<compile_context>
chip_gen: v7x
topology: tpu7x:2x2x1
jax: 0.10.0
libtpu: 0.0.40
codegen_flags: <defaults>
</compile_context>

<pallas_src>
import functools

import jax
import jax.numpy as jnp
from jax import lax
from jax.experimental import pallas as pl
from jax.experimental.pallas import tpu as pltpu

# --- fixed module constants -------------------------------------------------
D_MID = 8192            # middle-feature dim of the frozen PNR backbone
T_FRAMES = 16           # frame axis reduced by pnr_feat.mean(dim=1)
D_CAT = 2 * D_MID       # fc1 input dim: torch.cat((pnr_feat, pnr_feat), dim=1)
D_HID = 512             # fc1 output dim
NUM_CLASSES = 16        # self.num_classes


# ---------------------------------------------------------------------------
# Single fused kernel: mean over frames + (implicit) self-cat + fc1 + bias +
# ReLU + fc2 + bias.  Grid is the K (=16384) reduction axis of fc1, with an
# output-resident fp32 accumulator for the hidden layer in VMEM scratch.
# ---------------------------------------------------------------------------
def _finetune_head_kernel(x_ref, w1_ref, b1_ref, w2_ref, b2_ref, o_ref, h_acc):
    k = pl.program_id(0)

    @pl.when(k == 0)
    def _():
        h_acc[...] = jnp.zeros_like(h_acc)

    # pnr_feat.mean(dim=1), restricted to this K-slice of the feature dim.
    x = x_ref[...]                                        # (B, T, tk) f32
    m = jnp.sum(x, axis=1) * (1.0 / x.shape[1])           # (B, tk) f32

    # fc1 partial product: bf16 operands on the MXU, f32 accumulate.
    h_acc[...] += jnp.dot(m.astype(jnp.bfloat16), w1_ref[...],
                          preferred_element_type=jnp.float32)

    @pl.when(k == pl.num_programs(0) - 1)
    def _():
        hidden = jnp.maximum(h_acc[...] + b1_ref[...], 0.0)          # ReLU(fc1)
        o_ref[...] = jnp.dot(hidden, w2_ref[...],
                             preferred_element_type=jnp.float32) + b2_ref[...]


def finetune_keyframe_head(pnr_feat, w1, b1, w2, b2, *, tk=4096):
    """pnr_feat: (B, T, 8192) f32 middle features of the frozen PNR backbone.
    w1: (16384, 512) bf16 (= fc1.weight.T), b1: (1, 512) f32,
    w2: (512, 16) f32 (= fc2.weight.T),     b2: (1, 16) f32.
    Returns logits of shape (B, 16) f32."""
    b, t, d_mid = pnr_feat.shape
    assert d_mid == D_MID and w1.shape == (D_CAT, D_HID)
    assert D_MID % tk == 0 and tk <= D_MID
    n_half = D_MID // tk            # K tiles per half of the concatenated input
    n_k = D_CAT // tk               # total K tiles over fc1's 16384 input dim

    return pl.pallas_call(
        _finetune_head_kernel,
        out_shape=jax.ShapeDtypeStruct((b, NUM_CLASSES), jnp.float32),
        grid=(n_k,),
        in_specs=[
            # Same mean slice re-used for both halves of W1 == cat((m, m), dim=1).
            pl.BlockSpec((b, t, tk), lambda k, nh=n_half: (0, 0, k % nh)),
            pl.BlockSpec((tk, D_HID), lambda k: (k, 0)),
            pl.BlockSpec((1, D_HID), lambda k: (0, 0)),
            pl.BlockSpec((D_HID, NUM_CLASSES), lambda k: (0, 0)),
            pl.BlockSpec((1, NUM_CLASSES), lambda k: (0, 0)),
        ],
        out_specs=pl.BlockSpec((b, NUM_CLASSES), lambda k: (0, 0)),
        scratch_shapes=[pltpu.VMEM((b, D_HID), jnp.float32)],
        compiler_params=pltpu.CompilerParams(
            dimension_semantics=("arbitrary",),      # K is a reduction axis
            vmem_limit_bytes=32 * 1024 * 1024),
    )(pnr_feat, w1, b1, w2, b2)


# ---------------------------------------------------------------------------
# Parameters (deterministic, synthetic).  Layout: x @ W (transposed vs torch).
# ---------------------------------------------------------------------------
def init_params(key):
    k1, k2 = jax.random.split(key)
    w1 = (0.02 * jax.random.normal(k1, (D_CAT, D_HID), dtype=jnp.float32)
          ).astype(jnp.bfloat16)                     # fc1.weight.T, bf16 in HBM
    b1 = jnp.zeros((1, D_HID), jnp.float32)
    w2 = 0.02 * jax.random.normal(k2, (D_HID, NUM_CLASSES), dtype=jnp.float32)
    b2 = jnp.zeros((1, NUM_CLASSES), jnp.float32)
    return {"w1": w1, "b1": b1, "w2": w2, "b2": b2}


# ---------------------------------------------------------------------------
# Forward pass
# ---------------------------------------------------------------------------
def forward(params, pnr_feat):
    # TODO(synk): pnr_model(x, middle=True) (frozen ResNet) runs outside; this
    # consumes its middle features directly.
    logits = finetune_keyframe_head(
        pnr_feat, params["w1"], params["b1"], params["w2"], params["b2"])
    return logits[:, None, :]        # out.unsqueeze(1) -> (B, 1, num_classes)


def _reference(params, pnr_feat):
    """Pure-JAX reference of the same math (bf16 fc1 inputs, f32 accumulate)."""
    m = jnp.mean(pnr_feat, axis=1)                              # (B, 8192)
    feat = jnp.concatenate([m, m], axis=1).astype(jnp.bfloat16)  # (B, 16384)
    w1f = params["w1"].astype(jnp.float32)
    h = jnp.dot(feat.astype(jnp.float32), w1f,
                precision=lax.Precision.HIGHEST) + params["b1"]
    h = jnp.maximum(h, 0.0)
    out = jnp.dot(h, params["w2"],
                  precision=lax.Precision.HIGHEST) + params["b2"]
    return out[:, None, :]


if __name__ == "__main__":
    B = 2

    key = jax.random.PRNGKey(0)
    kx, kp = jax.random.split(key)

    # middle features produced by the frozen KeyframeLocalizationResNet backbone
    pnr_feat = jax.random.normal(kx, (B, T_FRAMES, D_MID), dtype=jnp.float32)
    params = init_params(kp)

    out = jax.block_until_ready(forward(params, pnr_feat))
    assert out.shape == (B, 1, NUM_CLASSES), out.shape
    assert bool(jnp.all(jnp.isfinite(out)))

    ref = jax.block_until_ready(_reference(params, pnr_feat))
    assert bool(jnp.allclose(out, ref, rtol=2e-2, atol=2e-2)), (
        float(jnp.max(jnp.abs(out - ref))))

    print("KERNEL_OK")
</pallas_src>

<mosaic_0001>
module attributes {stable_mosaic.version = 11 : i64} {
  func.func @_finetune_head_kernel(%arg0: i32, %arg1: memref<2x16x4096xf32, #tpu.memory_space<vmem>>, %arg2: memref<4096x512xbf16, #tpu.memory_space<vmem>>, %arg3: memref<1x512xf32, #tpu.memory_space<vmem>>, %arg4: memref<512x16xf32, #tpu.memory_space<vmem>>, %arg5: memref<1x16xf32, #tpu.memory_space<vmem>>, %arg6: memref<2x16xf32, #tpu.memory_space<vmem>>, %arg7: memref<2x512xf32, #tpu.memory_space<vmem>>) attributes {dimension_semantics = [#tpu.dimension_semantics<arbitrary>], iteration_bounds = array<i64: 4>, scalar_prefetch = 0 : i64, scratch_operands = 1 : i64, tpu.core_type = #tpu.core_type<tc>, window_params = [{transform_indices = @transform_0, window_bounds = array<i64: 2, 16, 4096>}, {transform_indices = @transform_1, window_bounds = array<i64: 4096, 512>}, {pipeline_mode = #tpu.pipeline_mode<synchronous>, transform_indices = @transform_2, window_bounds = array<i64: 1, 512>}, {pipeline_mode = #tpu.pipeline_mode<synchronous>, transform_indices = @transform_3, window_bounds = array<i64: 512, 16>}, {pipeline_mode = #tpu.pipeline_mode<synchronous>, transform_indices = @transform_4, window_bounds = array<i64: 1, 16>}, {pipeline_mode = #tpu.pipeline_mode<synchronous>, transform_indices = @transform_5, window_bounds = array<i64: 2, 16>}]} {
    %c0_i32 = arith.constant 0 : i32
    %0 = arith.cmpi eq, %arg0, %c0_i32 : i32
    %1 = arith.extui %0 : i1 to i32
    %c0_i32_0 = arith.constant 0 : i32
    %2 = arith.cmpi ne, %1, %c0_i32_0 : i32
    scf.if %2 {
      %cst_12 = arith.constant 0.000000e+00 : f32
      %16 = vector.broadcast %cst_12 : f32 to vector<2x512xf32>
      %c0_13 = arith.constant 0 : index
      %c0_14 = arith.constant 0 : index
      %17 = vector.load %arg7[%c0_13, %c0_14] : memref<2x512xf32, #tpu.memory_space<vmem>>, vector<2x512xf32>
      tpu.vector_store %arg7[%c0_13, %c0_14], %16 {strides = array<i32>} : memref<2x512xf32, #tpu.memory_space<vmem>>, vector<2x512xf32>,
    } else {
    }
    %c0 = arith.constant 0 : index
    %c0_1 = arith.constant 0 : index
    %c0_2 = arith.constant 0 : index
    %3 = vector.load %arg1[%c0, %c0_1, %c0_2] : memref<2x16x4096xf32, #tpu.memory_space<vmem>>, vector<2x16x4096xf32>
    %cst = arith.constant dense<0.000000e+00> : vector<2x4096xf32>
    %4 = vector.multi_reduction <add>, %3, %cst [1] : vector<2x16x4096xf32> to vector<2x4096xf32>
    %cst_3 = arith.constant 6.250000e-02 : f32
    %5 = vector.broadcast %cst_3 : f32 to vector<2x4096xf32>
    %6 = arith.mulf %4, %5 : vector<2x4096xf32>
    %c0_4 = arith.constant 0 : index
    %c0_5 = arith.constant 0 : index
    %7 = vector.load %arg7[%c0_4, %c0_5] : memref<2x512xf32, #tpu.memory_space<vmem>>, vector<2x512xf32>
    %8 = arith.truncf %6 : vector<2x4096xf32> to vector<2x4096xbf16>
    %c0_6 = arith.constant 0 : index
    %c0_7 = arith.constant 0 : index
    %9 = vector.load %arg2[%c0_6, %c0_7] : memref<4096x512xbf16, #tpu.memory_space<vmem>>, vector<4096x512xbf16>
    %cst_8 = arith.constant dense<0.000000e+00> : vector<2x512xf32>
    %10 = tpu.matmul %8, %9, %cst_8 {dimension_numbers = #tpu.dot_dimension_numbers<[1], [0], [0], [1], [0, 0, 1, 1], [], []>} : vector<2x4096xbf16>, vector<4096x512xbf16>, vector<2x512xf32> -> vector<2x512xf32>
    %11 = arith.addf %7, %10 : vector<2x512xf32>
    %c0_9 = arith.constant 0 : index
    %c0_10 = arith.constant 0 : index
    %12 = vector.load %arg7[%c0_9, %c0_10] : memref<2x512xf32, #tpu.memory_space<vmem>>, vector<2x512xf32>
    tpu.vector_store %arg7[%c0_9, %c0_10], %11 {strides = array<i32>} : memref<2x512xf32, #tpu.memory_space<vmem>>, vector<2x512xf32>,
    %c3_i32 = arith.constant 3 : i32
    %13 = arith.cmpi eq, %arg0, %c3_i32 : i32
    %14 = arith.extui %13 : i1 to i32
    %c0_i32_11 = arith.constant 0 : i32
    %15 = arith.cmpi ne, %14, %c0_i32_11 : i32
    scf.if %15 {
      %c0_12 = arith.constant 0 : index
      %c0_13 = arith.constant 0 : index
      %16 = vector.load %arg7[%c0_12, %c0_13] : memref<2x512xf32, #tpu.memory_space<vmem>>, vector<2x512xf32>
      %c0_14 = arith.constant 0 : index
      %c0_15 = arith.constant 0 : index
      %17 = vector.load %arg3[%c0_14, %c0_15] : memref<1x512xf32, #tpu.memory_space<vmem>>, vector<1x512xf32>
      %18 = vector.broadcast %17 : vector<1x512xf32> to vector<2x512xf32>
      %19 = arith.addf %16, %18 : vector<2x512xf32>
      %cst_16 = arith.constant 0.000000e+00 : f32
      %20 = vector.broadcast %cst_16 : f32 to vector<2x512xf32>
      %21 = arith.maximumf %19, %20 : vector<2x512xf32>
      %c0_17 = arith.constant 0 : index
      %c0_18 = arith.constant 0 : index
      %22 = vector.load %arg4[%c0_17, %c0_18] : memref<512x16xf32, #tpu.memory_space<vmem>>, vector<512x16xf32>
      %cst_19 = arith.constant dense<0.000000e+00> : vector<2x16xf32>
      %23 = tpu.matmul %21, %22, %cst_19 {dimension_numbers = #tpu.dot_dimension_numbers<[1], [0], [0], [1], [0, 0, 1, 1], [], []>} : vector<2x512xf32>, vector<512x16xf32>, vector<2x16xf32> -> vector<2x16xf32>
      %c0_20 = arith.constant 0 : index
      %c0_21 = arith.constant 0 : index
      %24 = vector.load %arg5[%c0_20, %c0_21] : memref<1x16xf32, #tpu.memory_space<vmem>>, vector<1x16xf32>
      %25 = vector.broadcast %24 : vector<1x16xf32> to vector<2x16xf32>
      %26 = arith.addf %23, %25 : vector<2x16xf32>
      %c0_22 = arith.constant 0 : index
      %c0_23 = arith.constant 0 : index
      %27 = vector.load %arg6[%c0_22, %c0_23] : memref<2x16xf32, #tpu.memory_space<vmem>>, vector<2x16xf32>
      tpu.vector_store %arg6[%c0_22, %c0_23], %26 {strides = array<i32>} : memref<2x16xf32, #tpu.memory_space<vmem>>, vector<2x16xf32>,
    } else {
    }
    return
  }
  func.func @transform_0(%arg0: i32) -> (i32, i32, i32) {
    %c2_i32 = arith.constant 2 : i32
    %c0_i32 = arith.constant 0 : i32
    %0 = arith.cmpi eq, %c2_i32, %c0_i32 : i32
    %c1_i32 = arith.constant 1 : i32
    %1 = arith.select %0, %c1_i32, %c2_i32 : i32
    %2 = arith.remsi %arg0, %1 : i32
    %c0_i32_0 = arith.constant 0 : i32
    %3 = arith.cmpi ne, %2, %c0_i32_0 : i32
    %c0_i32_1 = arith.constant 0 : i32
    %4 = arith.cmpi slt, %2, %c0_i32_1 : i32
    %c0_i32_2 = arith.constant 0 : i32
    %5 = arith.cmpi slt, %1, %c0_i32_2 : i32
    %6 = arith.xori %4, %5 : i1
    %7 = arith.andi %6, %3 : i1
    %8 = arith.addi %2, %1 : i32
    %9 = arith.select %7, %8, %2 : i32
    %c0_i32_3 = arith.constant 0 : i32
    %c0_i32_4 = arith.constant 0 : i32
    %c0_i32_5 = arith.constant 0 : i32
    return %c0_i32_3, %c0_i32_4, %9 : i32, i32, i32
  }
  func.func @transform_1(%arg0: i32) -> (i32, i32) {
    %c0_i32 = arith.constant 0 : i32
    %c0_i32_0 = arith.constant 0 : i32
    return %arg0, %c0_i32 : i32, i32
  }
  func.func @transform_2(%arg0: i32) -> (i32, i32) {
    %c0_i32 = arith.constant 0 : i32
    %c0_i32_0 = arith.constant 0 : i32
    %c0_i32_1 = arith.constant 0 : i32
    return %c0_i32, %c0_i32_0 : i32, i32
  }
  func.func @transform_3(%arg0: i32) -> (i32, i32) {
    %c0_i32 = arith.constant 0 : i32
    %c0_i32_0 = arith.constant 0 : i32
    %c0_i32_1 = arith.constant 0 : i32
    return %c0_i32, %c0_i32_0 : i32, i32
  }
  func.func @transform_4(%arg0: i32) -> (i32, i32) {
    %c0_i32 = arith.constant 0 : i32
    %c0_i32_0 = arith.constant 0 : i32
    %c0_i32_1 = arith.constant 0 : i32
    return %c0_i32, %c0_i32_0 : i32, i32
  }
  func.func @transform_5(%arg0: i32) -> (i32, i32) {
    %c0_i32 = arith.constant 0 : i32
    %c0_i32_0 = arith.constant 0 : i32
    %c0_i32_1 = arith.constant 0 : i32
    return %c0_i32, %c0_i32_0 : i32, i32
  }
}

</mosaic_0001>

<llo_original>
// kernel: tpu_custom_call.1
$region0: #{tpu_custom_call.1}
  #allocation0 [shape = 'u32[]', space=smem, size = 0x4, offset = 0x4, fixed_abs, tag = 'smem constant byte address 0x4 - core index']
  #allocation1 [shape = 'u32[144,128]{1,0:T(1,128)}', space=vmem, size = 0x12000, scoped, tag = 'internal scratch']
  #allocation2 [shape = 'f32[2,512]{1,0:T(2,128)}', space=vmem, size = 0x1000, scoped, tag = 'scratch operand']
  %s0 = inlined_call_operand.hbm [shape: f32[2,16,8192], index: 0, kind: input, shape index: {}]
  %s1 = inlined_call_operand.hbm [shape: bf16[16384,512], index: 1, kind: input, shape index: {}]
  %s2 = inlined_call_operand.hbm [shape: f32[1,512], index: 2, kind: input, shape index: {}]
  %s3 = inlined_call_operand.vmem [shape: f32[512,16], index: 3, kind: input, shape index: {}]
  %s4 = inlined_call_operand.hbm [shape: f32[1,16], index: 4, kind: input, shape index: {}]
  %s5 = inlined_call_operand.hbm [shape: f32[2,16], index: 5, kind: output, shape index: {}]
  %s6 = sld [smem:[#allocation0]]
  $region77: #{tpu_custom_call.1} parent=0
    _
  %s8 = ssub.s32 1, %s6
  %s9 = scalar_select 0, %s8, %s6
  $region1: #{tpu_custom_call.1} parent=0
    #allocation3 [shape = 'u8[1048576]{0}', space=vmem, size = 0x100000, scoped, tag = 'input window, operand 0']
    #allocation4 [shape = 's32[2]{0}', space=sflag, size = 0x8, scoped, tag = 'scoped memory for tpu_custom_call.1']
    #allocation5 [shape = 's32[2]{0}', space=sflag, size = 0x8, scoped, tag = 'scoped memory for tpu_custom_call.1']
    #allocation6 [shape = 'u8[8388608]{0}', space=vmem, size = 0x800000, scoped, tag = 'input window, operand 1']
    #allocation7 [shape = 's32[2]{0}', space=sflag, size = 0x8, scoped, tag = 'scoped memory for tpu_custom_call.1']
    #allocation8 [shape = 'u8[2048]{0}', space=vmem, size = 0x800, scoped, tag = 'input window, operand 2, single buffered']
    #allocation9 [shape = 'u8[512]{0}', space=vmem, size = 0x400, scoped, tag = 'input window, operand 4, single buffered']
    #allocation10 [shape = 's32[1]{0}', space=sflag, size = 0x4, scoped, tag = 'scoped memory for tpu_custom_call.1']
    #allocation11 [shape = 'u8[1024]{0}', space=vmem, size = 0x400, scoped, tag = 'output window, operand 0, single buffered']
    %10 = vsyncpa [#allocation4], 0
    %s11 = scalar_lea.sflag [#allocation4], 1
    %12 = vsyncpa %s11, 0
    %13 = vsyncpa [#allocation7], 0
    %s14 = scalar_lea.sflag [#allocation7], 1
    %15 = vsyncpa %s14, 0
    %16 = vsyncpa [#allocation10], 0
    %17 = vsyncpa [#allocation5], 0
    loop: start=0, step=1, limit=6
    $region2: #{tpu_custom_call.1} parent=1 // loop_pre_header
      _
    $region3: #{tpu_custom_call.1} parent=1 // loop_header
      %s19 = sphi 0, %s23
      %p20 = scmp.ge.s32.totalorder %s19, 6
      %s53 = sphi 0, %s55
      %s56 = sphi 0, %s53
      %s57 = sphi 0, %s56
      %s73 = sphi 0, %s57
      %s79 = sphi 0, %s81
      %s82 = sphi 0, %s79
      %s83 = sphi 0, %s82
      %s99 = sphi 0, %s83
      %s103 = sphi 0, %s103
      %s105 = sphi 0, %s103
      %s106 = sphi 0, %s105
      %s120 = sphi 0, %s106
      %s124 = sphi 0, %s124
      %s126 = sphi 0, %s124
      %s127 = sphi 0, %s126
      %s141 = sphi 0, %s127
      %s145 = sphi 0, %s145
      %s147 = sphi 0, %s145
      %s148 = sphi 0, %s147
      %s162 = sphi 0, %s148
      %s166 = sphi 0, %s166
      %s168 = sphi 0, %s166
      %s169 = sphi 0, %s168
      %s183 = sphi 0, %s169
    $region4: #{tpu_custom_call.1} parent=1 // loop_header_branch
      %22 = sbr.rel (%p20) target = $region8
    $region5: #{tpu_custom_call.1} parent=1 // loop_body
      %s24 = ssub.s32 %s19, 1
      %s25 = ssub.s32 %s19, 2
      %s26 = sadd.s32 %s19, 1
      %p27 = scmp.lt.s32.totalorder %s19, 0
      %s28 = ssub.s32 0, %s19
      %s29 = scalar_select %p27, %s28, %s19
      %s30 = sand.u32 %s29, 1
      %s31 = ssub.s32 0, %s30
      %s32 = scalar_select %p27, %s31, %s30
      %p33 = scmp.ne.s32.totalorder %s32, 0
      %p34 = scmp.lt.s32.totalorder %s32, 0
      %p35 = pnand %p34, %p33
      %p36 = pneg %p35
      %s37 = sadd.s32 %s32, 2
      %s38 = scalar_select %p36, %s37, %s32
      %p39 = scmp.lt.s32.totalorder %s26, 0
      %s40 = ssub.s32 0, %s26
      %s41 = scalar_select %p39, %s40, %s26
      %s42 = sand.u32 %s41, 1
      %s43 = ssub.s32 0, %s42
      %s44 = scalar_select %p39, %s43, %s42
      %p45 = scmp.ne.s32.totalorder %s44, 0
      %p46 = scmp.lt.s32.totalorder %s44, 0
      %p47 = pnand %p46, %p45
      %p48 = pneg %p47
      %s49 = sadd.s32 %s44, 2
      %s50 = scalar_select %p48, %s49, %s44
      %s51 = ssub.s32 %s38, %s50
      %p52 = scmp.eq.s32.totalorder %s51, 0
      %s54 = sadd.s32 %s53, 1
      %s55 = scalar_select %p52, %s53, %s54
      %p58 = pneg %p52
      %p59 = scmp.eq.s32.totalorder %s19, 3
      %p60 = por %p58, %p59
      %p61 = scmp.ne.s32.totalorder %s53, %s56
      %p62 = scmp.eq.s32.totalorder %s19, 0
      %p63 = por %p61, %p62
      %p64 = scmp.ne.s32.totalorder %s53, %s56
      %p65 = scmp.eq.s32.totalorder %s24, 3
      %p66 = por %p64, %p65
      %p67 = scmp.ne.s32.totalorder %s56, %s57
      %p68 = scmp.eq.s32.totalorder %s24, 0
      %p69 = por %p67, %p68
      %p70 = scmp.ne.s32.totalorder %s56, %s57
      %p71 = scmp.eq.s32.totalorder %s25, 3
      %p72 = por %p70, %p71
      %p74 = scmp.ne.s32.totalorder %s57, %s73
      %p75 = scmp.eq.s32.totalorder %s25, 0
      %p76 = por %p74, %p75
      %s77 = ssub.s32 %s19, %s26
      %p78 = scmp.eq.s32.totalorder %s77, 0
      %s80 = sadd.s32 %s79, 1
      %s81 = scalar_select %p78, %s79, %s80
      %p84 = pneg %p78
      %p85 = scmp.eq.s32.totalorder %s19, 3
      %p86 = por %p84, %p85
      %p87 = scmp.ne.s32.totalorder %s79, %s82
      %p88 = scmp.eq.s32.totalorder %s19, 0
      %p89 = por %p87, %p88
      %p90 = scmp.ne.s32.totalorder %s79, %s82
      %p91 = scmp.eq.s32.totalorder %s24, 3
      %p92 = por %p90, %p91
      %p93 = scmp.ne.s32.totalorder %s82, %s83
      %p94 = scmp.eq.s32.totalorder %s24, 0
      %p95 = por %p93, %p94
      %p96 = scmp.ne.s32.totalorder %s82, %s83
      %p97 = scmp.eq.s32.totalorder %s25, 3
      %p98 = por %p96, %p97
      %p100 = scmp.ne.s32.totalorder %s83, %s99
      %p101 = scmp.eq.s32.totalorder %s25, 0
      %p102 = por %p100, %p101
      %s104 = sadd.s32 %s103, 1
      %p107 = scmp.eq.s32.totalorder %s19, 3
      %p108 = scmp.ne.s32.totalorder %s103, %s105
      %p109 = scmp.eq.s32.totalorder %s19, 0
      %p110 = por %p108, %p109
      %p111 = scmp.ne.s32.totalorder %s103, %s105
      %p112 = scmp.eq.s32.totalorder %s24, 3
      %p113 = por %p111, %p112
      %p114 = scmp.ne.s32.totalorder %s105, %s106
      %p115 = scmp.eq.s32.totalorder %s24, 0
      %p116 = por %p114, %p115
      %p117 = scmp.ne.s32.totalorder %s105, %s106
      %p118 = scmp.eq.s32.totalorder %s25, 3
      %p119 = por %p117, %p118
      %p121 = scmp.ne.s32.totalorder %s106, %s120
      %p122 = scmp.eq.s32.totalorder %s25, 0
      %p123 = por %p121, %p122
      %s125 = sadd.s32 %s124, 1
      %p128 = scmp.eq.s32.totalorder %s19, 3
      %p129 = scmp.ne.s32.totalorder %s124, %s126
      %p130 = scmp.eq.s32.totalorder %s19, 0
      %p131 = por %p129, %p130
      %p132 = scmp.ne.s32.totalorder %s124, %s126
      %p133 = scmp.eq.s32.totalorder %s24, 3
      %p134 = por %p132, %p133
      %p135 = scmp.ne.s32.totalorder %s126, %s127
      %p136 = scmp.eq.s32.totalorder %s24, 0
      %p137 = por %p135, %p136
      %p138 = scmp.ne.s32.totalorder %s126, %s127
      %p139 = scmp.eq.s32.totalorder %s25, 3
      %p140 = por %p138, %p139
      %p142 = scmp.ne.s32.totalorder %s127, %s141
      %p143 = scmp.eq.s32.totalorder %s25, 0
      %p144 = por %p142, %p143
      %s146 = sadd.s32 %s145, 1
      %p149 = scmp.eq.s32.totalorder %s19, 3
      %p150 = scmp.ne.s32.totalorder %s145, %s147
      %p151 = scmp.eq.s32.totalorder %s19, 0
      %p152 = por %p150, %p151
      %p153 = scmp.ne.s32.totalorder %s145, %s147
      %p154 = scmp.eq.s32.totalorder %s24, 3
      %p155 = por %p153, %p154
      %p156 = scmp.ne.s32.totalorder %s147, %s148
      %p157 = scmp.eq.s32.totalorder %s24, 0
      %p158 = por %p156, %p157
      %p159 = scmp.ne.s32.totalorder %s147, %s148
      %p160 = scmp.eq.s32.totalorder %s25, 3
      %p161 = por %p159, %p160
      %p163 = scmp.ne.s32.totalorder %s148, %s162
      %p164 = scmp.eq.s32.totalorder %s25, 0
      %p165 = por %p163, %p164
      %s167 = sadd.s32 %s166, 1
      %p170 = scmp.eq.s32.totalorder %s19, 3
      %p171 = scmp.ne.s32.totalorder %s166, %s168
      %p172 = scmp.eq.s32.totalorder %s19, 0
      %p173 = por %p171, %p172
      %p174 = scmp.ne.s32.totalorder %s166, %s168
      %p175 = scmp.eq.s32.totalorder %s24, 3
      %p176 = por %p174, %p175
      %p177 = scmp.ne.s32.totalorder %s168, %s169
      %p178 = scmp.eq.s32.totalorder %s24, 0
      %p179 = por %p177, %p178
      %p180 = scmp.ne.s32.totalorder %s168, %s169
      %p181 = scmp.eq.s32.totalorder %s25, 3
      %p182 = por %p180, %p181
      %p184 = scmp.ne.s32.totalorder %s169, %s183
      %p185 = scmp.eq.s32.totalorder %s25, 0
      %p186 = por %p184, %p185
      %p187 = scmp.le.s32.totalorder 1, %s19
      %p188 = scmp.lt.s32.totalorder %s19, 5
      %p189 = pnand %p187, %p188
      %p190 = pneg %p189
      // Predicated region
      $region9: #{tpu_custom_call.1} parent=5 // pred_check
        _
      $region10: #{tpu_custom_call.1} parent=5 // pred_check_branch
        %192 = sbr.rel (%p189) target = $region12
      $region11: #{tpu_custom_call.1} parent=5 // pred_region
        %s193 = ssub.s32 %s19, 1
        // Predicated region
        $region13: #{tpu_custom_call.1} parent=11 // pred_check
          %p194 = pneg %p116
        $region14: #{tpu_custom_call.1} parent=11 // pred_check_branch
          %196 = sbr.rel (%p194) target = $region16
        $region15: #{tpu_custom_call.1} parent=11 // pred_region
          %s198 = ssub.s32 64, 64
          %199 = vsyncadd [#allocation7], %s198
          %s201 = sshll.u32 [#allocation8], 4
          %s202 = int_to_ptr.vmem [resolvable:$true] %s201
          %204 = dma.hbm_to_vmem [thread:$0]  %s2, 64, %s202, [#allocation7]
        $region16: #{tpu_custom_call.1} parent=11 // pred_fallthru
          _
        // Predicated region
        $region17: #{tpu_custom_call.1} parent=11 // pred_check
          %p205 = pneg %p137
        $region18: #{tpu_custom_call.1} parent=11 // pred_check_branch
          %207 = sbr.rel (%p205) target = $region20
        $region19: #{tpu_custom_call.1} parent=11 // pred_region
          _
        $region20: #{tpu_custom_call.1} parent=11 // pred_fallthru
          _
        // Predicated region
        $region21: #{tpu_custom_call.1} parent=11 // pred_check
          %p208 = pneg %p158
        $region22: #{tpu_custom_call.1} parent=11 // pred_check_branch
          %210 = sbr.rel (%p208) target = $region24
        $region23: #{tpu_custom_call.1} parent=11 // pred_region
          %s212 = ssub.s32 16, 16
          %213 = vsyncadd [#allocation10], %s212
          %s215 = sshll.u32 [#allocation9], 4
          %s216 = int_to_ptr.vmem [resolvable:$true] %s215
          %218 = dma.hbm_to_vmem [thread:$0]  %s4, 16, %s216, [#allocation10]
        $region24: #{tpu_custom_call.1} parent=11 // pred_fallthru
          _
      $region12: #{tpu_custom_call.1} parent=5 // pred_fallthru
        _
      %p219 = scmp.lt.s32.totalorder %s19, 4
      // Predicated region
      $region25: #{tpu_custom_call.1} parent=5 // pred_check
        %p220 = pneg %p219
      $region26: #{tpu_custom_call.1} parent=5 // pred_check_branch
        %222 = sbr.rel (%p220) target = $region28
      $region27: #{tpu_custom_call.1} parent=5 // pred_region
        // Predicated region
        $region29: #{tpu_custom_call.1} parent=27 // pred_check
          %p223 = pneg %p63
        $region30: #{tpu_custom_call.1} parent=27 // pred_check_branch
          %225 = sbr.rel (%p223) target = $region32
        $region31: #{tpu_custom_call.1} parent=27 // pred_region
          %s226 = sand.u32 %s53, 1
          %s227 = scalar_lea.sflag [#allocation4], %s226
          %s228 = sand.u32 %s53, 1
          %s229 = smul.addr %s228, 1024
          %s230 = scalar_lea.vmem [#allocation3], %s229
          %p231 = scmp.lt.s32.totalorder %s19, 0
          %s232 = ssub.s32 0, %s19
          %s233 = scalar_select %p231, %s232, %s19
          %s234 = sand.u32 %s233, 1
          %s235 = ssub.s32 0, %s234
          %s236 = scalar_select %p231, %s235, %s234
          %p237 = scmp.ne.s32.totalorder %s236, 0
          %p238 = scmp.lt.s32.totalorder %s236, 0
          %p239 = pnand %p238, %p237
          %p240 = pneg %p239
          %s241 = sadd.s32 %s236, 2
          %s242 = scalar_select %p240, %s241, %s236
          %s243 = smul.u32 32, %s242
          %s245 = ssub.s32 16384, 16384
          %246 = vsyncadd %s227, %s245
          %s247 = smul.addr %s243, 128
          %s248 = scalar_lea.hbm %s0, %s247
          %s249 = sshll.u32 %s230, 4
          %s250 = int_to_ptr.vmem [resolvable:$true] %s249
          %255 = dma.hbm_to_vmem [thread:$0]  %s248, 16384, %s250, %s227, 8192, 4096, 256
        $region32: #{tpu_custom_call.1} parent=27 // pred_fallthru
          _
        // Predicated region
        $region33: #{tpu_custom_call.1} parent=27 // pred_check
          %p256 = pneg %p89
        $region34: #{tpu_custom_call.1} parent=27 // pred_check_branch
          %258 = sbr.rel (%p256) target = $region36
        $region35: #{tpu_custom_call.1} parent=27 // pred_region
          %s259 = sand.u32 %s19, 1
          %s260 = scalar_lea.sflag [#allocation7], %s259
          %s261 = sand.u32 %s79, 1
          %s262 = smul.addr %s261, 8192
          %s263 = scalar_lea.vmem [#allocation6], %s262
          %s264 = smul.u32 512, %s19
          %s266 = ssub.s32 131072, 131072
          %267 = vsyncadd %s260, %s266
          %s268 = smul.addr %s264, 4
          %s269 = smul.addr %s268, 64
          %s270 = scalar_lea.hbm %s1, %s269
          %s271 = sshll.u32 %s263, 4
          %s272 = int_to_ptr.vmem [resolvable:$true] %s271
          %277 = dma.hbm_to_vmem [thread:$0]  %s270, 131072, %s272, %s260, 256, 256, 16
        $region36: #{tpu_custom_call.1} parent=27 // pred_fallthru
          _
      $region28: #{tpu_custom_call.1} parent=5 // pred_fallthru
        _
      %p278 = scmp.le.s32.totalorder 1, %s19
      %p279 = scmp.lt.s32.totalorder %s19, 5
      %p280 = pnand %p278, %p279
      %p281 = pneg %p280
      // Predicated region
      $region37: #{tpu_custom_call.1} parent=5 // pred_check
        _
      $region38: #{tpu_custom_call.1} parent=5 // pred_check_branch
        %283 = sbr.rel (%p280) target = $region40
      $region39: #{tpu_custom_call.1} parent=5 // pred_region
        %s284 = ssub.s32 %s19, 1
        %s285 = sand.u32 %s56, 1
        %s286 = scalar_lea.sflag [#allocation4], %s285
        %s287 = sand.u32 %s56, 1
        %s288 = smul.addr %s287, 1024
        %s289 = scalar_lea.vmem [#allocation3], %s288
        // Predicated region
        $region41: #{tpu_custom_call.1} parent=39 // pred_check
          %p290 = pneg %p69
        $region42: #{tpu_custom_call.1} parent=39 // pred_check_branch
          %292 = sbr.rel (%p290) target = $region44
        $region43: #{tpu_custom_call.1} parent=39 // pred_region
          %293 = dma.done %s286, 16384
        $region44: #{tpu_custom_call.1} parent=39 // pred_fallthru
          _
        %s294 = sand.u32 %s24, 1
        %s295 = scalar_lea.sflag [#allocation7], %s294
        %s296 = sand.u32 %s82, 1
        %s297 = smul.addr %s296, 8192
        %s298 = scalar_lea.vmem [#allocation6], %s297
        // Predicated region
        $region45: #{tpu_custom_call.1} parent=39 // pred_check
          %p299 = pneg %p95
        $region46: #{tpu_custom_call.1} parent=39 // pred_check_branch
          %301 = sbr.rel (%p299) target = $region48
        $region47: #{tpu_custom_call.1} parent=39 // pred_region
          %302 = dma.done %s295, 131072
        $region48: #{tpu_custom_call.1} parent=39 // pred_fallthru
          _
        // Predicated region
        $region49: #{tpu_custom_call.1} parent=39 // pred_check
          %p303 = pneg %p116
        $region50: #{tpu_custom_call.1} parent=39 // pred_check_branch
          %305 = sbr.rel (%p303) target = $region52
        $region51: #{tpu_custom_call.1} parent=39 // pred_region
          %306 = dma.done [#allocation7], 64
        $region52: #{tpu_custom_call.1} parent=39 // pred_fallthru
          _
        // Predicated region
        $region53: #{tpu_custom_call.1} parent=39 // pred_check
          %p307 = pneg %p158
        $region54: #{tpu_custom_call.1} parent=39 // pred_check_branch
          %309 = sbr.rel (%p307) target = $region56
        $region55: #{tpu_custom_call.1} parent=39 // pred_region
          %310 = dma.done [#allocation10], 16
        $region56: #{tpu_custom_call.1} parent=39 // pred_fallthru
          _
        %s311 = sand.u32 %s56, 1
        %s312 = scalar_lea.sflag [#allocation4], %s311
        %s313 = sand.u32 %s56, 1
        %s314 = smul.addr %s313, 1024
        %s315 = scalar_lea.vmem [#allocation3], %s314
        %p316 = pneg %p69
        %p317 = pneg %p66
        %s318 = sand.u32 %s24, 1
        %s319 = scalar_lea.sflag [#allocation7], %s318
        %s320 = sand.u32 %s82, 1
        %s321 = smul.addr %s320, 8192
        %s322 = scalar_lea.vmem [#allocation6], %s321
        %p323 = pneg %p95
        %p324 = pneg %p92
        %p325 = pneg %p116
        %p326 = pneg %p113
        %p327 = pneg %p137
        %p328 = pneg %p134
        %p329 = pneg %p158
        %p330 = pneg %p155
        %p331 = pneg %p179
        %p332 = pneg %p176
        %p333 = scmp.lt.s32.totalorder %s24, 0
        %s334 = ssub.s32 0, %s24
        %s335 = scalar_select %p333, %s334, %s24
        %s336 = sand.u32 %s335, 1
        %s337 = ssub.s32 0, %s336
        %s338 = scalar_select %p333, %s337, %s336
        %p339 = scmp.ne.s32.totalorder %s338, 0
        %p340 = scmp.lt.s32.totalorder %s338, 0
        %p341 = pnand %p340, %p339
        %p342 = pneg %p341
        %s343 = sadd.s32 %s338, 2
        %s344 = scalar_select %p342, %s343, %s338
        %s345 = smul.u32 32, %s344
        %s346 = smul.u32 512, %s24
        %p347 = scmp.eq.s32.totalorder %s24, 0
        // Predicated region
        $region57: #{tpu_custom_call.1} parent=39 // pred_check
          %p348 = pneg %p347
        $region58: #{tpu_custom_call.1} parent=39 // pred_check_branch
          %350 = sbr.rel (%p348) target = $region60
        $region59: #{tpu_custom_call.1} parent=39 // pred_region
          %351 = vst [vmem:[#allocation2] sm:$0xff] 0.0
        $region60: #{tpu_custom_call.1} parent=39 // pred_fallthru
          _
        %v352 = vld [vmem:[%s289] sm:$0xff]
        %v353 = vld [vmem:[%s289 + $0x8] sm:$0xff]
        %v354 = vld [vmem:[%s289 + $0x10] sm:$0xff]
        %v355 = vld [vmem:[%s289 + $0x18] sm:$0xff]
        %v356 = vld [vmem:[%s289 + $0x20] sm:$0xff]
        %v357 = vld [vmem:[%s289 + $0x28] sm:$0xff]
        %v358 = vld [vmem:[%s289 + $0x30] sm:$0xff]
        %v359 = vld [vmem:[%s289 + $0x38] sm:$0xff]
        %v360 = vld [vmem:[%s289 + $0x40] sm:$0xff]
        %v361 = vld [vmem:[%s289 + $0x48] sm:$0xff]
        %v362 = vld [vmem:[%s289 + $0x50] sm:$0xff]
        %v363 = vld [vmem:[%s289 + $0x58] sm:$0xff]
        %v364 = vld [vmem:[%s289 + $0x60] sm:$0xff]
        %v365 = vld [vmem:[%s289 + $0x68] sm:$0xff]
        %v366 = vld [vmem:[%s289 + $0x70] sm:$0xff]
        %v367 = vld [vmem:[%s289 + $0x78] sm:$0xff]
        %v368 = vld [vmem:[%s289 + $0x80] sm:$0xff]
        %v369 = vld [vmem:[%s289 + $0x88] sm:$0xff]
        %v370 = vld [vmem:[%s289 + $0x90] sm:$0xff]
        %v371 = vld [vmem:[%s289 + $0x98] sm:$0xff]
        %v372 = vld [vmem:[%s289 + $0xa0] sm:$0xff]
        %v373 = vld [vmem:[%s289 + $0xa8] sm:$0xff]
        %v374 = vld [vmem:[%s289 + $0xb0] sm:$0xff]
        %v375 = vld [vmem:[%s289 + $0xb8] sm:$0xff]
        %v376 = vld [vmem:[%s289 + $0xc0] sm:$0xff]
        %v377 = vld [vmem:[%s289 + $0xc8] sm:$0xff]
        %v378 = vld [vmem:[%s289 + $0xd0] sm:$0xff]
        %v379 = vld [vmem:[%s289 + $0xd8] sm:$0xff]
        %v380 = vld [vmem:[%s289 + $0xe0] sm:$0xff]
        %v381 = vld [vmem:[%s289 + $0xe8] sm:$0xff]
        %v382 = vld [vmem:[%s289 + $0xf0] sm:$0xff]
        %v383 = vld [vmem:[%s289 + $0xf8] sm:$0xff]
        %v384 = vld [vmem:[%s289 + $0x100] sm:$0xff]
        %v385 = vld [vmem:[%s289 + $0x108] sm:$0xff]
        %v386 = vld [vmem:[%s289 + $0x110] sm:$0xff]
        %v387 = vld [vmem:[%s289 + $0x118] sm:$0xff]
        %v388 = vld [vmem:[%s289 + $0x120] sm:$0xff]
        %v389 = vld [vmem:[%s289 + $0x128] sm:$0xff]
        %v390 = vld [vmem:[%s289 + $0x130] sm:$0xff]
        %v391 = vld [vmem:[%s289 + $0x138] sm:$0xff]
        %v392 = vld [vmem:[%s289 + $0x140] sm:$0xff]
        %v393 = vld [vmem:[%s289 + $0x148] sm:$0xff]
        %v394 = vld [vmem:[%s289 + $0x150] sm:$0xff]
        %v395 = vld [vmem:[%s289 + $0x158] sm:$0xff]
        %v396 = vld [vmem:[%s289 + $0x160] sm:$0xff]
        %v397 = vld [vmem:[%s289 + $0x168] sm:$0xff]
        %v398 = vld [vmem:[%s289 + $0x170] sm:$0xff]
        %v399 = vld [vmem:[%s289 + $0x178] sm:$0xff]
        %v400 = vld [vmem:[%s289 + $0x180] sm:$0xff]
        %v401 = vld [vmem:[%s289 + $0x188] sm:$0xff]
        %v402 = vld [vmem:[%s289 + $0x190] sm:$0xff]
        %v403 = vld [vmem:[%s289 + $0x198] sm:$0xff]
        %v404 = vld [vmem:[%s289 + $0x1a0] sm:$0xff]
        %v405 = vld [vmem:[%s289 + $0x1a8] sm:$0xff]
        %v406 = vld [vmem:[%s289 + $0x1b0] sm:$0xff]
        %v407 = vld [vmem:[%s289 + $0x1b8] sm:$0xff]
        %v408 = vld [vmem:[%s289 + $0x1c0] sm:$0xff]
        %v409 = vld [vmem:[%s289 + $0x1c8] sm:$0xff]
        %v410 = vld [vmem:[%s289 + $0x1d0] sm:$0xff]
        %v411 = vld [vmem:[%s289 + $0x1d8] sm:$0xff]
        %v412 = vld [vmem:[%s289 + $0x1e0] sm:$0xff]
        %v413 = vld [vmem:[%s289 + $0x1e8] sm:$0xff]
        %v414 = vld [vmem:[%s289 + $0x1f0] sm:$0xff]
        %v415 = vld [vmem:[%s289 + $0x1f8] sm:$0xff]
        %v416 = vld [vmem:[%s289 + $0x200] sm:$0xff]
        %v417 = vld [vmem:[%s289 + $0x208] sm:$0xff]
        %v418 = vld [vmem:[%s289 + $0x210] sm:$0xff]
        %v419 = vld [vmem:[%s289 + $0x218] sm:$0xff]
        %v420 = vld [vmem:[%s289 + $0x220] sm:$0xff]
        %v421 = vld [vmem:[%s289 + $0x228] sm:$0xff]
        %v422 = vld [vmem:[%s289 + $0x230] sm:$0xff]
        %v423 = vld [vmem:[%s289 + $0x238] sm:$0xff]
        %v424 = vld [vmem:[%s289 + $0x240] sm:$0xff]
        %v425 = vld [vmem:[%s289 + $0x248] sm:$0xff]
        %v426 = vld [vmem:[%s289 + $0x250] sm:$0xff]
        %v427 = vld [vmem:[%s289 + $0x258] sm:$0xff]
        %v428 = vld [vmem:[%s289 + $0x260] sm:$0xff]
        %v429 = vld [vmem:[%s289 + $0x268] sm:$0xff]
        %v430 = vld [vmem:[%s289 + $0x270] sm:$0xff]
        %v431 = vld [vmem:[%s289 + $0x278] sm:$0xff]
        %v432 = vld [vmem:[%s289 + $0x280] sm:$0xff]
        %v433 = vld [vmem:[%s289 + $0x288] sm:$0xff]
        %v434 = vld [vmem:[%s289 + $0x290] sm:$0xff]
        %v435 = vld [vmem:[%s289 + $0x298] sm:$0xff]
        %v436 = vld [vmem:[%s289 + $0x2a0] sm:$0xff]
        %v437 = vld [vmem:[%s289 + $0x2a8] sm:$0xff]
        %v438 = vld [vmem:[%s289 + $0x2b0] sm:$0xff]
        %v439 = vld [vmem:[%s289 + $0x2b8] sm:$0xff]
        %v440 = vld [vmem:[%s289 + $0x2c0] sm:$0xff]
        %v441 = vld [vmem:[%s289 + $0x2c8] sm:$0xff]
        %v442 = vld [vmem:[%s289 + $0x2d0] sm:$0xff]
        %v443 = vld [vmem:[%s289 + $0x2d8] sm:$0xff]
        %v444 = vld [vmem:[%s289 + $0x2e0] sm:$0xff]
        %v445 = vld [vmem:[%s289 + $0x2e8] sm:$0xff]
        %v446 = vld [vmem:[%s289 + $0x2f0] sm:$0xff]
        %v447 = vld [vmem:[%s289 + $0x2f8] sm:$0xff]
        %v448 = vld [vmem:[%s289 + $0x300] sm:$0xff]
        %v449 = vld [vmem:[%s289 + $0x308] sm:$0xff]
        %v450 = vld [vmem:[%s289 + $0x310] sm:$0xff]
        %v451 = vld [vmem:[%s289 + $0x318] sm:$0xff]
        %v452 = vld [vmem:[%s289 + $0x320] sm:$0xff]
        %v453 = vld [vmem:[%s289 + $0x328] sm:$0xff]
        %v454 = vld [vmem:[%s289 + $0x330] sm:$0xff]
        %v455 = vld [vmem:[%s289 + $0x338] sm:$0xff]
        %v456 = vld [vmem:[%s289 + $0x340] sm:$0xff]
        %v457 = vld [vmem:[%s289 + $0x348] sm:$0xff]
        %v458 = vld [vmem:[%s289 + $0x350] sm:$0xff]
        %v459 = vld [vmem:[%s289 + $0x358] sm:$0xff]
        %v460 = vld [vmem:[%s289 + $0x360] sm:$0xff]
        %v461 = vld [vmem:[%s289 + $0x368] sm:$0xff]
        %v462 = vld [vmem:[%s289 + $0x370] sm:$0xff]
        %v463 = vld [vmem:[%s289 + $0x378] sm:$0xff]
        %v464 = vld [vmem:[%s289 + $0x380] sm:$0xff]
        %v465 = vld [vmem:[%s289 + $0x388] sm:$0xff]
        %v466 = vld [vmem:[%s289 + $0x390] sm:$0xff]
        %v467 = vld [vmem:[%s289 + $0x398] sm:$0xff]
        %v468 = vld [vmem:[%s289 + $0x3a0] sm:$0xff]
        %v469 = vld [vmem:[%s289 + $0x3a8] sm:$0xff]
        %v470 = vld [vmem:[%s289 + $0x3b0] sm:$0xff]
        %v471 = vld [vmem:[%s289 + $0x3b8] sm:$0xff]
        %v472 = vld [vmem:[%s289 + $0x3c0] sm:$0xff]
        %v473 = vld [vmem:[%s289 + $0x3c8] sm:$0xff]
        %v474 = vld [vmem:[%s289 + $0x3d0] sm:$0xff]
        %v475 = vld [vmem:[%s289 + $0x3d8] sm:$0xff]
        %v476 = vld [vmem:[%s289 + $0x3e0] sm:$0xff]
        %v477 = vld [vmem:[%s289 + $0x3e8] sm:$0xff]
        %v478 = vld [vmem:[%s289 + $0x3f0] sm:$0xff]
        %v479 = vld [vmem:[%s289 + $0x3f8] sm:$0xff]
        %v480 = vadd.f32 %v352, %v384
        %v481 = vrot.slane %v480, 4
        %v482 = vadd.f32 %v480, %v481
        %v483 = vrot.slane %v482, 2
        %v484 = vadd.f32 %v482, %v483
        %v485 = vrot.slane %v484, 1
        %v486 = vadd.f32 %v484, %v485
        %v487 = vadd.f32 %v353, %v385
        %v488 = vrot.slane %v487, 4
        %v489 = vadd.f32 %v487, %v488
        %v490 = vrot.slane %v489, 2
        %v491 = vadd.f32 %v489, %v490
        %v492 = vrot.slane %v491, 1
        %v493 = vadd.f32 %v491, %v492
        %v494 = vadd.f32 %v354, %v386
        %v495 = vrot.slane %v494, 4
        %v496 = vadd.f32 %v494, %v495
        %v497 = vrot.slane %v496, 2
        %v498 = vadd.f32 %v496, %v497
        %v499 = vrot.slane %v498, 1
        %v500 = vadd.f32 %v498, %v499
        %v501 = vadd.f32 %v355, %v387
        %v502 = vrot.slane %v501, 4
        %v503 = vadd.f32 %v501, %v502
        %v504 = vrot.slane %v503, 2
        %v505 = vadd.f32 %v503, %v504
        %v506 = vrot.slane %v505, 1
        %v507 = vadd.f32 %v505, %v506
        %v508 = vadd.f32 %v356, %v388
        %v509 = vrot.slane %v508, 4
        %v510 = vadd.f32 %v508, %v509
        %v511 = vrot.slane %v510, 2
        %v512 = vadd.f32 %v510, %v511
        %v513 = vrot.slane %v512, 1
        %v514 = vadd.f32 %v512, %v513
        %v515 = vadd.f32 %v357, %v389
        %v516 = vrot.slane %v515, 4
        %v517 = vadd.f32 %v515, %v516
        %v518 = vrot.slane %v517, 2
        %v519 = vadd.f32 %v517, %v518
        %v520 = vrot.slane %v519, 1
        %v521 = vadd.f32 %v519, %v520
        %v522 = vadd.f32 %v358, %v390
        %v523 = vrot.slane %v522, 4
        %v524 = vadd.f32 %v522, %v523
        %v525 = vrot.slane %v524, 2
        %v526 = vadd.f32 %v524, %v525
        %v527 = vrot.slane %v526, 1
        %v528 = vadd.f32 %v526, %v527
        %v529 = vadd.f32 %v359, %v391
        %v530 = vrot.slane %v529, 4
        %v531 = vadd.f32 %v529, %v530
        %v532 = vrot.slane %v531, 2
        %v533 = vadd.f32 %v531, %v532
        %v534 = vrot.slane %v533, 1
        %v535 = vadd.f32 %v533, %v534
        %v536 = vadd.f32 %v360, %v392
        %v537 = vrot.slane %v536, 4
        %v538 = vadd.f32 %v536, %v537
        %v539 = vrot.slane %v538, 2
        %v540 = vadd.f32 %v538, %v539
        %v541 = vrot.slane %v540, 1
        %v542 = vadd.f32 %v540, %v541
        %v543 = vadd.f32 %v361, %v393
        %v544 = vrot.slane %v543, 4
        %v545 = vadd.f32 %v543, %v544
        %v546 = vrot.slane %v545, 2
        %v547 = vadd.f32 %v545, %v546
        %v548 = vrot.slane %v547, 1
        %v549 = vadd.f32 %v547, %v548
        %v550 = vadd.f32 %v362, %v394
        %v551 = vrot.slane %v550, 4
        %v552 = vadd.f32 %v550, %v551
        %v553 = vrot.slane %v552, 2
        %v554 = vadd.f32 %v552, %v553
        %v555 = vrot.slane %v554, 1
        %v556 = vadd.f32 %v554, %v555
        %v557 = vadd.f32 %v363, %v395
        %v558 = vrot.slane %v557, 4
        %v559 = vadd.f32 %v557, %v558
        %v560 = vrot.slane %v559, 2
        %v561 = vadd.f32 %v559, %v560
        %v562 = vrot.slane %v561, 1
        %v563 = vadd.f32 %v561, %v562
        %v564 = vadd.f32 %v364, %v396
        %v565 = vrot.slane %v564, 4
        %v566 = vadd.f32 %v564, %v565
        %v567 = vrot.slane %v566, 2
        %v568 = vadd.f32 %v566, %v567
        %v569 = vrot.slane %v568, 1
        %v570 = vadd.f32 %v568, %v569
        %v571 = vadd.f32 %v365, %v397
        %v572 = vrot.slane %v571, 4
        %v573 = vadd.f32 %v571, %v572
        %v574 = vrot.slane %v573, 2
        %v575 = vadd.f32 %v573, %v574
        %v576 = vrot.slane %v575, 1
        %v577 = vadd.f32 %v575, %v576
        %v578 = vadd.f32 %v366, %v398
        %v579 = vrot.slane %v578, 4
        %v580 = vadd.f32 %v578, %v579
        %v581 = vrot.slane %v580, 2
        %v582 = vadd.f32 %v580, %v581
        %v583 = vrot.slane %v582, 1
        %v584 = vadd.f32 %v582, %v583
        %v585 = vadd.f32 %v367, %v399
        %v586 = vrot.slane %v585, 4
        %v587 = vadd.f32 %v585, %v586
        %v588 = vrot.slane %v587, 2
        %v589 = vadd.f32 %v587, %v588
        %v590 = vrot.slane %v589, 1
        %v591 = vadd.f32 %v589, %v590
        %v592 = vadd.f32 %v368, %v400
        %v593 = vrot.slane %v592, 4
        %v594 = vadd.f32 %v592, %v593
        %v595 = vrot.slane %v594, 2
        %v596 = vadd.f32 %v594, %v595
        %v597 = vrot.slane %v596, 1
        %v598 = vadd.f32 %v596, %v597
        %v599 = vadd.f32 %v369, %v401
        %v600 = vrot.slane %v599, 4
        %v601 = vadd.f32 %v599, %v600
        %v602 = vrot.slane %v601, 2
        %v603 = vadd.f32 %v601, %v602
        %v604 = vrot.slane %v603, 1
        %v605 = vadd.f32 %v603, %v604
        %v606 = vadd.f32 %v370, %v402
        %v607 = vrot.slane %v606, 4
        %v608 = vadd.f32 %v606, %v607
        %v609 = vrot.slane %v608, 2
        %v610 = vadd.f32 %v608, %v609
        %v611 = vrot.slane %v610, 1
        %v612 = vadd.f32 %v610, %v611
        %v613 = vadd.f32 %v371, %v403
        %v614 = vrot.slane %v613, 4
        %v615 = vadd.f32 %v613, %v614
        %v616 = vrot.slane %v615, 2
        %v617 = vadd.f32 %v615, %v616
        %v618 = vrot.slane %v617, 1
        %v619 = vadd.f32 %v617, %v618
        %v620 = vadd.f32 %v372, %v404
        %v621 = vrot.slane %v620, 4
        %v622 = vadd.f32 %v620, %v621
        %v623 = vrot.slane %v622, 2
        %v624 = vadd.f32 %v622, %v623
        %v625 = vrot.slane %v624, 1
        %v626 = vadd.f32 %v624, %v625
        %v627 = vadd.f32 %v373, %v405
        %v628 = vrot.slane %v627, 4
        %v629 = vadd.f32 %v627, %v628
        %v630 = vrot.slane %v629, 2
        %v631 = vadd.f32 %v629, %v630
        %v632 = vrot.slane %v631, 1
        %v633 = vadd.f32 %v631, %v632
        %v634 = vadd.f32 %v374, %v406
        %v635 = vrot.slane %v634, 4
        %v636 = vadd.f32 %v634, %v635
        %v637 = vrot.slane %v636, 2
        %v638 = vadd.f32 %v636, %v637
        %v639 = vrot.slane %v638, 1
        %v640 = vadd.f32 %v638, %v639
        %v641 = vadd.f32 %v375, %v407
        %v642 = vrot.slane %v641, 4
        %v643 = vadd.f32 %v641, %v642
        %v644 = vrot.slane %v643, 2
        %v645 = vadd.f32 %v643, %v644
        %v646 = vrot.slane %v645, 1
        %v647 = vadd.f32 %v645, %v646
        %v648 = vadd.f32 %v376, %v408
        %v649 = vrot.slane %v648, 4
        %v650 = vadd.f32 %v648, %v649
        %v651 = vrot.slane %v650, 2
        %v652 = vadd.f32 %v650, %v651
        %v653 = vrot.slane %v652, 1
        %v654 = vadd.f32 %v652, %v653
        %v655 = vadd.f32 %v377, %v409
        %v656 = vrot.slane %v655, 4
        %v657 = vadd.f32 %v655, %v656
        %v658 = vrot.slane %v657, 2
        %v659 = vadd.f32 %v657, %v658
        %v660 = vrot.slane %v659, 1
        %v661 = vadd.f32 %v659, %v660
        %v662 = vadd.f32 %v378, %v410
        %v663 = vrot.slane %v662, 4
        %v664 = vadd.f32 %v662, %v663
        %v665 = vrot.slane %v664, 2
        %v666 = vadd.f32 %v664, %v665
        %v667 = vrot.slane %v666, 1
        %v668 = vadd.f32 %v666, %v667
        %v669 = vadd.f32 %v379, %v411
        %v670 = vrot.slane %v669, 4
        %v671 = vadd.f32 %v669, %v670
        %v672 = vrot.slane %v671, 2
        %v673 = vadd.f32 %v671, %v672
        %v674 = vrot.slane %v673, 1
        %v675 = vadd.f32 %v673, %v674
        %v676 = vadd.f32 %v380, %v412
        %v677 = vrot.slane %v676, 4
        %v678 = vadd.f32 %v676, %v677
        %v679 = vrot.slane %v678, 2
        %v680 = vadd.f32 %v678, %v679
        %v681 = vrot.slane %v680, 1
        %v682 = vadd.f32 %v680, %v681
        %v683 = vadd.f32 %v381, %v413
        %v684 = vrot.slane %v683, 4
        %v685 = vadd.f32 %v683, %v684
        %v686 = vrot.slane %v685, 2
        %v687 = vadd.f32 %v685, %v686
        %v688 = vrot.slane %v687, 1
        %v689 = vadd.f32 %v687, %v688
        %v690 = vadd.f32 %v382, %v414
        %v691 = vrot.slane %v690, 4
        %v692 = vadd.f32 %v690, %v691
        %v693 = vrot.slane %v692, 2
        %v694 = vadd.f32 %v692, %v693
        %v695 = vrot.slane %v694, 1
        %v696 = vadd.f32 %v694, %v695
        %v697 = vadd.f32 %v383, %v415
        %v698 = vrot.slane %v697, 4
        %v699 = vadd.f32 %v697, %v698
        %v700 = vrot.slane %v699, 2
        %v701 = vadd.f32 %v699, %v700
        %v702 = vrot.slane %v701, 1
        %v703 = vadd.f32 %v701, %v702
        %v704 = vadd.f32 %v416, %v448
        %v705 = vrot.slane %v704, 4
        %v706 = vadd.f32 %v704, %v705
        %v707 = vrot.slane %v706, 2
        %v708 = vadd.f32 %v706, %v707
        %v709 = vrot.slane %v708, 1
        %v710 = vadd.f32 %v708, %v709
        %v711 = vadd.f32 %v417, %v449
        %v712 = vrot.slane %v711, 4
        %v713 = vadd.f32 %v711, %v712
        %v714 = vrot.slane %v713, 2
        %v715 = vadd.f32 %v713, %v714
        %v716 = vrot.slane %v715, 1
        %v717 = vadd.f32 %v715, %v716
        %v718 = vadd.f32 %v418, %v450
        %v719 = vrot.slane %v718, 4
        %v720 = vadd.f32 %v718, %v719
        %v721 = vrot.slane %v720, 2
        %v722 = vadd.f32 %v720, %v721
        %v723 = vrot.slane %v722, 1
        %v724 = vadd.f32 %v722, %v723
        %v725 = vadd.f32 %v419, %v451
        %v726 = vrot.slane %v725, 4
        %v727 = vadd.f32 %v725, %v726
        %v728 = vrot.slane %v727, 2
        %v729 = vadd.f32 %v727, %v728
        %v730 = vrot.slane %v729, 1
        %v731 = vadd.f32 %v729, %v730
        %v732 = vadd.f32 %v420, %v452
        %v733 = vrot.slane %v732, 4
        %v734 = vadd.f32 %v732, %v733
        %v735 = vrot.slane %v734, 2
        %v736 = vadd.f32 %v734, %v735
        %v737 = vrot.slane %v736, 1
        %v738 = vadd.f32 %v736, %v737
        %v739 = vadd.f32 %v421, %v453
        %v740 = vrot.slane %v739, 4
        %v741 = vadd.f32 %v739, %v740
        %v742 = vrot.slane %v741, 2
        %v743 = vadd.f32 %v741, %v742
        %v744 = vrot.slane %v743, 1
        %v745 = vadd.f32 %v743, %v744
        %v746 = vadd.f32 %v422, %v454
        %v747 = vrot.slane %v746, 4
        %v748 = vadd.f32 %v746, %v747
        %v749 = vrot.slane %v748, 2
        %v750 = vadd.f32 %v748, %v749
        %v751 = vrot.slane %v750, 1
        %v752 = vadd.f32 %v750, %v751
        %v753 = vadd.f32 %v423, %v455
        %v754 = vrot.slane %v753, 4
        %v755 = vadd.f32 %v753, %v754
        %v756 = vrot.slane %v755, 2
        %v757 = vadd.f32 %v755, %v756
        %v758 = vrot.slane %v757, 1
        %v759 = vadd.f32 %v757, %v758
        %v760 = vadd.f32 %v424, %v456
        %v761 = vrot.slane %v760, 4
        %v762 = vadd.f32 %v760, %v761
        %v763 = vrot.slane %v762, 2
        %v764 = vadd.f32 %v762, %v763
        %v765 = vrot.slane %v764, 1
        %v766 = vadd.f32 %v764, %v765
        %v767 = vadd.f32 %v425, %v457
        %v768 = vrot.slane %v767, 4
        %v769 = vadd.f32 %v767, %v768
        %v770 = vrot.slane %v769, 2
        %v771 = vadd.f32 %v769, %v770
        %v772 = vrot.slane %v771, 1
        %v773 = vadd.f32 %v771, %v772
        %v774 = vadd.f32 %v426, %v458
        %v775 = vrot.slane %v774, 4
        %v776 = vadd.f32 %v774, %v775
        %v777 = vrot.slane %v776, 2
        %v778 = vadd.f32 %v776, %v777
        %v779 = vrot.slane %v778, 1
        %v780 = vadd.f32 %v778, %v779
        %v781 = vadd.f32 %v427, %v459
        %v782 = vrot.slane %v781, 4
        %v783 = vadd.f32 %v781, %v782
        %v784 = vrot.slane %v783, 2
        %v785 = vadd.f32 %v783, %v784
        %v786 = vrot.slane %v785, 1
        %v787 = vadd.f32 %v785, %v786
        %v788 = vadd.f32 %v428, %v460
        %v789 = vrot.slane %v788, 4
        %v790 = vadd.f32 %v788, %v789
        %v791 = vrot.slane %v790, 2
        %v792 = vadd.f32 %v790, %v791
        %v793 = vrot.slane %v792, 1
        %v794 = vadd.f32 %v792, %v793
        %v795 = vadd.f32 %v429, %v461
        %v796 = vrot.slane %v795, 4
        %v797 = vadd.f32 %v795, %v796
        %v798 = vrot.slane %v797, 2
        %v799 = vadd.f32 %v797, %v798
        %v800 = vrot.slane %v799, 1
        %v801 = vadd.f32 %v799, %v800
        %v802 = vadd.f32 %v430, %v462
        %v803 = vrot.slane %v802, 4
        %v804 = vadd.f32 %v802, %v803
        %v805 = vrot.slane %v804, 2
        %v806 = vadd.f32 %v804, %v805
        %v807 = vrot.slane %v806, 1
        %v808 = vadd.f32 %v806, %v807
        %v809 = vadd.f32 %v431, %v463
        %v810 = vrot.slane %v809, 4
        %v811 = vadd.f32 %v809, %v810
        %v812 = vrot.slane %v811, 2
        %v813 = vadd.f32 %v811, %v812
        %v814 = vrot.slane %v813, 1
        %v815 = vadd.f32 %v813, %v814
        %v816 = vadd.f32 %v432, %v464
        %v817 = vrot.slane %v816, 4
        %v818 = vadd.f32 %v816, %v817
        %v819 = vrot.slane %v818, 2
        %v820 = vadd.f32 %v818, %v819
        %v821 = vrot.slane %v820, 1
        %v822 = vadd.f32 %v820, %v821
        %v823 = vadd.f32 %v433, %v465
        %v824 = vrot.slane %v823, 4
        %v825 = vadd.f32 %v823, %v824
        %v826 = vrot.slane %v825, 2
        %v827 = vadd.f32 %v825, %v826
        %v828 = vrot.slane %v827, 1
        %v829 = vadd.f32 %v827, %v828
        %v830 = vadd.f32 %v434, %v466
        %v831 = vrot.slane %v830, 4
        %v832 = vadd.f32 %v830, %v831
        %v833 = vrot.slane %v832, 2
        %v834 = vadd.f32 %v832, %v833
        %v835 = vrot.slane %v834, 1
        %v836 = vadd.f32 %v834, %v835
        %v837 = vadd.f32 %v435, %v467
        %v838 = vrot.slane %v837, 4
        %v839 = vadd.f32 %v837, %v838
        %v840 = vrot.slane %v839, 2
        %v841 = vadd.f32 %v839, %v840
        %v842 = vrot.slane %v841, 1
        %v843 = vadd.f32 %v841, %v842
        %v844 = vadd.f32 %v436, %v468
        %v845 = vrot.slane %v844, 4
        %v846 = vadd.f32 %v844, %v845
        %v847 = vrot.slane %v846, 2
        %v848 = vadd.f32 %v846, %v847
        %v849 = vrot.slane %v848, 1
        %v850 = vadd.f32 %v848, %v849
        %v851 = vadd.f32 %v437, %v469
        %v852 = vrot.slane %v851, 4
        %v853 = vadd.f32 %v851, %v852
        %v854 = vrot.slane %v853, 2
        %v855 = vadd.f32 %v853, %v854
        %v856 = vrot.slane %v855, 1
        %v857 = vadd.f32 %v855, %v856
        %v858 = vadd.f32 %v438, %v470
        %v859 = vrot.slane %v858, 4
        %v860 = vadd.f32 %v858, %v859
        %v861 = vrot.slane %v860, 2
        %v862 = vadd.f32 %v860, %v861
        %v863 = vrot.slane %v862, 1
        %v864 = vadd.f32 %v862, %v863
        %v865 = vadd.f32 %v439, %v471
        %v866 = vrot.slane %v865, 4
        %v867 = vadd.f32 %v865, %v866
        %v868 = vrot.slane %v867, 2
        %v869 = vadd.f32 %v867, %v868
        %v870 = vrot.slane %v869, 1
        %v871 = vadd.f32 %v869, %v870
        %v872 = vadd.f32 %v440, %v472
        %v873 = vrot.slane %v872, 4
        %v874 = vadd.f32 %v872, %v873
        %v875 = vrot.slane %v874, 2
        %v876 = vadd.f32 %v874, %v875
        %v877 = vrot.slane %v876, 1
        %v878 = vadd.f32 %v876, %v877
        %v879 = vadd.f32 %v441, %v473
        %v880 = vrot.slane %v879, 4
        %v881 = vadd.f32 %v879, %v880
        %v882 = vrot.slane %v881, 2
        %v883 = vadd.f32 %v881, %v882
        %v884 = vrot.slane %v883, 1
        %v885 = vadd.f32 %v883, %v884
        %v886 = vadd.f32 %v442, %v474
        %v887 = vrot.slane %v886, 4
        %v888 = vadd.f32 %v886, %v887
        %v889 = vrot.slane %v888, 2
        %v890 = vadd.f32 %v888, %v889
        %v891 = vrot.slane %v890, 1
        %v892 = vadd.f32 %v890, %v891
        %v893 = vadd.f32 %v443, %v475
        %v894 = vrot.slane %v893, 4
        %v895 = vadd.f32 %v893, %v894
        %v896 = vrot.slane %v895, 2
        %v897 = vadd.f32 %v895, %v896
        %v898 = vrot.slane %v897, 1
        %v899 = vadd.f32 %v897, %v898
        %v900 = vadd.f32 %v444, %v476
        %v901 = vrot.slane %v900, 4
        %v902 = vadd.f32 %v900, %v901
        %v903 = vrot.slane %v902, 2
        %v904 = vadd.f32 %v902, %v903
        %v905 = vrot.slane %v904, 1
        %v906 = vadd.f32 %v904, %v905
        %v907 = vadd.f32 %v445, %v477
        %v908 = vrot.slane %v907, 4
        %v909 = vadd.f32 %v907, %v908
        %v910 = vrot.slane %v909, 2
        %v911 = vadd.f32 %v909, %v910
        %v912 = vrot.slane %v911, 1
        %v913 = vadd.f32 %v911, %v912
        %v914 = vadd.f32 %v446, %v478
        %v915 = vrot.slane %v914, 4
        %v916 = vadd.f32 %v914, %v915
        %v917 = vrot.slane %v916, 2
        %v918 = vadd.f32 %v916, %v917
        %v919 = vrot.slane %v918, 1
        %v920 = vadd.f32 %v918, %v919
        %v921 = vadd.f32 %v447, %v479
        %v922 = vrot.slane %v921, 4
        %v923 = vadd.f32 %v921, %v922
        %v924 = vrot.slane %v923, 2
        %v925 = vadd.f32 %v923, %v924
        %v926 = vrot.slane %v925, 1
        %v927 = vadd.f32 %v925, %v926
        %v928 = vmul.f32 %v486, 0.0625
        %v929 = vmul.f32 %v493, 0.0625
        %v930 = vmul.f32 %v500, 0.0625
        %v931 = vmul.f32 %v507, 0.0625
        %v932 = vmul.f32 %v514, 0.0625
        %v933 = vmul.f32 %v521, 0.0625
        %v934 = vmul.f32 %v528, 0.0625
        %v935 = vmul.f32 %v535, 0.0625
        %v936 = vmul.f32 %v542, 0.0625
        %v937 = vmul.f32 %v549, 0.0625
        %v938 = vmul.f32 %v556, 0.0625
        %v939 = vmul.f32 %v563, 0.0625
        %v940 = vmul.f32 %v570, 0.0625
        %v941 = vmul.f32 %v577, 0.0625
        %v942 = vmul.f32 %v584, 0.0625
        %v943 = vmul.f32 %v591, 0.0625
        %v944 = vmul.f32 %v598, 0.0625
        %v945 = vmul.f32 %v605, 0.0625
        %v946 = vmul.f32 %v612, 0.0625
        %v947 = vmul.f32 %v619, 0.0625
        %v948 = vmul.f32 %v626, 0.0625
        %v949 = vmul.f32 %v633, 0.0625
        %v950 = vmul.f32 %v640, 0.0625
        %v951 = vmul.f32 %v647, 0.0625
        %v952 = vmul.f32 %v654, 0.0625
        %v953 = vmul.f32 %v661, 0.0625
        %v954 = vmul.f32 %v668, 0.0625
        %v955 = vmul.f32 %v675, 0.0625
        %v956 = vmul.f32 %v682, 0.0625
        %v957 = vmul.f32 %v689, 0.0625
        %v958 = vmul.f32 %v696, 0.0625
        %v959 = vmul.f32 %v703, 0.0625
        %v960 = vmul.f32 %v710, 0.0625
        %v961 = vmul.f32 %v717, 0.0625
        %v962 = vmul.f32 %v724, 0.0625
        %v963 = vmul.f32 %v731, 0.0625
        %v964 = vmul.f32 %v738, 0.0625
        %v965 = vmul.f32 %v745, 0.0625
        %v966 = vmul.f32 %v752, 0.0625
        %v967 = vmul.f32 %v759, 0.0625
        %v968 = vmul.f32 %v766, 0.0625
        %v969 = vmul.f32 %v773, 0.0625
        %v970 = vmul.f32 %v780, 0.0625
        %v971 = vmul.f32 %v787, 0.0625
        %v972 = vmul.f32 %v794, 0.0625
        %v973 = vmul.f32 %v801, 0.0625
        %v974 = vmul.f32 %v808, 0.0625
        %v975 = vmul.f32 %v815, 0.0625
        %v976 = vmul.f32 %v822, 0.0625
        %v977 = vmul.f32 %v829, 0.0625
        %v978 = vmul.f32 %v836, 0.0625
        %v979 = vmul.f32 %v843, 0.0625
        %v980 = vmul.f32 %v850, 0.0625
        %v981 = vmul.f32 %v857, 0.0625
        %v982 = vmul.f32 %v864, 0.0625
        %v983 = vmul.f32 %v871, 0.0625
        %v984 = vmul.f32 %v878, 0.0625
        %v985 = vmul.f32 %v885, 0.0625
        %v986 = vmul.f32 %v892, 0.0625
        %v987 = vmul.f32 %v899, 0.0625
        %v988 = vmul.f32 %v906, 0.0625
        %v989 = vmul.f32 %v913, 0.0625
        %v990 = vmul.f32 %v920, 0.0625
        %v991 = vmul.f32 %v927, 0.0625
        %v992 = vld [vmem:[#allocation2] sm:$0xff]
        %v993 = vpack.c.bf16 %v928, %v928
        %v994 = vpack.c.bf16 %v929, %v929
        %v995 = vpack.c.bf16 %v930, %v930
        %v996 = vpack.c.bf16 %v931, %v931
        %v997 = vpack.c.bf16 %v932, %v932
        %v998 = vpack.c.bf16 %v933, %v933
        %v999 = vpack.c.bf16 %v934, %v934
        %v1000 = vpack.c.bf16 %v935, %v935
        %v1001 = vpack.c.bf16 %v936, %v936
        %v1002 = vpack.c.bf16 %v937, %v937
        %v1003 = vpack.c.bf16 %v938, %v938
        %v1004 = vpack.c.bf16 %v939, %v939
        %v1005 = vpack.c.bf16 %v940, %v940
        %v1006 = vpack.c.bf16 %v941, %v941
        %v1007 = vpack.c.bf16 %v942, %v942
        %v1008 = vpack.c.bf16 %v943, %v943
        %v1009 = vpack.c.bf16 %v944, %v944
        %v1010 = vpack.c.bf16 %v945, %v945
        %v1011 = vpack.c.bf16 %v946, %v946
        %v1012 = vpack.c.bf16 %v947, %v947
        %v1013 = vpack.c.bf16 %v948, %v948
        %v1014 = vpack.c.bf16 %v949, %v949
        %v1015 = vpack.c.bf16 %v950, %v950
        %v1016 = vpack.c.bf16 %v951, %v951
        %v1017 = vpack.c.bf16 %v952, %v952
        %v1018 = vpack.c.bf16 %v953, %v953
        %v1019 = vpack.c.bf16 %v954, %v954
        %v1020 = vpack.c.bf16 %v955, %v955
        %v1021 = vpack.c.bf16 %v956, %v956
        %v1022 = vpack.c.bf16 %v957, %v957
        %v1023 = vpack.c.bf16 %v958, %v958
        %v1024 = vpack.c.bf16 %v959, %v959
        %v1025 = vpack.c.bf16 %v960, %v960
        %v1026 = vpack.c.bf16 %v961, %v961
        %v1027 = vpack.c.bf16 %v962, %v962
        %v1028 = vpack.c.bf16 %v963, %v963
        %v1029 = vpack.c.bf16 %v964, %v964
        %v1030 = vpack.c.bf16 %v965, %v965
        %v1031 = vpack.c.bf16 %v966, %v966
        %v1032 = vpack.c.bf16 %v967, %v967
        %v1033 = vpack.c.bf16 %v968, %v968
        %v1034 = vpack.c.bf16 %v969, %v969
        %v1035 = vpack.c.bf16 %v970, %v970
        %v1036 = vpack.c.bf16 %v971, %v971
        %v1037 = vpack.c.bf16 %v972, %v972
        %v1038 = vpack.c.bf16 %v973, %v973
        %v1039 = vpack.c.bf16 %v974, %v974
        %v1040 = vpack.c.bf16 %v975, %v975
        %v1041 = vpack.c.bf16 %v976, %v976
        %v1042 = vpack.c.bf16 %v977, %v977
        %v1043 = vpack.c.bf16 %v978, %v978
        %v1044 = vpack.c.bf16 %v979, %v979
        %v1045 = vpack.c.bf16 %v980, %v980
        %v1046 = vpack.c.bf16 %v981, %v981
        %v1047 = vpack.c.bf16 %v982, %v982
        %v1048 = vpack.c.bf16 %v983, %v983
        %v1049 = vpack.c.bf16 %v984, %v984
        %v1050 = vpack.c.bf16 %v985, %v985
        %v1051 = vpack.c.bf16 %v986, %v986
        %v1052 = vpack.c.bf16 %v987, %v987
        %v1053 = vpack.c.bf16 %v988, %v988
        %v1054 = vpack.c.bf16 %v989, %v989
        %v1055 = vpack.c.bf16 %v990, %v990
        %v1056 = vpack.c.bf16 %v991, %v991
        %v1057 = vld [vmem:[%s298] sm:$0xff]
        %v1058 = vld [vmem:[%s298 + $0x8] sm:$0xff]
        %v1059 = vld [vmem:[%s298 + $0x10] sm:$0xff]
        %v1060 = vld [vmem:[%s298 + $0x18] sm:$0xff]
        %v1061 = vld [vmem:[%s298 + $0x20] sm:$0xff]
        %v1062 = vld [vmem:[%s298 + $0x28] sm:$0xff]
        %v1063 = vld [vmem:[%s298 + $0x30] sm:$0xff]
        %v1064 = vld [vmem:[%s298 + $0x38] sm:$0xff]
        %v1065 = vld [vmem:[%s298 + $0x40] sm:$0xff]
        %v1066 = vld [vmem:[%s298 + $0x48] sm:$0xff]
        %v1067 = vld [vmem:[%s298 + $0x50] sm:$0xff]
        %v1068 = vld [vmem:[%s298 + $0x58] sm:$0xff]
        %v1069 = vld [vmem:[%s298 + $0x60] sm:$0xff]
        %v1070 = vld [vmem:[%s298 + $0x68] sm:$0xff]
        %v1071 = vld [vmem:[%s298 + $0x70] sm:$0xff]
        %v1072 = vld [vmem:[%s298 + $0x78] sm:$0xff]
        %v1073 = vld [vmem:[%s298 + $0x80] sm:$0xff]
        %v1074 = vld [vmem:[%s298 + $0x88] sm:$0xff]
        %v1075 = vld [vmem:[%s298 + $0x90] sm:$0xff]
        %v1076 = vld [vmem:[%s298 + $0x98] sm:$0xff]
        %v1077 = vld [vmem:[%s298 + $0xa0] sm:$0xff]
        %v1078 = vld [vmem:[%s298 + $0xa8] sm:$0xff]
        %v1079 = vld [vmem:[%s298 + $0xb0] sm:$0xff]
        %v1080 = vld [vmem:[%s298 + $0xb8] sm:$0xff]
        %v1081 = vld [vmem:[%s298 + $0xc0] sm:$0xff]
        %v1082 = vld [vmem:[%s298 + $0xc8] sm:$0xff]
        %v1083 = vld [vmem:[%s298 + $0xd0] sm:$0xff]
        %v1084 = vld [vmem:[%s298 + $0xd8] sm:$0xff]
        %v1085 = vld [vmem:[%s298 + $0xe0] sm:$0xff]
        %v1086 = vld [vmem:[%s298 + $0xe8] sm:$0xff]
        %v1087 = vld [vmem:[%s298 + $0xf0] sm:$0xff]
        %v1088 = vld [vmem:[%s298 + $0xf8] sm:$0xff]
        %v1089 = vld [vmem:[%s298 + $0x100] sm:$0xff]
        %v1090 = vld [vmem:[%s298 + $0x108] sm:$0xff]
        %v1091 = vld [vmem:[%s298 + $0x110] sm:$0xff]
        %v1092 = vld [vmem:[%s298 + $0x118] sm:$0xff]
        %v1093 = vld [vmem:[%s298 + $0x120] sm:$0xff]
        %v1094 = vld [vmem:[%s298 + $0x128] sm:$0xff]
        %v1095 = vld [vmem:[%s298 + $0x130] sm:$0xff]
        %v1096 = vld [vmem:[%s298 + $0x138] sm:$0xff]
        %v1097 = vld [vmem:[%s298 + $0x140] sm:$0xff]
        %v1098 = vld [vmem:[%s298 + $0x148] sm:$0xff]
        %v1099 = vld [vmem:[%s298 + $0x150] sm:$0xff]
        %v1100 = vld [vmem:[%s298 + $0x158] sm:$0xff]
        %v1101 = vld [vmem:[%s298 + $0x160] sm:$0xff]
        %v1102 = vld [vmem:[%s298 + $0x168] sm:$0xff]
        %v1103 = vld [vmem:[%s298 + $0x170] sm:$0xff]
        %v1104 = vld [vmem:[%s298 + $0x178] sm:$0xff]
        %v1105 = vld [vmem:[%s298 + $0x180] sm:$0xff]
        %v1106 = vld [vmem:[%s298 + $0x188] sm:$0xff]
        %v1107 = vld [vmem:[%s298 + $0x190] sm:$0xff]
        %v1108 = vld [vmem:[%s298 + $0x198] sm:$0xff]
        %v1109 = vld [vmem:[%s298 + $0x1a0] sm:$0xff]
        %v1110 = vld [vmem:[%s298 + $0x1a8] sm:$0xff]
        %v1111 = vld [vmem:[%s298 + $0x1b0] sm:$0xff]
        %v1112 = vld [vmem:[%s298 + $0x1b8] sm:$0xff]
        %v1113 = vld [vmem:[%s298 + $0x1c0] sm:$0xff]
        %v1114 = vld [vmem:[%s298 + $0x1c8] sm:$0xff]
        %v1115 = vld [vmem:[%s298 + $0x1d0] sm:$0xff]
        %v1116 = vld [vmem:[%s298 + $0x1d8] sm:$0xff]
        %v1117 = vld [vmem:[%s298 + $0x1e0] sm:$0xff]
        %v1118 = vld [vmem:[%s298 + $0x1e8] sm:$0xff]
        %v1119 = vld [vmem:[%s298 + $0x1f0] sm:$0xff]
        %v1120 = vld [vmem:[%s298 + $0x1f8] sm:$0xff]
        %v1121 = vld [vmem:[%s298 + $0x200] sm:$0xff]
        %v1122 = vld [vmem:[%s298 + $0x208] sm:$0xff]
        %v1123 = vld [vmem:[%s298 + $0x210] sm:$0xff]
        %v1124 = vld [vmem:[%s298 + $0x218] sm:$0xff]
        %v1125 = vld [vmem:[%s298 + $0x220] sm:$0xff]
        %v1126 = vld [vmem:[%s298 + $0x228] sm:$0xff]
        %v1127 = vld [vmem:[%s298 + $0x230] sm:$0xff]
        %v1128 = vld [vmem:[%s298 + $0x238] sm:$0xff]
        %v1129 = vld [vmem:[%s298 + $0x240] sm:$0xff]
        %v1130 = vld [vmem:[%s298 + $0x248] sm:$0xff]
        %v1131 = vld [vmem:[%s298 + $0x250] sm:$0xff]
        %v1132 = vld [vmem:[%s298 + $0x258] sm:$0xff]
        %v1133 = vld [vmem:[%s298 + $0x260] sm:$0xff]
        %v1134 = vld [vmem:[%s298 + $0x268] sm:$0xff]
        %v1135 = vld [vmem:[%s298 + $0x270] sm:$0xff]
        %v1136 = vld [vmem:[%s298 + $0x278] sm:$0xff]
        %v1137 = vld [vmem:[%s298 + $0x280] sm:$0xff]
        %v1138 = vld [vmem:[%s298 + $0x288] sm:$0xff]
        %v1139 = vld [vmem:[%s298 + $0x290] sm:$0xff]
        %v1140 = vld [vmem:[%s298 + $0x298] sm:$0xff]
        %v1141 = vld [vmem:[%s298 + $0x2a0] sm:$0xff]
        %v1142 = vld [vmem:[%s298 + $0x2a8] sm:$0xff]
        %v1143 = vld [vmem:[%s298 + $0x2b0] sm:$0xff]
        %v1144 = vld [vmem:[%s298 + $0x2b8] sm:$0xff]
        %v1145 = vld [vmem:[%s298 + $0x2c0] sm:$0xff]
        %v1146 = vld [vmem:[%s298 + $0x2c8] sm:$0xff]
        %v1147 = vld [vmem:[%s298 + $0x2d0] sm:$0xff]
        %v1148 = vld [vmem:[%s298 + $0x2d8] sm:$0xff]
        %v1149 = vld [vmem:[%s298 + $0x2e0] sm:$0xff]
        %v1150 = vld [vmem:[%s298 + $0x2e8] sm:$0xff]
        %v1151 = vld [vmem:[%s298 + $0x2f0] sm:$0xff]
        %v1152 = vld [vmem:[%s298 + $0x2f8] sm:$0xff]
        %v1153 = vld [vmem:[%s298 + $0x300] sm:$0xff]
        %v1154 = vld [vmem:[%s298 + $0x308] sm:$0xff]
        %v1155 = vld [vmem:[%s298 + $0x310] sm:$0xff]
        %v1156 = vld [vmem:[%s298 + $0x318] sm:$0xff]
        %v1157 = vld [vmem:[%s298 + $0x320] sm:$0xff]
        %v1158 = vld [vmem:[%s298 + $0x328] sm:$0xff]
        %v1159 = vld [vmem:[%s298 + $0x330] sm:$0xff]
        %v1160 = vld [vmem:[%s298 + $0x338] sm:$0xff]
        %v1161 = vld [vmem:[%s298 + $0x340] sm:$0xff]
        %v1162 = vld [vmem:[%s298 + $0x348] sm:$0xff]
        %v1163 = vld [vmem:[%s298 + $0x350] sm:$0xff]
        %v1164 = vld [vmem:[%s298 + $0x358] sm:$0xff]
        %v1165 = vld [vmem:[%s298 + $0x360] sm:$0xff]
        %v1166 = vld [vmem:[%s298 + $0x368] sm:$0xff]
        %v1167 = vld [vmem:[%s298 + $0x370] sm:$0xff]
        %v1168 = vld [vmem:[%s298 + $0x378] sm:$0xff]
        %v1169 = vld [vmem:[%s298 + $0x380] sm:$0xff]
        %v1170 = vld [vmem:[%s298 + $0x388] sm:$0xff]
        %v1171 = vld [vmem:[%s298 + $0x390] sm:$0xff]
        %v1172 = vld [vmem:[%s298 + $0x398] sm:$0xff]
        %v1173 = vld [vmem:[%s298 + $0x3a0] sm:$0xff]
        %v1174 = vld [vmem:[%s298 + $0x3a8] sm:$0xff]
        %v1175 = vld [vmem:[%s298 + $0x3b0] sm:$0xff]
        %v1176 = vld [vmem:[%s298 + $0x3b8] sm:$0xff]
        %v1177 = vld [vmem:[%s298 + $0x3c0] sm:$0xff]
        %v1178 = vld [vmem:[%s298 + $0x3c8] sm:$0xff]
        %v1179 = vld [vmem:[%s298 + $0x3d0] sm:$0xff]
        %v1180 = vld [vmem:[%s298 + $0x3d8] sm:$0xff]
        %v1181 = vld [vmem:[%s298 + $0x3e0] sm:$0xff]
        %v1182 = vld [vmem:[%s298 + $0x3e8] sm:$0xff]
        %v1183 = vld [vmem:[%s298 + $0x3f0] sm:$0xff]
        %v1184 = vld [vmem:[%s298 + $0x3f8] sm:$0xff]
        %v1185 = vld [vmem:[%s298 + $0x400] sm:$0xff]
        %v1186 = vld [vmem:[%s298 + $0x408] sm:$0xff]
        %v1187 = vld [vmem:[%s298 + $0x410] sm:$0xff]
        %v1188 = vld [vmem:[%s298 + $0x418] sm:$0xff]
        %v1189 = vld [vmem:[%s298 + $0x420] sm:$0xff]
        %v1190 = vld [vmem:[%s298 + $0x428] sm:$0xff]
        %v1191 = vld [vmem:[%s298 + $0x430] sm:$0xff]
        %v1192 = vld [vmem:[%s298 + $0x438] sm:$0xff]
        %v1193 = vld [vmem:[%s298 + $0x440] sm:$0xff]
        %v1194 = vld [vmem:[%s298 + $0x448] sm:$0xff]
        %v1195 = vld [vmem:[%s298 + $0x450] sm:$0xff]
        %v1196 = vld [vmem:[%s298 + $0x458] sm:$0xff]
        %v1197 = vld [vmem:[%s298 + $0x460] sm:$0xff]
        %v1198 = vld [vmem:[%s298 + $0x468] sm:$0xff]
        %v1199 = vld [vmem:[%s298 + $0x470] sm:$0xff]
        %v1200 = vld [vmem:[%s298 + $0x478] sm:$0xff]
        %v1201 = vld [vmem:[%s298 + $0x480] sm:$0xff]
        %v1202 = vld [vmem:[%s298 + $0x488] sm:$0xff]
        %v1203 = vld [vmem:[%s298 + $0x490] sm:$0xff]
        %v1204 = vld [vmem:[%s298 + $0x498] sm:$0xff]
        %v1205 = vld [vmem:[%s298 + $0x4a0] sm:$0xff]
        %v1206 = vld [vmem:[%s298 + $0x4a8] sm:$0xff]
        %v1207 = vld [vmem:[%s298 + $0x4b0] sm:$0xff]
        %v1208 = vld [vmem:[%s298 + $0x4b8] sm:$0xff]
        %v1209 = vld [vmem:[%s298 + $0x4c0] sm:$0xff]
        %v1210 = vld [vmem:[%s298 + $0x4c8] sm:$0xff]
        %v1211 = vld [vmem:[%s298 + $0x4d0] sm:$0xff]
        %v1212 = vld [vmem:[%s298 + $0x4d8] sm:$0xff]
        %v1213 = vld [vmem:[%s298 + $0x4e0] sm:$0xff]
        %v1214 = vld [vmem:[%s298 + $0x4e8] sm:$0xff]
        %v1215 = vld [vmem:[%s298 + $0x4f0] sm:$0xff]
        %v1216 = vld [vmem:[%s298 + $0x4f8] sm:$0xff]
        %v1217 = vld [vmem:[%s298 + $0x500] sm:$0xff]
        %v1218 = vld [vmem:[%s298 + $0x508] sm:$0xff]
        %v1219 = vld [vmem:[%s298 + $0x510] sm:$0xff]
        %v1220 = vld [vmem:[%s298 + $0x518] sm:$0xff]
        %v1221 = vld [vmem:[%s298 + $0x520] sm:$0xff]
        %v1222 = vld [vmem:[%s298 + $0x528] sm:$0xff]
        %v1223 = vld [vmem:[%s298 + $0x530] sm:$0xff]
        %v1224 = vld [vmem:[%s298 + $0x538] sm:$0xff]
        %v1225 = vld [vmem:[%s298 + $0x540] sm:$0xff]
        %v1226 = vld [vmem:[%s298 + $0x548] sm:$0xff]
        %v1227 = vld [vmem:[%s298 + $0x550] sm:$0xff]
        %v1228 = vld [vmem:[%s298 + $0x558] sm:$0xff]
        %v1229 = vld [vmem:[%s298 + $0x560] sm:$0xff]
        %v1230 = vld [vmem:[%s298 + $0x568] sm:$0xff]
        %v1231 = vld [vmem:[%s298 + $0x570] sm:$0xff]
        %v1232 = vld [vmem:[%s298 + $0x578] sm:$0xff]
        %v1233 = vld [vmem:[%s298 + $0x580] sm:$0xff]
        %v1234 = vld [vmem:[%s298 + $0x588] sm:$0xff]
        %v1235 = vld [vmem:[%s298 + $0x590] sm:$0xff]
        %v1236 = vld [vmem:[%s298 + $0x598] sm:$0xff]
        %v1237 = vld [vmem:[%s298 + $0x5a0] sm:$0xff]
        %v1238 = vld [vmem:[%s298 + $0x5a8] sm:$0xff]
        %v1239 = vld [vmem:[%s298 + $0x5b0] sm:$0xff]
        %v1240 = vld [vmem:[%s298 + $0x5b8] sm:$0xff]
        %v1241 = vld [vmem:[%s298 + $0x5c0] sm:$0xff]
        %v1242 = vld [vmem:[%s298 + $0x5c8] sm:$0xff]
        %v1243 = vld [vmem:[%s298 + $0x5d0] sm:$0xff]
        %v1244 = vld [vmem:[%s298 + $0x5d8] sm:$0xff]
        %v1245 = vld [vmem:[%s298 + $0x5e0] sm:$0xff]
        %v1246 = vld [vmem:[%s298 + $0x5e8] sm:$0xff]
        %v1247 = vld [vmem:[%s298 + $0x5f0] sm:$0xff]
        %v1248 = vld [vmem:[%s298 + $0x5f8] sm:$0xff]
        %v1249 = vld [vmem:[%s298 + $0x600] sm:$0xff]
        %v1250 = vld [vmem:[%s298 + $0x608] sm:$0xff]
        %v1251 = vld [vmem:[%s298 + $0x610] sm:$0xff]
        %v1252 = vld [vmem:[%s298 + $0x618] sm:$0xff]
        %v1253 = vld [vmem:[%s298 + $0x620] sm:$0xff]
        %v1254 = vld [vmem:[%s298 + $0x628] sm:$0xff]
        %v1255 = vld [vmem:[%s298 + $0x630] sm:$0xff]
        %v1256 = vld [vmem:[%s298 + $0x638] sm:$0xff]
        %v1257 = vld [vmem:[%s298 + $0x640] sm:$0xff]
        %v1258 = vld [vmem:[%s298 + $0x648] sm:$0xff]
        %v1259 = vld [vmem:[%s298 + $0x650] sm:$0xff]
        %v1260 = vld [vmem:[%s298 + $0x658] sm:$0xff]
        %v1261 = vld [vmem:[%s298 + $0x660] sm:$0xff]
        %v1262 = vld [vmem:[%s298 + $0x668] sm:$0xff]
        %v1263 = vld [vmem:[%s298 + $0x670] sm:$0xff]
        %v1264 = vld [vmem:[%s298 + $0x678] sm:$0xff]
        %v1265 = vld [vmem:[%s298 + $0x680] sm:$0xff]
        %v1266 = vld [vmem:[%s298 + $0x688] sm:$0xff]
        %v1267 = vld [vmem:[%s298 + $0x690] sm:$0xff]
        %v1268 = vld [vmem:[%s298 + $0x698] sm:$0xff]
        %v1269 = vld [vmem:[%s298 + $0x6a0] sm:$0xff]
        %v1270 = vld [vmem:[%s298 + $0x6a8] sm:$0xff]
        %v1271 = vld [vmem:[%s298 + $0x6b0] sm:$0xff]
        %v1272 = vld [vmem:[%s298 + $0x6b8] sm:$0xff]
        %v1273 = vld [vmem:[%s298 + $0x6c0] sm:$0xff]
        %v1274 = vld [vmem:[%s298 + $0x6c8] sm:$0xff]
        %v1275 = vld [vmem:[%s298 + $0x6d0] sm:$0xff]
        %v1276 = vld [vmem:[%s298 + $0x6d8] sm:$0xff]
        %v1277 = vld [vmem:[%s298 + $0x6e0] sm:$0xff]
        %v1278 = vld [vmem:[%s298 + $0x6e8] sm:$0xff]
        %v1279 = vld [vmem:[%s298 + $0x6f0] sm:$0xff]
        %v1280 = vld [vmem:[%s298 + $0x6f8] sm:$0xff]
        %v1281 = vld [vmem:[%s298 + $0x700] sm:$0xff]
        %v1282 = vld [vmem:[%s298 + $0x708] sm:$0xff]
        %v1283 = vld [vmem:[%s298 + $0x710] sm:$0xff]
        %v1284 = vld [vmem:[%s298 + $0x718] sm:$0xff]
        %v1285 = vld [vmem:[%s298 + $0x720] sm:$0xff]
        %v1286 = vld [vmem:[%s298 + $0x728] sm:$0xff]
        %v1287 = vld [vmem:[%s298 + $0x730] sm:$0xff]
        %v1288 = vld [vmem:[%s298 + $0x738] sm:$0xff]
        %v1289 = vld [vmem:[%s298 + $0x740] sm:$0xff]
        %v1290 = vld [vmem:[%s298 + $0x748] sm:$0xff]
        %v1291 = vld [vmem:[%s298 + $0x750] sm:$0xff]
        %v1292 = vld [vmem:[%s298 + $0x758] sm:$0xff]
        %v1293 = vld [vmem:[%s298 + $0x760] sm:$0xff]
        %v1294 = vld [vmem:[%s298 + $0x768] sm:$0xff]
        %v1295 = vld [vmem:[%s298 + $0x770] sm:$0xff]
        %v1296 = vld [vmem:[%s298 + $0x778] sm:$0xff]
        %v1297 = vld [vmem:[%s298 + $0x780] sm:$0xff]
        %v1298 = vld [vmem:[%s298 + $0x788] sm:$0xff]
        %v1299 = vld [vmem:[%s298 + $0x790] sm:$0xff]
        %v1300 = vld [vmem:[%s298 + $0x798] sm:$0xff]
        %v1301 = vld [vmem:[%s298 + $0x7a0] sm:$0xff]
        %v1302 = vld [vmem:[%s298 + $0x7a8] sm:$0xff]
        %v1303 = vld [vmem:[%s298 + $0x7b0] sm:$0xff]
        %v1304 = vld [vmem:[%s298 + $0x7b8] sm:$0xff]
        %v1305 = vld [vmem:[%s298 + $0x7c0] sm:$0xff]
        %v1306 = vld [vmem:[%s298 + $0x7c8] sm:$0xff]
        %v1307 = vld [vmem:[%s298 + $0x7d0] sm:$0xff]
        %v1308 = vld [vmem:[%s298 + $0x7d8] sm:$0xff]
        %v1309 = vld [vmem:[%s298 + $0x7e0] sm:$0xff]
        %v1310 = vld [vmem:[%s298 + $0x7e8] sm:$0xff]
        %v1311 = vld [vmem:[%s298 + $0x7f0] sm:$0xff]
        %v1312 = vld [vmem:[%s298 + $0x7f8] sm:$0xff]
        %v1313 = vld [vmem:[%s298 + $0x800] sm:$0xff]
        %v1314 = vld [vmem:[%s298 + $0x808] sm:$0xff]
        %v1315 = vld [vmem:[%s298 + $0x810] sm:$0xff]
        %v1316 = vld [vmem:[%s298 + $0x818] sm:$0xff]
        %v1317 = vld [vmem:[%s298 + $0x820] sm:$0xff]
        %v1318 = vld [vmem:[%s298 + $0x828] sm:$0xff]
        %v1319 = vld [vmem:[%s298 + $0x830] sm:$0xff]
        %v1320 = vld [vmem:[%s298 + $0x838] sm:$0xff]
        %v1321 = vld [vmem:[%s298 + $0x840] sm:$0xff]
        %v1322 = vld [vmem:[%s298 + $0x848] sm:$0xff]
        %v1323 = vld [vmem:[%s298 + $0x850] sm:$0xff]
        %v1324 = vld [vmem:[%s298 + $0x858] sm:$0xff]
        %v1325 = vld [vmem:[%s298 + $0x860] sm:$0xff]
        %v1326 = vld [vmem:[%s298 + $0x868] sm:$0xff]
        %v1327 = vld [vmem:[%s298 + $0x870] sm:$0xff]
        %v1328 = vld [vmem:[%s298 + $0x878] sm:$0xff]
        %v1329 = vld [vmem:[%s298 + $0x880] sm:$0xff]
        %v1330 = vld [vmem:[%s298 + $0x888] sm:$0xff]
        %v1331 = vld [vmem:[%s298 + $0x890] sm:$0xff]
        %v1332 = vld [vmem:[%s298 + $0x898] sm:$0xff]
        %v1333 = vld [vmem:[%s298 + $0x8a0] sm:$0xff]
        %v1334 = vld [vmem:[%s298 + $0x8a8] sm:$0xff]
        %v1335 = vld [vmem:[%s298 + $0x8b0] sm:$0xff]
        %v1336 = vld [vmem:[%s298 + $0x8b8] sm:$0xff]
        %v1337 = vld [vmem:[%s298 + $0x8c0] sm:$0xff]
        %v1338 = vld [vmem:[%s298 + $0x8c8] sm:$0xff]
        %v1339 = vld [vmem:[%s298 + $0x8d0] sm:$0xff]
        %v1340 = vld [vmem:[%s298 + $0x8d8] sm:$0xff]
        %v1341 = vld [vmem:[%s298 + $0x8e0] sm:$0xff]
        %v1342 = vld [vmem:[%s298 + $0x8e8] sm:$0xff]
        %v1343 = vld [vmem:[%s298 + $0x8f0] sm:$0xff]
        %v1344 = vld [vmem:[%s298 + $0x8f8] sm:$0xff]
        %v1345 = vld [vmem:[%s298 + $0x900] sm:$0xff]
        %v1346 = vld [vmem:[%s298 + $0x908] sm:$0xff]
        %v1347 = vld [vmem:[%s298 + $0x910] sm:$0xff]
        %v1348 = vld [vmem:[%s298 + $0x918] sm:$0xff]
        %v1349 = vld [vmem:[%s298 + $0x920] sm:$0xff]
        %v1350 = vld [vmem:[%s298 + $0x928] sm:$0xff]
        %v1351 = vld [vmem:[%s298 + $0x930] sm:$0xff]
        %v1352 = vld [vmem:[%s298 + $0x938] sm:$0xff]
        %v1353 = vld [vmem:[%s298 + $0x940] sm:$0xff]
        %v1354 = vld [vmem:[%s298 + $0x948] sm:$0xff]
        %v1355 = vld [vmem:[%s298 + $0x950] sm:$0xff]
        %v1356 = vld [vmem:[%s298 + $0x958] sm:$0xff]
        %v1357 = vld [vmem:[%s298 + $0x960] sm:$0xff]
        %v1358 = vld [vmem:[%s298 + $0x968] sm:$0xff]
        %v1359 = vld [vmem:[%s298 + $0x970] sm:$0xff]
        %v1360 = vld [vmem:[%s298 + $0x978] sm:$0xff]
        %v1361 = vld [vmem:[%s298 + $0x980] sm:$0xff]
        %v1362 = vld [vmem:[%s298 + $0x988] sm:$0xff]
        %v1363 = vld [vmem:[%s298 + $0x990] sm:$0xff]
        %v1364 = vld [vmem:[%s298 + $0x998] sm:$0xff]
        %v1365 = vld [vmem:[%s298 + $0x9a0] sm:$0xff]
        %v1366 = vld [vmem:[%s298 + $0x9a8] sm:$0xff]
        %v1367 = vld [vmem:[%s298 + $0x9b0] sm:$0xff]
        %v1368 = vld [vmem:[%s298 + $0x9b8] sm:$0xff]
        %v1369 = vld [vmem:[%s298 + $0x9c0] sm:$0xff]
        %v1370 = vld [vmem:[%s298 + $0x9c8] sm:$0xff]
        %v1371 = vld [vmem:[%s298 + $0x9d0] sm:$0xff]
        %v1372 = vld [vmem:[%s298 + $0x9d8] sm:$0xff]
        %v1373 = vld [vmem:[%s298 + $0x9e0] sm:$0xff]
        %v1374 = vld [vmem:[%s298 + $0x9e8] sm:$0xff]
        %v1375 = vld [vmem:[%s298 + $0x9f0] sm:$0xff]
        %v1376 = vld [vmem:[%s298 + $0x9f8] sm:$0xff]
        %v1377 = vld [vmem:[%s298 + $0xa00] sm:$0xff]
        %v1378 = vld [vmem:[%s298 + $0xa08] sm:$0xff]
        %v1379 = vld [vmem:[%s298 + $0xa10] sm:$0xff]
        %v1380 = vld [vmem:[%s298 + $0xa18] sm:$0xff]
        %v1381 = vld [vmem:[%s298 + $0xa20] sm:$0xff]
        %v1382 = vld [vmem:[%s298 + $0xa28] sm:$0xff]
        %v1383 = vld [vmem:[%s298 + $0xa30] sm:$0xff]
        %v1384 = vld [vmem:[%s298 + $0xa38] sm:$0xff]
        %v1385 = vld [vmem:[%s298 + $0xa40] sm:$0xff]
        %v1386 = vld [vmem:[%s298 + $0xa48] sm:$0xff]
        %v1387 = vld [vmem:[%s298 + $0xa50] sm:$0xff]
        %v1388 = vld [vmem:[%s298 + $0xa58] sm:$0xff]
        %v1389 = vld [vmem:[%s298 + $0xa60] sm:$0xff]
        %v1390 = vld [vmem:[%s298 + $0xa68] sm:$0xff]
        %v1391 = vld [vmem:[%s298 + $0xa70] sm:$0xff]
        %v1392 = vld [vmem:[%s298 + $0xa78] sm:$0xff]
        %v1393 = vld [vmem:[%s298 + $0xa80] sm:$0xff]
        %v1394 = vld [vmem:[%s298 + $0xa88] sm:$0xff]
        %v1395 = vld [vmem:[%s298 + $0xa90] sm:$0xff]
        %v1396 = vld [vmem:[%s298 + $0xa98] sm:$0xff]
        %v1397 = vld [vmem:[%s298 + $0xaa0] sm:$0xff]
        %v1398 = vld [vmem:[%s298 + $0xaa8] sm:$0xff]
        %v1399 = vld [vmem:[%s298 + $0xab0] sm:$0xff]
        %v1400 = vld [vmem:[%s298 + $0xab8] sm:$0xff]
        %v1401 = vld [vmem:[%s298 + $0xac0] sm:$0xff]
        %v1402 = vld [vmem:[%s298 + $0xac8] sm:$0xff]
        %v1403 = vld [vmem:[%s298 + $0xad0] sm:$0xff]
        %v1404 = vld [vmem:[%s298 + $0xad8] sm:$0xff]
        %v1405 = vld [vmem:[%s298 + $0xae0] sm:$0xff]
        %v1406 = vld [vmem:[%s298 + $0xae8] sm:$0xff]
        %v1407 = vld [vmem:[%s298 + $0xaf0] sm:$0xff]
        %v1408 = vld [vmem:[%s298 + $0xaf8] sm:$0xff]
        %v1409 = vld [vmem:[%s298 + $0xb00] sm:$0xff]
        %v1410 = vld [vmem:[%s298 + $0xb08] sm:$0xff]
        %v1411 = vld [vmem:[%s298 + $0xb10] sm:$0xff]
        %v1412 = vld [vmem:[%s298 + $0xb18] sm:$0xff]
        %v1413 = vld [vmem:[%s298 + $0xb20] sm:$0xff]
        %v1414 = vld [vmem:[%s298 + $0xb28] sm:$0xff]
        %v1415 = vld [vmem:[%s298 + $0xb30] sm:$0xff]
        %v1416 = vld [vmem:[%s298 + $0xb38] sm:$0xff]
        %v1417 = vld [vmem:[%s298 + $0xb40] sm:$0xff]
        %v1418 = vld [vmem:[%s298 + $0xb48] sm:$0xff]
        %v1419 = vld [vmem:[%s298 + $0xb50] sm:$0xff]
        %v1420 = vld [vmem:[%s298 + $0xb58] sm:$0xff]
        %v1421 = vld [vmem:[%s298 + $0xb60] sm:$0xff]
        %v1422 = vld [vmem:[%s298 + $0xb68] sm:$0xff]
        %v1423 = vld [vmem:[%s298 + $0xb70] sm:$0xff]
        %v1424 = vld [vmem:[%s298 + $0xb78] sm:$0xff]
        %v1425 = vld [vmem:[%s298 + $0xb80] sm:$0xff]
        %v1426 = vld [vmem:[%s298 + $0xb88] sm:$0xff]
        %v1427 = vld [vmem:[%s298 + $0xb90] sm:$0xff]
        %v1428 = vld [vmem:[%s298 + $0xb98] sm:$0xff]
        %v1429 = vld [vmem:[%s298 + $0xba0] sm:$0xff]
        %v1430 = vld [vmem:[%s298 + $0xba8] sm:$0xff]
        %v1431 = vld [vmem:[%s298 + $0xbb0] sm:$0xff]
        %v1432 = vld [vmem:[%s298 + $0xbb8] sm:$0xff]
        %v1433 = vld [vmem:[%s298 + $0xbc0] sm:$0xff]
        %v1434 = vld [vmem:[%s298 + $0xbc8] sm:$0xff]
        %v1435 = vld [vmem:[%s298 + $0xbd0] sm:$0xff]
        %v1436 = vld [vmem:[%s298 + $0xbd8] sm:$0xff]
        %v1437 = vld [vmem:[%s298 + $0xbe0] sm:$0xff]
        %v1438 = vld [vmem:[%s298 + $0xbe8] sm:$0xff]
        %v1439 = vld [vmem:[%s298 + $0xbf0] sm:$0xff]
        %v1440 = vld [vmem:[%s298 + $0xbf8] sm:$0xff]
        %v1441 = vld [vmem:[%s298 + $0xc00] sm:$0xff]
        %v1442 = vld [vmem:[%s298 + $0xc08] sm:$0xff]
        %v1443 = vld [vmem:[%s298 + $0xc10] sm:$0xff]
        %v1444 = vld [vmem:[%s298 + $0xc18] sm:$0xff]
        %v1445 = vld [vmem:[%s298 + $0xc20] sm:$0xff]
        %v1446 = vld [vmem:[%s298 + $0xc28] sm:$0xff]
        %v1447 = vld [vmem:[%s298 + $0xc30] sm:$0xff]
        %v1448 = vld [vmem:[%s298 + $0xc38] sm:$0xff]
        %v1449 = vld [vmem:[%s298 + $0xc40] sm:$0xff]
        %v1450 = vld [vmem:[%s298 + $0xc48] sm:$0xff]
        %v1451 = vld [vmem:[%s298 + $0xc50] sm:$0xff]
        %v1452 = vld [vmem:[%s298 + $0xc58] sm:$0xff]
        %v1453 = vld [vmem:[%s298 + $0xc60] sm:$0xff]
        %v1454 = vld [vmem:[%s298 + $0xc68] sm:$0xff]
        %v1455 = vld [vmem:[%s298 + $0xc70] sm:$0xff]
        %v1456 = vld [vmem:[%s298 + $0xc78] sm:$0xff]
        %v1457 = vld [vmem:[%s298 + $0xc80] sm:$0xff]
        %v1458 = vld [vmem:[%s298 + $0xc88] sm:$0xff]
        %v1459 = vld [vmem:[%s298 + $0xc90] sm:$0xff]
        %v1460 = vld [vmem:[%s298 + $0xc98] sm:$0xff]
        %v1461 = vld [vmem:[%s298 + $0xca0] sm:$0xff]
        %v1462 = vld [vmem:[%s298 + $0xca8] sm:$0xff]
        %v1463 = vld [vmem:[%s298 + $0xcb0] sm:$0xff]
        %v1464 = vld [vmem:[%s298 + $0xcb8] sm:$0xff]
        %v1465 = vld [vmem:[%s298 + $0xcc0] sm:$0xff]
        %v1466 = vld [vmem:[%s298 + $0xcc8] sm:$0xff]
        %v1467 = vld [vmem:[%s298 + $0xcd0] sm:$0xff]
        %v1468 = vld [vmem:[%s298 + $0xcd8] sm:$0xff]
        %v1469 = vld [vmem:[%s298 + $0xce0] sm:$0xff]
        %v1470 = vld [vmem:[%s298 + $0xce8] sm:$0xff]
        %v1471 = vld [vmem:[%s298 + $0xcf0] sm:$0xff]
        %v1472 = vld [vmem:[%s298 + $0xcf8] sm:$0xff]
        %v1473 = vld [vmem:[%s298 + $0xd00] sm:$0xff]
        %v1474 = vld [vmem:[%s298 + $0xd08] sm:$0xff]
        %v1475 = vld [vmem:[%s298 + $0xd10] sm:$0xff]
        %v1476 = vld [vmem:[%s298 + $0xd18] sm:$0xff]
        %v1477 = vld [vmem:[%s298 + $0xd20] sm:$0xff]
        %v1478 = vld [vmem:[%s298 + $0xd28] sm:$0xff]
        %v1479 = vld [vmem:[%s298 + $0xd30] sm:$0xff]
        %v1480 = vld [vmem:[%s298 + $0xd38] sm:$0xff]
        %v1481 = vld [vmem:[%s298 + $0xd40] sm:$0xff]
        %v1482 = vld [vmem:[%s298 + $0xd48] sm:$0xff]
        %v1483 = vld [vmem:[%s298 + $0xd50] sm:$0xff]
        %v1484 = vld [vmem:[%s298 + $0xd58] sm:$0xff]
        %v1485 = vld [vmem:[%s298 + $0xd60] sm:$0xff]
        %v1486 = vld [vmem:[%s298 + $0xd68] sm:$0xff]
        %v1487 = vld [vmem:[%s298 + $0xd70] sm:$0xff]
        %v1488 = vld [vmem:[%s298 + $0xd78] sm:$0xff]
        %v1489 = vld [vmem:[%s298 + $0xd80] sm:$0xff]
        %v1490 = vld [vmem:[%s298 + $0xd88] sm:$0xff]
        %v1491 = vld [vmem:[%s298 + $0xd90] sm:$0xff]
        %v1492 = vld [vmem:[%s298 + $0xd98] sm:$0xff]
        %v1493 = vld [vmem:[%s298 + $0xda0] sm:$0xff]
        %v1494 = vld [vmem:[%s298 + $0xda8] sm:$0xff]
        %v1495 = vld [vmem:[%s298 + $0xdb0] sm:$0xff]
        %v1496 = vld [vmem:[%s298 + $0xdb8] sm:$0xff]
        %v1497 = vld [vmem:[%s298 + $0xdc0] sm:$0xff]
        %v1498 = vld [vmem:[%s298 + $0xdc8] sm:$0xff]
        %v1499 = vld [vmem:[%s298 + $0xdd0] sm:$0xff]
        %v1500 = vld [vmem:[%s298 + $0xdd8] sm:$0xff]
        %v1501 = vld [vmem:[%s298 + $0xde0] sm:$0xff]
        %v1502 = vld [vmem:[%s298 + $0xde8] sm:$0xff]
        %v1503 = vld [vmem:[%s298 + $0xdf0] sm:$0xff]
        %v1504 = vld [vmem:[%s298 + $0xdf8] sm:$0xff]
        %v1505 = vld [vmem:[%s298 + $0xe00] sm:$0xff]
        %v1506 = vld [vmem:[%s298 + $0xe08] sm:$0xff]
        %v1507 = vld [vmem:[%s298 + $0xe10] sm:$0xff]
        %v1508 = vld [vmem:[%s298 + $0xe18] sm:$0xff]
        %v1509 = vld [vmem:[%s298 + $0xe20] sm:$0xff]
        %v1510 = vld [vmem:[%s298 + $0xe28] sm:$0xff]
        %v1511 = vld [vmem:[%s298 + $0xe30] sm:$0xff]
        %v1512 = vld [vmem:[%s298 + $0xe38] sm:$0xff]
        %v1513 = vld [vmem:[%s298 + $0xe40] sm:$0xff]
        %v1514 = vld [vmem:[%s298 + $0xe48] sm:$0xff]
        %v1515 = vld [vmem:[%s298 + $0xe50] sm:$0xff]
        %v1516 = vld [vmem:[%s298 + $0xe58] sm:$0xff]
        %v1517 = vld [vmem:[%s298 + $0xe60] sm:$0xff]
        %v1518 = vld [vmem:[%s298 + $0xe68] sm:$0xff]
        %v1519 = vld [vmem:[%s298 + $0xe70] sm:$0xff]
        %v1520 = vld [vmem:[%s298 + $0xe78] sm:$0xff]
        %v1521 = vld [vmem:[%s298 + $0xe80] sm:$0xff]
        %v1522 = vld [vmem:[%s298 + $0xe88] sm:$0xff]
        %v1523 = vld [vmem:[%s298 + $0xe90] sm:$0xff]
        %v1524 = vld [vmem:[%s298 + $0xe98] sm:$0xff]
        %v1525 = vld [vmem:[%s298 + $0xea0] sm:$0xff]
        %v1526 = vld [vmem:[%s298 + $0xea8] sm:$0xff]
        %v1527 = vld [vmem:[%s298 + $0xeb0] sm:$0xff]
        %v1528 = vld [vmem:[%s298 + $0xeb8] sm:$0xff]
        %v1529 = vld [vmem:[%s298 + $0xec0] sm:$0xff]
        %v1530 = vld [vmem:[%s298 + $0xec8] sm:$0xff]
        %v1531 = vld [vmem:[%s298 + $0xed0] sm:$0xff]
        %v1532 = vld [vmem:[%s298 + $0xed8] sm:$0xff]
        %v1533 = vld [vmem:[%s298 + $0xee0] sm:$0xff]
        %v1534 = vld [vmem:[%s298 + $0xee8] sm:$0xff]
        %v1535 = vld [vmem:[%s298 + $0xef0] sm:$0xff]
        %v1536 = vld [vmem:[%s298 + $0xef8] sm:$0xff]
        %v1537 = vld [vmem:[%s298 + $0xf00] sm:$0xff]
        %v1538 = vld [vmem:[%s298 + $0xf08] sm:$0xff]
        %v1539 = vld [vmem:[%s298 + $0xf10] sm:$0xff]
        %v1540 = vld [vmem:[%s298 + $0xf18] sm:$0xff]
        %v1541 = vld [vmem:[%s298 + $0xf20] sm:$0xff]
        %v1542 = vld [vmem:[%s298 + $0xf28] sm:$0xff]
        %v1543 = vld [vmem:[%s298 + $0xf30] sm:$0xff]
        %v1544 = vld [vmem:[%s298 + $0xf38] sm:$0xff]
        %v1545 = vld [vmem:[%s298 + $0xf40] sm:$0xff]
        %v1546 = vld [vmem:[%s298 + $0xf48] sm:$0xff]
        %v1547 = vld [vmem:[%s298 + $0xf50] sm:$0xff]
        %v1548 = vld [vmem:[%s298 + $0xf58] sm:$0xff]
        %v1549 = vld [vmem:[%s298 + $0xf60] sm:$0xff]
        %v1550 = vld [vmem:[%s298 + $0xf68] sm:$0xff]
        %v1551 = vld [vmem:[%s298 + $0xf70] sm:$0xff]
        %v1552 = vld [vmem:[%s298 + $0xf78] sm:$0xff]
        %v1553 = vld [vmem:[%s298 + $0xf80] sm:$0xff]
        %v1554 = vld [vmem:[%s298 + $0xf88] sm:$0xff]
        %v1555 = vld [vmem:[%s298 + $0xf90] sm:$0xff]
        %v1556 = vld [vmem:[%s298 + $0xf98] sm:$0xff]
        %v1557 = vld [vmem:[%s298 + $0xfa0] sm:$0xff]
        %v1558 = vld [vmem:[%s298 + $0xfa8] sm:$0xff]
        %v1559 = vld [vmem:[%s298 + $0xfb0] sm:$0xff]
        %v1560 = vld [vmem:[%s298 + $0xfb8] sm:$0xff]
        %v1561 = vld [vmem:[%s298 + $0xfc0] sm:$0xff]
        %v1562 = vld [vmem:[%s298 + $0xfc8] sm:$0xff]
        %v1563 = vld [vmem:[%s298 + $0xfd0] sm:$0xff]
        %v1564 = vld [vmem:[%s298 + $0xfd8] sm:$0xff]
        %v1565 = vld [vmem:[%s298 + $0xfe0] sm:$0xff]
        %v1566 = vld [vmem:[%s298 + $0xfe8] sm:$0xff]
        %v1567 = vld [vmem:[%s298 + $0xff0] sm:$0xff]
        %v1568 = vld [vmem:[%s298 + $0xff8] sm:$0xff]
        %v1569 = vld [vmem:[%s298 + $0x1000] sm:$0xff]
        %v1570 = vld [vmem:[%s298 + $0x1008] sm:$0xff]
        %v1571 = vld [vmem:[%s298 + $0x1010] sm:$0xff]
        %v1572 = vld [vmem:[%s298 + $0x1018] sm:$0xff]
        %v1573 = vld [vmem:[%s298 + $0x1020] sm:$0xff]
        %v1574 = vld [vmem:[%s298 + $0x1028] sm:$0xff]
        %v1575 = vld [vmem:[%s298 + $0x1030] sm:$0xff]
        %v1576 = vld [vmem:[%s298 + $0x1038] sm:$0xff]
        %v1577 = vld [vmem:[%s298 + $0x1040] sm:$0xff]
        %v1578 = vld [vmem:[%s298 + $0x1048] sm:$0xff]
        %v1579 = vld [vmem:[%s298 + $0x1050] sm:$0xff]
        %v1580 = vld [vmem:[%s298 + $0x1058] sm:$0xff]
        %v1581 = vld [vmem:[%s298 + $0x1060] sm:$0xff]
        %v1582 = vld [vmem:[%s298 + $0x1068] sm:$0xff]
        %v1583 = vld [vmem:[%s298 + $0x1070] sm:$0xff]
        %v1584 = vld [vmem:[%s298 + $0x1078] sm:$0xff]
        %v1585 = vld [vmem:[%s298 + $0x1080] sm:$0xff]
        %v1586 = vld [vmem:[%s298 + $0x1088] sm:$0xff]
        %v1587 = vld [vmem:[%s298 + $0x1090] sm:$0xff]
        %v1588 = vld [vmem:[%s298 + $0x1098] sm:$0xff]
        %v1589 = vld [vmem:[%s298 + $0x10a0] sm:$0xff]
        %v1590 = vld [vmem:[%s298 + $0x10a8] sm:$0xff]
        %v1591 = vld [vmem:[%s298 + $0x10b0] sm:$0xff]
        %v1592 = vld [vmem:[%s298 + $0x10b8] sm:$0xff]
        %v1593 = vld [vmem:[%s298 + $0x10c0] sm:$0xff]
        %v1594 = vld [vmem:[%s298 + $0x10c8] sm:$0xff]
        %v1595 = vld [vmem:[%s298 + $0x10d0] sm:$0xff]
        %v1596 = vld [vmem:[%s298 + $0x10d8] sm:$0xff]
        %v1597 = vld [vmem:[%s298 + $0x10e0] sm:$0xff]
        %v1598 = vld [vmem:[%s298 + $0x10e8] sm:$0xff]
        %v1599 = vld [vmem:[%s298 + $0x10f0] sm:$0xff]
        %v1600 = vld [vmem:[%s298 + $0x10f8] sm:$0xff]
        %v1601 = vld [vmem:[%s298 + $0x1100] sm:$0xff]
        %v1602 = vld [vmem:[%s298 + $0x1108] sm:$0xff]
        %v1603 = vld [vmem:[%s298 + $0x1110] sm:$0xff]
        %v1604 = vld [vmem:[%s298 + $0x1118] sm:$0xff]
        %v1605 = vld [vmem:[%s298 + $0x1120] sm:$0xff]
        %v1606 = vld [vmem:[%s298 + $0x1128] sm:$0xff]
        %v1607 = vld [vmem:[%s298 + $0x1130] sm:$0xff]
        %v1608 = vld [vmem:[%s298 + $0x1138] sm:$0xff]
        %v1609 = vld [vmem:[%s298 + $0x1140] sm:$0xff]
        %v1610 = vld [vmem:[%s298 + $0x1148] sm:$0xff]
        %v1611 = vld [vmem:[%s298 + $0x1150] sm:$0xff]
        %v1612 = vld [vmem:[%s298 + $0x1158] sm:$0xff]
        %v1613 = vld [vmem:[%s298 + $0x1160] sm:$0xff]
        %v1614 = vld [vmem:[%s298 + $0x1168] sm:$0xff]
        %v1615 = vld [vmem:[%s298 + $0x1170] sm:$0xff]
        %v1616 = vld [vmem:[%s298 + $0x1178] sm:$0xff]
        %v1617 = vld [vmem:[%s298 + $0x1180] sm:$0xff]
        %v1618 = vld [vmem:[%s298 + $0x1188] sm:$0xff]
        %v1619 = vld [vmem:[%s298 + $0x1190] sm:$0xff]
        %v1620 = vld [vmem:[%s298 + $0x1198] sm:$0xff]
        %v1621 = vld [vmem:[%s298 + $0x11a0] sm:$0xff]
        %v1622 = vld [vmem:[%s298 + $0x11a8] sm:$0xff]
        %v1623 = vld [vmem:[%s298 + $0x11b0] sm:$0xff]
        %v1624 = vld [vmem:[%s298 + $0x11b8] sm:$0xff]
        %v1625 = vld [vmem:[%s298 + $0x11c0] sm:$0xff]
        %v1626 = vld [vmem:[%s298 + $0x11c8] sm:$0xff]
        %v1627 = vld [vmem:[%s298 + $0x11d0] sm:$0xff]
        %v1628 = vld [vmem:[%s298 + $0x11d8] sm:$0xff]
        %v1629 = vld [vmem:[%s298 + $0x11e0] sm:$0xff]
        %v1630 = vld [vmem:[%s298 + $0x11e8] sm:$0xff]
        %v1631 = vld [vmem:[%s298 + $0x11f0] sm:$0xff]
        %v1632 = vld [vmem:[%s298 + $0x11f8] sm:$0xff]
        %v1633 = vld [vmem:[%s298 + $0x1200] sm:$0xff]
        %v1634 = vld [vmem:[%s298 + $0x1208] sm:$0xff]
        %v1635 = vld [vmem:[%s298 + $0x1210] sm:$0xff]
        %v1636 = vld [vmem:[%s298 + $0x1218] sm:$0xff]
        %v1637 = vld [vmem:[%s298 + $0x1220] sm:$0xff]
        %v1638 = vld [vmem:[%s298 + $0x1228] sm:$0xff]
        %v1639 = vld [vmem:[%s298 + $0x1230] sm:$0xff]
        %v1640 = vld [vmem:[%s298 + $0x1238] sm:$0xff]
        %v1641 = vld [vmem:[%s298 + $0x1240] sm:$0xff]
        %v1642 = vld [vmem:[%s298 + $0x1248] sm:$0xff]
        %v1643 = vld [vmem:[%s298 + $0x1250] sm:$0xff]
        %v1644 = vld [vmem:[%s298 + $0x1258] sm:$0xff]
        %v1645 = vld [vmem:[%s298 + $0x1260] sm:$0xff]
        %v1646 = vld [vmem:[%s298 + $0x1268] sm:$0xff]
        %v1647 = vld [vmem:[%s298 + $0x1270] sm:$0xff]
        %v1648 = vld [vmem:[%s298 + $0x1278] sm:$0xff]
        %v1649 = vld [vmem:[%s298 + $0x1280] sm:$0xff]
        %v1650 = vld [vmem:[%s298 + $0x1288] sm:$0xff]
        %v1651 = vld [vmem:[%s298 + $0x1290] sm:$0xff]
        %v1652 = vld [vmem:[%s298 + $0x1298] sm:$0xff]
        %v1653 = vld [vmem:[%s298 + $0x12a0] sm:$0xff]
        %v1654 = vld [vmem:[%s298 + $0x12a8] sm:$0xff]
        %v1655 = vld [vmem:[%s298 + $0x12b0] sm:$0xff]
        %v1656 = vld [vmem:[%s298 + $0x12b8] sm:$0xff]
        %v1657 = vld [vmem:[%s298 + $0x12c0] sm:$0xff]
        %v1658 = vld [vmem:[%s298 + $0x12c8] sm:$0xff]
        %v1659 = vld [vmem:[%s298 + $0x12d0] sm:$0xff]
        %v1660 = vld [vmem:[%s298 + $0x12d8] sm:$0xff]
        %v1661 = vld [vmem:[%s298 + $0x12e0] sm:$0xff]
        %v1662 = vld [vmem:[%s298 + $0x12e8] sm:$0xff]
        %v1663 = vld [vmem:[%s298 + $0x12f0] sm:$0xff]
        %v1664 = vld [vmem:[%s298 + $0x12f8] sm:$0xff]
        %v1665 = vld [vmem:[%s298 + $0x1300] sm:$0xff]
        %v1666 = vld [vmem:[%s298 + $0x1308] sm:$0xff]
        %v1667 = vld [vmem:[%s298 + $0x1310] sm:$0xff]
        %v1668 = vld [vmem:[%s298 + $0x1318] sm:$0xff]
        %v1669 = vld [vmem:[%s298 + $0x1320] sm:$0xff]
        %v1670 = vld [vmem:[%s298 + $0x1328] sm:$0xff]
        %v1671 = vld [vmem:[%s298 + $0x1330] sm:$0xff]
        %v1672 = vld [vmem:[%s298 + $0x1338] sm:$0xff]
        %v1673 = vld [vmem:[%s298 + $0x1340] sm:$0xff]
        %v1674 = vld [vmem:[%s298 + $0x1348] sm:$0xff]
        %v1675 = vld [vmem:[%s298 + $0x1350] sm:$0xff]
        %v1676 = vld [vmem:[%s298 + $0x1358] sm:$0xff]
        %v1677 = vld [vmem:[%s298 + $0x1360] sm:$0xff]
        %v1678 = vld [vmem:[%s298 + $0x1368] sm:$0xff]
        %v1679 = vld [vmem:[%s298 + $0x1370] sm:$0xff]
        %v1680 = vld [vmem:[%s298 + $0x1378] sm:$0xff]
        %v1681 = vld [vmem:[%s298 + $0x1380] sm:$0xff]
        %v1682 = vld [vmem:[%s298 + $0x1388] sm:$0xff]
        %v1683 = vld [vmem:[%s298 + $0x1390] sm:$0xff]
        %v1684 = vld [vmem:[%s298 + $0x1398] sm:$0xff]
        %v1685 = vld [vmem:[%s298 + $0x13a0] sm:$0xff]
        %v1686 = vld [vmem:[%s298 + $0x13a8] sm:$0xff]
        %v1687 = vld [vmem:[%s298 + $0x13b0] sm:$0xff]
        %v1688 = vld [vmem:[%s298 + $0x13b8] sm:$0xff]
        %v1689 = vld [vmem:[%s298 + $0x13c0] sm:$0xff]
        %v1690 = vld [vmem:[%s298 + $0x13c8] sm:$0xff]
        %v1691 = vld [vmem:[%s298 + $0x13d0] sm:$0xff]
        %v1692 = vld [vmem:[%s298 + $0x13d8] sm:$0xff]
        %v1693 = vld [vmem:[%s298 + $0x13e0] sm:$0xff]
        %v1694 = vld [vmem:[%s298 + $0x13e8] sm:$0xff]
        %v1695 = vld [vmem:[%s298 + $0x13f0] sm:$0xff]
        %v1696 = vld [vmem:[%s298 + $0x13f8] sm:$0xff]
        %v1697 = vld [vmem:[%s298 + $0x1400] sm:$0xff]
        %v1698 = vld [vmem:[%s298 + $0x1408] sm:$0xff]
        %v1699 = vld [vmem:[%s298 + $0x1410] sm:$0xff]
        %v1700 = vld [vmem:[%s298 + $0x1418] sm:$0xff]
        %v1701 = vld [vmem:[%s298 + $0x1420] sm:$0xff]
        %v1702 = vld [vmem:[%s298 + $0x1428] sm:$0xff]
        %v1703 = vld [vmem:[%s298 + $0x1430] sm:$0xff]
        %v1704 = vld [vmem:[%s298 + $0x1438] sm:$0xff]
        %v1705 = vld [vmem:[%s298 + $0x1440] sm:$0xff]
        %v1706 = vld [vmem:[%s298 + $0x1448] sm:$0xff]
        %v1707 = vld [vmem:[%s298 + $0x1450] sm:$0xff]
        %v1708 = vld [vmem:[%s298 + $0x1458] sm:$0xff]
        %v1709 = vld [vmem:[%s298 + $0x1460] sm:$0xff]
        %v1710 = vld [vmem:[%s298 + $0x1468] sm:$0xff]
        %v1711 = vld [vmem:[%s298 + $0x1470] sm:$0xff]
        %v1712 = vld [vmem:[%s298 + $0x1478] sm:$0xff]
        %v1713 = vld [vmem:[%s298 + $0x1480] sm:$0xff]
        %v1714 = vld [vmem:[%s298 + $0x1488] sm:$0xff]
        %v1715 = vld [vmem:[%s298 + $0x1490] sm:$0xff]
        %v1716 = vld [vmem:[%s298 + $0x1498] sm:$0xff]
        %v1717 = vld [vmem:[%s298 + $0x14a0] sm:$0xff]
        %v1718 = vld [vmem:[%s298 + $0x14a8] sm:$0xff]
        %v1719 = vld [vmem:[%s298 + $0x14b0] sm:$0xff]
        %v1720 = vld [vmem:[%s298 + $0x14b8] sm:$0xff]
        %v1721 = vld [vmem:[%s298 + $0x14c0] sm:$0xff]
        %v1722 = vld [vmem:[%s298 + $0x14c8] sm:$0xff]
        %v1723 = vld [vmem:[%s298 + $0x14d0] sm:$0xff]
        %v1724 = vld [vmem:[%s298 + $0x14d8] sm:$0xff]
        %v1725 = vld [vmem:[%s298 + $0x14e0] sm:$0xff]
        %v1726 = vld [vmem:[%s298 + $0x14e8] sm:$0xff]
        %v1727 = vld [vmem:[%s298 + $0x14f0] sm:$0xff]
        %v1728 = vld [vmem:[%s298 + $0x14f8] sm:$0xff]
        %v1729 = vld [vmem:[%s298 + $0x1500] sm:$0xff]
        %v1730 = vld [vmem:[%s298 + $0x1508] sm:$0xff]
        %v1731 = vld [vmem:[%s298 + $0x1510] sm:$0xff]
        %v1732 = vld [vmem:[%s298 + $0x1518] sm:$0xff]
        %v1733 = vld [vmem:[%s298 + $0x1520] sm:$0xff]
        %v1734 = vld [vmem:[%s298 + $0x1528] sm:$0xff]
        %v1735 = vld [vmem:[%s298 + $0x1530] sm:$0xff]
        %v1736 = vld [vmem:[%s298 + $0x1538] sm:$0xff]
        %v1737 = vld [vmem:[%s298 + $0x1540] sm:$0xff]
        %v1738 = vld [vmem:[%s298 + $0x1548] sm:$0xff]
        %v1739 = vld [vmem:[%s298 + $0x1550] sm:$0xff]
        %v1740 = vld [vmem:[%s298 + $0x1558] sm:$0xff]
        %v1741 = vld [vmem:[%s298 + $0x1560] sm:$0xff]
        %v1742 = vld [vmem:[%s298 + $0x1568] sm:$0xff]
        %v1743 = vld [vmem:[%s298 + $0x1570] sm:$0xff]
        %v1744 = vld [vmem:[%s298 + $0x1578] sm:$0xff]
        %v1745 = vld [vmem:[%s298 + $0x1580] sm:$0xff]
        %v1746 = vld [vmem:[%s298 + $0x1588] sm:$0xff]
        %v1747 = vld [vmem:[%s298 + $0x1590] sm:$0xff]
        %v1748 = vld [vmem:[%s298 + $0x1598] sm:$0xff]
        %v1749 = vld [vmem:[%s298 + $0x15a0] sm:$0xff]
        %v1750 = vld [vmem:[%s298 + $0x15a8] sm:$0xff]
        %v1751 = vld [vmem:[%s298 + $0x15b0] sm:$0xff]
        %v1752 = vld [vmem:[%s298 + $0x15b8] sm:$0xff]
        %v1753 = vld [vmem:[%s298 + $0x15c0] sm:$0xff]
        %v1754 = vld [vmem:[%s298 + $0x15c8] sm:$0xff]
        %v1755 = vld [vmem:[%s298 + $0x15d0] sm:$0xff]
        %v1756 = vld [vmem:[%s298 + $0x15d8] sm:$0xff]
        %v1757 = vld [vmem:[%s298 + $0x15e0] sm:$0xff]
        %v1758 = vld [vmem:[%s298 + $0x15e8] sm:$0xff]
        %v1759 = vld [vmem:[%s298 + $0x15f0] sm:$0xff]
        %v1760 = vld [vmem:[%s298 + $0x15f8] sm:$0xff]
        %v1761 = vld [vmem:[%s298 + $0x1600] sm:$0xff]
        %v1762 = vld [vmem:[%s298 + $0x1608] sm:$0xff]
        %v1763 = vld [vmem:[%s298 + $0x1610] sm:$0xff]
        %v1764 = vld [vmem:[%s298 + $0x1618] sm:$0xff]
        %v1765 = vld [vmem:[%s298 + $0x1620] sm:$0xff]
        %v1766 = vld [vmem:[%s298 + $0x1628] sm:$0xff]
        %v1767 = vld [vmem:[%s298 + $0x1630] sm:$0xff]
        %v1768 = vld [vmem:[%s298 + $0x1638] sm:$0xff]
        %v1769 = vld [vmem:[%s298 + $0x1640] sm:$0xff]
        %v1770 = vld [vmem:[%s298 + $0x1648] sm:$0xff]
        %v1771 = vld [vmem:[%s298 + $0x1650] sm:$0xff]
        %v1772 = vld [vmem:[%s298 + $0x1658] sm:$0xff]
        %v1773 = vld [vmem:[%s298 + $0x1660] sm:$0xff]
        %v1774 = vld [vmem:[%s298 + $0x1668] sm:$0xff]
        %v1775 = vld [vmem:[%s298 + $0x1670] sm:$0xff]
        %v1776 = vld [vmem:[%s298 + $0x1678] sm:$0xff]
        %v1777 = vld [vmem:[%s298 + $0x1680] sm:$0xff]
        %v1778 = vld [vmem:[%s298 + $0x1688] sm:$0xff]
        %v1779 = vld [vmem:[%s298 + $0x1690] sm:$0xff]
        %v1780 = vld [vmem:[%s298 + $0x1698] sm:$0xff]
        %v1781 = vld [vmem:[%s298 + $0x16a0] sm:$0xff]
        %v1782 = vld [vmem:[%s298 + $0x16a8] sm:$0xff]
        %v1783 = vld [vmem:[%s298 + $0x16b0] sm:$0xff]
        %v1784 = vld [vmem:[%s298 + $0x16b8] sm:$0xff]
        %v1785 = vld [vmem:[%s298 + $0x16c0] sm:$0xff]
        %v1786 = vld [vmem:[%s298 + $0x16c8] sm:$0xff]
        %v1787 = vld [vmem:[%s298 + $0x16d0] sm:$0xff]
        %v1788 = vld [vmem:[%s298 + $0x16d8] sm:$0xff]
        %v1789 = vld [vmem:[%s298 + $0x16e0] sm:$0xff]
        %v1790 = vld [vmem:[%s298 + $0x16e8] sm:$0xff]
        %v1791 = vld [vmem:[%s298 + $0x16f0] sm:$0xff]
        %v1792 = vld [vmem:[%s298 + $0x16f8] sm:$0xff]
        %v1793 = vld [vmem:[%s298 + $0x1700] sm:$0xff]
        %v1794 = vld [vmem:[%s298 + $0x1708] sm:$0xff]
        %v1795 = vld [vmem:[%s298 + $0x1710] sm:$0xff]
        %v1796 = vld [vmem:[%s298 + $0x1718] sm:$0xff]
        %v1797 = vld [vmem:[%s298 + $0x1720] sm:$0xff]
        %v1798 = vld [vmem:[%s298 + $0x1728] sm:$0xff]
        %v1799 = vld [vmem:[%s298 + $0x1730] sm:$0xff]
        %v1800 = vld [vmem:[%s298 + $0x1738] sm:$0xff]
        %v1801 = vld [vmem:[%s298 + $0x1740] sm:$0xff]
        %v1802 = vld [vmem:[%s298 + $0x1748] sm:$0xff]
        %v1803 = vld [vmem:[%s298 + $0x1750] sm:$0xff]
        %v1804 = vld [vmem:[%s298 + $0x1758] sm:$0xff]
        %v1805 = vld [vmem:[%s298 + $0x1760] sm:$0xff]
        %v1806 = vld [vmem:[%s298 + $0x1768] sm:$0xff]
        %v1807 = vld [vmem:[%s298 + $0x1770] sm:$0xff]
        %v1808 = vld [vmem:[%s298 + $0x1778] sm:$0xff]
        %v1809 = vld [vmem:[%s298 + $0x1780] sm:$0xff]
        %v1810 = vld [vmem:[%s298 + $0x1788] sm:$0xff]
        %v1811 = vld [vmem:[%s298 + $0x1790] sm:$0xff]
        %v1812 = vld [vmem:[%s298 + $0x1798] sm:$0xff]
        %v1813 = vld [vmem:[%s298 + $0x17a0] sm:$0xff]
        %v1814 = vld [vmem:[%s298 + $0x17a8] sm:$0xff]
        %v1815 = vld [vmem:[%s298 + $0x17b0] sm:$0xff]
        %v1816 = vld [vmem:[%s298 + $0x17b8] sm:$0xff]
        %v1817 = vld [vmem:[%s298 + $0x17c0] sm:$0xff]
        %v1818 = vld [vmem:[%s298 + $0x17c8] sm:$0xff]
        %v1819 = vld [vmem:[%s298 + $0x17d0] sm:$0xff]
        %v1820 = vld [vmem:[%s298 + $0x17d8] sm:$0xff]
        %v1821 = vld [vmem:[%s298 + $0x17e0] sm:$0xff]
        %v1822 = vld [vmem:[%s298 + $0x17e8] sm:$0xff]
        %v1823 = vld [vmem:[%s298 + $0x17f0] sm:$0xff]
        %v1824 = vld [vmem:[%s298 + $0x17f8] sm:$0xff]
        %v1825 = vld [vmem:[%s298 + $0x1800] sm:$0xff]
        %v1826 = vld [vmem:[%s298 + $0x1808] sm:$0xff]
        %v1827 = vld [vmem:[%s298 + $0x1810] sm:$0xff]
        %v1828 = vld [vmem:[%s298 + $0x1818] sm:$0xff]
        %v1829 = vld [vmem:[%s298 + $0x1820] sm:$0xff]
        %v1830 = vld [vmem:[%s298 + $0x1828] sm:$0xff]
        %v1831 = vld [vmem:[%s298 + $0x1830] sm:$0xff]
        %v1832 = vld [vmem:[%s298 + $0x1838] sm:$0xff]
        %v1833 = vld [vmem:[%s298 + $0x1840] sm:$0xff]
        %v1834 = vld [vmem:[%s298 + $0x1848] sm:$0xff]
        %v1835 = vld [vmem:[%s298 + $0x1850] sm:$0xff]
        %v1836 = vld [vmem:[%s298 + $0x1858] sm:$0xff]
        %v1837 = vld [vmem:[%s298 + $0x1860] sm:$0xff]
        %v1838 = vld [vmem:[%s298 + $0x1868] sm:$0xff]
        %v1839 = vld [vmem:[%s298 + $0x1870] sm:$0xff]
        %v1840 = vld [vmem:[%s298 + $0x1878] sm:$0xff]
        %v1841 = vld [vmem:[%s298 + $0x1880] sm:$0xff]
        %v1842 = vld [vmem:[%s298 + $0x1888] sm:$0xff]
        %v1843 = vld [vmem:[%s298 + $0x1890] sm:$0xff]
        %v1844 = vld [vmem:[%s298 + $0x1898] sm:$0xff]
        %v1845 = vld [vmem:[%s298 + $0x18a0] sm:$0xff]
        %v1846 = vld [vmem:[%s298 + $0x18a8] sm:$0xff]
        %v1847 = vld [vmem:[%s298 + $0x18b0] sm:$0xff]
        %v1848 = vld [vmem:[%s298 + $0x18b8] sm:$0xff]
        %v1849 = vld [vmem:[%s298 + $0x18c0] sm:$0xff]
        %v1850 = vld [vmem:[%s298 + $0x18c8] sm:$0xff]
        %v1851 = vld [vmem:[%s298 + $0x18d0] sm:$0xff]
        %v1852 = vld [vmem:[%s298 + $0x18d8] sm:$0xff]
        %v1853 = vld [vmem:[%s298 + $0x18e0] sm:$0xff]
        %v1854 = vld [vmem:[%s298 + $0x18e8] sm:$0xff]
        %v1855 = vld [vmem:[%s298 + $0x18f0] sm:$0xff]
        %v1856 = vld [vmem:[%s298 + $0x18f8] sm:$0xff]
        %v1857 = vld [vmem:[%s298 + $0x1900] sm:$0xff]
        %v1858 = vld [vmem:[%s298 + $0x1908] sm:$0xff]
        %v1859 = vld [vmem:[%s298 + $0x1910] sm:$0xff]
        %v1860 = vld [vmem:[%s298 + $0x1918] sm:$0xff]
        %v1861 = vld [vmem:[%s298 + $0x1920] sm:$0xff]
        %v1862 = vld [vmem:[%s298 + $0x1928] sm:$0xff]
        %v1863 = vld [vmem:[%s298 + $0x1930] sm:$0xff]
        %v1864 = vld [vmem:[%s298 + $0x1938] sm:$0xff]
        %v1865 = vld [vmem:[%s298 + $0x1940] sm:$0xff]
        %v1866 = vld [vmem:[%s298 + $0x1948] sm:$0xff]
        %v1867 = vld [vmem:[%s298 + $0x1950] sm:$0xff]
        %v1868 = vld [vmem:[%s298 + $0x1958] sm:$0xff]
        %v1869 = vld [vmem:[%s298 + $0x1960] sm:$0xff]
        %v1870 = vld [vmem:[%s298 + $0x1968] sm:$0xff]
        %v1871 = vld [vmem:[%s298 + $0x1970] sm:$0xff]
        %v1872 = vld [vmem:[%s298 + $0x1978] sm:$0xff]
        %v1873 = vld [vmem:[%s298 + $0x1980] sm:$0xff]
        %v1874 = vld [vmem:[%s298 + $0x1988] sm:$0xff]
        %v1875 = vld [vmem:[%s298 + $0x1990] sm:$0xff]
        %v1876 = vld [vmem:[%s298 + $0x1998] sm:$0xff]
        %v1877 = vld [vmem:[%s298 + $0x19a0] sm:$0xff]
        %v1878 = vld [vmem:[%s298 + $0x19a8] sm:$0xff]
        %v1879 = vld [vmem:[%s298 + $0x19b0] sm:$0xff]
        %v1880 = vld [vmem:[%s298 + $0x19b8] sm:$0xff]
        %v1881 = vld [vmem:[%s298 + $0x19c0] sm:$0xff]
        %v1882 = vld [vmem:[%s298 + $0x19c8] sm:$0xff]
        %v1883 = vld [vmem:[%s298 + $0x19d0] sm:$0xff]
        %v1884 = vld [vmem:[%s298 + $0x19d8] sm:$0xff]
        %v1885 = vld [vmem:[%s298 + $0x19e0] sm:$0xff]
        %v1886 = vld [vmem:[%s298 + $0x19e8] sm:$0xff]
        %v1887 = vld [vmem:[%s298 + $0x19f0] sm:$0xff]
        %v1888 = vld [vmem:[%s298 + $0x19f8] sm:$0xff]
        %v1889 = vld [vmem:[%s298 + $0x1a00] sm:$0xff]
        %v1890 = vld [vmem:[%s298 + $0x1a08] sm:$0xff]
        %v1891 = vld [vmem:[%s298 + $0x1a10] sm:$0xff]
        %v1892 = vld [vmem:[%s298 + $0x1a18] sm:$0xff]
        %v1893 = vld [vmem:[%s298 + $0x1a20] sm:$0xff]
        %v1894 = vld [vmem:[%s298 + $0x1a28] sm:$0xff]
        %v1895 = vld [vmem:[%s298 + $0x1a30] sm:$0xff]
        %v1896 = vld [vmem:[%s298 + $0x1a38] sm:$0xff]
        %v1897 = vld [vmem:[%s298 + $0x1a40] sm:$0xff]
        %v1898 = vld [vmem:[%s298 + $0x1a48] sm:$0xff]
        %v1899 = vld [vmem:[%s298 + $0x1a50] sm:$0xff]
        %v1900 = vld [vmem:[%s298 + $0x1a58] sm:$0xff]
        %v1901 = vld [vmem:[%s298 + $0x1a60] sm:$0xff]
        %v1902 = vld [vmem:[%s298 + $0x1a68] sm:$0xff]
        %v1903 = vld [vmem:[%s298 + $0x1a70] sm:$0xff]
        %v1904 = vld [vmem:[%s298 + $0x1a78] sm:$0xff]
        %v1905 = vld [vmem:[%s298 + $0x1a80] sm:$0xff]
        %v1906 = vld [vmem:[%s298 + $0x1a88] sm:$0xff]
        %v1907 = vld [vmem:[%s298 + $0x1a90] sm:$0xff]
        %v1908 = vld [vmem:[%s298 + $0x1a98] sm:$0xff]
        %v1909 = vld [vmem:[%s298 + $0x1aa0] sm:$0xff]
        %v1910 = vld [vmem:[%s298 + $0x1aa8] sm:$0xff]
        %v1911 = vld [vmem:[%s298 + $0x1ab0] sm:$0xff]
        %v1912 = vld [vmem:[%s298 + $0x1ab8] sm:$0xff]
        %v1913 = vld [vmem:[%s298 + $0x1ac0] sm:$0xff]
        %v1914 = vld [vmem:[%s298 + $0x1ac8] sm:$0xff]
        %v1915 = vld [vmem:[%s298 + $0x1ad0] sm:$0xff]
        %v1916 = vld [vmem:[%s298 + $0x1ad8] sm:$0xff]
        %v1917 = vld [vmem:[%s298 + $0x1ae0] sm:$0xff]
        %v1918 = vld [vmem:[%s298 + $0x1ae8] sm:$0xff]
        %v1919 = vld [vmem:[%s298 + $0x1af0] sm:$0xff]
        %v1920 = vld [vmem:[%s298 + $0x1af8] sm:$0xff]
        %v1921 = vld [vmem:[%s298 + $0x1b00] sm:$0xff]
        %v1922 = vld [vmem:[%s298 + $0x1b08] sm:$0xff]
        %v1923 = vld [vmem:[%s298 + $0x1b10] sm:$0xff]
        %v1924 = vld [vmem:[%s298 + $0x1b18] sm:$0xff]
        %v1925 = vld [vmem:[%s298 + $0x1b20] sm:$0xff]
        %v1926 = vld [vmem:[%s298 + $0x1b28] sm:$0xff]
        %v1927 = vld [vmem:[%s298 + $0x1b30] sm:$0xff]
        %v1928 = vld [vmem:[%s298 + $0x1b38] sm:$0xff]
        %v1929 = vld [vmem:[%s298 + $0x1b40] sm:$0xff]
        %v1930 = vld [vmem:[%s298 + $0x1b48] sm:$0xff]
        %v1931 = vld [vmem:[%s298 + $0x1b50] sm:$0xff]
        %v1932 = vld [vmem:[%s298 + $0x1b58] sm:$0xff]
        %v1933 = vld [vmem:[%s298 + $0x1b60] sm:$0xff]
        %v1934 = vld [vmem:[%s298 + $0x1b68] sm:$0xff]
        %v1935 = vld [vmem:[%s298 + $0x1b70] sm:$0xff]
        %v1936 = vld [vmem:[%s298 + $0x1b78] sm:$0xff]
        %v1937 = vld [vmem:[%s298 + $0x1b80] sm:$0xff]
        %v1938 = vld [vmem:[%s298 + $0x1b88] sm:$0xff]
        %v1939 = vld [vmem:[%s298 + $0x1b90] sm:$0xff]
        %v1940 = vld [vmem:[%s298 + $0x1b98] sm:$0xff]
        %v1941 = vld [vmem:[%s298 + $0x1ba0] sm:$0xff]
        %v1942 = vld [vmem:[%s298 + $0x1ba8] sm:$0xff]
        %v1943 = vld [vmem:[%s298 + $0x1bb0] sm:$0xff]
        %v1944 = vld [vmem:[%s298 + $0x1bb8] sm:$0xff]
        %v1945 = vld [vmem:[%s298 + $0x1bc0] sm:$0xff]
        %v1946 = vld [vmem:[%s298 + $0x1bc8] sm:$0xff]
        %v1947 = vld [vmem:[%s298 + $0x1bd0] sm:$0xff]
        %v1948 = vld [vmem:[%s298 + $0x1bd8] sm:$0xff]
        %v1949 = vld [vmem:[%s298 + $0x1be0] sm:$0xff]
        %v1950 = vld [vmem:[%s298 + $0x1be8] sm:$0xff]
        %v1951 = vld [vmem:[%s298 + $0x1bf0] sm:$0xff]
        %v1952 = vld [vmem:[%s298 + $0x1bf8] sm:$0xff]
        %v1953 = vld [vmem:[%s298 + $0x1c00] sm:$0xff]
        %v1954 = vld [vmem:[%s298 + $0x1c08] sm:$0xff]
        %v1955 = vld [vmem:[%s298 + $0x1c10] sm:$0xff]
        %v1956 = vld [vmem:[%s298 + $0x1c18] sm:$0xff]
        %v1957 = vld [vmem:[%s298 + $0x1c20] sm:$0xff]
        %v1958 = vld [vmem:[%s298 + $0x1c28] sm:$0xff]
        %v1959 = vld [vmem:[%s298 + $0x1c30] sm:$0xff]
        %v1960 = vld [vmem:[%s298 + $0x1c38] sm:$0xff]
        %v1961 = vld [vmem:[%s298 + $0x1c40] sm:$0xff]
        %v1962 = vld [vmem:[%s298 + $0x1c48] sm:$0xff]
        %v1963 = vld [vmem:[%s298 + $0x1c50] sm:$0xff]
        %v1964 = vld [vmem:[%s298 + $0x1c58] sm:$0xff]
        %v1965 = vld [vmem:[%s298 + $0x1c60] sm:$0xff]
        %v1966 = vld [vmem:[%s298 + $0x1c68] sm:$0xff]
        %v1967 = vld [vmem:[%s298 + $0x1c70] sm:$0xff]
        %v1968 = vld [vmem:[%s298 + $0x1c78] sm:$0xff]
        %v1969 = vld [vmem:[%s298 + $0x1c80] sm:$0xff]
        %v1970 = vld [vmem:[%s298 + $0x1c88] sm:$0xff]
        %v1971 = vld [vmem:[%s298 + $0x1c90] sm:$0xff]
        %v1972 = vld [vmem:[%s298 + $0x1c98] sm:$0xff]
        %v1973 = vld [vmem:[%s298 + $0x1ca0] sm:$0xff]
        %v1974 = vld [vmem:[%s298 + $0x1ca8] sm:$0xff]
        %v1975 = vld [vmem:[%s298 + $0x1cb0] sm:$0xff]
        %v1976 = vld [vmem:[%s298 + $0x1cb8] sm:$0xff]
        %v1977 = vld [vmem:[%s298 + $0x1cc0] sm:$0xff]
        %v1978 = vld [vmem:[%s298 + $0x1cc8] sm:$0xff]
        %v1979 = vld [vmem:[%s298 + $0x1cd0] sm:$0xff]
        %v1980 = vld [vmem:[%s298 + $0x1cd8] sm:$0xff]
        %v1981 = vld [vmem:[%s298 + $0x1ce0] sm:$0xff]
        %v1982 = vld [vmem:[%s298 + $0x1ce8] sm:$0xff]
        %v1983 = vld [vmem:[%s298 + $0x1cf0] sm:$0xff]
        %v1984 = vld [vmem:[%s298 + $0x1cf8] sm:$0xff]
        %v1985 = vld [vmem:[%s298 + $0x1d00] sm:$0xff]
        %v1986 = vld [vmem:[%s298 + $0x1d08] sm:$0xff]
        %v1987 = vld [vmem:[%s298 + $0x1d10] sm:$0xff]
        %v1988 = vld [vmem:[%s298 + $0x1d18] sm:$0xff]
        %v1989 = vld [vmem:[%s298 + $0x1d20] sm:$0xff]
        %v1990 = vld [vmem:[%s298 + $0x1d28] sm:$0xff]
        %v1991 = vld [vmem:[%s298 + $0x1d30] sm:$0xff]
        %v1992 = vld [vmem:[%s298 + $0x1d38] sm:$0xff]
        %v1993 = vld [vmem:[%s298 + $0x1d40] sm:$0xff]
        %v1994 = vld [vmem:[%s298 + $0x1d48] sm:$0xff]
        %v1995 = vld [vmem:[%s298 + $0x1d50] sm:$0xff]
        %v1996 = vld [vmem:[%s298 + $0x1d58] sm:$0xff]
        %v1997 = vld [vmem:[%s298 + $0x1d60] sm:$0xff]
        %v1998 = vld [vmem:[%s298 + $0x1d68] sm:$0xff]
        %v1999 = vld [vmem:[%s298 + $0x1d70] sm:$0xff]
        %v2000 = vld [vmem:[%s298 + $0x1d78] sm:$0xff]
        %v2001 = vld [vmem:[%s298 + $0x1d80] sm:$0xff]
        %v2002 = vld [vmem:[%s298 + $0x1d88] sm:$0xff]
        %v2003 = vld [vmem:[%s298 + $0x1d90] sm:$0xff]
        %v2004 = vld [vmem:[%s298 + $0x1d98] sm:$0xff]
        %v2005 = vld [vmem:[%s298 + $0x1da0] sm:$0xff]
        %v2006 = vld [vmem:[%s298 + $0x1da8] sm:$0xff]
        %v2007 = vld [vmem:[%s298 + $0x1db0] sm:$0xff]
        %v2008 = vld [vmem:[%s298 + $0x1db8] sm:$0xff]
        %v2009 = vld [vmem:[%s298 + $0x1dc0] sm:$0xff]
        %v2010 = vld [vmem:[%s298 + $0x1dc8] sm:$0xff]
        %v2011 = vld [vmem:[%s298 + $0x1dd0] sm:$0xff]
        %v2012 = vld [vmem:[%s298 + $0x1dd8] sm:$0xff]
        %v2013 = vld [vmem:[%s298 + $0x1de0] sm:$0xff]
        %v2014 = vld [vmem:[%s298 + $0x1de8] sm:$0xff]
        %v2015 = vld [vmem:[%s298 + $0x1df0] sm:$0xff]
        %v2016 = vld [vmem:[%s298 + $0x1df8] sm:$0xff]
        %v2017 = vld [vmem:[%s298 + $0x1e00] sm:$0xff]
        %v2018 = vld [vmem:[%s298 + $0x1e08] sm:$0xff]
        %v2019 = vld [vmem:[%s298 + $0x1e10] sm:$0xff]
        %v2020 = vld [vmem:[%s298 + $0x1e18] sm:$0xff]
        %v2021 = vld [vmem:[%s298 + $0x1e20] sm:$0xff]
        %v2022 = vld [vmem:[%s298 + $0x1e28] sm:$0xff]
        %v2023 = vld [vmem:[%s298 + $0x1e30] sm:$0xff]
        %v2024 = vld [vmem:[%s298 + $0x1e38] sm:$0xff]
        %v2025 = vld [vmem:[%s298 + $0x1e40] sm:$0xff]
        %v2026 = vld [vmem:[%s298 + $0x1e48] sm:$0xff]
        %v2027 = vld [vmem:[%s298 + $0x1e50] sm:$0xff]
        %v2028 = vld [vmem:[%s298 + $0x1e58] sm:$0xff]
        %v2029 = vld [vmem:[%s298 + $0x1e60] sm:$0xff]
        %v2030 = vld [vmem:[%s298 + $0x1e68] sm:$0xff]
        %v2031 = vld [vmem:[%s298 + $0x1e70] sm:$0xff]
        %v2032 = vld [vmem:[%s298 + $0x1e78] sm:$0xff]
        %v2033 = vld [vmem:[%s298 + $0x1e80] sm:$0xff]
        %v2034 = vld [vmem:[%s298 + $0x1e88] sm:$0xff]
        %v2035 = vld [vmem:[%s298 + $0x1e90] sm:$0xff]
        %v2036 = vld [vmem:[%s298 + $0x1e98] sm:$0xff]
        %v2037 = vld [vmem:[%s298 + $0x1ea0] sm:$0xff]
        %v2038 = vld [vmem:[%s298 + $0x1ea8] sm:$0xff]
        %v2039 = vld [vmem:[%s298 + $0x1eb0] sm:$0xff]
        %v2040 = vld [vmem:[%s298 + $0x1eb8] sm:$0xff]
        %v2041 = vld [vmem:[%s298 + $0x1ec0] sm:$0xff]
        %v2042 = vld [vmem:[%s298 + $0x1ec8] sm:$0xff]
        %v2043 = vld [vmem:[%s298 + $0x1ed0] sm:$0xff]
        %v2044 = vld [vmem:[%s298 + $0x1ed8] sm:$0xff]
        %v2045 = vld [vmem:[%s298 + $0x1ee0] sm:$0xff]
        %v2046 = vld [vmem:[%s298 + $0x1ee8] sm:$0xff]
        %v2047 = vld [vmem:[%s298 + $0x1ef0] sm:$0xff]
        %v2048 = vld [vmem:[%s298 + $0x1ef8] sm:$0xff]
        %v2049 = vld [vmem:[%s298 + $0x1f00] sm:$0xff]
        %v2050 = vld [vmem:[%s298 + $0x1f08] sm:$0xff]
        %v2051 = vld [vmem:[%s298 + $0x1f10] sm:$0xff]
        %v2052 = vld [vmem:[%s298 + $0x1f18] sm:$0xff]
        %v2053 = vld [vmem:[%s298 + $0x1f20] sm:$0xff]
        %v2054 = vld [vmem:[%s298 + $0x1f28] sm:$0xff]
        %v2055 = vld [vmem:[%s298 + $0x1f30] sm:$0xff]
        %v2056 = vld [vmem:[%s298 + $0x1f38] sm:$0xff]
        %v2057 = vld [vmem:[%s298 + $0x1f40] sm:$0xff]
        %v2058 = vld [vmem:[%s298 + $0x1f48] sm:$0xff]
        %v2059 = vld [vmem:[%s298 + $0x1f50] sm:$0xff]
        %v2060 = vld [vmem:[%s298 + $0x1f58] sm:$0xff]
        %v2061 = vld [vmem:[%s298 + $0x1f60] sm:$0xff]
        %v2062 = vld [vmem:[%s298 + $0x1f68] sm:$0xff]
        %v2063 = vld [vmem:[%s298 + $0x1f70] sm:$0xff]
        %v2064 = vld [vmem:[%s298 + $0x1f78] sm:$0xff]
        %v2065 = vld [vmem:[%s298 + $0x1f80] sm:$0xff]
        %v2066 = vld [vmem:[%s298 + $0x1f88] sm:$0xff]
        %v2067 = vld [vmem:[%s298 + $0x1f90] sm:$0xff]
        %v2068 = vld [vmem:[%s298 + $0x1f98] sm:$0xff]
        %v2069 = vld [vmem:[%s298 + $0x1fa0] sm:$0xff]
        %v2070 = vld [vmem:[%s298 + $0x1fa8] sm:$0xff]
        %v2071 = vld [vmem:[%s298 + $0x1fb0] sm:$0xff]
        %v2072 = vld [vmem:[%s298 + $0x1fb8] sm:$0xff]
        %v2073 = vld [vmem:[%s298 + $0x1fc0] sm:$0xff]
        %v2074 = vld [vmem:[%s298 + $0x1fc8] sm:$0xff]
        %v2075 = vld [vmem:[%s298 + $0x1fd0] sm:$0xff]
        %v2076 = vld [vmem:[%s298 + $0x1fd8] sm:$0xff]
        %v2077 = vld [vmem:[%s298 + $0x1fe0] sm:$0xff]
        %v2078 = vld [vmem:[%s298 + $0x1fe8] sm:$0xff]
        %v2079 = vld [vmem:[%s298 + $0x1ff0] sm:$0xff]
        %v2080 = vld [vmem:[%s298 + $0x1ff8] sm:$0xff]
        %v2145 = vunpack.c.l.b16 %v993
        %v2146 = vunpack.c.l.b16 %v994
        %v2147 = vunpack.c.l.b16 %v995
        %v2148 = vunpack.c.l.b16 %v996
        %v2149 = vunpack.c.l.b16 %v997
        %v2150 = vunpack.c.l.b16 %v998
        %v2151 = vunpack.c.l.b16 %v999
        %v2152 = vunpack.c.l.b16 %v1000
        %v2153 = vunpack.c.l.b16 %v1001
        %v2154 = vunpack.c.l.b16 %v1002
        %v2155 = vunpack.c.l.b16 %v1003
        %v2156 = vunpack.c.l.b16 %v1004
        %v2157 = vunpack.c.l.b16 %v1005
        %v2158 = vunpack.c.l.b16 %v1006
        %v2159 = vunpack.c.l.b16 %v1007
        %v2160 = vunpack.c.l.b16 %v1008
        %v2161 = vunpack.c.l.b16 %v1009
        %v2162 = vunpack.c.l.b16 %v1010
        %v2163 = vunpack.c.l.b16 %v1011
        %v2164 = vunpack.c.l.b16 %v1012
        %v2165 = vunpack.c.l.b16 %v1013
        %v2166 = vunpack.c.l.b16 %v1014
        %v2167 = vunpack.c.l.b16 %v1015
        %v2168 = vunpack.c.l.b16 %v1016
        %v2169 = vunpack.c.l.b16 %v1017
        %v2170 = vunpack.c.l.b16 %v1018
        %v2171 = vunpack.c.l.b16 %v1019
        %v2172 = vunpack.c.l.b16 %v1020
        %v2173 = vunpack.c.l.b16 %v1021
        %v2174 = vunpack.c.l.b16 %v1022
        %v2175 = vunpack.c.l.b16 %v1023
        %v2176 = vunpack.c.l.b16 %v1024
        %v2177 = vunpack.c.l.b16 %v1025
        %v2178 = vunpack.c.l.b16 %v1026
        %v2179 = vunpack.c.l.b16 %v1027
        %v2180 = vunpack.c.l.b16 %v1028
        %v2181 = vunpack.c.l.b16 %v1029
        %v2182 = vunpack.c.l.b16 %v1030
        %v2183 = vunpack.c.l.b16 %v1031
        %v2184 = vunpack.c.l.b16 %v1032
        %v2185 = vunpack.c.l.b16 %v1033
        %v2186 = vunpack.c.l.b16 %v1034
        %v2187 = vunpack.c.l.b16 %v1035
        %v2188 = vunpack.c.l.b16 %v1036
        %v2189 = vunpack.c.l.b16 %v1037
        %v2190 = vunpack.c.l.b16 %v1038
        %v2191 = vunpack.c.l.b16 %v1039
        %v2192 = vunpack.c.l.b16 %v1040
        %v2193 = vunpack.c.l.b16 %v1041
        %v2194 = vunpack.c.l.b16 %v1042
        %v2195 = vunpack.c.l.b16 %v1043
        %v2196 = vunpack.c.l.b16 %v1044
        %v2197 = vunpack.c.l.b16 %v1045
        %v2198 = vunpack.c.l.b16 %v1046
        %v2199 = vunpack.c.l.b16 %v1047
        %v2200 = vunpack.c.l.b16 %v1048
        %v2201 = vunpack.c.l.b16 %v1049
        %v2202 = vunpack.c.l.b16 %v1050
        %v2203 = vunpack.c.l.b16 %v1051
        %v2204 = vunpack.c.l.b16 %v1052
        %v2205 = vunpack.c.l.b16 %v1053
        %v2206 = vunpack.c.l.b16 %v1054
        %v2207 = vunpack.c.l.b16 %v1055
        %v2208 = vunpack.c.l.b16 %v1056
        %vm2209 = vcmask 1041409
        %v2210 = vsel %vm2209, %v2177, %v2145
        %v2211 = vsel %vm2209, %v2178, %v2146
        %v2212 = vsel %vm2209, %v2179, %v2147
        %v2213 = vsel %vm2209, %v2180, %v2148
        %v2214 = vsel %vm2209, %v2181, %v2149
        %v2215 = vsel %vm2209, %v2182, %v2150
        %v2216 = vsel %vm2209, %v2183, %v2151
        %v2217 = vsel %vm2209, %v2184, %v2152
        %v2218 = vsel %vm2209, %v2185, %v2153
        %v2219 = vsel %vm2209, %v2186, %v2154
        %v2220 = vsel %vm2209, %v2187, %v2155
        %v2221 = vsel %vm2209, %v2188, %v2156
        %v2222 = vsel %vm2209, %v2189, %v2157
        %v2223 = vsel %vm2209, %v2190, %v2158
        %v2224 = vsel %vm2209, %v2191, %v2159
        %v2225 = vsel %vm2209, %v2192, %v2160
        %v2226 = vsel %vm2209, %v2193, %v2161
        %v2227 = vsel %vm2209, %v2194, %v2162
        %v2228 = vsel %vm2209, %v2195, %v2163
        %v2229 = vsel %vm2209, %v2196, %v2164
        %v2230 = vsel %vm2209, %v2197, %v2165
        %v2231 = vsel %vm2209, %v2198, %v2166
        %v2232 = vsel %vm2209, %v2199, %v2167
        %v2233 = vsel %vm2209, %v2200, %v2168
        %v2234 = vsel %vm2209, %v2201, %v2169
        %v2235 = vsel %vm2209, %v2202, %v2170
        %v2236 = vsel %vm2209, %v2203, %v2171
        %v2237 = vsel %vm2209, %v2204, %v2172
        %v2238 = vsel %vm2209, %v2205, %v2173
        %v2239 = vsel %vm2209, %v2206, %v2174
        %v2240 = vsel %vm2209, %v2207, %v2175
        %v2241 = vsel %vm2209, %v2208, %v2176
        %v2242 = vpack.c.b16 %v2210, %v2210
        %v2243 = vpack.c.b16 %v2211, %v2211
        %v2244 = vpack.c.b16 %v2212, %v2212
        %v2245 = vpack.c.b16 %v2213, %v2213
        %v2246 = vpack.c.b16 %v2214, %v2214
        %v2247 = vpack.c.b16 %v2215, %v2215
        %v2248 = vpack.c.b16 %v2216, %v2216
        %v2249 = vpack.c.b16 %v2217, %v2217
        %v2250 = vpack.c.b16 %v2218, %v2218
        %v2251 = vpack.c.b16 %v2219, %v2219
        %v2252 = vpack.c.b16 %v2220, %v2220
        %v2253 = vpack.c.b16 %v2221, %v2221
        %v2254 = vpack.c.b16 %v2222, %v2222
        %v2255 = vpack.c.b16 %v2223, %v2223
        %v2256 = vpack.c.b16 %v2224, %v2224
        %v2257 = vpack.c.b16 %v2225, %v2225
        %v2258 = vpack.c.b16 %v2226, %v2226
        %v2259 = vpack.c.b16 %v2227, %v2227
        %v2260 = vpack.c.b16 %v2228, %v2228
        %v2261 = vpack.c.b16 %v2229, %v2229
        %v2262 = vpack.c.b16 %v2230, %v2230
        %v2263 = vpack.c.b16 %v2231, %v2231
        %v2264 = vpack.c.b16 %v2232, %v2232
        %v2265 = vpack.c.b16 %v2233, %v2233
        %v2266 = vpack.c.b16 %v2234, %v2234
        %v2267 = vpack.c.b16 %v2235, %v2235
        %v2268 = vpack.c.b16 %v2236, %v2236
        %v2269 = vpack.c.b16 %v2237, %v2237
        %v2270 = vpack.c.b16 %v2238, %v2238
        %v2271 = vpack.c.b16 %v2239, %v2239
        %v2272 = vpack.c.b16 %v2240, %v2240
        %v2273 = vpack.c.b16 %v2241, %v2241
        %v3330 = vunpack.c.l.b16 %v1057
        %v3331 = vunpack.c.h.b16 %v1057
        %v3332 = vunpack.c.l.b16 %v1058
        %v3333 = vunpack.c.h.b16 %v1058
        %v3334 = vunpack.c.l.b16 %v1059
        %v3335 = vunpack.c.h.b16 %v1059
        %v3336 = vunpack.c.l.b16 %v1060
        %v3337 = vunpack.c.h.b16 %v1060
        %v3338 = vunpack.c.l.b16 %v1061
        %v3339 = vunpack.c.h.b16 %v1061
        %v3340 = vunpack.c.l.b16 %v1062
        %v3341 = vunpack.c.h.b16 %v1062
        %v3342 = vunpack.c.l.b16 %v1063
        %v3343 = vunpack.c.h.b16 %v1063
        %v3344 = vunpack.c.l.b16 %v1064
        %v3345 = vunpack.c.h.b16 %v1064
        %v3346 = vunpack.c.l.b16 %v1065
        %v3347 = vunpack.c.h.b16 %v1065
        %v3348 = vunpack.c.l.b16 %v1066
        %v3349 = vunpack.c.h.b16 %v1066
        %v3350 = vunpack.c.l.b16 %v1067
        %v3351 = vunpack.c.h.b16 %v1067
        %v3352 = vunpack.c.l.b16 %v1068
        %v3353 = vunpack.c.h.b16 %v1068
        %v3354 = vunpack.c.l.b16 %v1069
        %v3355 = vunpack.c.h.b16 %v1069
        %v3356 = vunpack.c.l.b16 %v1070
        %v3357 = vunpack.c.h.b16 %v1070
        %v3358 = vunpack.c.l.b16 %v1071
        %v3359 = vunpack.c.h.b16 %v1071
        %v3360 = vunpack.c.l.b16 %v1072
        %v3361 = vunpack.c.h.b16 %v1072
        %v3362 = vunpack.c.l.b16 %v1073
        %v3363 = vunpack.c.h.b16 %v1073
        %v3364 = vunpack.c.l.b16 %v1074
        %v3365 = vunpack.c.h.b16 %v1074
        %v3366 = vunpack.c.l.b16 %v1075
        %v3367 = vunpack.c.h.b16 %v1075
        %v3368 = vunpack.c.l.b16 %v1076
        %v3369 = vunpack.c.h.b16 %v1076
        %v3370 = vunpack.c.l.b16 %v1077
        %v3371 = vunpack.c.h.b16 %v1077
        %v3372 = vunpack.c.l.b16 %v1078
        %v3373 = vunpack.c.h.b16 %v1078
        %v3374 = vunpack.c.l.b16 %v1079
        %v3375 = vunpack.c.h.b16 %v1079
        %v3376 = vunpack.c.l.b16 %v1080
        %v3377 = vunpack.c.h.b16 %v1080
        %v3378 = vunpack.c.l.b16 %v1081
        %v3379 = vunpack.c.h.b16 %v1081
        %v3380 = vunpack.c.l.b16 %v1082
        %v3381 = vunpack.c.h.b16 %v1082
        %v3382 = vunpack.c.l.b16 %v1083
        %v3383 = vunpack.c.h.b16 %v1083
        %v3384 = vunpack.c.l.b16 %v1084
        %v3385 = vunpack.c.h.b16 %v1084
        %v3386 = vunpack.c.l.b16 %v1085
        %v3387 = vunpack.c.h.b16 %v1085
        %v3388 = vunpack.c.l.b16 %v1086
        %v3389 = vunpack.c.h.b16 %v1086
        %v3390 = vunpack.c.l.b16 %v1087
        %v3391 = vunpack.c.h.b16 %v1087
        %v3392 = vunpack.c.l.b16 %v1088
        %v3393 = vunpack.c.h.b16 %v1088
        %v3394 = vunpack.c.l.b16 %v1089
        %v3395 = vunpack.c.h.b16 %v1089
        %v3396 = vunpack.c.l.b16 %v1090
        %v3397 = vunpack.c.h.b16 %v1090
        %v3398 = vunpack.c.l.b16 %v1091
        %v3399 = vunpack.c.h.b16 %v1091
        %v3400 = vunpack.c.l.b16 %v1092
        %v3401 = vunpack.c.h.b16 %v1092
        %v3402 = vunpack.c.l.b16 %v1093
        %v3403 = vunpack.c.h.b16 %v1093
        %v3404 = vunpack.c.l.b16 %v1094
        %v3405 = vunpack.c.h.b16 %v1094
        %v3406 = vunpack.c.l.b16 %v1095
        %v3407 = vunpack.c.h.b16 %v1095
        %v3408 = vunpack.c.l.b16 %v1096
        %v3409 = vunpack.c.h.b16 %v1096
        %v3410 = vunpack.c.l.b16 %v1097
        %v3411 = vunpack.c.h.b16 %v1097
        %v3412 = vunpack.c.l.b16 %v1098
        %v3413 = vunpack.c.h.b16 %v1098
        %v3414 = vunpack.c.l.b16 %v1099
        %v3415 = vunpack.c.h.b16 %v1099
        %v3416 = vunpack.c.l.b16 %v1100
        %v3417 = vunpack.c.h.b16 %v1100
        %v3418 = vunpack.c.l.b16 %v1101
        %v3419 = vunpack.c.h.b16 %v1101
        %v3420 = vunpack.c.l.b16 %v1102
        %v3421 = vunpack.c.h.b16 %v1102
        %v3422 = vunpack.c.l.b16 %v1103
        %v3423 = vunpack.c.h.b16 %v1103
        %v3424 = vunpack.c.l.b16 %v1104
        %v3425 = vunpack.c.h.b16 %v1104
        %v3426 = vunpack.c.l.b16 %v1105
        %v3427 = vunpack.c.h.b16 %v1105
        %v3428 = vunpack.c.l.b16 %v1106
        %v3429 = vunpack.c.h.b16 %v1106
        %v3430 = vunpack.c.l.b16 %v1107
        %v3431 = vunpack.c.h.b16 %v1107
        %v3432 = vunpack.c.l.b16 %v1108
        %v3433 = vunpack.c.h.b16 %v1108
        %v3434 = vunpack.c.l.b16 %v1109
        %v3435 = vunpack.c.h.b16 %v1109
        %v3436 = vunpack.c.l.b16 %v1110
        %v3437 = vunpack.c.h.b16 %v1110
        %v3438 = vunpack.c.l.b16 %v1111
        %v3439 = vunpack.c.h.b16 %v1111
        %v3440 = vunpack.c.l.b16 %v1112
        %v3441 = vunpack.c.h.b16 %v1112
        %v3442 = vunpack.c.l.b16 %v1113
        %v3443 = vunpack.c.h.b16 %v1113
        %v3444 = vunpack.c.l.b16 %v1114
        %v3445 = vunpack.c.h.b16 %v1114
        %v3446 = vunpack.c.l.b16 %v1115
        %v3447 = vunpack.c.h.b16 %v1115
        %v3448 = vunpack.c.l.b16 %v1116
        %v3449 = vunpack.c.h.b16 %v1116
        %v3450 = vunpack.c.l.b16 %v1117
        %v3451 = vunpack.c.h.b16 %v1117
        %v3452 = vunpack.c.l.b16 %v1118
        %v3453 = vunpack.c.h.b16 %v1118
        %v3454 = vunpack.c.l.b16 %v1119
        %v3455 = vunpack.c.h.b16 %v1119
        %v3456 = vunpack.c.l.b16 %v1120
        %v3457 = vunpack.c.h.b16 %v1120
        %v3458 = vunpack.c.l.b16 %v1121
        %v3459 = vunpack.c.h.b16 %v1121
        %v3460 = vunpack.c.l.b16 %v1122
        %v3461 = vunpack.c.h.b16 %v1122
        %v3462 = vunpack.c.l.b16 %v1123
        %v3463 = vunpack.c.h.b16 %v1123
        %v3464 = vunpack.c.l.b16 %v1124
        %v3465 = vunpack.c.h.b16 %v1124
        %v3466 = vunpack.c.l.b16 %v1125
        %v3467 = vunpack.c.h.b16 %v1125
        %v3468 = vunpack.c.l.b16 %v1126
        %v3469 = vunpack.c.h.b16 %v1126
        %v3470 = vunpack.c.l.b16 %v1127
        %v3471 = vunpack.c.h.b16 %v1127
        %v3472 = vunpack.c.l.b16 %v1128
        %v3473 = vunpack.c.h.b16 %v1128
        %v3474 = vunpack.c.l.b16 %v1129
        %v3475 = vunpack.c.h.b16 %v1129
        %v3476 = vunpack.c.l.b16 %v1130
        %v3477 = vunpack.c.h.b16 %v1130
        %v3478 = vunpack.c.l.b16 %v1131
        %v3479 = vunpack.c.h.b16 %v1131
        %v3480 = vunpack.c.l.b16 %v1132
        %v3481 = vunpack.c.h.b16 %v1132
        %v3482 = vunpack.c.l.b16 %v1133
        %v3483 = vunpack.c.h.b16 %v1133
        %v3484 = vunpack.c.l.b16 %v1134
        %v3485 = vunpack.c.h.b16 %v1134
        %v3486 = vunpack.c.l.b16 %v1135
        %v3487 = vunpack.c.h.b16 %v1135
        %v3488 = vunpack.c.l.b16 %v1136
        %v3489 = vunpack.c.h.b16 %v1136
        %v3490 = vunpack.c.l.b16 %v1137
        %v3491 = vunpack.c.h.b16 %v1137
        %v3492 = vunpack.c.l.b16 %v1138
        %v3493 = vunpack.c.h.b16 %v1138
        %v3494 = vunpack.c.l.b16 %v1139
        %v3495 = vunpack.c.h.b16 %v1139
        %v3496 = vunpack.c.l.b16 %v1140
        %v3497 = vunpack.c.h.b16 %v1140
        %v3498 = vunpack.c.l.b16 %v1141
        %v3499 = vunpack.c.h.b16 %v1141
        %v3500 = vunpack.c.l.b16 %v1142
        %v3501 = vunpack.c.h.b16 %v1142
        %v3502 = vunpack.c.l.b16 %v1143
        %v3503 = vunpack.c.h.b16 %v1143
        %v3504 = vunpack.c.l.b16 %v1144
        %v3505 = vunpack.c.h.b16 %v1144
        %v3506 = vunpack.c.l.b16 %v1145
        %v3507 = vunpack.c.h.b16 %v1145
        %v3508 = vunpack.c.l.b16 %v1146
        %v3509 = vunpack.c.h.b16 %v1146
        %v3510 = vunpack.c.l.b16 %v1147
        %v3511 = vunpack.c.h.b16 %v1147
        %v3512 = vunpack.c.l.b16 %v1148
        %v3513 = vunpack.c.h.b16 %v1148
        %v3514 = vunpack.c.l.b16 %v1149
        %v3515 = vunpack.c.h.b16 %v1149
        %v3516 = vunpack.c.l.b16 %v1150
        %v3517 = vunpack.c.h.b16 %v1150
        %v3518 = vunpack.c.l.b16 %v1151
        %v3519 = vunpack.c.h.b16 %v1151
        %v3520 = vunpack.c.l.b16 %v1152
        %v3521 = vunpack.c.h.b16 %v1152
        %v3522 = vunpack.c.l.b16 %v1153
        %v3523 = vunpack.c.h.b16 %v1153
        %v3524 = vunpack.c.l.b16 %v1154
        %v3525 = vunpack.c.h.b16 %v1154
        %v3526 = vunpack.c.l.b16 %v1155
        %v3527 = vunpack.c.h.b16 %v1155
        %v3528 = vunpack.c.l.b16 %v1156
        %v3529 = vunpack.c.h.b16 %v1156
        %v3530 = vunpack.c.l.b16 %v1157
        %v3531 = vunpack.c.h.b16 %v1157
        %v3532 = vunpack.c.l.b16 %v1158
        %v3533 = vunpack.c.h.b16 %v1158
        %v3534 = vunpack.c.l.b16 %v1159
        %v3535 = vunpack.c.h.b16 %v1159
        %v3536 = vunpack.c.l.b16 %v1160
        %v3537 = vunpack.c.h.b16 %v1160
        %v3538 = vunpack.c.l.b16 %v1161
        %v3539 = vunpack.c.h.b16 %v1161
        %v3540 = vunpack.c.l.b16 %v1162
        %v3541 = vunpack.c.h.b16 %v1162
        %v3542 = vunpack.c.l.b16 %v1163
        %v3543 = vunpack.c.h.b16 %v1163
        %v3544 = vunpack.c.l.b16 %v1164
        %v3545 = vunpack.c.h.b16 %v1164
        %v3546 = vunpack.c.l.b16 %v1165
        %v3547 = vunpack.c.h.b16 %v1165
        %v3548 = vunpack.c.l.b16 %v1166
        %v3549 = vunpack.c.h.b16 %v1166
        %v3550 = vunpack.c.l.b16 %v1167
        %v3551 = vunpack.c.h.b16 %v1167
        %v3552 = vunpack.c.l.b16 %v1168
        %v3553 = vunpack.c.h.b16 %v1168
        %v3554 = vunpack.c.l.b16 %v1169
        %v3555 = vunpack.c.h.b16 %v1169
        %v3556 = vunpack.c.l.b16 %v1170
        %v3557 = vunpack.c.h.b16 %v1170
        %v3558 = vunpack.c.l.b16 %v1171
        %v3559 = vunpack.c.h.b16 %v1171
        %v3560 = vunpack.c.l.b16 %v1172
        %v3561 = vunpack.c.h.b16 %v1172
        %v3562 = vunpack.c.l.b16 %v1173
        %v3563 = vunpack.c.h.b16 %v1173
        %v3564 = vunpack.c.l.b16 %v1174
        %v3565 = vunpack.c.h.b16 %v1174
        %v3566 = vunpack.c.l.b16 %v1175
        %v3567 = vunpack.c.h.b16 %v1175
        %v3568 = vunpack.c.l.b16 %v1176
        %v3569 = vunpack.c.h.b16 %v1176
        %v3570 = vunpack.c.l.b16 %v1177
        %v3571 = vunpack.c.h.b16 %v1177
        %v3572 = vunpack.c.l.b16 %v1178
        %v3573 = vunpack.c.h.b16 %v1178
        %v3574 = vunpack.c.l.b16 %v1179
        %v3575 = vunpack.c.h.b16 %v1179
        %v3576 = vunpack.c.l.b16 %v1180
        %v3577 = vunpack.c.h.b16 %v1180
        %v3578 = vunpack.c.l.b16 %v1181
        %v3579 = vunpack.c.h.b16 %v1181
        %v3580 = vunpack.c.l.b16 %v1182
        %v3581 = vunpack.c.h.b16 %v1182
        %v3582 = vunpack.c.l.b16 %v1183
        %v3583 = vunpack.c.h.b16 %v1183
        %v3584 = vunpack.c.l.b16 %v1184
        %v3585 = vunpack.c.h.b16 %v1184
        %v3586 = vunpack.c.l.b16 %v1185
        %v3587 = vunpack.c.h.b16 %v1185
        %v3588 = vunpack.c.l.b16 %v1186
        %v3589 = vunpack.c.h.b16 %v1186
        %v3590 = vunpack.c.l.b16 %v1187
        %v3591 = vunpack.c.h.b16 %v1187
        %v3592 = vunpack.c.l.b16 %v1188
        %v3593 = vunpack.c.h.b16 %v1188
        %v3594 = vunpack.c.l.b16 %v1189
        %v3595 = vunpack.c.h.b16 %v1189
        %v3596 = vunpack.c.l.b16 %v1190
        %v3597 = vunpack.c.h.b16 %v1190
        %v3598 = vunpack.c.l.b16 %v1191
        %v3599 = vunpack.c.h.b16 %v1191
        %v3600 = vunpack.c.l.b16 %v1192
        %v3601 = vunpack.c.h.b16 %v1192
        %v3602 = vunpack.c.l.b16 %v1193
        %v3603 = vunpack.c.h.b16 %v1193
        %v3604 = vunpack.c.l.b16 %v1194
        %v3605 = vunpack.c.h.b16 %v1194
        %v3606 = vunpack.c.l.b16 %v1195
        %v3607 = vunpack.c.h.b16 %v1195
        %v3608 = vunpack.c.l.b16 %v1196
        %v3609 = vunpack.c.h.b16 %v1196
        %v3610 = vunpack.c.l.b16 %v1197
        %v3611 = vunpack.c.h.b16 %v1197
        %v3612 = vunpack.c.l.b16 %v1198
        %v3613 = vunpack.c.h.b16 %v1198
        %v3614 = vunpack.c.l.b16 %v1199
        %v3615 = vunpack.c.h.b16 %v1199
        %v3616 = vunpack.c.l.b16 %v1200
        %v3617 = vunpack.c.h.b16 %v1200
        %v3618 = vunpack.c.l.b16 %v1201
        %v3619 = vunpack.c.h.b16 %v1201
        %v3620 = vunpack.c.l.b16 %v1202
        %v3621 = vunpack.c.h.b16 %v1202
        %v3622 = vunpack.c.l.b16 %v1203
        %v3623 = vunpack.c.h.b16 %v1203
        %v3624 = vunpack.c.l.b16 %v1204
        %v3625 = vunpack.c.h.b16 %v1204
        %v3626 = vunpack.c.l.b16 %v1205
        %v3627 = vunpack.c.h.b16 %v1205
        %v3628 = vunpack.c.l.b16 %v1206
        %v3629 = vunpack.c.h.b16 %v1206
        %v3630 = vunpack.c.l.b16 %v1207
        %v3631 = vunpack.c.h.b16 %v1207
        %v3632 = vunpack.c.l.b16 %v1208
        %v3633 = vunpack.c.h.b16 %v1208
        %v3634 = vunpack.c.l.b16 %v1209
        %v3635 = vunpack.c.h.b16 %v1209
        %v3636 = vunpack.c.l.b16 %v1210
        %v3637 = vunpack.c.h.b16 %v1210
        %v3638 = vunpack.c.l.b16 %v1211
        %v3639 = vunpack.c.h.b16 %v1211
        %v3640 = vunpack.c.l.b16 %v1212
        %v3641 = vunpack.c.h.b16 %v1212
        %v3642 = vunpack.c.l.b16 %v1213
        %v3643 = vunpack.c.h.b16 %v1213
        %v3644 = vunpack.c.l.b16 %v1214
        %v3645 = vunpack.c.h.b16 %v1214
        %v3646 = vunpack.c.l.b16 %v1215
        %v3647 = vunpack.c.h.b16 %v1215
        %v3648 = vunpack.c.l.b16 %v1216
        %v3649 = vunpack.c.h.b16 %v1216
        %v3650 = vunpack.c.l.b16 %v1217
        %v3651 = vunpack.c.h.b16 %v1217
        %v3652 = vunpack.c.l.b16 %v1218
        %v3653 = vunpack.c.h.b16 %v1218
        %v3654 = vunpack.c.l.b16 %v1219
        %v3655 = vunpack.c.h.b16 %v1219
        %v3656 = vunpack.c.l.b16 %v1220
        %v3657 = vunpack.c.h.b16 %v1220
        %v3658 = vunpack.c.l.b16 %v1221
        %v3659 = vunpack.c.h.b16 %v1221
        %v3660 = vunpack.c.l.b16 %v1222
        %v3661 = vunpack.c.h.b16 %v1222
        %v3662 = vunpack.c.l.b16 %v1223
        %v3663 = vunpack.c.h.b16 %v1223
        %v3664 = vunpack.c.l.b16 %v1224
        %v3665 = vunpack.c.h.b16 %v1224
        %v3666 = vunpack.c.l.b16 %v1225
        %v3667 = vunpack.c.h.b16 %v1225
        %v3668 = vunpack.c.l.b16 %v1226
        %v3669 = vunpack.c.h.b16 %v1226
        %v3670 = vunpack.c.l.b16 %v1227
        %v3671 = vunpack.c.h.b16 %v1227
        %v3672 = vunpack.c.l.b16 %v1228
        %v3673 = vunpack.c.h.b16 %v1228
        %v3674 = vunpack.c.l.b16 %v1229
        %v3675 = vunpack.c.h.b16 %v1229
        %v3676 = vunpack.c.l.b16 %v1230
        %v3677 = vunpack.c.h.b16 %v1230
        %v3678 = vunpack.c.l.b16 %v1231
        %v3679 = vunpack.c.h.b16 %v1231
        %v3680 = vunpack.c.l.b16 %v1232
        %v3681 = vunpack.c.h.b16 %v1232
        %v3682 = vunpack.c.l.b16 %v1233
        %v3683 = vunpack.c.h.b16 %v1233
        %v3684 = vunpack.c.l.b16 %v1234
        %v3685 = vunpack.c.h.b16 %v1234
        %v3686 = vunpack.c.l.b16 %v1235
        %v3687 = vunpack.c.h.b16 %v1235
        %v3688 = vunpack.c.l.b16 %v1236
        %v3689 = vunpack.c.h.b16 %v1236
        %v3690 = vunpack.c.l.b16 %v1237
        %v3691 = vunpack.c.h.b16 %v1237
        %v3692 = vunpack.c.l.b16 %v1238
        %v3693 = vunpack.c.h.b16 %v1238
        %v3694 = vunpack.c.l.b16 %v1239
        %v3695 = vunpack.c.h.b16 %v1239
        %v3696 = vunpack.c.l.b16 %v1240
        %v3697 = vunpack.c.h.b16 %v1240
        %v3698 = vunpack.c.l.b16 %v1241
        %v3699 = vunpack.c.h.b16 %v1241
        %v3700 = vunpack.c.l.b16 %v1242
        %v3701 = vunpack.c.h.b16 %v1242
        %v3702 = vunpack.c.l.b16 %v1243
        %v3703 = vunpack.c.h.b16 %v1243
        %v3704 = vunpack.c.l.b16 %v1244
        %v3705 = vunpack.c.h.b16 %v1244
        %v3706 = vunpack.c.l.b16 %v1245
        %v3707 = vunpack.c.h.b16 %v1245
        %v3708 = vunpack.c.l.b16 %v1246
        %v3709 = vunpack.c.h.b16 %v1246
        %v3710 = vunpack.c.l.b16 %v1247
        %v3711 = vunpack.c.h.b16 %v1247
        %v3712 = vunpack.c.l.b16 %v1248
        %v3713 = vunpack.c.h.b16 %v1248
        %v3714 = vunpack.c.l.b16 %v1249
        %v3715 = vunpack.c.h.b16 %v1249
        %v3716 = vunpack.c.l.b16 %v1250
        %v3717 = vunpack.c.h.b16 %v1250
        %v3718 = vunpack.c.l.b16 %v1251
        %v3719 = vunpack.c.h.b16 %v1251
        %v3720 = vunpack.c.l.b16 %v1252
        %v3721 = vunpack.c.h.b16 %v1252
        %v3722 = vunpack.c.l.b16 %v1253
        %v3723 = vunpack.c.h.b16 %v1253
        %v3724 = vunpack.c.l.b16 %v1254
        %v3725 = vunpack.c.h.b16 %v1254
        %v3726 = vunpack.c.l.b16 %v1255
        %v3727 = vunpack.c.h.b16 %v1255
        %v3728 = vunpack.c.l.b16 %v1256
        %v3729 = vunpack.c.h.b16 %v1256
        %v3730 = vunpack.c.l.b16 %v1257
        %v3731 = vunpack.c.h.b16 %v1257
        %v3732 = vunpack.c.l.b16 %v1258
        %v3733 = vunpack.c.h.b16 %v1258
        %v3734 = vunpack.c.l.b16 %v1259
        %v3735 = vunpack.c.h.b16 %v1259
        %v3736 = vunpack.c.l.b16 %v1260
        %v3737 = vunpack.c.h.b16 %v1260
        %v3738 = vunpack.c.l.b16 %v1261
        %v3739 = vunpack.c.h.b16 %v1261
        %v3740 = vunpack.c.l.b16 %v1262
        %v3741 = vunpack.c.h.b16 %v1262
        %v3742 = vunpack.c.l.b16 %v1263
        %v3743 = vunpack.c.h.b16 %v1263
        %v3744 = vunpack.c.l.b16 %v1264
        %v3745 = vunpack.c.h.b16 %v1264
        %v3746 = vunpack.c.l.b16 %v1265
        %v3747 = vunpack.c.h.b16 %v1265
        %v3748 = vunpack.c.l.b16 %v1266
        %v3749 = vunpack.c.h.b16 %v1266
        %v3750 = vunpack.c.l.b16 %v1267
        %v3751 = vunpack.c.h.b16 %v1267
        %v3752 = vunpack.c.l.b16 %v1268
        %v3753 = vunpack.c.h.b16 %v1268
        %v3754 = vunpack.c.l.b16 %v1269
        %v3755 = vunpack.c.h.b16 %v1269
        %v3756 = vunpack.c.l.b16 %v1270
        %v3757 = vunpack.c.h.b16 %v1270
        %v3758 = vunpack.c.l.b16 %v1271
        %v3759 = vunpack.c.h.b16 %v1271
        %v3760 = vunpack.c.l.b16 %v1272
        %v3761 = vunpack.c.h.b16 %v1272
        %v3762 = vunpack.c.l.b16 %v1273
        %v3763 = vunpack.c.h.b16 %v1273
        %v3764 = vunpack.c.l.b16 %v1274
        %v3765 = vunpack.c.h.b16 %v1274
        %v3766 = vunpack.c.l.b16 %v1275
        %v3767 = vunpack.c.h.b16 %v1275
        %v3768 = vunpack.c.l.b16 %v1276
        %v3769 = vunpack.c.h.b16 %v1276
        %v3770 = vunpack.c.l.b16 %v1277
        %v3771 = vunpack.c.h.b16 %v1277
        %v3772 = vunpack.c.l.b16 %v1278
        %v3773 = vunpack.c.h.b16 %v1278
        %v3774 = vunpack.c.l.b16 %v1279
        %v3775 = vunpack.c.h.b16 %v1279
        %v3776 = vunpack.c.l.b16 %v1280
        %v3777 = vunpack.c.h.b16 %v1280
        %v3778 = vunpack.c.l.b16 %v1281
        %v3779 = vunpack.c.h.b16 %v1281
        %v3780 = vunpack.c.l.b16 %v1282
        %v3781 = vunpack.c.h.b16 %v1282
        %v3782 = vunpack.c.l.b16 %v1283
        %v3783 = vunpack.c.h.b16 %v1283
        %v3784 = vunpack.c.l.b16 %v1284
        %v3785 = vunpack.c.h.b16 %v1284
        %v3786 = vunpack.c.l.b16 %v1285
        %v3787 = vunpack.c.h.b16 %v1285
        %v3788 = vunpack.c.l.b16 %v1286
        %v3789 = vunpack.c.h.b16 %v1286
        %v3790 = vunpack.c.l.b16 %v1287
        %v3791 = vunpack.c.h.b16 %v1287
        %v3792 = vunpack.c.l.b16 %v1288
        %v3793 = vunpack.c.h.b16 %v1288
        %v3794 = vunpack.c.l.b16 %v1289
        %v3795 = vunpack.c.h.b16 %v1289
        %v3796 = vunpack.c.l.b16 %v1290
        %v3797 = vunpack.c.h.b16 %v1290
        %v3798 = vunpack.c.l.b16 %v1291
        %v3799 = vunpack.c.h.b16 %v1291
        %v3800 = vunpack.c.l.b16 %v1292
        %v3801 = vunpack.c.h.b16 %v1292
        %v3802 = vunpack.c.l.b16 %v1293
        %v3803 = vunpack.c.h.b16 %v1293
        %v3804 = vunpack.c.l.b16 %v1294
        %v3805 = vunpack.c.h.b16 %v1294
        %v3806 = vunpack.c.l.b16 %v1295
        %v3807 = vunpack.c.h.b16 %v1295
        %v3808 = vunpack.c.l.b16 %v1296
        %v3809 = vunpack.c.h.b16 %v1296
        %v3810 = vunpack.c.l.b16 %v1297
        %v3811 = vunpack.c.h.b16 %v1297
        %v3812 = vunpack.c.l.b16 %v1298
        %v3813 = vunpack.c.h.b16 %v1298
        %v3814 = vunpack.c.l.b16 %v1299
        %v3815 = vunpack.c.h.b16 %v1299
        %v3816 = vunpack.c.l.b16 %v1300
        %v3817 = vunpack.c.h.b16 %v1300
        %v3818 = vunpack.c.l.b16 %v1301
        %v3819 = vunpack.c.h.b16 %v1301
        %v3820 = vunpack.c.l.b16 %v1302
        %v3821 = vunpack.c.h.b16 %v1302
        %v3822 = vunpack.c.l.b16 %v1303
        %v3823 = vunpack.c.h.b16 %v1303
        %v3824 = vunpack.c.l.b16 %v1304
        %v3825 = vunpack.c.h.b16 %v1304
        %v3826 = vunpack.c.l.b16 %v1305
        %v3827 = vunpack.c.h.b16 %v1305
        %v3828 = vunpack.c.l.b16 %v1306
        %v3829 = vunpack.c.h.b16 %v1306
        %v3830 = vunpack.c.l.b16 %v1307
        %v3831 = vunpack.c.h.b16 %v1307
        %v3832 = vunpack.c.l.b16 %v1308
        %v3833 = vunpack.c.h.b16 %v1308
        %v3834 = vunpack.c.l.b16 %v1309
        %v3835 = vunpack.c.h.b16 %v1309
        %v3836 = vunpack.c.l.b16 %v1310
        %v3837 = vunpack.c.h.b16 %v1310
        %v3838 = vunpack.c.l.b16 %v1311
        %v3839 = vunpack.c.h.b16 %v1311
        %v3840 = vunpack.c.l.b16 %v1312
        %v3841 = vunpack.c.h.b16 %v1312
        %v3842 = vunpack.c.l.b16 %v1313
        %v3843 = vunpack.c.h.b16 %v1313
        %v3844 = vunpack.c.l.b16 %v1314
        %v3845 = vunpack.c.h.b16 %v1314
        %v3846 = vunpack.c.l.b16 %v1315
        %v3847 = vunpack.c.h.b16 %v1315
        %v3848 = vunpack.c.l.b16 %v1316
        %v3849 = vunpack.c.h.b16 %v1316
        %v3850 = vunpack.c.l.b16 %v1317
        %v3851 = vunpack.c.h.b16 %v1317
        %v3852 = vunpack.c.l.b16 %v1318
        %v3853 = vunpack.c.h.b16 %v1318
        %v3854 = vunpack.c.l.b16 %v1319
        %v3855 = vunpack.c.h.b16 %v1319
        %v3856 = vunpack.c.l.b16 %v1320
        %v3857 = vunpack.c.h.b16 %v1320
        %v3858 = vunpack.c.l.b16 %v1321
        %v3859 = vunpack.c.h.b16 %v1321
        %v3860 = vunpack.c.l.b16 %v1322
        %v3861 = vunpack.c.h.b16 %v1322
        %v3862 = vunpack.c.l.b16 %v1323
        %v3863 = vunpack.c.h.b16 %v1323
        %v3864 = vunpack.c.l.b16 %v1324
        %v3865 = vunpack.c.h.b16 %v1324
        %v3866 = vunpack.c.l.b16 %v1325
        %v3867 = vunpack.c.h.b16 %v1325
        %v3868 = vunpack.c.l.b16 %v1326
        %v3869 = vunpack.c.h.b16 %v1326
        %v3870 = vunpack.c.l.b16 %v1327
        %v3871 = vunpack.c.h.b16 %v1327
        %v3872 = vunpack.c.l.b16 %v1328
        %v3873 = vunpack.c.h.b16 %v1328
        %v3874 = vunpack.c.l.b16 %v1329
        %v3875 = vunpack.c.h.b16 %v1329
        %v3876 = vunpack.c.l.b16 %v1330
        %v3877 = vunpack.c.h.b16 %v1330
        %v3878 = vunpack.c.l.b16 %v1331
        %v3879 = vunpack.c.h.b16 %v1331
        %v3880 = vunpack.c.l.b16 %v1332
        %v3881 = vunpack.c.h.b16 %v1332
        %v3882 = vunpack.c.l.b16 %v1333
        %v3883 = vunpack.c.h.b16 %v1333
        %v3884 = vunpack.c.l.b16 %v1334
        %v3885 = vunpack.c.h.b16 %v1334
        %v3886 = vunpack.c.l.b16 %v1335
        %v3887 = vunpack.c.h.b16 %v1335
        %v3888 = vunpack.c.l.b16 %v1336
        %v3889 = vunpack.c.h.b16 %v1336
        %v3890 = vunpack.c.l.b16 %v1337
        %v3891 = vunpack.c.h.b16 %v1337
        %v3892 = vunpack.c.l.b16 %v1338
        %v3893 = vunpack.c.h.b16 %v1338
        %v3894 = vunpack.c.l.b16 %v1339
        %v3895 = vunpack.c.h.b16 %v1339
        %v3896 = vunpack.c.l.b16 %v1340
        %v3897 = vunpack.c.h.b16 %v1340
        %v3898 = vunpack.c.l.b16 %v1341
        %v3899 = vunpack.c.h.b16 %v1341
        %v3900 = vunpack.c.l.b16 %v1342
        %v3901 = vunpack.c.h.b16 %v1342
        %v3902 = vunpack.c.l.b16 %v1343
        %v3903 = vunpack.c.h.b16 %v1343
        %v3904 = vunpack.c.l.b16 %v1344
        %v3905 = vunpack.c.h.b16 %v1344
        %v3906 = vunpack.c.l.b16 %v1345
        %v3907 = vunpack.c.h.b16 %v1345
        %v3908 = vunpack.c.l.b16 %v1346
        %v3909 = vunpack.c.h.b16 %v1346
        %v3910 = vunpack.c.l.b16 %v1347
        %v3911 = vunpack.c.h.b16 %v1347
        %v3912 = vunpack.c.l.b16 %v1348
        %v3913 = vunpack.c.h.b16 %v1348
        %v3914 = vunpack.c.l.b16 %v1349
        %v3915 = vunpack.c.h.b16 %v1349
        %v3916 = vunpack.c.l.b16 %v1350
        %v3917 = vunpack.c.h.b16 %v1350
        %v3918 = vunpack.c.l.b16 %v1351
        %v3919 = vunpack.c.h.b16 %v1351
        %v3920 = vunpack.c.l.b16 %v1352
        %v3921 = vunpack.c.h.b16 %v1352
        %v3922 = vunpack.c.l.b16 %v1353
        %v3923 = vunpack.c.h.b16 %v1353
        %v3924 = vunpack.c.l.b16 %v1354
        %v3925 = vunpack.c.h.b16 %v1354
        %v3926 = vunpack.c.l.b16 %v1355
        %v3927 = vunpack.c.h.b16 %v1355
        %v3928 = vunpack.c.l.b16 %v1356
        %v3929 = vunpack.c.h.b16 %v1356
        %v3930 = vunpack.c.l.b16 %v1357
        %v3931 = vunpack.c.h.b16 %v1357
        %v3932 = vunpack.c.l.b16 %v1358
        %v3933 = vunpack.c.h.b16 %v1358
        %v3934 = vunpack.c.l.b16 %v1359
        %v3935 = vunpack.c.h.b16 %v1359
        %v3936 = vunpack.c.l.b16 %v1360
        %v3937 = vunpack.c.h.b16 %v1360
        %v3938 = vunpack.c.l.b16 %v1361
        %v3939 = vunpack.c.h.b16 %v1361
        %v3940 = vunpack.c.l.b16 %v1362
        %v3941 = vunpack.c.h.b16 %v1362
        %v3942 = vunpack.c.l.b16 %v1363
        %v3943 = vunpack.c.h.b16 %v1363
        %v3944 = vunpack.c.l.b16 %v1364
        %v3945 = vunpack.c.h.b16 %v1364
        %v3946 = vunpack.c.l.b16 %v1365
        %v3947 = vunpack.c.h.b16 %v1365
        %v3948 = vunpack.c.l.b16 %v1366
        %v3949 = vunpack.c.h.b16 %v1366
        %v3950 = vunpack.c.l.b16 %v1367
        %v3951 = vunpack.c.h.b16 %v1367
        %v3952 = vunpack.c.l.b16 %v1368
        %v3953 = vunpack.c.h.b16 %v1368
        %v3954 = vunpack.c.l.b16 %v1369
        %v3955 = vunpack.c.h.b16 %v1369
        %v3956 = vunpack.c.l.b16 %v1370
        %v3957 = vunpack.c.h.b16 %v1370
        %v3958 = vunpack.c.l.b16 %v1371
        %v3959 = vunpack.c.h.b16 %v1371
        %v3960 = vunpack.c.l.b16 %v1372
        %v3961 = vunpack.c.h.b16 %v1372
        %v3962 = vunpack.c.l.b16 %v1373
        %v3963 = vunpack.c.h.b16 %v1373
        %v3964 = vunpack.c.l.b16 %v1374
        %v3965 = vunpack.c.h.b16 %v1374
        %v3966 = vunpack.c.l.b16 %v1375
        %v3967 = vunpack.c.h.b16 %v1375
        %v3968 = vunpack.c.l.b16 %v1376
        %v3969 = vunpack.c.h.b16 %v1376
        %v3970 = vunpack.c.l.b16 %v1377
        %v3971 = vunpack.c.h.b16 %v1377
        %v3972 = vunpack.c.l.b16 %v1378
        %v3973 = vunpack.c.h.b16 %v1378
        %v3974 = vunpack.c.l.b16 %v1379
        %v3975 = vunpack.c.h.b16 %v1379
        %v3976 = vunpack.c.l.b16 %v1380
        %v3977 = vunpack.c.h.b16 %v1380
        %v3978 = vunpack.c.l.b16 %v1381
        %v3979 = vunpack.c.h.b16 %v1381
        %v3980 = vunpack.c.l.b16 %v1382
        %v3981 = vunpack.c.h.b16 %v1382
        %v3982 = vunpack.c.l.b16 %v1383
        %v3983 = vunpack.c.h.b16 %v1383
        %v3984 = vunpack.c.l.b16 %v1384
        %v3985 = vunpack.c.h.b16 %v1384
        %v3986 = vunpack.c.l.b16 %v1385
        %v3987 = vunpack.c.h.b16 %v1385
        %v3988 = vunpack.c.l.b16 %v1386
        %v3989 = vunpack.c.h.b16 %v1386
        %v3990 = vunpack.c.l.b16 %v1387
        %v3991 = vunpack.c.h.b16 %v1387
        %v3992 = vunpack.c.l.b16 %v1388
        %v3993 = vunpack.c.h.b16 %v1388
        %v3994 = vunpack.c.l.b16 %v1389
        %v3995 = vunpack.c.h.b16 %v1389
        %v3996 = vunpack.c.l.b16 %v1390
        %v3997 = vunpack.c.h.b16 %v1390
        %v3998 = vunpack.c.l.b16 %v1391
        %v3999 = vunpack.c.h.b16 %v1391
        %v4000 = vunpack.c.l.b16 %v1392
        %v4001 = vunpack.c.h.b16 %v1392
        %v4002 = vunpack.c.l.b16 %v1393
        %v4003 = vunpack.c.h.b16 %v1393
        %v4004 = vunpack.c.l.b16 %v1394
        %v4005 = vunpack.c.h.b16 %v1394
        %v4006 = vunpack.c.l.b16 %v1395
        %v4007 = vunpack.c.h.b16 %v1395
        %v4008 = vunpack.c.l.b16 %v1396
        %v4009 = vunpack.c.h.b16 %v1396
        %v4010 = vunpack.c.l.b16 %v1397
        %v4011 = vunpack.c.h.b16 %v1397
        %v4012 = vunpack.c.l.b16 %v1398
        %v4013 = vunpack.c.h.b16 %v1398
        %v4014 = vunpack.c.l.b16 %v1399
        %v4015 = vunpack.c.h.b16 %v1399
        %v4016 = vunpack.c.l.b16 %v1400
        %v4017 = vunpack.c.h.b16 %v1400
        %v4018 = vunpack.c.l.b16 %v1401
        %v4019 = vunpack.c.h.b16 %v1401
        %v4020 = vunpack.c.l.b16 %v1402
        %v4021 = vunpack.c.h.b16 %v1402
        %v4022 = vunpack.c.l.b16 %v1403
        %v4023 = vunpack.c.h.b16 %v1403
        %v4024 = vunpack.c.l.b16 %v1404
        %v4025 = vunpack.c.h.b16 %v1404
        %v4026 = vunpack.c.l.b16 %v1405
        %v4027 = vunpack.c.h.b16 %v1405
        %v4028 = vunpack.c.l.b16 %v1406
        %v4029 = vunpack.c.h.b16 %v1406
        %v4030 = vunpack.c.l.b16 %v1407
        %v4031 = vunpack.c.h.b16 %v1407
        %v4032 = vunpack.c.l.b16 %v1408
        %v4033 = vunpack.c.h.b16 %v1408
        %v4034 = vunpack.c.l.b16 %v1409
        %v4035 = vunpack.c.h.b16 %v1409
        %v4036 = vunpack.c.l.b16 %v1410
        %v4037 = vunpack.c.h.b16 %v1410
        %v4038 = vunpack.c.l.b16 %v1411
        %v4039 = vunpack.c.h.b16 %v1411
        %v4040 = vunpack.c.l.b16 %v1412
        %v4041 = vunpack.c.h.b16 %v1412
        %v4042 = vunpack.c.l.b16 %v1413
        %v4043 = vunpack.c.h.b16 %v1413
        %v4044 = vunpack.c.l.b16 %v1414
        %v4045 = vunpack.c.h.b16 %v1414
        %v4046 = vunpack.c.l.b16 %v1415
        %v4047 = vunpack.c.h.b16 %v1415
        %v4048 = vunpack.c.l.b16 %v1416
        %v4049 = vunpack.c.h.b16 %v1416
        %v4050 = vunpack.c.l.b16 %v1417
        %v4051 = vunpack.c.h.b16 %v1417
        %v4052 = vunpack.c.l.b16 %v1418
        %v4053 = vunpack.c.h.b16 %v1418
        %v4054 = vunpack.c.l.b16 %v1419
        %v4055 = vunpack.c.h.b16 %v1419
        %v4056 = vunpack.c.l.b16 %v1420
        %v4057 = vunpack.c.h.b16 %v1420
        %v4058 = vunpack.c.l.b16 %v1421
        %v4059 = vunpack.c.h.b16 %v1421
        %v4060 = vunpack.c.l.b16 %v1422
        %v4061 = vunpack.c.h.b16 %v1422
        %v4062 = vunpack.c.l.b16 %v1423
        %v4063 = vunpack.c.h.b16 %v1423
        %v4064 = vunpack.c.l.b16 %v1424
        %v4065 = vunpack.c.h.b16 %v1424
        %v4066 = vunpack.c.l.b16 %v1425
        %v4067 = vunpack.c.h.b16 %v1425
        %v4068 = vunpack.c.l.b16 %v1426
        %v4069 = vunpack.c.h.b16 %v1426
        %v4070 = vunpack.c.l.b16 %v1427
        %v4071 = vunpack.c.h.b16 %v1427
        %v4072 = vunpack.c.l.b16 %v1428
        %v4073 = vunpack.c.h.b16 %v1428
        %v4074 = vunpack.c.l.b16 %v1429
        %v4075 = vunpack.c.h.b16 %v1429
        %v4076 = vunpack.c.l.b16 %v1430
        %v4077 = vunpack.c.h.b16 %v1430
        %v4078 = vunpack.c.l.b16 %v1431
        %v4079 = vunpack.c.h.b16 %v1431
        %v4080 = vunpack.c.l.b16 %v1432
        %v4081 = vunpack.c.h.b16 %v1432
        %v4082 = vunpack.c.l.b16 %v1433
        %v4083 = vunpack.c.h.b16 %v1433
        %v4084 = vunpack.c.l.b16 %v1434
        %v4085 = vunpack.c.h.b16 %v1434
        %v4086 = vunpack.c.l.b16 %v1435
        %v4087 = vunpack.c.h.b16 %v1435
        %v4088 = vunpack.c.l.b16 %v1436
        %v4089 = vunpack.c.h.b16 %v1436
        %v4090 = vunpack.c.l.b16 %v1437
        %v4091 = vunpack.c.h.b16 %v1437
        %v4092 = vunpack.c.l.b16 %v1438
        %v4093 = vunpack.c.h.b16 %v1438
        %v4094 = vunpack.c.l.b16 %v1439
        %v4095 = vunpack.c.h.b16 %v1439
        %v4096 = vunpack.c.l.b16 %v1440
        %v4097 = vunpack.c.h.b16 %v1440
        %v4098 = vunpack.c.l.b16 %v1441
        %v4099 = vunpack.c.h.b16 %v1441
        %v4100 = vunpack.c.l.b16 %v1442
        %v4101 = vunpack.c.h.b16 %v1442
        %v4102 = vunpack.c.l.b16 %v1443
        %v4103 = vunpack.c.h.b16 %v1443
        %v4104 = vunpack.c.l.b16 %v1444
        %v4105 = vunpack.c.h.b16 %v1444
        %v4106 = vunpack.c.l.b16 %v1445
        %v4107 = vunpack.c.h.b16 %v1445
        %v4108 = vunpack.c.l.b16 %v1446
        %v4109 = vunpack.c.h.b16 %v1446
        %v4110 = vunpack.c.l.b16 %v1447
        %v4111 = vunpack.c.h.b16 %v1447
        %v4112 = vunpack.c.l.b16 %v1448
        %v4113 = vunpack.c.h.b16 %v1448
        %v4114 = vunpack.c.l.b16 %v1449
        %v4115 = vunpack.c.h.b16 %v1449
        %v4116 = vunpack.c.l.b16 %v1450
        %v4117 = vunpack.c.h.b16 %v1450
        %v4118 = vunpack.c.l.b16 %v1451
        %v4119 = vunpack.c.h.b16 %v1451
        %v4120 = vunpack.c.l.b16 %v1452
        %v4121 = vunpack.c.h.b16 %v1452
        %v4122 = vunpack.c.l.b16 %v1453
        %v4123 = vunpack.c.h.b16 %v1453
        %v4124 = vunpack.c.l.b16 %v1454
        %v4125 = vunpack.c.h.b16 %v1454
        %v4126 = vunpack.c.l.b16 %v1455
        %v4127 = vunpack.c.h.b16 %v1455
        %v4128 = vunpack.c.l.b16 %v1456
        %v4129 = vunpack.c.h.b16 %v1456
        %v4130 = vunpack.c.l.b16 %v1457
        %v4131 = vunpack.c.h.b16 %v1457
        %v4132 = vunpack.c.l.b16 %v1458
        %v4133 = vunpack.c.h.b16 %v1458
        %v4134 = vunpack.c.l.b16 %v1459
        %v4135 = vunpack.c.h.b16 %v1459
        %v4136 = vunpack.c.l.b16 %v1460
        %v4137 = vunpack.c.h.b16 %v1460
        %v4138 = vunpack.c.l.b16 %v1461
        %v4139 = vunpack.c.h.b16 %v1461
        %v4140 = vunpack.c.l.b16 %v1462
        %v4141 = vunpack.c.h.b16 %v1462
        %v4142 = vunpack.c.l.b16 %v1463
        %v4143 = vunpack.c.h.b16 %v1463
        %v4144 = vunpack.c.l.b16 %v1464
        %v4145 = vunpack.c.h.b16 %v1464
        %v4146 = vunpack.c.l.b16 %v1465
        %v4147 = vunpack.c.h.b16 %v1465
        %v4148 = vunpack.c.l.b16 %v1466
        %v4149 = vunpack.c.h.b16 %v1466
        %v4150 = vunpack.c.l.b16 %v1467
        %v4151 = vunpack.c.h.b16 %v1467
        %v4152 = vunpack.c.l.b16 %v1468
        %v4153 = vunpack.c.h.b16 %v1468
        %v4154 = vunpack.c.l.b16 %v1469
        %v4155 = vunpack.c.h.b16 %v1469
        %v4156 = vunpack.c.l.b16 %v1470
        %v4157 = vunpack.c.h.b16 %v1470
        %v4158 = vunpack.c.l.b16 %v1471
        %v4159 = vunpack.c.h.b16 %v1471
        %v4160 = vunpack.c.l.b16 %v1472
        %v4161 = vunpack.c.h.b16 %v1472
        %v4162 = vunpack.c.l.b16 %v1473
        %v4163 = vunpack.c.h.b16 %v1473
        %v4164 = vunpack.c.l.b16 %v1474
        %v4165 = vunpack.c.h.b16 %v1474
        %v4166 = vunpack.c.l.b16 %v1475
        %v4167 = vunpack.c.h.b16 %v1475
        %v4168 = vunpack.c.l.b16 %v1476
        %v4169 = vunpack.c.h.b16 %v1476
        %v4170 = vunpack.c.l.b16 %v1477
        %v4171 = vunpack.c.h.b16 %v1477
        %v4172 = vunpack.c.l.b16 %v1478
        %v4173 = vunpack.c.h.b16 %v1478
        %v4174 = vunpack.c.l.b16 %v1479
        %v4175 = vunpack.c.h.b16 %v1479
        %v4176 = vunpack.c.l.b16 %v1480
        %v4177 = vunpack.c.h.b16 %v1480
        %v4178 = vunpack.c.l.b16 %v1481
        %v4179 = vunpack.c.h.b16 %v1481
        %v4180 = vunpack.c.l.b16 %v1482
        %v4181 = vunpack.c.h.b16 %v1482
        %v4182 = vunpack.c.l.b16 %v1483
        %v4183 = vunpack.c.h.b16 %v1483
        %v4184 = vunpack.c.l.b16 %v1484
        %v4185 = vunpack.c.h.b16 %v1484
        %v4186 = vunpack.c.l.b16 %v1485
        %v4187 = vunpack.c.h.b16 %v1485
        %v4188 = vunpack.c.l.b16 %v1486
        %v4189 = vunpack.c.h.b16 %v1486
        %v4190 = vunpack.c.l.b16 %v1487
        %v4191 = vunpack.c.h.b16 %v1487
        %v4192 = vunpack.c.l.b16 %v1488
        %v4193 = vunpack.c.h.b16 %v1488
        %v4194 = vunpack.c.l.b16 %v1489
        %v4195 = vunpack.c.h.b16 %v1489
        %v4196 = vunpack.c.l.b16 %v1490
        %v4197 = vunpack.c.h.b16 %v1490
        %v4198 = vunpack.c.l.b16 %v1491
        %v4199 = vunpack.c.h.b16 %v1491
        %v4200 = vunpack.c.l.b16 %v1492
        %v4201 = vunpack.c.h.b16 %v1492
        %v4202 = vunpack.c.l.b16 %v1493
        %v4203 = vunpack.c.h.b16 %v1493
        %v4204 = vunpack.c.l.b16 %v1494
        %v4205 = vunpack.c.h.b16 %v1494
        %v4206 = vunpack.c.l.b16 %v1495
        %v4207 = vunpack.c.h.b16 %v1495
        %v4208 = vunpack.c.l.b16 %v1496
        %v4209 = vunpack.c.h.b16 %v1496
        %v4210 = vunpack.c.l.b16 %v1497
        %v4211 = vunpack.c.h.b16 %v1497
        %v4212 = vunpack.c.l.b16 %v1498
        %v4213 = vunpack.c.h.b16 %v1498
        %v4214 = vunpack.c.l.b16 %v1499
        %v4215 = vunpack.c.h.b16 %v1499
        %v4216 = vunpack.c.l.b16 %v1500
        %v4217 = vunpack.c.h.b16 %v1500
        %v4218 = vunpack.c.l.b16 %v1501
        %v4219 = vunpack.c.h.b16 %v1501
        %v4220 = vunpack.c.l.b16 %v1502
        %v4221 = vunpack.c.h.b16 %v1502
        %v4222 = vunpack.c.l.b16 %v1503
        %v4223 = vunpack.c.h.b16 %v1503
        %v4224 = vunpack.c.l.b16 %v1504
        %v4225 = vunpack.c.h.b16 %v1504
        %v4226 = vunpack.c.l.b16 %v1505
        %v4227 = vunpack.c.h.b16 %v1505
        %v4228 = vunpack.c.l.b16 %v1506
        %v4229 = vunpack.c.h.b16 %v1506
        %v4230 = vunpack.c.l.b16 %v1507
        %v4231 = vunpack.c.h.b16 %v1507
        %v4232 = vunpack.c.l.b16 %v1508
        %v4233 = vunpack.c.h.b16 %v1508
        %v4234 = vunpack.c.l.b16 %v1509
        %v4235 = vunpack.c.h.b16 %v1509
        %v4236 = vunpack.c.l.b16 %v1510
        %v4237 = vunpack.c.h.b16 %v1510
        %v4238 = vunpack.c.l.b16 %v1511
        %v4239 = vunpack.c.h.b16 %v1511
        %v4240 = vunpack.c.l.b16 %v1512
        %v4241 = vunpack.c.h.b16 %v1512
        %v4242 = vunpack.c.l.b16 %v1513
        %v4243 = vunpack.c.h.b16 %v1513
        %v4244 = vunpack.c.l.b16 %v1514
        %v4245 = vunpack.c.h.b16 %v1514
        %v4246 = vunpack.c.l.b16 %v1515
        %v4247 = vunpack.c.h.b16 %v1515
        %v4248 = vunpack.c.l.b16 %v1516
        %v4249 = vunpack.c.h.b16 %v1516
        %v4250 = vunpack.c.l.b16 %v1517
        %v4251 = vunpack.c.h.b16 %v1517
        %v4252 = vunpack.c.l.b16 %v1518
        %v4253 = vunpack.c.h.b16 %v1518
        %v4254 = vunpack.c.l.b16 %v1519
        %v4255 = vunpack.c.h.b16 %v1519
        %v4256 = vunpack.c.l.b16 %v1520
        %v4257 = vunpack.c.h.b16 %v1520
        %v4258 = vunpack.c.l.b16 %v1521
        %v4259 = vunpack.c.h.b16 %v1521
        %v4260 = vunpack.c.l.b16 %v1522
        %v4261 = vunpack.c.h.b16 %v1522
        %v4262 = vunpack.c.l.b16 %v1523
        %v4263 = vunpack.c.h.b16 %v1523
        %v4264 = vunpack.c.l.b16 %v1524
        %v4265 = vunpack.c.h.b16 %v1524
        %v4266 = vunpack.c.l.b16 %v1525
        %v4267 = vunpack.c.h.b16 %v1525
        %v4268 = vunpack.c.l.b16 %v1526
        %v4269 = vunpack.c.h.b16 %v1526
        %v4270 = vunpack.c.l.b16 %v1527
        %v4271 = vunpack.c.h.b16 %v1527
        %v4272 = vunpack.c.l.b16 %v1528
        %v4273 = vunpack.c.h.b16 %v1528
        %v4274 = vunpack.c.l.b16 %v1529
        %v4275 = vunpack.c.h.b16 %v1529
        %v4276 = vunpack.c.l.b16 %v1530
        %v4277 = vunpack.c.h.b16 %v1530
        %v4278 = vunpack.c.l.b16 %v1531
        %v4279 = vunpack.c.h.b16 %v1531
        %v4280 = vunpack.c.l.b16 %v1532
        %v4281 = vunpack.c.h.b16 %v1532
        %v4282 = vunpack.c.l.b16 %v1533
        %v4283 = vunpack.c.h.b16 %v1533
        %v4284 = vunpack.c.l.b16 %v1534
        %v4285 = vunpack.c.h.b16 %v1534
        %v4286 = vunpack.c.l.b16 %v1535
        %v4287 = vunpack.c.h.b16 %v1535
        %v4288 = vunpack.c.l.b16 %v1536
        %v4289 = vunpack.c.h.b16 %v1536
        %v4290 = vunpack.c.l.b16 %v1537
        %v4291 = vunpack.c.h.b16 %v1537
        %v4292 = vunpack.c.l.b16 %v1538
        %v4293 = vunpack.c.h.b16 %v1538
        %v4294 = vunpack.c.l.b16 %v1539
        %v4295 = vunpack.c.h.b16 %v1539
        %v4296 = vunpack.c.l.b16 %v1540
        %v4297 = vunpack.c.h.b16 %v1540
        %v4298 = vunpack.c.l.b16 %v1541
        %v4299 = vunpack.c.h.b16 %v1541
        %v4300 = vunpack.c.l.b16 %v1542
        %v4301 = vunpack.c.h.b16 %v1542
        %v4302 = vunpack.c.l.b16 %v1543
        %v4303 = vunpack.c.h.b16 %v1543
        %v4304 = vunpack.c.l.b16 %v1544
        %v4305 = vunpack.c.h.b16 %v1544
        %v4306 = vunpack.c.l.b16 %v1545
        %v4307 = vunpack.c.h.b16 %v1545
        %v4308 = vunpack.c.l.b16 %v1546
        %v4309 = vunpack.c.h.b16 %v1546
        %v4310 = vunpack.c.l.b16 %v1547
        %v4311 = vunpack.c.h.b16 %v1547
        %v4312 = vunpack.c.l.b16 %v1548
        %v4313 = vunpack.c.h.b16 %v1548
        %v4314 = vunpack.c.l.b16 %v1549
        %v4315 = vunpack.c.h.b16 %v1549
        %v4316 = vunpack.c.l.b16 %v1550
        %v4317 = vunpack.c.h.b16 %v1550
        %v4318 = vunpack.c.l.b16 %v1551
        %v4319 = vunpack.c.h.b16 %v1551
        %v4320 = vunpack.c.l.b16 %v1552
        %v4321 = vunpack.c.h.b16 %v1552
        %v4322 = vunpack.c.l.b16 %v1553
        %v4323 = vunpack.c.h.b16 %v1553
        %v4324 = vunpack.c.l.b16 %v1554
        %v4325 = vunpack.c.h.b16 %v1554
        %v4326 = vunpack.c.l.b16 %v1555
        %v4327 = vunpack.c.h.b16 %v1555
        %v4328 = vunpack.c.l.b16 %v1556
        %v4329 = vunpack.c.h.b16 %v1556
        %v4330 = vunpack.c.l.b16 %v1557
        %v4331 = vunpack.c.h.b16 %v1557
        %v4332 = vunpack.c.l.b16 %v1558
        %v4333 = vunpack.c.h.b16 %v1558
        %v4334 = vunpack.c.l.b16 %v1559
        %v4335 = vunpack.c.h.b16 %v1559
        %v4336 = vunpack.c.l.b16 %v1560
        %v4337 = vunpack.c.h.b16 %v1560
        %v4338 = vunpack.c.l.b16 %v1561
        %v4339 = vunpack.c.h.b16 %v1561
        %v4340 = vunpack.c.l.b16 %v1562
        %v4341 = vunpack.c.h.b16 %v1562
        %v4342 = vunpack.c.l.b16 %v1563
        %v4343 = vunpack.c.h.b16 %v1563
        %v4344 = vunpack.c.l.b16 %v1564
        %v4345 = vunpack.c.h.b16 %v1564
        %v4346 = vunpack.c.l.b16 %v1565
        %v4347 = vunpack.c.h.b16 %v1565
        %v4348 = vunpack.c.l.b16 %v1566
        %v4349 = vunpack.c.h.b16 %v1566
        %v4350 = vunpack.c.l.b16 %v1567
        %v4351 = vunpack.c.h.b16 %v1567
        %v4352 = vunpack.c.l.b16 %v1568
        %v4353 = vunpack.c.h.b16 %v1568
        %v4354 = vunpack.c.l.b16 %v1569
        %v4355 = vunpack.c.h.b16 %v1569
        %v4356 = vunpack.c.l.b16 %v1570
        %v4357 = vunpack.c.h.b16 %v1570
        %v4358 = vunpack.c.l.b16 %v1571
        %v4359 = vunpack.c.h.b16 %v1571
        %v4360 = vunpack.c.l.b16 %v1572
        %v4361 = vunpack.c.h.b16 %v1572
        %v4362 = vunpack.c.l.b16 %v1573
        %v4363 = vunpack.c.h.b16 %v1573
        %v4364 = vunpack.c.l.b16 %v1574
        %v4365 = vunpack.c.h.b16 %v1574
        %v4366 = vunpack.c.l.b16 %v1575
        %v4367 = vunpack.c.h.b16 %v1575
        %v4368 = vunpack.c.l.b16 %v1576
        %v4369 = vunpack.c.h.b16 %v1576
        %v4370 = vunpack.c.l.b16 %v1577
        %v4371 = vunpack.c.h.b16 %v1577
        %v4372 = vunpack.c.l.b16 %v1578
        %v4373 = vunpack.c.h.b16 %v1578
        %v4374 = vunpack.c.l.b16 %v1579
        %v4375 = vunpack.c.h.b16 %v1579
        %v4376 = vunpack.c.l.b16 %v1580
        %v4377 = vunpack.c.h.b16 %v1580
        %v4378 = vunpack.c.l.b16 %v1581
        %v4379 = vunpack.c.h.b16 %v1581
        %v4380 = vunpack.c.l.b16 %v1582
        %v4381 = vunpack.c.h.b16 %v1582
        %v4382 = vunpack.c.l.b16 %v1583
        %v4383 = vunpack.c.h.b16 %v1583
        %v4384 = vunpack.c.l.b16 %v1584
        %v4385 = vunpack.c.h.b16 %v1584
        %v4386 = vunpack.c.l.b16 %v1585
        %v4387 = vunpack.c.h.b16 %v1585
        %v4388 = vunpack.c.l.b16 %v1586
        %v4389 = vunpack.c.h.b16 %v1586
        %v4390 = vunpack.c.l.b16 %v1587
        %v4391 = vunpack.c.h.b16 %v1587
        %v4392 = vunpack.c.l.b16 %v1588
        %v4393 = vunpack.c.h.b16 %v1588
        %v4394 = vunpack.c.l.b16 %v1589
        %v4395 = vunpack.c.h.b16 %v1589
        %v4396 = vunpack.c.l.b16 %v1590
        %v4397 = vunpack.c.h.b16 %v1590
        %v4398 = vunpack.c.l.b16 %v1591
        %v4399 = vunpack.c.h.b16 %v1591
        %v4400 = vunpack.c.l.b16 %v1592
        %v4401 = vunpack.c.h.b16 %v1592
        %v4402 = vunpack.c.l.b16 %v1593
        %v4403 = vunpack.c.h.b16 %v1593
        %v4404 = vunpack.c.l.b16 %v1594
        %v4405 = vunpack.c.h.b16 %v1594
        %v4406 = vunpack.c.l.b16 %v1595
        %v4407 = vunpack.c.h.b16 %v1595
        %v4408 = vunpack.c.l.b16 %v1596
        %v4409 = vunpack.c.h.b16 %v1596
        %v4410 = vunpack.c.l.b16 %v1597
        %v4411 = vunpack.c.h.b16 %v1597
        %v4412 = vunpack.c.l.b16 %v1598
        %v4413 = vunpack.c.h.b16 %v1598
        %v4414 = vunpack.c.l.b16 %v1599
        %v4415 = vunpack.c.h.b16 %v1599
        %v4416 = vunpack.c.l.b16 %v1600
        %v4417 = vunpack.c.h.b16 %v1600
        %v4418 = vunpack.c.l.b16 %v1601
        %v4419 = vunpack.c.h.b16 %v1601
        %v4420 = vunpack.c.l.b16 %v1602
        %v4421 = vunpack.c.h.b16 %v1602
        %v4422 = vunpack.c.l.b16 %v1603
        %v4423 = vunpack.c.h.b16 %v1603
        %v4424 = vunpack.c.l.b16 %v1604
        %v4425 = vunpack.c.h.b16 %v1604
        %v4426 = vunpack.c.l.b16 %v1605
        %v4427 = vunpack.c.h.b16 %v1605
        %v4428 = vunpack.c.l.b16 %v1606
        %v4429 = vunpack.c.h.b16 %v1606
        %v4430 = vunpack.c.l.b16 %v1607
        %v4431 = vunpack.c.h.b16 %v1607
        %v4432 = vunpack.c.l.b16 %v1608
        %v4433 = vunpack.c.h.b16 %v1608
        %v4434 = vunpack.c.l.b16 %v1609
        %v4435 = vunpack.c.h.b16 %v1609
        %v4436 = vunpack.c.l.b16 %v1610
        %v4437 = vunpack.c.h.b16 %v1610
        %v4438 = vunpack.c.l.b16 %v1611
        %v4439 = vunpack.c.h.b16 %v1611
        %v4440 = vunpack.c.l.b16 %v1612
        %v4441 = vunpack.c.h.b16 %v1612
        %v4442 = vunpack.c.l.b16 %v1613
        %v4443 = vunpack.c.h.b16 %v1613
        %v4444 = vunpack.c.l.b16 %v1614
        %v4445 = vunpack.c.h.b16 %v1614
        %v4446 = vunpack.c.l.b16 %v1615
        %v4447 = vunpack.c.h.b16 %v1615
        %v4448 = vunpack.c.l.b16 %v1616
        %v4449 = vunpack.c.h.b16 %v1616
        %v4450 = vunpack.c.l.b16 %v1617
        %v4451 = vunpack.c.h.b16 %v1617
        %v4452 = vunpack.c.l.b16 %v1618
        %v4453 = vunpack.c.h.b16 %v1618
        %v4454 = vunpack.c.l.b16 %v1619
        %v4455 = vunpack.c.h.b16 %v1619
        %v4456 = vunpack.c.l.b16 %v1620
        %v4457 = vunpack.c.h.b16 %v1620
        %v4458 = vunpack.c.l.b16 %v1621
        %v4459 = vunpack.c.h.b16 %v1621
        %v4460 = vunpack.c.l.b16 %v1622
        %v4461 = vunpack.c.h.b16 %v1622
        %v4462 = vunpack.c.l.b16 %v1623
        %v4463 = vunpack.c.h.b16 %v1623
        %v4464 = vunpack.c.l.b16 %v1624
        %v4465 = vunpack.c.h.b16 %v1624
        %v4466 = vunpack.c.l.b16 %v1625
        %v4467 = vunpack.c.h.b16 %v1625
        %v4468 = vunpack.c.l.b16 %v1626
        %v4469 = vunpack.c.h.b16 %v1626
        %v4470 = vunpack.c.l.b16 %v1627
        %v4471 = vunpack.c.h.b16 %v1627
        %v4472 = vunpack.c.l.b16 %v1628
        %v4473 = vunpack.c.h.b16 %v1628
        %v4474 = vunpack.c.l.b16 %v1629
        %v4475 = vunpack.c.h.b16 %v1629
        %v4476 = vunpack.c.l.b16 %v1630
        %v4477 = vunpack.c.h.b16 %v1630
        %v4478 = vunpack.c.l.b16 %v1631
        %v4479 = vunpack.c.h.b16 %v1631
        %v4480 = vunpack.c.l.b16 %v1632
        %v4481 = vunpack.c.h.b16 %v1632
        %v4482 = vunpack.c.l.b16 %v1633
        %v4483 = vunpack.c.h.b16 %v1633
        %v4484 = vunpack.c.l.b16 %v1634
        %v4485 = vunpack.c.h.b16 %v1634
        %v4486 = vunpack.c.l.b16 %v1635
        %v4487 = vunpack.c.h.b16 %v1635
        %v4488 = vunpack.c.l.b16 %v1636
        %v4489 = vunpack.c.h.b16 %v1636
        %v4490 = vunpack.c.l.b16 %v1637
        %v4491 = vunpack.c.h.b16 %v1637
        %v4492 = vunpack.c.l.b16 %v1638
        %v4493 = vunpack.c.h.b16 %v1638
        %v4494 = vunpack.c.l.b16 %v1639
        %v4495 = vunpack.c.h.b16 %v1639
        %v4496 = vunpack.c.l.b16 %v1640
        %v4497 = vunpack.c.h.b16 %v1640
        %v4498 = vunpack.c.l.b16 %v1641
        %v4499 = vunpack.c.h.b16 %v1641
        %v4500 = vunpack.c.l.b16 %v1642
        %v4501 = vunpack.c.h.b16 %v1642
        %v4502 = vunpack.c.l.b16 %v1643
        %v4503 = vunpack.c.h.b16 %v1643
        %v4504 = vunpack.c.l.b16 %v1644
        %v4505 = vunpack.c.h.b16 %v1644
        %v4506 = vunpack.c.l.b16 %v1645
        %v4507 = vunpack.c.h.b16 %v1645
        %v4508 = vunpack.c.l.b16 %v1646
        %v4509 = vunpack.c.h.b16 %v1646
        %v4510 = vunpack.c.l.b16 %v1647
        %v4511 = vunpack.c.h.b16 %v1647
        %v4512 = vunpack.c.l.b16 %v1648
        %v4513 = vunpack.c.h.b16 %v1648
        %v4514 = vunpack.c.l.b16 %v1649
        %v4515 = vunpack.c.h.b16 %v1649
        %v4516 = vunpack.c.l.b16 %v1650
        %v4517 = vunpack.c.h.b16 %v1650
        %v4518 = vunpack.c.l.b16 %v1651
        %v4519 = vunpack.c.h.b16 %v1651
        %v4520 = vunpack.c.l.b16 %v1652
        %v4521 = vunpack.c.h.b16 %v1652
        %v4522 = vunpack.c.l.b16 %v1653
        %v4523 = vunpack.c.h.b16 %v1653
        %v4524 = vunpack.c.l.b16 %v1654
        %v4525 = vunpack.c.h.b16 %v1654
        %v4526 = vunpack.c.l.b16 %v1655
        %v4527 = vunpack.c.h.b16 %v1655
        %v4528 = vunpack.c.l.b16 %v1656
        %v4529 = vunpack.c.h.b16 %v1656
        %v4530 = vunpack.c.l.b16 %v1657
        %v4531 = vunpack.c.h.b16 %v1657
        %v4532 = vunpack.c.l.b16 %v1658
        %v4533 = vunpack.c.h.b16 %v1658
        %v4534 = vunpack.c.l.b16 %v1659
        %v4535 = vunpack.c.h.b16 %v1659
        %v4536 = vunpack.c.l.b16 %v1660
        %v4537 = vunpack.c.h.b16 %v1660
        %v4538 = vunpack.c.l.b16 %v1661
        %v4539 = vunpack.c.h.b16 %v1661
        %v4540 = vunpack.c.l.b16 %v1662
        %v4541 = vunpack.c.h.b16 %v1662
        %v4542 = vunpack.c.l.b16 %v1663
        %v4543 = vunpack.c.h.b16 %v1663
        %v4544 = vunpack.c.l.b16 %v1664
        %v4545 = vunpack.c.h.b16 %v1664
        %v4546 = vunpack.c.l.b16 %v1665
        %v4547 = vunpack.c.h.b16 %v1665
        %v4548 = vunpack.c.l.b16 %v1666
        %v4549 = vunpack.c.h.b16 %v1666
        %v4550 = vunpack.c.l.b16 %v1667
        %v4551 = vunpack.c.h.b16 %v1667
        %v4552 = vunpack.c.l.b16 %v1668
        %v4553 = vunpack.c.h.b16 %v1668
        %v4554 = vunpack.c.l.b16 %v1669
        %v4555 = vunpack.c.h.b16 %v1669
        %v4556 = vunpack.c.l.b16 %v1670
        %v4557 = vunpack.c.h.b16 %v1670
        %v4558 = vunpack.c.l.b16 %v1671
        %v4559 = vunpack.c.h.b16 %v1671
        %v4560 = vunpack.c.l.b16 %v1672
        %v4561 = vunpack.c.h.b16 %v1672
        %v4562 = vunpack.c.l.b16 %v1673
        %v4563 = vunpack.c.h.b16 %v1673
        %v4564 = vunpack.c.l.b16 %v1674
        %v4565 = vunpack.c.h.b16 %v1674
        %v4566 = vunpack.c.l.b16 %v1675
        %v4567 = vunpack.c.h.b16 %v1675
        %v4568 = vunpack.c.l.b16 %v1676
        %v4569 = vunpack.c.h.b16 %v1676
        %v4570 = vunpack.c.l.b16 %v1677
        %v4571 = vunpack.c.h.b16 %v1677
        %v4572 = vunpack.c.l.b16 %v1678
        %v4573 = vunpack.c.h.b16 %v1678
        %v4574 = vunpack.c.l.b16 %v1679
        %v4575 = vunpack.c.h.b16 %v1679
        %v4576 = vunpack.c.l.b16 %v1680
        %v4577 = vunpack.c.h.b16 %v1680
        %v4578 = vunpack.c.l.b16 %v1681
        %v4579 = vunpack.c.h.b16 %v1681
        %v4580 = vunpack.c.l.b16 %v1682
        %v4581 = vunpack.c.h.b16 %v1682
        %v4582 = vunpack.c.l.b16 %v1683
        %v4583 = vunpack.c.h.b16 %v1683
        %v4584 = vunpack.c.l.b16 %v1684
        %v4585 = vunpack.c.h.b16 %v1684
        %v4586 = vunpack.c.l.b16 %v1685
        %v4587 = vunpack.c.h.b16 %v1685
        %v4588 = vunpack.c.l.b16 %v1686
        %v4589 = vunpack.c.h.b16 %v1686
        %v4590 = vunpack.c.l.b16 %v1687
        %v4591 = vunpack.c.h.b16 %v1687
        %v4592 = vunpack.c.l.b16 %v1688
        %v4593 = vunpack.c.h.b16 %v1688
        %v4594 = vunpack.c.l.b16 %v1689
        %v4595 = vunpack.c.h.b16 %v1689
        %v4596 = vunpack.c.l.b16 %v1690
        %v4597 = vunpack.c.h.b16 %v1690
        %v4598 = vunpack.c.l.b16 %v1691
        %v4599 = vunpack.c.h.b16 %v1691
        %v4600 = vunpack.c.l.b16 %v1692
        %v4601 = vunpack.c.h.b16 %v1692
        %v4602 = vunpack.c.l.b16 %v1693
        %v4603 = vunpack.c.h.b16 %v1693
        %v4604 = vunpack.c.l.b16 %v1694
        %v4605 = vunpack.c.h.b16 %v1694
        %v4606 = vunpack.c.l.b16 %v1695
        %v4607 = vunpack.c.h.b16 %v1695
        %v4608 = vunpack.c.l.b16 %v1696
        %v4609 = vunpack.c.h.b16 %v1696
        %v4610 = vunpack.c.l.b16 %v1697
        %v4611 = vunpack.c.h.b16 %v1697
        %v4612 = vunpack.c.l.b16 %v1698
        %v4613 = vunpack.c.h.b16 %v1698
        %v4614 = vunpack.c.l.b16 %v1699
        %v4615 = vunpack.c.h.b16 %v1699
        %v4616 = vunpack.c.l.b16 %v1700
        %v4617 = vunpack.c.h.b16 %v1700
        %v4618 = vunpack.c.l.b16 %v1701
        %v4619 = vunpack.c.h.b16 %v1701
        %v4620 = vunpack.c.l.b16 %v1702
        %v4621 = vunpack.c.h.b16 %v1702
        %v4622 = vunpack.c.l.b16 %v1703
        %v4623 = vunpack.c.h.b16 %v1703
        %v4624 = vunpack.c.l.b16 %v1704
        %v4625 = vunpack.c.h.b16 %v1704
        %v4626 = vunpack.c.l.b16 %v1705
        %v4627 = vunpack.c.h.b16 %v1705
        %v4628 = vunpack.c.l.b16 %v1706
        %v4629 = vunpack.c.h.b16 %v1706
        %v4630 = vunpack.c.l.b16 %v1707
        %v4631 = vunpack.c.h.b16 %v1707
        %v4632 = vunpack.c.l.b16 %v1708
        %v4633 = vunpack.c.h.b16 %v1708
        %v4634 = vunpack.c.l.b16 %v1709
        %v4635 = vunpack.c.h.b16 %v1709
        %v4636 = vunpack.c.l.b16 %v1710
        %v4637 = vunpack.c.h.b16 %v1710
        %v4638 = vunpack.c.l.b16 %v1711
        %v4639 = vunpack.c.h.b16 %v1711
        %v4640 = vunpack.c.l.b16 %v1712
        %v4641 = vunpack.c.h.b16 %v1712
        %v4642 = vunpack.c.l.b16 %v1713
        %v4643 = vunpack.c.h.b16 %v1713
        %v4644 = vunpack.c.l.b16 %v1714
        %v4645 = vunpack.c.h.b16 %v1714
        %v4646 = vunpack.c.l.b16 %v1715
        %v4647 = vunpack.c.h.b16 %v1715
        %v4648 = vunpack.c.l.b16 %v1716
        %v4649 = vunpack.c.h.b16 %v1716
        %v4650 = vunpack.c.l.b16 %v1717
        %v4651 = vunpack.c.h.b16 %v1717
        %v4652 = vunpack.c.l.b16 %v1718
        %v4653 = vunpack.c.h.b16 %v1718
        %v4654 = vunpack.c.l.b16 %v1719
        %v4655 = vunpack.c.h.b16 %v1719
        %v4656 = vunpack.c.l.b16 %v1720
        %v4657 = vunpack.c.h.b16 %v1720
        %v4658 = vunpack.c.l.b16 %v1721
        %v4659 = vunpack.c.h.b16 %v1721
        %v4660 = vunpack.c.l.b16 %v1722
        %v4661 = vunpack.c.h.b16 %v1722
        %v4662 = vunpack.c.l.b16 %v1723
        %v4663 = vunpack.c.h.b16 %v1723
        %v4664 = vunpack.c.l.b16 %v1724
        %v4665 = vunpack.c.h.b16 %v1724
        %v4666 = vunpack.c.l.b16 %v1725
        %v4667 = vunpack.c.h.b16 %v1725
        %v4668 = vunpack.c.l.b16 %v1726
        %v4669 = vunpack.c.h.b16 %v1726
        %v4670 = vunpack.c.l.b16 %v1727
        %v4671 = vunpack.c.h.b16 %v1727
        %v4672 = vunpack.c.l.b16 %v1728
        %v4673 = vunpack.c.h.b16 %v1728
        %v4674 = vunpack.c.l.b16 %v1729
        %v4675 = vunpack.c.h.b16 %v1729
        %v4676 = vunpack.c.l.b16 %v1730
        %v4677 = vunpack.c.h.b16 %v1730
        %v4678 = vunpack.c.l.b16 %v1731
        %v4679 = vunpack.c.h.b16 %v1731
        %v4680 = vunpack.c.l.b16 %v1732
        %v4681 = vunpack.c.h.b16 %v1732
        %v4682 = vunpack.c.l.b16 %v1733
        %v4683 = vunpack.c.h.b16 %v1733
        %v4684 = vunpack.c.l.b16 %v1734
        %v4685 = vunpack.c.h.b16 %v1734
        %v4686 = vunpack.c.l.b16 %v1735
        %v4687 = vunpack.c.h.b16 %v1735
        %v4688 = vunpack.c.l.b16 %v1736
        %v4689 = vunpack.c.h.b16 %v1736
        %v4690 = vunpack.c.l.b16 %v1737
        %v4691 = vunpack.c.h.b16 %v1737
        %v4692 = vunpack.c.l.b16 %v1738
        %v4693 = vunpack.c.h.b16 %v1738
        %v4694 = vunpack.c.l.b16 %v1739
        %v4695 = vunpack.c.h.b16 %v1739
        %v4696 = vunpack.c.l.b16 %v1740
        %v4697 = vunpack.c.h.b16 %v1740
        %v4698 = vunpack.c.l.b16 %v1741
        %v4699 = vunpack.c.h.b16 %v1741
        %v4700 = vunpack.c.l.b16 %v1742
        %v4701 = vunpack.c.h.b16 %v1742
        %v4702 = vunpack.c.l.b16 %v1743
        %v4703 = vunpack.c.h.b16 %v1743
        %v4704 = vunpack.c.l.b16 %v1744
        %v4705 = vunpack.c.h.b16 %v1744
        %v4706 = vunpack.c.l.b16 %v1745
        %v4707 = vunpack.c.h.b16 %v1745
        %v4708 = vunpack.c.l.b16 %v1746
        %v4709 = vunpack.c.h.b16 %v1746
        %v4710 = vunpack.c.l.b16 %v1747
        %v4711 = vunpack.c.h.b16 %v1747
        %v4712 = vunpack.c.l.b16 %v1748
        %v4713 = vunpack.c.h.b16 %v1748
        %v4714 = vunpack.c.l.b16 %v1749
        %v4715 = vunpack.c.h.b16 %v1749
        %v4716 = vunpack.c.l.b16 %v1750
        %v4717 = vunpack.c.h.b16 %v1750
        %v4718 = vunpack.c.l.b16 %v1751
        %v4719 = vunpack.c.h.b16 %v1751
        %v4720 = vunpack.c.l.b16 %v1752
        %v4721 = vunpack.c.h.b16 %v1752
        %v4722 = vunpack.c.l.b16 %v1753
        %v4723 = vunpack.c.h.b16 %v1753
        %v4724 = vunpack.c.l.b16 %v1754
        %v4725 = vunpack.c.h.b16 %v1754
        %v4726 = vunpack.c.l.b16 %v1755
        %v4727 = vunpack.c.h.b16 %v1755
        %v4728 = vunpack.c.l.b16 %v1756
        %v4729 = vunpack.c.h.b16 %v1756
        %v4730 = vunpack.c.l.b16 %v1757
        %v4731 = vunpack.c.h.b16 %v1757
        %v4732 = vunpack.c.l.b16 %v1758
        %v4733 = vunpack.c.h.b16 %v1758
        %v4734 = vunpack.c.l.b16 %v1759
        %v4735 = vunpack.c.h.b16 %v1759
        %v4736 = vunpack.c.l.b16 %v1760
        %v4737 = vunpack.c.h.b16 %v1760
        %v4738 = vunpack.c.l.b16 %v1761
        %v4739 = vunpack.c.h.b16 %v1761
        %v4740 = vunpack.c.l.b16 %v1762
        %v4741 = vunpack.c.h.b16 %v1762
        %v4742 = vunpack.c.l.b16 %v1763
        %v4743 = vunpack.c.h.b16 %v1763
        %v4744 = vunpack.c.l.b16 %v1764
        %v4745 = vunpack.c.h.b16 %v1764
        %v4746 = vunpack.c.l.b16 %v1765
        %v4747 = vunpack.c.h.b16 %v1765
        %v4748 = vunpack.c.l.b16 %v1766
        %v4749 = vunpack.c.h.b16 %v1766
        %v4750 = vunpack.c.l.b16 %v1767
        %v4751 = vunpack.c.h.b16 %v1767
        %v4752 = vunpack.c.l.b16 %v1768
        %v4753 = vunpack.c.h.b16 %v1768
        %v4754 = vunpack.c.l.b16 %v1769
        %v4755 = vunpack.c.h.b16 %v1769
        %v4756 = vunpack.c.l.b16 %v1770
        %v4757 = vunpack.c.h.b16 %v1770
        %v4758 = vunpack.c.l.b16 %v1771
        %v4759 = vunpack.c.h.b16 %v1771
        %v4760 = vunpack.c.l.b16 %v1772
        %v4761 = vunpack.c.h.b16 %v1772
        %v4762 = vunpack.c.l.b16 %v1773
        %v4763 = vunpack.c.h.b16 %v1773
        %v4764 = vunpack.c.l.b16 %v1774
        %v4765 = vunpack.c.h.b16 %v1774
        %v4766 = vunpack.c.l.b16 %v1775
        %v4767 = vunpack.c.h.b16 %v1775
        %v4768 = vunpack.c.l.b16 %v1776
        %v4769 = vunpack.c.h.b16 %v1776
        %v4770 = vunpack.c.l.b16 %v1777
        %v4771 = vunpack.c.h.b16 %v1777
        %v4772 = vunpack.c.l.b16 %v1778
        %v4773 = vunpack.c.h.b16 %v1778
        %v4774 = vunpack.c.l.b16 %v1779
        %v4775 = vunpack.c.h.b16 %v1779
        %v4776 = vunpack.c.l.b16 %v1780
        %v4777 = vunpack.c.h.b16 %v1780
        %v4778 = vunpack.c.l.b16 %v1781
        %v4779 = vunpack.c.h.b16 %v1781
        %v4780 = vunpack.c.l.b16 %v1782
        %v4781 = vunpack.c.h.b16 %v1782
        %v4782 = vunpack.c.l.b16 %v1783
        %v4783 = vunpack.c.h.b16 %v1783
        %v4784 = vunpack.c.l.b16 %v1784
        %v4785 = vunpack.c.h.b16 %v1784
        %v4786 = vunpack.c.l.b16 %v1785
        %v4787 = vunpack.c.h.b16 %v1785
        %v4788 = vunpack.c.l.b16 %v1786
        %v4789 = vunpack.c.h.b16 %v1786
        %v4790 = vunpack.c.l.b16 %v1787
        %v4791 = vunpack.c.h.b16 %v1787
        %v4792 = vunpack.c.l.b16 %v1788
        %v4793 = vunpack.c.h.b16 %v1788
        %v4794 = vunpack.c.l.b16 %v1789
        %v4795 = vunpack.c.h.b16 %v1789
        %v4796 = vunpack.c.l.b16 %v1790
        %v4797 = vunpack.c.h.b16 %v1790
        %v4798 = vunpack.c.l.b16 %v1791
        %v4799 = vunpack.c.h.b16 %v1791
        %v4800 = vunpack.c.l.b16 %v1792
        %v4801 = vunpack.c.h.b16 %v1792
        %v4802 = vunpack.c.l.b16 %v1793
        %v4803 = vunpack.c.h.b16 %v1793
        %v4804 = vunpack.c.l.b16 %v1794
        %v4805 = vunpack.c.h.b16 %v1794
        %v4806 = vunpack.c.l.b16 %v1795
        %v4807 = vunpack.c.h.b16 %v1795
        %v4808 = vunpack.c.l.b16 %v1796
        %v4809 = vunpack.c.h.b16 %v1796
        %v4810 = vunpack.c.l.b16 %v1797
        %v4811 = vunpack.c.h.b16 %v1797
        %v4812 = vunpack.c.l.b16 %v1798
        %v4813 = vunpack.c.h.b16 %v1798
        %v4814 = vunpack.c.l.b16 %v1799
        %v4815 = vunpack.c.h.b16 %v1799
        %v4816 = vunpack.c.l.b16 %v1800
        %v4817 = vunpack.c.h.b16 %v1800
        %v4818 = vunpack.c.l.b16 %v1801
        %v4819 = vunpack.c.h.b16 %v1801
        %v4820 = vunpack.c.l.b16 %v1802
        %v4821 = vunpack.c.h.b16 %v1802
        %v4822 = vunpack.c.l.b16 %v1803
        %v4823 = vunpack.c.h.b16 %v1803
        %v4824 = vunpack.c.l.b16 %v1804
        %v4825 = vunpack.c.h.b16 %v1804
        %v4826 = vunpack.c.l.b16 %v1805
        %v4827 = vunpack.c.h.b16 %v1805
        %v4828 = vunpack.c.l.b16 %v1806
        %v4829 = vunpack.c.h.b16 %v1806
        %v4830 = vunpack.c.l.b16 %v1807
        %v4831 = vunpack.c.h.b16 %v1807
        %v4832 = vunpack.c.l.b16 %v1808
        %v4833 = vunpack.c.h.b16 %v1808
        %v4834 = vunpack.c.l.b16 %v1809
        %v4835 = vunpack.c.h.b16 %v1809
        %v4836 = vunpack.c.l.b16 %v1810
        %v4837 = vunpack.c.h.b16 %v1810
        %v4838 = vunpack.c.l.b16 %v1811
        %v4839 = vunpack.c.h.b16 %v1811
        %v4840 = vunpack.c.l.b16 %v1812
        %v4841 = vunpack.c.h.b16 %v1812
        %v4842 = vunpack.c.l.b16 %v1813
        %v4843 = vunpack.c.h.b16 %v1813
        %v4844 = vunpack.c.l.b16 %v1814
        %v4845 = vunpack.c.h.b16 %v1814
        %v4846 = vunpack.c.l.b16 %v1815
        %v4847 = vunpack.c.h.b16 %v1815
        %v4848 = vunpack.c.l.b16 %v1816
        %v4849 = vunpack.c.h.b16 %v1816
        %v4850 = vunpack.c.l.b16 %v1817
        %v4851 = vunpack.c.h.b16 %v1817
        %v4852 = vunpack.c.l.b16 %v1818
        %v4853 = vunpack.c.h.b16 %v1818
        %v4854 = vunpack.c.l.b16 %v1819
        %v4855 = vunpack.c.h.b16 %v1819
        %v4856 = vunpack.c.l.b16 %v1820
        %v4857 = vunpack.c.h.b16 %v1820
        %v4858 = vunpack.c.l.b16 %v1821
        %v4859 = vunpack.c.h.b16 %v1821
        %v4860 = vunpack.c.l.b16 %v1822
        %v4861 = vunpack.c.h.b16 %v1822
        %v4862 = vunpack.c.l.b16 %v1823
        %v4863 = vunpack.c.h.b16 %v1823
        %v4864 = vunpack.c.l.b16 %v1824
        %v4865 = vunpack.c.h.b16 %v1824
        %v4866 = vunpack.c.l.b16 %v1825
        %v4867 = vunpack.c.h.b16 %v1825
        %v4868 = vunpack.c.l.b16 %v1826
        %v4869 = vunpack.c.h.b16 %v1826
        %v4870 = vunpack.c.l.b16 %v1827
        %v4871 = vunpack.c.h.b16 %v1827
        %v4872 = vunpack.c.l.b16 %v1828
        %v4873 = vunpack.c.h.b16 %v1828
        %v4874 = vunpack.c.l.b16 %v1829
        %v4875 = vunpack.c.h.b16 %v1829
        %v4876 = vunpack.c.l.b16 %v1830
        %v4877 = vunpack.c.h.b16 %v1830
        %v4878 = vunpack.c.l.b16 %v1831
        %v4879 = vunpack.c.h.b16 %v1831
        %v4880 = vunpack.c.l.b16 %v1832
        %v4881 = vunpack.c.h.b16 %v1832
        %v4882 = vunpack.c.l.b16 %v1833
        %v4883 = vunpack.c.h.b16 %v1833
        %v4884 = vunpack.c.l.b16 %v1834
        %v4885 = vunpack.c.h.b16 %v1834
        %v4886 = vunpack.c.l.b16 %v1835
        %v4887 = vunpack.c.h.b16 %v1835
        %v4888 = vunpack.c.l.b16 %v1836
        %v4889 = vunpack.c.h.b16 %v1836
        %v4890 = vunpack.c.l.b16 %v1837
        %v4891 = vunpack.c.h.b16 %v1837
        %v4892 = vunpack.c.l.b16 %v1838
        %v4893 = vunpack.c.h.b16 %v1838
        %v4894 = vunpack.c.l.b16 %v1839
        %v4895 = vunpack.c.h.b16 %v1839
        %v4896 = vunpack.c.l.b16 %v1840
        %v4897 = vunpack.c.h.b16 %v1840
        %v4898 = vunpack.c.l.b16 %v1841
        %v4899 = vunpack.c.h.b16 %v1841
        %v4900 = vunpack.c.l.b16 %v1842
        %v4901 = vunpack.c.h.b16 %v1842
        %v4902 = vunpack.c.l.b16 %v1843
        %v4903 = vunpack.c.h.b16 %v1843
        %v4904 = vunpack.c.l.b16 %v1844
        %v4905 = vunpack.c.h.b16 %v1844
        %v4906 = vunpack.c.l.b16 %v1845
        %v4907 = vunpack.c.h.b16 %v1845
        %v4908 = vunpack.c.l.b16 %v1846
        %v4909 = vunpack.c.h.b16 %v1846
        %v4910 = vunpack.c.l.b16 %v1847
        %v4911 = vunpack.c.h.b16 %v1847
        %v4912 = vunpack.c.l.b16 %v1848
        %v4913 = vunpack.c.h.b16 %v1848
        %v4914 = vunpack.c.l.b16 %v1849
        %v4915 = vunpack.c.h.b16 %v1849
        %v4916 = vunpack.c.l.b16 %v1850
        %v4917 = vunpack.c.h.b16 %v1850
        %v4918 = vunpack.c.l.b16 %v1851
        %v4919 = vunpack.c.h.b16 %v1851
        %v4920 = vunpack.c.l.b16 %v1852
        %v4921 = vunpack.c.h.b16 %v1852
        %v4922 = vunpack.c.l.b16 %v1853
        %v4923 = vunpack.c.h.b16 %v1853
        %v4924 = vunpack.c.l.b16 %v1854
        %v4925 = vunpack.c.h.b16 %v1854
        %v4926 = vunpack.c.l.b16 %v1855
        %v4927 = vunpack.c.h.b16 %v1855
        %v4928 = vunpack.c.l.b16 %v1856
        %v4929 = vunpack.c.h.b16 %v1856
        %v4930 = vunpack.c.l.b16 %v1857
        %v4931 = vunpack.c.h.b16 %v1857
        %v4932 = vunpack.c.l.b16 %v1858
        %v4933 = vunpack.c.h.b16 %v1858
        %v4934 = vunpack.c.l.b16 %v1859
        %v4935 = vunpack.c.h.b16 %v1859
        %v4936 = vunpack.c.l.b16 %v1860
        %v4937 = vunpack.c.h.b16 %v1860
        %v4938 = vunpack.c.l.b16 %v1861
        %v4939 = vunpack.c.h.b16 %v1861
        %v4940 = vunpack.c.l.b16 %v1862
        %v4941 = vunpack.c.h.b16 %v1862
        %v4942 = vunpack.c.l.b16 %v1863
        %v4943 = vunpack.c.h.b16 %v1863
        %v4944 = vunpack.c.l.b16 %v1864
        %v4945 = vunpack.c.h.b16 %v1864
        %v4946 = vunpack.c.l.b16 %v1865
        %v4947 = vunpack.c.h.b16 %v1865
        %v4948 = vunpack.c.l.b16 %v1866
        %v4949 = vunpack.c.h.b16 %v1866
        %v4950 = vunpack.c.l.b16 %v1867
        %v4951 = vunpack.c.h.b16 %v1867
        %v4952 = vunpack.c.l.b16 %v1868
        %v4953 = vunpack.c.h.b16 %v1868
        %v4954 = vunpack.c.l.b16 %v1869
        %v4955 = vunpack.c.h.b16 %v1869
        %v4956 = vunpack.c.l.b16 %v1870
        %v4957 = vunpack.c.h.b16 %v1870
        %v4958 = vunpack.c.l.b16 %v1871
        %v4959 = vunpack.c.h.b16 %v1871
        %v4960 = vunpack.c.l.b16 %v1872
        %v4961 = vunpack.c.h.b16 %v1872
        %v4962 = vunpack.c.l.b16 %v1873
        %v4963 = vunpack.c.h.b16 %v1873
        %v4964 = vunpack.c.l.b16 %v1874
        %v4965 = vunpack.c.h.b16 %v1874
        %v4966 = vunpack.c.l.b16 %v1875
        %v4967 = vunpack.c.h.b16 %v1875
        %v4968 = vunpack.c.l.b16 %v1876
        %v4969 = vunpack.c.h.b16 %v1876
        %v4970 = vunpack.c.l.b16 %v1877
        %v4971 = vunpack.c.h.b16 %v1877
        %v4972 = vunpack.c.l.b16 %v1878
        %v4973 = vunpack.c.h.b16 %v1878
        %v4974 = vunpack.c.l.b16 %v1879
        %v4975 = vunpack.c.h.b16 %v1879
        %v4976 = vunpack.c.l.b16 %v1880
        %v4977 = vunpack.c.h.b16 %v1880
        %v4978 = vunpack.c.l.b16 %v1881
        %v4979 = vunpack.c.h.b16 %v1881
        %v4980 = vunpack.c.l.b16 %v1882
        %v4981 = vunpack.c.h.b16 %v1882
        %v4982 = vunpack.c.l.b16 %v1883
        %v4983 = vunpack.c.h.b16 %v1883
        %v4984 = vunpack.c.l.b16 %v1884
        %v4985 = vunpack.c.h.b16 %v1884
        %v4986 = vunpack.c.l.b16 %v1885
        %v4987 = vunpack.c.h.b16 %v1885
        %v4988 = vunpack.c.l.b16 %v1886
        %v4989 = vunpack.c.h.b16 %v1886
        %v4990 = vunpack.c.l.b16 %v1887
        %v4991 = vunpack.c.h.b16 %v1887
        %v4992 = vunpack.c.l.b16 %v1888
        %v4993 = vunpack.c.h.b16 %v1888
        %v4994 = vunpack.c.l.b16 %v1889
        %v4995 = vunpack.c.h.b16 %v1889
        %v4996 = vunpack.c.l.b16 %v1890
        %v4997 = vunpack.c.h.b16 %v1890
        %v4998 = vunpack.c.l.b16 %v1891
        %v4999 = vunpack.c.h.b16 %v1891
        %v5000 = vunpack.c.l.b16 %v1892
        %v5001 = vunpack.c.h.b16 %v1892
        %v5002 = vunpack.c.l.b16 %v1893
        %v5003 = vunpack.c.h.b16 %v1893
        %v5004 = vunpack.c.l.b16 %v1894
        %v5005 = vunpack.c.h.b16 %v1894
        %v5006 = vunpack.c.l.b16 %v1895
        %v5007 = vunpack.c.h.b16 %v1895
        %v5008 = vunpack.c.l.b16 %v1896
        %v5009 = vunpack.c.h.b16 %v1896
        %v5010 = vunpack.c.l.b16 %v1897
        %v5011 = vunpack.c.h.b16 %v1897
        %v5012 = vunpack.c.l.b16 %v1898
        %v5013 = vunpack.c.h.b16 %v1898
        %v5014 = vunpack.c.l.b16 %v1899
        %v5015 = vunpack.c.h.b16 %v1899
        %v5016 = vunpack.c.l.b16 %v1900
        %v5017 = vunpack.c.h.b16 %v1900
        %v5018 = vunpack.c.l.b16 %v1901
        %v5019 = vunpack.c.h.b16 %v1901
        %v5020 = vunpack.c.l.b16 %v1902
        %v5021 = vunpack.c.h.b16 %v1902
        %v5022 = vunpack.c.l.b16 %v1903
        %v5023 = vunpack.c.h.b16 %v1903
        %v5024 = vunpack.c.l.b16 %v1904
        %v5025 = vunpack.c.h.b16 %v1904
        %v5026 = vunpack.c.l.b16 %v1905
        %v5027 = vunpack.c.h.b16 %v1905
        %v5028 = vunpack.c.l.b16 %v1906
        %v5029 = vunpack.c.h.b16 %v1906
        %v5030 = vunpack.c.l.b16 %v1907
        %v5031 = vunpack.c.h.b16 %v1907
        %v5032 = vunpack.c.l.b16 %v1908
        %v5033 = vunpack.c.h.b16 %v1908
        %v5034 = vunpack.c.l.b16 %v1909
        %v5035 = vunpack.c.h.b16 %v1909
        %v5036 = vunpack.c.l.b16 %v1910
        %v5037 = vunpack.c.h.b16 %v1910
        %v5038 = vunpack.c.l.b16 %v1911
        %v5039 = vunpack.c.h.b16 %v1911
        %v5040 = vunpack.c.l.b16 %v1912
        %v5041 = vunpack.c.h.b16 %v1912
        %v5042 = vunpack.c.l.b16 %v1913
        %v5043 = vunpack.c.h.b16 %v1913
        %v5044 = vunpack.c.l.b16 %v1914
        %v5045 = vunpack.c.h.b16 %v1914
        %v5046 = vunpack.c.l.b16 %v1915
        %v5047 = vunpack.c.h.b16 %v1915
        %v5048 = vunpack.c.l.b16 %v1916
        %v5049 = vunpack.c.h.b16 %v1916
        %v5050 = vunpack.c.l.b16 %v1917
        %v5051 = vunpack.c.h.b16 %v1917
        %v5052 = vunpack.c.l.b16 %v1918
        %v5053 = vunpack.c.h.b16 %v1918
        %v5054 = vunpack.c.l.b16 %v1919
        %v5055 = vunpack.c.h.b16 %v1919
        %v5056 = vunpack.c.l.b16 %v1920
        %v5057 = vunpack.c.h.b16 %v1920
        %v5058 = vunpack.c.l.b16 %v1921
        %v5059 = vunpack.c.h.b16 %v1921
        %v5060 = vunpack.c.l.b16 %v1922
        %v5061 = vunpack.c.h.b16 %v1922
        %v5062 = vunpack.c.l.b16 %v1923
        %v5063 = vunpack.c.h.b16 %v1923
        %v5064 = vunpack.c.l.b16 %v1924
        %v5065 = vunpack.c.h.b16 %v1924
        %v5066 = vunpack.c.l.b16 %v1925
        %v5067 = vunpack.c.h.b16 %v1925
        %v5068 = vunpack.c.l.b16 %v1926
        %v5069 = vunpack.c.h.b16 %v1926
        %v5070 = vunpack.c.l.b16 %v1927
        %v5071 = vunpack.c.h.b16 %v1927
        %v5072 = vunpack.c.l.b16 %v1928
        %v5073 = vunpack.c.h.b16 %v1928
        %v5074 = vunpack.c.l.b16 %v1929
        %v5075 = vunpack.c.h.b16 %v1929
        %v5076 = vunpack.c.l.b16 %v1930
        %v5077 = vunpack.c.h.b16 %v1930
        %v5078 = vunpack.c.l.b16 %v1931
        %v5079 = vunpack.c.h.b16 %v1931
        %v5080 = vunpack.c.l.b16 %v1932
        %v5081 = vunpack.c.h.b16 %v1932
        %v5082 = vunpack.c.l.b16 %v1933
        %v5083 = vunpack.c.h.b16 %v1933
        %v5084 = vunpack.c.l.b16 %v1934
        %v5085 = vunpack.c.h.b16 %v1934
        %v5086 = vunpack.c.l.b16 %v1935
        %v5087 = vunpack.c.h.b16 %v1935
        %v5088 = vunpack.c.l.b16 %v1936
        %v5089 = vunpack.c.h.b16 %v1936
        %v5090 = vunpack.c.l.b16 %v1937
        %v5091 = vunpack.c.h.b16 %v1937
        %v5092 = vunpack.c.l.b16 %v1938
        %v5093 = vunpack.c.h.b16 %v1938
        %v5094 = vunpack.c.l.b16 %v1939
        %v5095 = vunpack.c.h.b16 %v1939
        %v5096 = vunpack.c.l.b16 %v1940
        %v5097 = vunpack.c.h.b16 %v1940
        %v5098 = vunpack.c.l.b16 %v1941
        %v5099 = vunpack.c.h.b16 %v1941
        %v5100 = vunpack.c.l.b16 %v1942
        %v5101 = vunpack.c.h.b16 %v1942
        %v5102 = vunpack.c.l.b16 %v1943
        %v5103 = vunpack.c.h.b16 %v1943
        %v5104 = vunpack.c.l.b16 %v1944
        %v5105 = vunpack.c.h.b16 %v1944
        %v5106 = vunpack.c.l.b16 %v1945
        %v5107 = vunpack.c.h.b16 %v1945
        %v5108 = vunpack.c.l.b16 %v1946
        %v5109 = vunpack.c.h.b16 %v1946
        %v5110 = vunpack.c.l.b16 %v1947
        %v5111 = vunpack.c.h.b16 %v1947
        %v5112 = vunpack.c.l.b16 %v1948
        %v5113 = vunpack.c.h.b16 %v1948
        %v5114 = vunpack.c.l.b16 %v1949
        %v5115 = vunpack.c.h.b16 %v1949
        %v5116 = vunpack.c.l.b16 %v1950
        %v5117 = vunpack.c.h.b16 %v1950
        %v5118 = vunpack.c.l.b16 %v1951
        %v5119 = vunpack.c.h.b16 %v1951
        %v5120 = vunpack.c.l.b16 %v1952
        %v5121 = vunpack.c.h.b16 %v1952
        %v5122 = vunpack.c.l.b16 %v1953
        %v5123 = vunpack.c.h.b16 %v1953
        %v5124 = vunpack.c.l.b16 %v1954
        %v5125 = vunpack.c.h.b16 %v1954
        %v5126 = vunpack.c.l.b16 %v1955
        %v5127 = vunpack.c.h.b16 %v1955
        %v5128 = vunpack.c.l.b16 %v1956
        %v5129 = vunpack.c.h.b16 %v1956
        %v5130 = vunpack.c.l.b16 %v1957
        %v5131 = vunpack.c.h.b16 %v1957
        %v5132 = vunpack.c.l.b16 %v1958
        %v5133 = vunpack.c.h.b16 %v1958
        %v5134 = vunpack.c.l.b16 %v1959
        %v5135 = vunpack.c.h.b16 %v1959
        %v5136 = vunpack.c.l.b16 %v1960
        %v5137 = vunpack.c.h.b16 %v1960
        %v5138 = vunpack.c.l.b16 %v1961
        %v5139 = vunpack.c.h.b16 %v1961
        %v5140 = vunpack.c.l.b16 %v1962
        %v5141 = vunpack.c.h.b16 %v1962
        %v5142 = vunpack.c.l.b16 %v1963
        %v5143 = vunpack.c.h.b16 %v1963
        %v5144 = vunpack.c.l.b16 %v1964
        %v5145 = vunpack.c.h.b16 %v1964
        %v5146 = vunpack.c.l.b16 %v1965
        %v5147 = vunpack.c.h.b16 %v1965
        %v5148 = vunpack.c.l.b16 %v1966
        %v5149 = vunpack.c.h.b16 %v1966
        %v5150 = vunpack.c.l.b16 %v1967
        %v5151 = vunpack.c.h.b16 %v1967
        %v5152 = vunpack.c.l.b16 %v1968
        %v5153 = vunpack.c.h.b16 %v1968
        %v5154 = vunpack.c.l.b16 %v1969
        %v5155 = vunpack.c.h.b16 %v1969
        %v5156 = vunpack.c.l.b16 %v1970
        %v5157 = vunpack.c.h.b16 %v1970
        %v5158 = vunpack.c.l.b16 %v1971
        %v5159 = vunpack.c.h.b16 %v1971
        %v5160 = vunpack.c.l.b16 %v1972
        %v5161 = vunpack.c.h.b16 %v1972
        %v5162 = vunpack.c.l.b16 %v1973
        %v5163 = vunpack.c.h.b16 %v1973
        %v5164 = vunpack.c.l.b16 %v1974
        %v5165 = vunpack.c.h.b16 %v1974
        %v5166 = vunpack.c.l.b16 %v1975
        %v5167 = vunpack.c.h.b16 %v1975
        %v5168 = vunpack.c.l.b16 %v1976
        %v5169 = vunpack.c.h.b16 %v1976
        %v5170 = vunpack.c.l.b16 %v1977
        %v5171 = vunpack.c.h.b16 %v1977
        %v5172 = vunpack.c.l.b16 %v1978
        %v5173 = vunpack.c.h.b16 %v1978
        %v5174 = vunpack.c.l.b16 %v1979
        %v5175 = vunpack.c.h.b16 %v1979
        %v5176 = vunpack.c.l.b16 %v1980
        %v5177 = vunpack.c.h.b16 %v1980
        %v5178 = vunpack.c.l.b16 %v1981
        %v5179 = vunpack.c.h.b16 %v1981
        %v5180 = vunpack.c.l.b16 %v1982
        %v5181 = vunpack.c.h.b16 %v1982
        %v5182 = vunpack.c.l.b16 %v1983
        %v5183 = vunpack.c.h.b16 %v1983
        %v5184 = vunpack.c.l.b16 %v1984
        %v5185 = vunpack.c.h.b16 %v1984
        %v5186 = vunpack.c.l.b16 %v1985
        %v5187 = vunpack.c.h.b16 %v1985
        %v5188 = vunpack.c.l.b16 %v1986
        %v5189 = vunpack.c.h.b16 %v1986
        %v5190 = vunpack.c.l.b16 %v1987
        %v5191 = vunpack.c.h.b16 %v1987
        %v5192 = vunpack.c.l.b16 %v1988
        %v5193 = vunpack.c.h.b16 %v1988
        %v5194 = vunpack.c.l.b16 %v1989
        %v5195 = vunpack.c.h.b16 %v1989
        %v5196 = vunpack.c.l.b16 %v1990
        %v5197 = vunpack.c.h.b16 %v1990
        %v5198 = vunpack.c.l.b16 %v1991
        %v5199 = vunpack.c.h.b16 %v1991
        %v5200 = vunpack.c.l.b16 %v1992
        %v5201 = vunpack.c.h.b16 %v1992
        %v5202 = vunpack.c.l.b16 %v1993
        %v5203 = vunpack.c.h.b16 %v1993
        %v5204 = vunpack.c.l.b16 %v1994
        %v5205 = vunpack.c.h.b16 %v1994
        %v5206 = vunpack.c.l.b16 %v1995
        %v5207 = vunpack.c.h.b16 %v1995
        %v5208 = vunpack.c.l.b16 %v1996
        %v5209 = vunpack.c.h.b16 %v1996
        %v5210 = vunpack.c.l.b16 %v1997
        %v5211 = vunpack.c.h.b16 %v1997
        %v5212 = vunpack.c.l.b16 %v1998
        %v5213 = vunpack.c.h.b16 %v1998
        %v5214 = vunpack.c.l.b16 %v1999
        %v5215 = vunpack.c.h.b16 %v1999
        %v5216 = vunpack.c.l.b16 %v2000
        %v5217 = vunpack.c.h.b16 %v2000
        %v5218 = vunpack.c.l.b16 %v2001
        %v5219 = vunpack.c.h.b16 %v2001
        %v5220 = vunpack.c.l.b16 %v2002
        %v5221 = vunpack.c.h.b16 %v2002
        %v5222 = vunpack.c.l.b16 %v2003
        %v5223 = vunpack.c.h.b16 %v2003
        %v5224 = vunpack.c.l.b16 %v2004
        %v5225 = vunpack.c.h.b16 %v2004
        %v5226 = vunpack.c.l.b16 %v2005
        %v5227 = vunpack.c.h.b16 %v2005
        %v5228 = vunpack.c.l.b16 %v2006
        %v5229 = vunpack.c.h.b16 %v2006
        %v5230 = vunpack.c.l.b16 %v2007
        %v5231 = vunpack.c.h.b16 %v2007
        %v5232 = vunpack.c.l.b16 %v2008
        %v5233 = vunpack.c.h.b16 %v2008
        %v5234 = vunpack.c.l.b16 %v2009
        %v5235 = vunpack.c.h.b16 %v2009
        %v5236 = vunpack.c.l.b16 %v2010
        %v5237 = vunpack.c.h.b16 %v2010
        %v5238 = vunpack.c.l.b16 %v2011
        %v5239 = vunpack.c.h.b16 %v2011
        %v5240 = vunpack.c.l.b16 %v2012
        %v5241 = vunpack.c.h.b16 %v2012
        %v5242 = vunpack.c.l.b16 %v2013
        %v5243 = vunpack.c.h.b16 %v2013
        %v5244 = vunpack.c.l.b16 %v2014
        %v5245 = vunpack.c.h.b16 %v2014
        %v5246 = vunpack.c.l.b16 %v2015
        %v5247 = vunpack.c.h.b16 %v2015
        %v5248 = vunpack.c.l.b16 %v2016
        %v5249 = vunpack.c.h.b16 %v2016
        %v5250 = vunpack.c.l.b16 %v2017
        %v5251 = vunpack.c.h.b16 %v2017
        %v5252 = vunpack.c.l.b16 %v2018
        %v5253 = vunpack.c.h.b16 %v2018
        %v5254 = vunpack.c.l.b16 %v2019
        %v5255 = vunpack.c.h.b16 %v2019
        %v5256 = vunpack.c.l.b16 %v2020
        %v5257 = vunpack.c.h.b16 %v2020
        %v5258 = vunpack.c.l.b16 %v2021
        %v5259 = vunpack.c.h.b16 %v2021
        %v5260 = vunpack.c.l.b16 %v2022
        %v5261 = vunpack.c.h.b16 %v2022
        %v5262 = vunpack.c.l.b16 %v2023
        %v5263 = vunpack.c.h.b16 %v2023
        %v5264 = vunpack.c.l.b16 %v2024
        %v5265 = vunpack.c.h.b16 %v2024
        %v5266 = vunpack.c.l.b16 %v2025
        %v5267 = vunpack.c.h.b16 %v2025
        %v5268 = vunpack.c.l.b16 %v2026
        %v5269 = vunpack.c.h.b16 %v2026
        %v5270 = vunpack.c.l.b16 %v2027
        %v5271 = vunpack.c.h.b16 %v2027
        %v5272 = vunpack.c.l.b16 %v2028
        %v5273 = vunpack.c.h.b16 %v2028
        %v5274 = vunpack.c.l.b16 %v2029
        %v5275 = vunpack.c.h.b16 %v2029
        %v5276 = vunpack.c.l.b16 %v2030
        %v5277 = vunpack.c.h.b16 %v2030
        %v5278 = vunpack.c.l.b16 %v2031
        %v5279 = vunpack.c.h.b16 %v2031
        %v5280 = vunpack.c.l.b16 %v2032
        %v5281 = vunpack.c.h.b16 %v2032
        %v5282 = vunpack.c.l.b16 %v2033
        %v5283 = vunpack.c.h.b16 %v2033
        %v5284 = vunpack.c.l.b16 %v2034
        %v5285 = vunpack.c.h.b16 %v2034
        %v5286 = vunpack.c.l.b16 %v2035
        %v5287 = vunpack.c.h.b16 %v2035
        %v5288 = vunpack.c.l.b16 %v2036
        %v5289 = vunpack.c.h.b16 %v2036
        %v5290 = vunpack.c.l.b16 %v2037
        %v5291 = vunpack.c.h.b16 %v2037
        %v5292 = vunpack.c.l.b16 %v2038
        %v5293 = vunpack.c.h.b16 %v2038
        %v5294 = vunpack.c.l.b16 %v2039
        %v5295 = vunpack.c.h.b16 %v2039
        %v5296 = vunpack.c.l.b16 %v2040
        %v5297 = vunpack.c.h.b16 %v2040
        %v5298 = vunpack.c.l.b16 %v2041
        %v5299 = vunpack.c.h.b16 %v2041
        %v5300 = vunpack.c.l.b16 %v2042
        %v5301 = vunpack.c.h.b16 %v2042
        %v5302 = vunpack.c.l.b16 %v2043
        %v5303 = vunpack.c.h.b16 %v2043
        %v5304 = vunpack.c.l.b16 %v2044
        %v5305 = vunpack.c.h.b16 %v2044
        %v5306 = vunpack.c.l.b16 %v2045
        %v5307 = vunpack.c.h.b16 %v2045
        %v5308 = vunpack.c.l.b16 %v2046
        %v5309 = vunpack.c.h.b16 %v2046
        %v5310 = vunpack.c.l.b16 %v2047
        %v5311 = vunpack.c.h.b16 %v2047
        %v5312 = vunpack.c.l.b16 %v2048
        %v5313 = vunpack.c.h.b16 %v2048
        %v5314 = vunpack.c.l.b16 %v2049
        %v5315 = vunpack.c.h.b16 %v2049
        %v5316 = vunpack.c.l.b16 %v2050
        %v5317 = vunpack.c.h.b16 %v2050
        %v5318 = vunpack.c.l.b16 %v2051
        %v5319 = vunpack.c.h.b16 %v2051
        %v5320 = vunpack.c.l.b16 %v2052
        %v5321 = vunpack.c.h.b16 %v2052
        %v5322 = vunpack.c.l.b16 %v2053
        %v5323 = vunpack.c.h.b16 %v2053
        %v5324 = vunpack.c.l.b16 %v2054
        %v5325 = vunpack.c.h.b16 %v2054
        %v5326 = vunpack.c.l.b16 %v2055
        %v5327 = vunpack.c.h.b16 %v2055
        %v5328 = vunpack.c.l.b16 %v2056
        %v5329 = vunpack.c.h.b16 %v2056
        %v5330 = vunpack.c.l.b16 %v2057
        %v5331 = vunpack.c.h.b16 %v2057
        %v5332 = vunpack.c.l.b16 %v2058
        %v5333 = vunpack.c.h.b16 %v2058
        %v5334 = vunpack.c.l.b16 %v2059
        %v5335 = vunpack.c.h.b16 %v2059
        %v5336 = vunpack.c.l.b16 %v2060
        %v5337 = vunpack.c.h.b16 %v2060
        %v5338 = vunpack.c.l.b16 %v2061
        %v5339 = vunpack.c.h.b16 %v2061
        %v5340 = vunpack.c.l.b16 %v2062
        %v5341 = vunpack.c.h.b16 %v2062
        %v5342 = vunpack.c.l.b16 %v2063
        %v5343 = vunpack.c.h.b16 %v2063
        %v5344 = vunpack.c.l.b16 %v2064
        %v5345 = vunpack.c.h.b16 %v2064
        %v5346 = vunpack.c.l.b16 %v2065
        %v5347 = vunpack.c.h.b16 %v2065
        %v5348 = vunpack.c.l.b16 %v2066
        %v5349 = vunpack.c.h.b16 %v2066
        %v5350 = vunpack.c.l.b16 %v2067
        %v5351 = vunpack.c.h.b16 %v2067
        %v5352 = vunpack.c.l.b16 %v2068
        %v5353 = vunpack.c.h.b16 %v2068
        %v5354 = vunpack.c.l.b16 %v2069
        %v5355 = vunpack.c.h.b16 %v2069
        %v5356 = vunpack.c.l.b16 %v2070
        %v5357 = vunpack.c.h.b16 %v2070
        %v5358 = vunpack.c.l.b16 %v2071
        %v5359 = vunpack.c.h.b16 %v2071
        %v5360 = vunpack.c.l.b16 %v2072
        %v5361 = vunpack.c.h.b16 %v2072
        %v5362 = vunpack.c.l.b16 %v2073
        %v5363 = vunpack.c.h.b16 %v2073
        %v5364 = vunpack.c.l.b16 %v2074
        %v5365 = vunpack.c.h.b16 %v2074
        %v5366 = vunpack.c.l.b16 %v2075
        %v5367 = vunpack.c.h.b16 %v2075
        %v5368 = vunpack.c.l.b16 %v2076
        %v5369 = vunpack.c.h.b16 %v2076
        %v5370 = vunpack.c.l.b16 %v2077
        %v5371 = vunpack.c.h.b16 %v2077
        %v5372 = vunpack.c.l.b16 %v2078
        %v5373 = vunpack.c.h.b16 %v2078
        %v5374 = vunpack.c.l.b16 %v2079
        %v5375 = vunpack.c.h.b16 %v2079
        %v5376 = vunpack.c.l.b16 %v2080
        %v5377 = vunpack.c.h.b16 %v2080
        %v5378 = vpack.c.b16 %v3334, %v3330
        %v5379 = vpack.c.b16 %v3335, %v3331
        %v5380 = vpack.c.b16 %v3336, %v3332
        %v5381 = vpack.c.b16 %v3337, %v3333
        %v5382 = vpack.c.b16 %v3342, %v3338
        %v5383 = vpack.c.b16 %v3343, %v3339
        %v5384 = vpack.c.b16 %v3344, %v3340
        %v5385 = vpack.c.b16 %v3345, %v3341
        %v5386 = vpack.c.b16 %v3350, %v3346
        %v5387 = vpack.c.b16 %v3351, %v3347
        %v5388 = vpack.c.b16 %v3352, %v3348
        %v5389 = vpack.c.b16 %v3353, %v3349
        %v5390 = vpack.c.b16 %v3358, %v3354
        %v5391 = vpack.c.b16 %v3359, %v3355
        %v5392 = vpack.c.b16 %v3360, %v3356
        %v5393 = vpack.c.b16 %v3361, %v3357
        %v5394 = vpack.c.b16 %v3366, %v3362
        %v5395 = vpack.c.b16 %v3367, %v3363
        %v5396 = vpack.c.b16 %v3368, %v3364
        %v5397 = vpack.c.b16 %v3369, %v3365
        %v5398 = vpack.c.b16 %v3374, %v3370
        %v5399 = vpack.c.b16 %v3375, %v3371
        %v5400 = vpack.c.b16 %v3376, %v3372
        %v5401 = vpack.c.b16 %v3377, %v3373
        %v5402 = vpack.c.b16 %v3382, %v3378
        %v5403 = vpack.c.b16 %v3383, %v3379
        %v5404 = vpack.c.b16 %v3384, %v3380
        %v5405 = vpack.c.b16 %v3385, %v3381
        %v5406 = vpack.c.b16 %v3390, %v3386
        %v5407 = vpack.c.b16 %v3391, %v3387
        %v5408 = vpack.c.b16 %v3392, %v3388
        %v5409 = vpack.c.b16 %v3393, %v3389
        %v5410 = vpack.c.b16 %v3398, %v3394
        %v5411 = vpack.c.b16 %v3399, %v3395
        %v5412 = vpack.c.b16 %v3400, %v3396
        %v5413 = vpack.c.b16 %v3401, %v3397
        %v5414 = vpack.c.b16 %v3406, %v3402
        %v5415 = vpack.c.b16 %v3407, %v3403
        %v5416 = vpack.c.b16 %v3408, %v3404
        %v5417 = vpack.c.b16 %v3409, %v3405
        %v5418 = vpack.c.b16 %v3414, %v3410
        %v5419 = vpack.c.b16 %v3415, %v3411
        %v5420 = vpack.c.b16 %v3416, %v3412
        %v5421 = vpack.c.b16 %v3417, %v3413
        %v5422 = vpack.c.b16 %v3422, %v3418
        %v5423 = vpack.c.b16 %v3423, %v3419
        %v5424 = vpack.c.b16 %v3424, %v3420
        %v5425 = vpack.c.b16 %v3425, %v3421
        %v5426 = vpack.c.b16 %v3430, %v3426
        %v5427 = vpack.c.b16 %v3431, %v3427
        %v5428 = vpack.c.b16 %v3432, %v3428
        %v5429 = vpack.c.b16 %v3433, %v3429
        %v5430 = vpack.c.b16 %v3438, %v3434
        %v5431 = vpack.c.b16 %v3439, %v3435
        %v5432 = vpack.c.b16 %v3440, %v3436
        %v5433 = vpack.c.b16 %v3441, %v3437
        %v5434 = vpack.c.b16 %v3446, %v3442
        %v5435 = vpack.c.b16 %v3447, %v3443
        %v5436 = vpack.c.b16 %v3448, %v3444
        %v5437 = vpack.c.b16 %v3449, %v3445
        %v5438 = vpack.c.b16 %v3454, %v3450
        %v5439 = vpack.c.b16 %v3455, %v3451
        %v5440 = vpack.c.b16 %v3456, %v3452
        %v5441 = vpack.c.b16 %v3457, %v3453
        %v5442 = vpack.c.b16 %v3462, %v3458
        %v5443 = vpack.c.b16 %v3463, %v3459
        %v5444 = vpack.c.b16 %v3464, %v3460
        %v5445 = vpack.c.b16 %v3465, %v3461
        %v5446 = vpack.c.b16 %v3470, %v3466
        %v5447 = vpack.c.b16 %v3471, %v3467
        %v5448 = vpack.c.b16 %v3472, %v3468
        %v5449 = vpack.c.b16 %v3473, %v3469
        %v5450 = vpack.c.b16 %v3478, %v3474
        %v5451 = vpack.c.b16 %v3479, %v3475
        %v5452 = vpack.c.b16 %v3480, %v3476
        %v5453 = vpack.c.b16 %v3481, %v3477
        %v5454 = vpack.c.b16 %v3486, %v3482
        %v5455 = vpack.c.b16 %v3487, %v3483
        %v5456 = vpack.c.b16 %v3488, %v3484
        %v5457 = vpack.c.b16 %v3489, %v3485
        %v5458 = vpack.c.b16 %v3494, %v3490
        %v5459 = vpack.c.b16 %v3495, %v3491
        %v5460 = vpack.c.b16 %v3496, %v3492
        %v5461 = vpack.c.b16 %v3497, %v3493
        %v5462 = vpack.c.b16 %v3502, %v3498
        %v5463 = vpack.c.b16 %v3503, %v3499
        %v5464 = vpack.c.b16 %v3504, %v3500
        %v5465 = vpack.c.b16 %v3505, %v3501
        %v5466 = vpack.c.b16 %v3510, %v3506
        %v5467 = vpack.c.b16 %v3511, %v3507
        %v5468 = vpack.c.b16 %v3512, %v3508
        %v5469 = vpack.c.b16 %v3513, %v3509
        %v5470 = vpack.c.b16 %v3518, %v3514
        %v5471 = vpack.c.b16 %v3519, %v3515
        %v5472 = vpack.c.b16 %v3520, %v3516
        %v5473 = vpack.c.b16 %v3521, %v3517
        %v5474 = vpack.c.b16 %v3526, %v3522
        %v5475 = vpack.c.b16 %v3527, %v3523
        %v5476 = vpack.c.b16 %v3528, %v3524
        %v5477 = vpack.c.b16 %v3529, %v3525
        %v5478 = vpack.c.b16 %v3534, %v3530
        %v5479 = vpack.c.b16 %v3535, %v3531
        %v5480 = vpack.c.b16 %v3536, %v3532
        %v5481 = vpack.c.b16 %v3537, %v3533
        %v5482 = vpack.c.b16 %v3542, %v3538
        %v5483 = vpack.c.b16 %v3543, %v3539
        %v5484 = vpack.c.b16 %v3544, %v3540
        %v5485 = vpack.c.b16 %v3545, %v3541
        %v5486 = vpack.c.b16 %v3550, %v3546
        %v5487 = vpack.c.b16 %v3551, %v3547
        %v5488 = vpack.c.b16 %v3552, %v3548
        %v5489 = vpack.c.b16 %v3553, %v3549
        %v5490 = vpack.c.b16 %v3558, %v3554
        %v5491 = vpack.c.b16 %v3559, %v3555
        %v5492 = vpack.c.b16 %v3560, %v3556
        %v5493 = vpack.c.b16 %v3561, %v3557
        %v5494 = vpack.c.b16 %v3566, %v3562
        %v5495 = vpack.c.b16 %v3567, %v3563
        %v5496 = vpack.c.b16 %v3568, %v3564
        %v5497 = vpack.c.b16 %v3569, %v3565
        %v5498 = vpack.c.b16 %v3574, %v3570
        %v5499 = vpack.c.b16 %v3575, %v3571
        %v5500 = vpack.c.b16 %v3576, %v3572
        %v5501 = vpack.c.b16 %v3577, %v3573
        %v5502 = vpack.c.b16 %v3582, %v3578
        %v5503 = vpack.c.b16 %v3583, %v3579
        %v5504 = vpack.c.b16 %v3584, %v3580
        %v5505 = vpack.c.b16 %v3585, %v3581
        %v5506 = vpack.c.b16 %v3590, %v3586
        %v5507 = vpack.c.b16 %v3591, %v3587
        %v5508 = vpack.c.b16 %v3592, %v3588
        %v5509 = vpack.c.b16 %v3593, %v3589
        %v5510 = vpack.c.b16 %v3598, %v3594
        %v5511 = vpack.c.b16 %v3599, %v3595
        %v5512 = vpack.c.b16 %v3600, %v3596
        %v5513 = vpack.c.b16 %v3601, %v3597
        %v5514 = vpack.c.b16 %v3606, %v3602
        %v5515 = vpack.c.b16 %v3607, %v3603
        %v5516 = vpack.c.b16 %v3608, %v3604
        %v5517 = vpack.c.b16 %v3609, %v3605
        %v5518 = vpack.c.b16 %v3614, %v3610
        %v5519 = vpack.c.b16 %v3615, %v3611
        %v5520 = vpack.c.b16 %v3616, %v3612
        %v5521 = vpack.c.b16 %v3617, %v3613
        %v5522 = vpack.c.b16 %v3622, %v3618
        %v5523 = vpack.c.b16 %v3623, %v3619
        %v5524 = vpack.c.b16 %v3624, %v3620
        %v5525 = vpack.c.b16 %v3625, %v3621
        %v5526 = vpack.c.b16 %v3630, %v3626
        %v5527 = vpack.c.b16 %v3631, %v3627
        %v5528 = vpack.c.b16 %v3632, %v3628
        %v5529 = vpack.c.b16 %v3633, %v3629
        %v5530 = vpack.c.b16 %v3638, %v3634
        %v5531 = vpack.c.b16 %v3639, %v3635
        %v5532 = vpack.c.b16 %v3640, %v3636
        %v5533 = vpack.c.b16 %v3641, %v3637
        %v5534 = vpack.c.b16 %v3646, %v3642
        %v5535 = vpack.c.b16 %v3647, %v3643
        %v5536 = vpack.c.b16 %v3648, %v3644
        %v5537 = vpack.c.b16 %v3649, %v3645
        %v5538 = vpack.c.b16 %v3654, %v3650
        %v5539 = vpack.c.b16 %v3655, %v3651
        %v5540 = vpack.c.b16 %v3656, %v3652
        %v5541 = vpack.c.b16 %v3657, %v3653
        %v5542 = vpack.c.b16 %v3662, %v3658
        %v5543 = vpack.c.b16 %v3663, %v3659
        %v5544 = vpack.c.b16 %v3664, %v3660
        %v5545 = vpack.c.b16 %v3665, %v3661
        %v5546 = vpack.c.b16 %v3670, %v3666
        %v5547 = vpack.c.b16 %v3671, %v3667
        %v5548 = vpack.c.b16 %v3672, %v3668
        %v5549 = vpack.c.b16 %v3673, %v3669
        %v5550 = vpack.c.b16 %v3678, %v3674
        %v5551 = vpack.c.b16 %v3679, %v3675
        %v5552 = vpack.c.b16 %v3680, %v3676
        %v5553 = vpack.c.b16 %v3681, %v3677
        %v5554 = vpack.c.b16 %v3686, %v3682
        %v5555 = vpack.c.b16 %v3687, %v3683
        %v5556 = vpack.c.b16 %v3688, %v3684
        %v5557 = vpack.c.b16 %v3689, %v3685
        %v5558 = vpack.c.b16 %v3694, %v3690
        %v5559 = vpack.c.b16 %v3695, %v3691
        %v5560 = vpack.c.b16 %v3696, %v3692
        %v5561 = vpack.c.b16 %v3697, %v3693
        %v5562 = vpack.c.b16 %v3702, %v3698
        %v5563 = vpack.c.b16 %v3703, %v3699
        %v5564 = vpack.c.b16 %v3704, %v3700
        %v5565 = vpack.c.b16 %v3705, %v3701
        %v5566 = vpack.c.b16 %v3710, %v3706
        %v5567 = vpack.c.b16 %v3711, %v3707
        %v5568 = vpack.c.b16 %v3712, %v3708
        %v5569 = vpack.c.b16 %v3713, %v3709
        %v5570 = vpack.c.b16 %v3718, %v3714
        %v5571 = vpack.c.b16 %v3719, %v3715
        %v5572 = vpack.c.b16 %v3720, %v3716
        %v5573 = vpack.c.b16 %v3721, %v3717
        %v5574 = vpack.c.b16 %v3726, %v3722
        %v5575 = vpack.c.b16 %v3727, %v3723
        %v5576 = vpack.c.b16 %v3728, %v3724
        %v5577 = vpack.c.b16 %v3729, %v3725
        %v5578 = vpack.c.b16 %v3734, %v3730
        %v5579 = vpack.c.b16 %v3735, %v3731
        %v5580 = vpack.c.b16 %v3736, %v3732
        %v5581 = vpack.c.b16 %v3737, %v3733
        %v5582 = vpack.c.b16 %v3742, %v3738
        %v5583 = vpack.c.b16 %v3743, %v3739
        %v5584 = vpack.c.b16 %v3744, %v3740
        %v5585 = vpack.c.b16 %v3745, %v3741
        %v5586 = vpack.c.b16 %v3750, %v3746
        %v5587 = vpack.c.b16 %v3751, %v3747
        %v5588 = vpack.c.b16 %v3752, %v3748
        %v5589 = vpack.c.b16 %v3753, %v3749
        %v5590 = vpack.c.b16 %v3758, %v3754
        %v5591 = vpack.c.b16 %v3759, %v3755
        %v5592 = vpack.c.b16 %v3760, %v3756
        %v5593 = vpack.c.b16 %v3761, %v3757
        %v5594 = vpack.c.b16 %v3766, %v3762
        %v5595 = vpack.c.b16 %v3767, %v3763
        %v5596 = vpack.c.b16 %v3768, %v3764
        %v5597 = vpack.c.b16 %v3769, %v3765
        %v5598 = vpack.c.b16 %v3774, %v3770
        %v5599 = vpack.c.b16 %v3775, %v3771
        %v5600 = vpack.c.b16 %v3776, %v3772
        %v5601 = vpack.c.b16 %v3777, %v3773
        %v5602 = vpack.c.b16 %v3782, %v3778
        %v5603 = vpack.c.b16 %v3783, %v3779
        %v5604 = vpack.c.b16 %v3784, %v3780
        %v5605 = vpack.c.b16 %v3785, %v3781
        %v5606 = vpack.c.b16 %v3790, %v3786
        %v5607 = vpack.c.b16 %v3791, %v3787
        %v5608 = vpack.c.b16 %v3792, %v3788
        %v5609 = vpack.c.b16 %v3793, %v3789
        %v5610 = vpack.c.b16 %v3798, %v3794
        %v5611 = vpack.c.b16 %v3799, %v3795
        %v5612 = vpack.c.b16 %v3800, %v3796
        %v5613 = vpack.c.b16 %v3801, %v3797
        %v5614 = vpack.c.b16 %v3806, %v3802
        %v5615 = vpack.c.b16 %v3807, %v3803
        %v5616 = vpack.c.b16 %v3808, %v3804
        %v5617 = vpack.c.b16 %v3809, %v3805
        %v5618 = vpack.c.b16 %v3814, %v3810
        %v5619 = vpack.c.b16 %v3815, %v3811
        %v5620 = vpack.c.b16 %v3816, %v3812
        %v5621 = vpack.c.b16 %v3817, %v3813
        %v5622 = vpack.c.b16 %v3822, %v3818
        %v5623 = vpack.c.b16 %v3823, %v3819
        %v5624 = vpack.c.b16 %v3824, %v3820
        %v5625 = vpack.c.b16 %v3825, %v3821
        %v5626 = vpack.c.b16 %v3830, %v3826
        %v5627 = vpack.c.b16 %v3831, %v3827
        %v5628 = vpack.c.b16 %v3832, %v3828
        %v5629 = vpack.c.b16 %v3833, %v3829
        %v5630 = vpack.c.b16 %v3838, %v3834
        %v5631 = vpack.c.b16 %v3839, %v3835
        %v5632 = vpack.c.b16 %v3840, %v3836
        %v5633 = vpack.c.b16 %v3841, %v3837
        %v5634 = vpack.c.b16 %v3846, %v3842
        %v5635 = vpack.c.b16 %v3847, %v3843
        %v5636 = vpack.c.b16 %v3848, %v3844
        %v5637 = vpack.c.b16 %v3849, %v3845
        %v5638 = vpack.c.b16 %v3854, %v3850
        %v5639 = vpack.c.b16 %v3855, %v3851
        %v5640 = vpack.c.b16 %v3856, %v3852
        %v5641 = vpack.c.b16 %v3857, %v3853
        %v5642 = vpack.c.b16 %v3862, %v3858
        %v5643 = vpack.c.b16 %v3863, %v3859
        %v5644 = vpack.c.b16 %v3864, %v3860
        %v5645 = vpack.c.b16 %v3865, %v3861
        %v5646 = vpack.c.b16 %v3870, %v3866
        %v5647 = vpack.c.b16 %v3871, %v3867
        %v5648 = vpack.c.b16 %v3872, %v3868
        %v5649 = vpack.c.b16 %v3873, %v3869
        %v5650 = vpack.c.b16 %v3878, %v3874
        %v5651 = vpack.c.b16 %v3879, %v3875
        %v5652 = vpack.c.b16 %v3880, %v3876
        %v5653 = vpack.c.b16 %v3881, %v3877
        %v5654 = vpack.c.b16 %v3886, %v3882
        %v5655 = vpack.c.b16 %v3887, %v3883
        %v5656 = vpack.c.b16 %v3888, %v3884
        %v5657 = vpack.c.b16 %v3889, %v3885
        %v5658 = vpack.c.b16 %v3894, %v3890
        %v5659 = vpack.c.b16 %v3895, %v3891
        %v5660 = vpack.c.b16 %v3896, %v3892
        %v5661 = vpack.c.b16 %v3897, %v3893
        %v5662 = vpack.c.b16 %v3902, %v3898
        %v5663 = vpack.c.b16 %v3903, %v3899
        %v5664 = vpack.c.b16 %v3904, %v3900
        %v5665 = vpack.c.b16 %v3905, %v3901
        %v5666 = vpack.c.b16 %v3910, %v3906
        %v5667 = vpack.c.b16 %v3911, %v3907
        %v5668 = vpack.c.b16 %v3912, %v3908
        %v5669 = vpack.c.b16 %v3913, %v3909
        %v5670 = vpack.c.b16 %v3918, %v3914
        %v5671 = vpack.c.b16 %v3919, %v3915
        %v5672 = vpack.c.b16 %v3920, %v3916
        %v5673 = vpack.c.b16 %v3921, %v3917
        %v5674 = vpack.c.b16 %v3926, %v3922
        %v5675 = vpack.c.b16 %v3927, %v3923
        %v5676 = vpack.c.b16 %v3928, %v3924
        %v5677 = vpack.c.b16 %v3929, %v3925
        %v5678 = vpack.c.b16 %v3934, %v3930
        %v5679 = vpack.c.b16 %v3935, %v3931
        %v5680 = vpack.c.b16 %v3936, %v3932
        %v5681 = vpack.c.b16 %v3937, %v3933
        %v5682 = vpack.c.b16 %v3942, %v3938
        %v5683 = vpack.c.b16 %v3943, %v3939
        %v5684 = vpack.c.b16 %v3944, %v3940
        %v5685 = vpack.c.b16 %v3945, %v3941
        %v5686 = vpack.c.b16 %v3950, %v3946
        %v5687 = vpack.c.b16 %v3951, %v3947
        %v5688 = vpack.c.b16 %v3952, %v3948
        %v5689 = vpack.c.b16 %v3953, %v3949
        %v5690 = vpack.c.b16 %v3958, %v3954
        %v5691 = vpack.c.b16 %v3959, %v3955
        %v5692 = vpack.c.b16 %v3960, %v3956
        %v5693 = vpack.c.b16 %v3961, %v3957
        %v5694 = vpack.c.b16 %v3966, %v3962
        %v5695 = vpack.c.b16 %v3967, %v3963
        %v5696 = vpack.c.b16 %v3968, %v3964
        %v5697 = vpack.c.b16 %v3969, %v3965
        %v5698 = vpack.c.b16 %v3974, %v3970
        %v5699 = vpack.c.b16 %v3975, %v3971
        %v5700 = vpack.c.b16 %v3976, %v3972
        %v5701 = vpack.c.b16 %v3977, %v3973
        %v5702 = vpack.c.b16 %v3982, %v3978
        %v5703 = vpack.c.b16 %v3983, %v3979
        %v5704 = vpack.c.b16 %v3984, %v3980
        %v5705 = vpack.c.b16 %v3985, %v3981
        %v5706 = vpack.c.b16 %v3990, %v3986
        %v5707 = vpack.c.b16 %v3991, %v3987
        %v5708 = vpack.c.b16 %v3992, %v3988
        %v5709 = vpack.c.b16 %v3993, %v3989
        %v5710 = vpack.c.b16 %v3998, %v3994
        %v5711 = vpack.c.b16 %v3999, %v3995
        %v5712 = vpack.c.b16 %v4000, %v3996
        %v5713 = vpack.c.b16 %v4001, %v3997
        %v5714 = vpack.c.b16 %v4006, %v4002
        %v5715 = vpack.c.b16 %v4007, %v4003
        %v5716 = vpack.c.b16 %v4008, %v4004
        %v5717 = vpack.c.b16 %v4009, %v4005
        %v5718 = vpack.c.b16 %v4014, %v4010
        %v5719 = vpack.c.b16 %v4015, %v4011
        %v5720 = vpack.c.b16 %v4016, %v4012
        %v5721 = vpack.c.b16 %v4017, %v4013
        %v5722 = vpack.c.b16 %v4022, %v4018
        %v5723 = vpack.c.b16 %v4023, %v4019
        %v5724 = vpack.c.b16 %v4024, %v4020
        %v5725 = vpack.c.b16 %v4025, %v4021
        %v5726 = vpack.c.b16 %v4030, %v4026
        %v5727 = vpack.c.b16 %v4031, %v4027
        %v5728 = vpack.c.b16 %v4032, %v4028
        %v5729 = vpack.c.b16 %v4033, %v4029
        %v5730 = vpack.c.b16 %v4038, %v4034
        %v5731 = vpack.c.b16 %v4039, %v4035
        %v5732 = vpack.c.b16 %v4040, %v4036
        %v5733 = vpack.c.b16 %v4041, %v4037
        %v5734 = vpack.c.b16 %v4046, %v4042
        %v5735 = vpack.c.b16 %v4047, %v4043
        %v5736 = vpack.c.b16 %v4048, %v4044
        %v5737 = vpack.c.b16 %v4049, %v4045
        %v5738 = vpack.c.b16 %v4054, %v4050
        %v5739 = vpack.c.b16 %v4055, %v4051
        %v5740 = vpack.c.b16 %v4056, %v4052
        %v5741 = vpack.c.b16 %v4057, %v4053
        %v5742 = vpack.c.b16 %v4062, %v4058
        %v5743 = vpack.c.b16 %v4063, %v4059
        %v5744 = vpack.c.b16 %v4064, %v4060
        %v5745 = vpack.c.b16 %v4065, %v4061
        %v5746 = vpack.c.b16 %v4070, %v4066
        %v5747 = vpack.c.b16 %v4071, %v4067
        %v5748 = vpack.c.b16 %v4072, %v4068
        %v5749 = vpack.c.b16 %v4073, %v4069
        %v5750 = vpack.c.b16 %v4078, %v4074
        %v5751 = vpack.c.b16 %v4079, %v4075
        %v5752 = vpack.c.b16 %v4080, %v4076
        %v5753 = vpack.c.b16 %v4081, %v4077
        %v5754 = vpack.c.b16 %v4086, %v4082
        %v5755 = vpack.c.b16 %v4087, %v4083
        %v5756 = vpack.c.b16 %v4088, %v4084
        %v5757 = vpack.c.b16 %v4089, %v4085
        %v5758 = vpack.c.b16 %v4094, %v4090
        %v5759 = vpack.c.b16 %v4095, %v4091
        %v5760 = vpack.c.b16 %v4096, %v4092
        %v5761 = vpack.c.b16 %v4097, %v4093
        %v5762 = vpack.c.b16 %v4102, %v4098
        %v5763 = vpack.c.b16 %v4103, %v4099
        %v5764 = vpack.c.b16 %v4104, %v4100
        %v5765 = vpack.c.b16 %v4105, %v4101
        %v5766 = vpack.c.b16 %v4110, %v4106
        %v5767 = vpack.c.b16 %v4111, %v4107
        %v5768 = vpack.c.b16 %v4112, %v4108
        %v5769 = vpack.c.b16 %v4113, %v4109
        %v5770 = vpack.c.b16 %v4118, %v4114
        %v5771 = vpack.c.b16 %v4119, %v4115
        %v5772 = vpack.c.b16 %v4120, %v4116
        %v5773 = vpack.c.b16 %v4121, %v4117
        %v5774 = vpack.c.b16 %v4126, %v4122
        %v5775 = vpack.c.b16 %v4127, %v4123
        %v5776 = vpack.c.b16 %v4128, %v4124
        %v5777 = vpack.c.b16 %v4129, %v4125
        %v5778 = vpack.c.b16 %v4134, %v4130
        %v5779 = vpack.c.b16 %v4135, %v4131
        %v5780 = vpack.c.b16 %v4136, %v4132
        %v5781 = vpack.c.b16 %v4137, %v4133
        %v5782 = vpack.c.b16 %v4142, %v4138
        %v5783 = vpack.c.b16 %v4143, %v4139
        %v5784 = vpack.c.b16 %v4144, %v4140
        %v5785 = vpack.c.b16 %v4145, %v4141
        %v5786 = vpack.c.b16 %v4150, %v4146
        %v5787 = vpack.c.b16 %v4151, %v4147
        %v5788 = vpack.c.b16 %v4152, %v4148
        %v5789 = vpack.c.b16 %v4153, %v4149
        %v5790 = vpack.c.b16 %v4158, %v4154
        %v5791 = vpack.c.b16 %v4159, %v4155
        %v5792 = vpack.c.b16 %v4160, %v4156
        %v5793 = vpack.c.b16 %v4161, %v4157
        %v5794 = vpack.c.b16 %v4166, %v4162
        %v5795 = vpack.c.b16 %v4167, %v4163
        %v5796 = vpack.c.b16 %v4168, %v4164
        %v5797 = vpack.c.b16 %v4169, %v4165
        %v5798 = vpack.c.b16 %v4174, %v4170
        %v5799 = vpack.c.b16 %v4175, %v4171
        %v5800 = vpack.c.b16 %v4176, %v4172
        %v5801 = vpack.c.b16 %v4177, %v4173
        %v5802 = vpack.c.b16 %v4182, %v4178
        %v5803 = vpack.c.b16 %v4183, %v4179
        %v5804 = vpack.c.b16 %v4184, %v4180
        %v5805 = vpack.c.b16 %v4185, %v4181
        %v5806 = vpack.c.b16 %v4190, %v4186
        %v5807 = vpack.c.b16 %v4191, %v4187
        %v5808 = vpack.c.b16 %v4192, %v4188
        %v5809 = vpack.c.b16 %v4193, %v4189
        %v5810 = vpack.c.b16 %v4198, %v4194
        %v5811 = vpack.c.b16 %v4199, %v4195
        %v5812 = vpack.c.b16 %v4200, %v4196
        %v5813 = vpack.c.b16 %v4201, %v4197
        %v5814 = vpack.c.b16 %v4206, %v4202
        %v5815 = vpack.c.b16 %v4207, %v4203
        %v5816 = vpack.c.b16 %v4208, %v4204
        %v5817 = vpack.c.b16 %v4209, %v4205
        %v5818 = vpack.c.b16 %v4214, %v4210
        %v5819 = vpack.c.b16 %v4215, %v4211
        %v5820 = vpack.c.b16 %v4216, %v4212
        %v5821 = vpack.c.b16 %v4217, %v4213
        %v5822 = vpack.c.b16 %v4222, %v4218
        %v5823 = vpack.c.b16 %v4223, %v4219
        %v5824 = vpack.c.b16 %v4224, %v4220
        %v5825 = vpack.c.b16 %v4225, %v4221
        %v5826 = vpack.c.b16 %v4230, %v4226
        %v5827 = vpack.c.b16 %v4231, %v4227
        %v5828 = vpack.c.b16 %v4232, %v4228
        %v5829 = vpack.c.b16 %v4233, %v4229
        %v5830 = vpack.c.b16 %v4238, %v4234
        %v5831 = vpack.c.b16 %v4239, %v4235
        %v5832 = vpack.c.b16 %v4240, %v4236
        %v5833 = vpack.c.b16 %v4241, %v4237
        %v5834 = vpack.c.b16 %v4246, %v4242
        %v5835 = vpack.c.b16 %v4247, %v4243
        %v5836 = vpack.c.b16 %v4248, %v4244
        %v5837 = vpack.c.b16 %v4249, %v4245
        %v5838 = vpack.c.b16 %v4254, %v4250
        %v5839 = vpack.c.b16 %v4255, %v4251
        %v5840 = vpack.c.b16 %v4256, %v4252
        %v5841 = vpack.c.b16 %v4257, %v4253
        %v5842 = vpack.c.b16 %v4262, %v4258
        %v5843 = vpack.c.b16 %v4263, %v4259
        %v5844 = vpack.c.b16 %v4264, %v4260
        %v5845 = vpack.c.b16 %v4265, %v4261
        %v5846 = vpack.c.b16 %v4270, %v4266
        %v5847 = vpack.c.b16 %v4271, %v4267
        %v5848 = vpack.c.b16 %v4272, %v4268
        %v5849 = vpack.c.b16 %v4273, %v4269
        %v5850 = vpack.c.b16 %v4278, %v4274
        %v5851 = vpack.c.b16 %v4279, %v4275
        %v5852 = vpack.c.b16 %v4280, %v4276
        %v5853 = vpack.c.b16 %v4281, %v4277
        %v5854 = vpack.c.b16 %v4286, %v4282
        %v5855 = vpack.c.b16 %v4287, %v4283
        %v5856 = vpack.c.b16 %v4288, %v4284
        %v5857 = vpack.c.b16 %v4289, %v4285
        %v5858 = vpack.c.b16 %v4294, %v4290
        %v5859 = vpack.c.b16 %v4295, %v4291
        %v5860 = vpack.c.b16 %v4296, %v4292
        %v5861 = vpack.c.b16 %v4297, %v4293
        %v5862 = vpack.c.b16 %v4302, %v4298
        %v5863 = vpack.c.b16 %v4303, %v4299
        %v5864 = vpack.c.b16 %v4304, %v4300
        %v5865 = vpack.c.b16 %v4305, %v4301
        %v5866 = vpack.c.b16 %v4310, %v4306
        %v5867 = vpack.c.b16 %v4311, %v4307
        %v5868 = vpack.c.b16 %v4312, %v4308
        %v5869 = vpack.c.b16 %v4313, %v4309
        %v5870 = vpack.c.b16 %v4318, %v4314
        %v5871 = vpack.c.b16 %v4319, %v4315
        %v5872 = vpack.c.b16 %v4320, %v4316
        %v5873 = vpack.c.b16 %v4321, %v4317
        %v5874 = vpack.c.b16 %v4326, %v4322
        %v5875 = vpack.c.b16 %v4327, %v4323
        %v5876 = vpack.c.b16 %v4328, %v4324
        %v5877 = vpack.c.b16 %v4329, %v4325
        %v5878 = vpack.c.b16 %v4334, %v4330
        %v5879 = vpack.c.b16 %v4335, %v4331
        %v5880 = vpack.c.b16 %v4336, %v4332
        %v5881 = vpack.c.b16 %v4337, %v4333
        %v5882 = vpack.c.b16 %v4342, %v4338
        %v5883 = vpack.c.b16 %v4343, %v4339
        %v5884 = vpack.c.b16 %v4344, %v4340
        %v5885 = vpack.c.b16 %v4345, %v4341
        %v5886 = vpack.c.b16 %v4350, %v4346
        %v5887 = vpack.c.b16 %v4351, %v4347
        %v5888 = vpack.c.b16 %v4352, %v4348
        %v5889 = vpack.c.b16 %v4353, %v4349
        %v5890 = vpack.c.b16 %v4358, %v4354
        %v5891 = vpack.c.b16 %v4359, %v4355
        %v5892 = vpack.c.b16 %v4360, %v4356
        %v5893 = vpack.c.b16 %v4361, %v4357
        %v5894 = vpack.c.b16 %v4366, %v4362
        %v5895 = vpack.c.b16 %v4367, %v4363
        %v5896 = vpack.c.b16 %v4368, %v4364
        %v5897 = vpack.c.b16 %v4369, %v4365
        %v5898 = vpack.c.b16 %v4374, %v4370
        %v5899 = vpack.c.b16 %v4375, %v4371
        %v5900 = vpack.c.b16 %v4376, %v4372
        %v5901 = vpack.c.b16 %v4377, %v4373
        %v5902 = vpack.c.b16 %v4382, %v4378
        %v5903 = vpack.c.b16 %v4383, %v4379
        %v5904 = vpack.c.b16 %v4384, %v4380
        %v5905 = vpack.c.b16 %v4385, %v4381
        %v5906 = vpack.c.b16 %v4390, %v4386
        %v5907 = vpack.c.b16 %v4391, %v4387
        %v5908 = vpack.c.b16 %v4392, %v4388
        %v5909 = vpack.c.b16 %v4393, %v4389
        %v5910 = vpack.c.b16 %v4398, %v4394
        %v5911 = vpack.c.b16 %v4399, %v4395
        %v5912 = vpack.c.b16 %v4400, %v4396
        %v5913 = vpack.c.b16 %v4401, %v4397
        %v5914 = vpack.c.b16 %v4406, %v4402
        %v5915 = vpack.c.b16 %v4407, %v4403
        %v5916 = vpack.c.b16 %v4408, %v4404
        %v5917 = vpack.c.b16 %v4409, %v4405
        %v5918 = vpack.c.b16 %v4414, %v4410
        %v5919 = vpack.c.b16 %v4415, %v4411
        %v5920 = vpack.c.b16 %v4416, %v4412
        %v5921 = vpack.c.b16 %v4417, %v4413
        %v5922 = vpack.c.b16 %v4422, %v4418
        %v5923 = vpack.c.b16 %v4423, %v4419
        %v5924 = vpack.c.b16 %v4424, %v4420
        %v5925 = vpack.c.b16 %v4425, %v4421
        %v5926 = vpack.c.b16 %v4430, %v4426
        %v5927 = vpack.c.b16 %v4431, %v4427
        %v5928 = vpack.c.b16 %v4432, %v4428
        %v5929 = vpack.c.b16 %v4433, %v4429
        %v5930 = vpack.c.b16 %v4438, %v4434
        %v5931 = vpack.c.b16 %v4439, %v4435
        %v5932 = vpack.c.b16 %v4440, %v4436
        %v5933 = vpack.c.b16 %v4441, %v4437
        %v5934 = vpack.c.b16 %v4446, %v4442
        %v5935 = vpack.c.b16 %v4447, %v4443
        %v5936 = vpack.c.b16 %v4448, %v4444
        %v5937 = vpack.c.b16 %v4449, %v4445
        %v5938 = vpack.c.b16 %v4454, %v4450
        %v5939 = vpack.c.b16 %v4455, %v4451
        %v5940 = vpack.c.b16 %v4456, %v4452
        %v5941 = vpack.c.b16 %v4457, %v4453
        %v5942 = vpack.c.b16 %v4462, %v4458
        %v5943 = vpack.c.b16 %v4463, %v4459
        %v5944 = vpack.c.b16 %v4464, %v4460
        %v5945 = vpack.c.b16 %v4465, %v4461
        %v5946 = vpack.c.b16 %v4470, %v4466
        %v5947 = vpack.c.b16 %v4471, %v4467
        %v5948 = vpack.c.b16 %v4472, %v4468
        %v5949 = vpack.c.b16 %v4473, %v4469
        %v5950 = vpack.c.b16 %v4478, %v4474
        %v5951 = vpack.c.b16 %v4479, %v4475
        %v5952 = vpack.c.b16 %v4480, %v4476
        %v5953 = vpack.c.b16 %v4481, %v4477
        %v5954 = vpack.c.b16 %v4486, %v4482
        %v5955 = vpack.c.b16 %v4487, %v4483
        %v5956 = vpack.c.b16 %v4488, %v4484
        %v5957 = vpack.c.b16 %v4489, %v4485
        %v5958 = vpack.c.b16 %v4494, %v4490
        %v5959 = vpack.c.b16 %v4495, %v4491
        %v5960 = vpack.c.b16 %v4496, %v4492
        %v5961 = vpack.c.b16 %v4497, %v4493
        %v5962 = vpack.c.b16 %v4502, %v4498
        %v5963 = vpack.c.b16 %v4503, %v4499
        %v5964 = vpack.c.b16 %v4504, %v4500
        %v5965 = vpack.c.b16 %v4505, %v4501
        %v5966 = vpack.c.b16 %v4510, %v4506
        %v5967 = vpack.c.b16 %v4511, %v4507
        %v5968 = vpack.c.b16 %v4512, %v4508
        %v5969 = vpack.c.b16 %v4513, %v4509
        %v5970 = vpack.c.b16 %v4518, %v4514
        %v5971 = vpack.c.b16 %v4519, %v4515
        %v5972 = vpack.c.b16 %v4520, %v4516
        %v5973 = vpack.c.b16 %v4521, %v4517
        %v5974 = vpack.c.b16 %v4526, %v4522
        %v5975 = vpack.c.b16 %v4527, %v4523
        %v5976 = vpack.c.b16 %v4528, %v4524
        %v5977 = vpack.c.b16 %v4529, %v4525
        %v5978 = vpack.c.b16 %v4534, %v4530
        %v5979 = vpack.c.b16 %v4535, %v4531
        %v5980 = vpack.c.b16 %v4536, %v4532
        %v5981 = vpack.c.b16 %v4537, %v4533
        %v5982 = vpack.c.b16 %v4542, %v4538
        %v5983 = vpack.c.b16 %v4543, %v4539
        %v5984 = vpack.c.b16 %v4544, %v4540
        %v5985 = vpack.c.b16 %v4545, %v4541
        %v5986 = vpack.c.b16 %v4550, %v4546
        %v5987 = vpack.c.b16 %v4551, %v4547
        %v5988 = vpack.c.b16 %v4552, %v4548
        %v5989 = vpack.c.b16 %v4553, %v4549
        %v5990 = vpack.c.b16 %v4558, %v4554
        %v5991 = vpack.c.b16 %v4559, %v4555
        %v5992 = vpack.c.b16 %v4560, %v4556
        %v5993 = vpack.c.b16 %v4561, %v4557
        %v5994 = vpack.c.b16 %v4566, %v4562
        %v5995 = vpack.c.b16 %v4567, %v4563
        %v5996 = vpack.c.b16 %v4568, %v4564
        %v5997 = vpack.c.b16 %v4569, %v4565
        %v5998 = vpack.c.b16 %v4574, %v4570
        %v5999 = vpack.c.b16 %v4575, %v4571
        %v6000 = vpack.c.b16 %v4576, %v4572
        %v6001 = vpack.c.b16 %v4577, %v4573
        %v6002 = vpack.c.b16 %v4582, %v4578
        %v6003 = vpack.c.b16 %v4583, %v4579
        %v6004 = vpack.c.b16 %v4584, %v4580
        %v6005 = vpack.c.b16 %v4585, %v4581
        %v6006 = vpack.c.b16 %v4590, %v4586
        %v6007 = vpack.c.b16 %v4591, %v4587
        %v6008 = vpack.c.b16 %v4592, %v4588
        %v6009 = vpack.c.b16 %v4593, %v4589
        %v6010 = vpack.c.b16 %v4598, %v4594
        %v6011 = vpack.c.b16 %v4599, %v4595
        %v6012 = vpack.c.b16 %v4600, %v4596
        %v6013 = vpack.c.b16 %v4601, %v4597
        %v6014 = vpack.c.b16 %v4606, %v4602
        %v6015 = vpack.c.b16 %v4607, %v4603
        %v6016 = vpack.c.b16 %v4608, %v4604
        %v6017 = vpack.c.b16 %v4609, %v4605
        %v6018 = vpack.c.b16 %v4614, %v4610
        %v6019 = vpack.c.b16 %v4615, %v4611
        %v6020 = vpack.c.b16 %v4616, %v4612
        %v6021 = vpack.c.b16 %v4617, %v4613
        %v6022 = vpack.c.b16 %v4622, %v4618
        %v6023 = vpack.c.b16 %v4623, %v4619
        %v6024 = vpack.c.b16 %v4624, %v4620
        %v6025 = vpack.c.b16 %v4625, %v4621
        %v6026 = vpack.c.b16 %v4630, %v4626
        %v6027 = vpack.c.b16 %v4631, %v4627
        %v6028 = vpack.c.b16 %v4632, %v4628
        %v6029 = vpack.c.b16 %v4633, %v4629
        %v6030 = vpack.c.b16 %v4638, %v4634
        %v6031 = vpack.c.b16 %v4639, %v4635
        %v6032 = vpack.c.b16 %v4640, %v4636
        %v6033 = vpack.c.b16 %v4641, %v4637
        %v6034 = vpack.c.b16 %v4646, %v4642
        %v6035 = vpack.c.b16 %v4647, %v4643
        %v6036 = vpack.c.b16 %v4648, %v4644
        %v6037 = vpack.c.b16 %v4649, %v4645
        %v6038 = vpack.c.b16 %v4654, %v4650
        %v6039 = vpack.c.b16 %v4655, %v4651
        %v6040 = vpack.c.b16 %v4656, %v4652
        %v6041 = vpack.c.b16 %v4657, %v4653
        %v6042 = vpack.c.b16 %v4662, %v4658
        %v6043 = vpack.c.b16 %v4663, %v4659
        %v6044 = vpack.c.b16 %v4664, %v4660
        %v6045 = vpack.c.b16 %v4665, %v4661
        %v6046 = vpack.c.b16 %v4670, %v4666
        %v6047 = vpack.c.b16 %v4671, %v4667
        %v6048 = vpack.c.b16 %v4672, %v4668
        %v6049 = vpack.c.b16 %v4673, %v4669
        %v6050 = vpack.c.b16 %v4678, %v4674
        %v6051 = vpack.c.b16 %v4679, %v4675
        %v6052 = vpack.c.b16 %v4680, %v4676
        %v6053 = vpack.c.b16 %v4681, %v4677
        %v6054 = vpack.c.b16 %v4686, %v4682
        %v6055 = vpack.c.b16 %v4687, %v4683
        %v6056 = vpack.c.b16 %v4688, %v4684
        %v6057 = vpack.c.b16 %v4689, %v4685
        %v6058 = vpack.c.b16 %v4694, %v4690
        %v6059 = vpack.c.b16 %v4695, %v4691
        %v6060 = vpack.c.b16 %v4696, %v4692
        %v6061 = vpack.c.b16 %v4697, %v4693
        %v6062 = vpack.c.b16 %v4702, %v4698
        %v6063 = vpack.c.b16 %v4703, %v4699
        %v6064 = vpack.c.b16 %v4704, %v4700
        %v6065 = vpack.c.b16 %v4705, %v4701
        %v6066 = vpack.c.b16 %v4710, %v4706
        %v6067 = vpack.c.b16 %v4711, %v4707
        %v6068 = vpack.c.b16 %v4712, %v4708
        %v6069 = vpack.c.b16 %v4713, %v4709
        %v6070 = vpack.c.b16 %v4718, %v4714
        %v6071 = vpack.c.b16 %v4719, %v4715
        %v6072 = vpack.c.b16 %v4720, %v4716
        %v6073 = vpack.c.b16 %v4721, %v4717
        %v6074 = vpack.c.b16 %v4726, %v4722
        %v6075 = vpack.c.b16 %v4727, %v4723
        %v6076 = vpack.c.b16 %v4728, %v4724
        %v6077 = vpack.c.b16 %v4729, %v4725
        %v6078 = vpack.c.b16 %v4734, %v4730
        %v6079 = vpack.c.b16 %v4735, %v4731
        %v6080 = vpack.c.b16 %v4736, %v4732
        %v6081 = vpack.c.b16 %v4737, %v4733
        %v6082 = vpack.c.b16 %v4742, %v4738
        %v6083 = vpack.c.b16 %v4743, %v4739
        %v6084 = vpack.c.b16 %v4744, %v4740
        %v6085 = vpack.c.b16 %v4745, %v4741
        %v6086 = vpack.c.b16 %v4750, %v4746
        %v6087 = vpack.c.b16 %v4751, %v4747
        %v6088 = vpack.c.b16 %v4752, %v4748
        %v6089 = vpack.c.b16 %v4753, %v4749
        %v6090 = vpack.c.b16 %v4758, %v4754
        %v6091 = vpack.c.b16 %v4759, %v4755
        %v6092 = vpack.c.b16 %v4760, %v4756
        %v6093 = vpack.c.b16 %v4761, %v4757
        %v6094 = vpack.c.b16 %v4766, %v4762
        %v6095 = vpack.c.b16 %v4767, %v4763
        %v6096 = vpack.c.b16 %v4768, %v4764
        %v6097 = vpack.c.b16 %v4769, %v4765
        %v6098 = vpack.c.b16 %v4774, %v4770
        %v6099 = vpack.c.b16 %v4775, %v4771
        %v6100 = vpack.c.b16 %v4776, %v4772
        %v6101 = vpack.c.b16 %v4777, %v4773
        %v6102 = vpack.c.b16 %v4782, %v4778
        %v6103 = vpack.c.b16 %v4783, %v4779
        %v6104 = vpack.c.b16 %v4784, %v4780
        %v6105 = vpack.c.b16 %v4785, %v4781
        %v6106 = vpack.c.b16 %v4790, %v4786
        %v6107 = vpack.c.b16 %v4791, %v4787
        %v6108 = vpack.c.b16 %v4792, %v4788
        %v6109 = vpack.c.b16 %v4793, %v4789
        %v6110 = vpack.c.b16 %v4798, %v4794
        %v6111 = vpack.c.b16 %v4799, %v4795
        %v6112 = vpack.c.b16 %v4800, %v4796
        %v6113 = vpack.c.b16 %v4801, %v4797
        %v6114 = vpack.c.b16 %v4806, %v4802
        %v6115 = vpack.c.b16 %v4807, %v4803
        %v6116 = vpack.c.b16 %v4808, %v4804
        %v6117 = vpack.c.b16 %v4809, %v4805
        %v6118 = vpack.c.b16 %v4814, %v4810
        %v6119 = vpack.c.b16 %v4815, %v4811
        %v6120 = vpack.c.b16 %v4816, %v4812
        %v6121 = vpack.c.b16 %v4817, %v4813
        %v6122 = vpack.c.b16 %v4822, %v4818
        %v6123 = vpack.c.b16 %v4823, %v4819
        %v6124 = vpack.c.b16 %v4824, %v4820
        %v6125 = vpack.c.b16 %v4825, %v4821
        %v6126 = vpack.c.b16 %v4830, %v4826
        %v6127 = vpack.c.b16 %v4831, %v4827
        %v6128 = vpack.c.b16 %v4832, %v4828
        %v6129 = vpack.c.b16 %v4833, %v4829
        %v6130 = vpack.c.b16 %v4838, %v4834
        %v6131 = vpack.c.b16 %v4839, %v4835
        %v6132 = vpack.c.b16 %v4840, %v4836
        %v6133 = vpack.c.b16 %v4841, %v4837
        %v6134 = vpack.c.b16 %v4846, %v4842
        %v6135 = vpack.c.b16 %v4847, %v4843
        %v6136 = vpack.c.b16 %v4848, %v4844
        %v6137 = vpack.c.b16 %v4849, %v4845
        %v6138 = vpack.c.b16 %v4854, %v4850
        %v6139 = vpack.c.b16 %v4855, %v4851
        %v6140 = vpack.c.b16 %v4856, %v4852
        %v6141 = vpack.c.b16 %v4857, %v4853
        %v6142 = vpack.c.b16 %v4862, %v4858
        %v6143 = vpack.c.b16 %v4863, %v4859
        %v6144 = vpack.c.b16 %v4864, %v4860
        %v6145 = vpack.c.b16 %v4865, %v4861
        %v6146 = vpack.c.b16 %v4870, %v4866
        %v6147 = vpack.c.b16 %v4871, %v4867
        %v6148 = vpack.c.b16 %v4872, %v4868
        %v6149 = vpack.c.b16 %v4873, %v4869
        %v6150 = vpack.c.b16 %v4878, %v4874
        %v6151 = vpack.c.b16 %v4879, %v4875
        %v6152 = vpack.c.b16 %v4880, %v4876
        %v6153 = vpack.c.b16 %v4881, %v4877
        %v6154 = vpack.c.b16 %v4886, %v4882
        %v6155 = vpack.c.b16 %v4887, %v4883
        %v6156 = vpack.c.b16 %v4888, %v4884
        %v6157 = vpack.c.b16 %v4889, %v4885
        %v6158 = vpack.c.b16 %v4894, %v4890
        %v6159 = vpack.c.b16 %v4895, %v4891
        %v6160 = vpack.c.b16 %v4896, %v4892
        %v6161 = vpack.c.b16 %v4897, %v4893
        %v6162 = vpack.c.b16 %v4902, %v4898
        %v6163 = vpack.c.b16 %v4903, %v4899
        %v6164 = vpack.c.b16 %v4904, %v4900
        %v6165 = vpack.c.b16 %v4905, %v4901
        %v6166 = vpack.c.b16 %v4910, %v4906
        %v6167 = vpack.c.b16 %v4911, %v4907
        %v6168 = vpack.c.b16 %v4912, %v4908
        %v6169 = vpack.c.b16 %v4913, %v4909
        %v6170 = vpack.c.b16 %v4918, %v4914
        %v6171 = vpack.c.b16 %v4919, %v4915
        %v6172 = vpack.c.b16 %v4920, %v4916
        %v6173 = vpack.c.b16 %v4921, %v4917
        %v6174 = vpack.c.b16 %v4926, %v4922
        %v6175 = vpack.c.b16 %v4927, %v4923
        %v6176 = vpack.c.b16 %v4928, %v4924
        %v6177 = vpack.c.b16 %v4929, %v4925
        %v6178 = vpack.c.b16 %v4934, %v4930
        %v6179 = vpack.c.b16 %v4935, %v4931
        %v6180 = vpack.c.b16 %v4936, %v4932
        %v6181 = vpack.c.b16 %v4937, %v4933
        %v6182 = vpack.c.b16 %v4942, %v4938
        %v6183 = vpack.c.b16 %v4943, %v4939
        %v6184 = vpack.c.b16 %v4944, %v4940
        %v6185 = vpack.c.b16 %v4945, %v4941
        %v6186 = vpack.c.b16 %v4950, %v4946
        %v6187 = vpack.c.b16 %v4951, %v4947
        %v6188 = vpack.c.b16 %v4952, %v4948
        %v6189 = vpack.c.b16 %v4953, %v4949
        %v6190 = vpack.c.b16 %v4958, %v4954
        %v6191 = vpack.c.b16 %v4959, %v4955
        %v6192 = vpack.c.b16 %v4960, %v4956
        %v6193 = vpack.c.b16 %v4961, %v4957
        %v6194 = vpack.c.b16 %v4966, %v4962
        %v6195 = vpack.c.b16 %v4967, %v4963
        %v6196 = vpack.c.b16 %v4968, %v4964
        %v6197 = vpack.c.b16 %v4969, %v4965
        %v6198 = vpack.c.b16 %v4974, %v4970
        %v6199 = vpack.c.b16 %v4975, %v4971
        %v6200 = vpack.c.b16 %v4976, %v4972
        %v6201 = vpack.c.b16 %v4977, %v4973
        %v6202 = vpack.c.b16 %v4982, %v4978
        %v6203 = vpack.c.b16 %v4983, %v4979
        %v6204 = vpack.c.b16 %v4984, %v4980
        %v6205 = vpack.c.b16 %v4985, %v4981
        %v6206 = vpack.c.b16 %v4990, %v4986
        %v6207 = vpack.c.b16 %v4991, %v4987
        %v6208 = vpack.c.b16 %v4992, %v4988
        %v6209 = vpack.c.b16 %v4993, %v4989
        %v6210 = vpack.c.b16 %v4998, %v4994
        %v6211 = vpack.c.b16 %v4999, %v4995
        %v6212 = vpack.c.b16 %v5000, %v4996
        %v6213 = vpack.c.b16 %v5001, %v4997
        %v6214 = vpack.c.b16 %v5006, %v5002
        %v6215 = vpack.c.b16 %v5007, %v5003
        %v6216 = vpack.c.b16 %v5008, %v5004
        %v6217 = vpack.c.b16 %v5009, %v5005
        %v6218 = vpack.c.b16 %v5014, %v5010
        %v6219 = vpack.c.b16 %v5015, %v5011
        %v6220 = vpack.c.b16 %v5016, %v5012
        %v6221 = vpack.c.b16 %v5017, %v5013
        %v6222 = vpack.c.b16 %v5022, %v5018
        %v6223 = vpack.c.b16 %v5023, %v5019
        %v6224 = vpack.c.b16 %v5024, %v5020
        %v6225 = vpack.c.b16 %v5025, %v5021
        %v6226 = vpack.c.b16 %v5030, %v5026
        %v6227 = vpack.c.b16 %v5031, %v5027
        %v6228 = vpack.c.b16 %v5032, %v5028
        %v6229 = vpack.c.b16 %v5033, %v5029
        %v6230 = vpack.c.b16 %v5038, %v5034
        %v6231 = vpack.c.b16 %v5039, %v5035
        %v6232 = vpack.c.b16 %v5040, %v5036
        %v6233 = vpack.c.b16 %v5041, %v5037
        %v6234 = vpack.c.b16 %v5046, %v5042
        %v6235 = vpack.c.b16 %v5047, %v5043
        %v6236 = vpack.c.b16 %v5048, %v5044
        %v6237 = vpack.c.b16 %v5049, %v5045
        %v6238 = vpack.c.b16 %v5054, %v5050
        %v6239 = vpack.c.b16 %v5055, %v5051
        %v6240 = vpack.c.b16 %v5056, %v5052
        %v6241 = vpack.c.b16 %v5057, %v5053
        %v6242 = vpack.c.b16 %v5062, %v5058
        %v6243 = vpack.c.b16 %v5063, %v5059
        %v6244 = vpack.c.b16 %v5064, %v5060
        %v6245 = vpack.c.b16 %v5065, %v5061
        %v6246 = vpack.c.b16 %v5070, %v5066
        %v6247 = vpack.c.b16 %v5071, %v5067
        %v6248 = vpack.c.b16 %v5072, %v5068
        %v6249 = vpack.c.b16 %v5073, %v5069
        %v6250 = vpack.c.b16 %v5078, %v5074
        %v6251 = vpack.c.b16 %v5079, %v5075
        %v6252 = vpack.c.b16 %v5080, %v5076
        %v6253 = vpack.c.b16 %v5081, %v5077
        %v6254 = vpack.c.b16 %v5086, %v5082
        %v6255 = vpack.c.b16 %v5087, %v5083
        %v6256 = vpack.c.b16 %v5088, %v5084
        %v6257 = vpack.c.b16 %v5089, %v5085
        %v6258 = vpack.c.b16 %v5094, %v5090
        %v6259 = vpack.c.b16 %v5095, %v5091
        %v6260 = vpack.c.b16 %v5096, %v5092
        %v6261 = vpack.c.b16 %v5097, %v5093
        %v6262 = vpack.c.b16 %v5102, %v5098
        %v6263 = vpack.c.b16 %v5103, %v5099
        %v6264 = vpack.c.b16 %v5104, %v5100
        %v6265 = vpack.c.b16 %v5105, %v5101
        %v6266 = vpack.c.b16 %v5110, %v5106
        %v6267 = vpack.c.b16 %v5111, %v5107
        %v6268 = vpack.c.b16 %v5112, %v5108
        %v6269 = vpack.c.b16 %v5113, %v5109
        %v6270 = vpack.c.b16 %v5118, %v5114
        %v6271 = vpack.c.b16 %v5119, %v5115
        %v6272 = vpack.c.b16 %v5120, %v5116
        %v6273 = vpack.c.b16 %v5121, %v5117
        %v6274 = vpack.c.b16 %v5126, %v5122
        %v6275 = vpack.c.b16 %v5127, %v5123
        %v6276 = vpack.c.b16 %v5128, %v5124
        %v6277 = vpack.c.b16 %v5129, %v5125
        %v6278 = vpack.c.b16 %v5134, %v5130
        %v6279 = vpack.c.b16 %v5135, %v5131
        %v6280 = vpack.c.b16 %v5136, %v5132
        %v6281 = vpack.c.b16 %v5137, %v5133
        %v6282 = vpack.c.b16 %v5142, %v5138
        %v6283 = vpack.c.b16 %v5143, %v5139
        %v6284 = vpack.c.b16 %v5144, %v5140
        %v6285 = vpack.c.b16 %v5145, %v5141
        %v6286 = vpack.c.b16 %v5150, %v5146
        %v6287 = vpack.c.b16 %v5151, %v5147
        %v6288 = vpack.c.b16 %v5152, %v5148
        %v6289 = vpack.c.b16 %v5153, %v5149
        %v6290 = vpack.c.b16 %v5158, %v5154
        %v6291 = vpack.c.b16 %v5159, %v5155
        %v6292 = vpack.c.b16 %v5160, %v5156
        %v6293 = vpack.c.b16 %v5161, %v5157
        %v6294 = vpack.c.b16 %v5166, %v5162
        %v6295 = vpack.c.b16 %v5167, %v5163
        %v6296 = vpack.c.b16 %v5168, %v5164
        %v6297 = vpack.c.b16 %v5169, %v5165
        %v6298 = vpack.c.b16 %v5174, %v5170
        %v6299 = vpack.c.b16 %v5175, %v5171
        %v6300 = vpack.c.b16 %v5176, %v5172
        %v6301 = vpack.c.b16 %v5177, %v5173
        %v6302 = vpack.c.b16 %v5182, %v5178
        %v6303 = vpack.c.b16 %v5183, %v5179
        %v6304 = vpack.c.b16 %v5184, %v5180
        %v6305 = vpack.c.b16 %v5185, %v5181
        %v6306 = vpack.c.b16 %v5190, %v5186
        %v6307 = vpack.c.b16 %v5191, %v5187
        %v6308 = vpack.c.b16 %v5192, %v5188
        %v6309 = vpack.c.b16 %v5193, %v5189
        %v6310 = vpack.c.b16 %v5198, %v5194
        %v6311 = vpack.c.b16 %v5199, %v5195
        %v6312 = vpack.c.b16 %v5200, %v5196
        %v6313 = vpack.c.b16 %v5201, %v5197
        %v6314 = vpack.c.b16 %v5206, %v5202
        %v6315 = vpack.c.b16 %v5207, %v5203
        %v6316 = vpack.c.b16 %v5208, %v5204
        %v6317 = vpack.c.b16 %v5209, %v5205
        %v6318 = vpack.c.b16 %v5214, %v5210
        %v6319 = vpack.c.b16 %v5215, %v5211
        %v6320 = vpack.c.b16 %v5216, %v5212
        %v6321 = vpack.c.b16 %v5217, %v5213
        %v6322 = vpack.c.b16 %v5222, %v5218
        %v6323 = vpack.c.b16 %v5223, %v5219
        %v6324 = vpack.c.b16 %v5224, %v5220
        %v6325 = vpack.c.b16 %v5225, %v5221
        %v6326 = vpack.c.b16 %v5230, %v5226
        %v6327 = vpack.c.b16 %v5231, %v5227
        %v6328 = vpack.c.b16 %v5232, %v5228
        %v6329 = vpack.c.b16 %v5233, %v5229
        %v6330 = vpack.c.b16 %v5238, %v5234
        %v6331 = vpack.c.b16 %v5239, %v5235
        %v6332 = vpack.c.b16 %v5240, %v5236
        %v6333 = vpack.c.b16 %v5241, %v5237
        %v6334 = vpack.c.b16 %v5246, %v5242
        %v6335 = vpack.c.b16 %v5247, %v5243
        %v6336 = vpack.c.b16 %v5248, %v5244
        %v6337 = vpack.c.b16 %v5249, %v5245
        %v6338 = vpack.c.b16 %v5254, %v5250
        %v6339 = vpack.c.b16 %v5255, %v5251
        %v6340 = vpack.c.b16 %v5256, %v5252
        %v6341 = vpack.c.b16 %v5257, %v5253
        %v6342 = vpack.c.b16 %v5262, %v5258
        %v6343 = vpack.c.b16 %v5263, %v5259
        %v6344 = vpack.c.b16 %v5264, %v5260
        %v6345 = vpack.c.b16 %v5265, %v5261
        %v6346 = vpack.c.b16 %v5270, %v5266
        %v6347 = vpack.c.b16 %v5271, %v5267
        %v6348 = vpack.c.b16 %v5272, %v5268
        %v6349 = vpack.c.b16 %v5273, %v5269
        %v6350 = vpack.c.b16 %v5278, %v5274
        %v6351 = vpack.c.b16 %v5279, %v5275
        %v6352 = vpack.c.b16 %v5280, %v5276
        %v6353 = vpack.c.b16 %v5281, %v5277
        %v6354 = vpack.c.b16 %v5286, %v5282
        %v6355 = vpack.c.b16 %v5287, %v5283
        %v6356 = vpack.c.b16 %v5288, %v5284
        %v6357 = vpack.c.b16 %v5289, %v5285
        %v6358 = vpack.c.b16 %v5294, %v5290
        %v6359 = vpack.c.b16 %v5295, %v5291
        %v6360 = vpack.c.b16 %v5296, %v5292
        %v6361 = vpack.c.b16 %v5297, %v5293
        %v6362 = vpack.c.b16 %v5302, %v5298
        %v6363 = vpack.c.b16 %v5303, %v5299
        %v6364 = vpack.c.b16 %v5304, %v5300
        %v6365 = vpack.c.b16 %v5305, %v5301
        %v6366 = vpack.c.b16 %v5310, %v5306
        %v6367 = vpack.c.b16 %v5311, %v5307
        %v6368 = vpack.c.b16 %v5312, %v5308
        %v6369 = vpack.c.b16 %v5313, %v5309
        %v6370 = vpack.c.b16 %v5318, %v5314
        %v6371 = vpack.c.b16 %v5319, %v5315
        %v6372 = vpack.c.b16 %v5320, %v5316
        %v6373 = vpack.c.b16 %v5321, %v5317
        %v6374 = vpack.c.b16 %v5326, %v5322
        %v6375 = vpack.c.b16 %v5327, %v5323
        %v6376 = vpack.c.b16 %v5328, %v5324
        %v6377 = vpack.c.b16 %v5329, %v5325
        %v6378 = vpack.c.b16 %v5334, %v5330
        %v6379 = vpack.c.b16 %v5335, %v5331
        %v6380 = vpack.c.b16 %v5336, %v5332
        %v6381 = vpack.c.b16 %v5337, %v5333
        %v6382 = vpack.c.b16 %v5342, %v5338
        %v6383 = vpack.c.b16 %v5343, %v5339
        %v6384 = vpack.c.b16 %v5344, %v5340
        %v6385 = vpack.c.b16 %v5345, %v5341
        %v6386 = vpack.c.b16 %v5350, %v5346
        %v6387 = vpack.c.b16 %v5351, %v5347
        %v6388 = vpack.c.b16 %v5352, %v5348
        %v6389 = vpack.c.b16 %v5353, %v5349
        %v6390 = vpack.c.b16 %v5358, %v5354
        %v6391 = vpack.c.b16 %v5359, %v5355
        %v6392 = vpack.c.b16 %v5360, %v5356
        %v6393 = vpack.c.b16 %v5361, %v5357
        %v6394 = vpack.c.b16 %v5366, %v5362
        %v6395 = vpack.c.b16 %v5367, %v5363
        %v6396 = vpack.c.b16 %v5368, %v5364
        %v6397 = vpack.c.b16 %v5369, %v5365
        %v6398 = vpack.c.b16 %v5374, %v5370
        %v6399 = vpack.c.b16 %v5375, %v5371
        %v6400 = vpack.c.b16 %v5376, %v5372
        %v6401 = vpack.c.b16 %v5377, %v5373
        %7426 = vmatprep.subr.bf16.mxu0 %v5379
        %7427 = vmatpush1.bf16.msra.mxu0 %v5378
        %7428 = vmatprep.subr.bf16.mxu0 %v5383
        %7429 = vmatpush1.bf16.msra.mxu0 %v5382
        %7430 = vmatprep.subr.bf16.mxu0 %v5387
        %7431 = vmatpush1.bf16.msra.mxu0 %v5386
        %7432 = vmatprep.subr.bf16.mxu0 %v5391
        %7433 = vmatpush1.bf16.msra.mxu0 %v5390
        %7434 = vmatprep.subr.bf16.mxu0 %v5395
        %7435 = vmatpush1.bf16.msra.mxu0 %v5394
        %7436 = vmatprep.subr.bf16.mxu0 %v5399
        %7437 = vmatpush1.bf16.msra.mxu0 %v5398
        %7438 = vmatprep.subr.bf16.mxu0 %v5403
        %7439 = vmatpush1.bf16.msra.mxu0 %v5402
        %7440 = vmatprep.subr.bf16.mxu0 %v5407
        %7441 = vmatpush1.bf16.msra.mxu0 %v5406
        %7442 = vmatprep.subr.bf16.mxu0 %v5411
        %7443 = vmatpush1.bf16.msra.mxu0 %v5410
        %7444 = vmatprep.subr.bf16.mxu0 %v5415
        %7445 = vmatpush1.bf16.msra.mxu0 %v5414
        %7446 = vmatprep.subr.bf16.mxu0 %v5419
        %7447 = vmatpush1.bf16.msra.mxu0 %v5418
        %7448 = vmatprep.subr.bf16.mxu0 %v5423
        %7449 = vmatpush1.bf16.msra.mxu0 %v5422
        %7450 = vmatprep.subr.bf16.mxu0 %v5427
        %7451 = vmatpush1.bf16.msra.mxu0 %v5426
        %7452 = vmatprep.subr.bf16.mxu0 %v5431
        %7453 = vmatpush1.bf16.msra.mxu0 %v5430
        %7454 = vmatprep.subr.bf16.mxu0 %v5435
        %7455 = vmatpush1.bf16.msra.mxu0 %v5434
        %7456 = vmatprep.subr.bf16.mxu0 %v5439
        %7457 = vmatpush1.bf16.msra.mxu0 %v5438
        %7458 = vmatprep.mubr.bf16.mxu0 %v2243
        %7459 = vmatmul.mubr.bf16.gmra.mrb[0].mxu0 %v2242
        %v7460 = vpop.f32.mrb[0].mxu0
        %v7461 = vadd.f32 0.0, %v7460
        %v7462 = vpop.f32.mrb[0].mxu0
        %v7463 = vadd.f32 0.0, %v7462
        %v7464 = vpop.f32.mrb[0].mxu0
        %v7465 = vpop.f32.mrb[0].mxu0
        %7466 = vdwg.mxu0
        %7467 = vmatprep.subr.bf16.mxu0 %v5443
        %7468 = vmatpush1.bf16.msra.mxu0 %v5442
        %7469 = vmatprep.subr.bf16.mxu0 %v5447
        %7470 = vmatpush1.bf16.msra.mxu0 %v5446
        %7471 = vmatprep.subr.bf16.mxu0 %v5451
        %7472 = vmatpush1.bf16.msra.mxu0 %v5450
        %7473 = vmatprep.subr.bf16.mxu0 %v5455
        %7474 = vmatpush1.bf16.msra.mxu0 %v5454
        %7475 = vmatprep.subr.bf16.mxu0 %v5459
        %7476 = vmatpush1.bf16.msra.mxu0 %v5458
        %7477 = vmatprep.subr.bf16.mxu0 %v5463
        %7478 = vmatpush1.bf16.msra.mxu0 %v5462
        %7479 = vmatprep.subr.bf16.mxu0 %v5467
        %7480 = vmatpush1.bf16.msra.mxu0 %v5466
        %7481 = vmatprep.subr.bf16.mxu0 %v5471
        %7482 = vmatpush1.bf16.msra.mxu0 %v5470
        %7483 = vmatprep.subr.bf16.mxu0 %v5475
        %7484 = vmatpush1.bf16.msra.mxu0 %v5474
        %7485 = vmatprep.subr.bf16.mxu0 %v5479
        %7486 = vmatpush1.bf16.msra.mxu0 %v5478
        %7487 = vmatprep.subr.bf16.mxu0 %v5483
        %7488 = vmatpush1.bf16.msra.mxu0 %v5482
        %7489 = vmatprep.subr.bf16.mxu0 %v5487
        %7490 = vmatpush1.bf16.msra.mxu0 %v5486
        %7491 = vmatprep.subr.bf16.mxu0 %v5491
        %7492 = vmatpush1.bf16.msra.mxu0 %v5490
        %7493 = vmatprep.subr.bf16.mxu0 %v5495
        %7494 = vmatpush1.bf16.msra.mxu0 %v5494
        %7495 = vmatprep.subr.bf16.mxu0 %v5499
        %7496 = vmatpush1.bf16.msra.mxu0 %v5498
        %7497 = vmatprep.subr.bf16.mxu0 %v5503
        %7498 = vmatpush1.bf16.msra.mxu0 %v5502
        %7499 = vmatprep.mubr.bf16.mxu0 %v2245
        %7500 = vmatmul.mubr.bf16.gmra.mrb[0].mxu0 %v2244
        %v7501 = vpop.f32.mrb[0].mxu0
        %v7502 = vadd.f32 %v7461, %v7501
        %v7503 = vpop.f32.mrb[0].mxu0
        %v7504 = vadd.f32 %v7463, %v7503
        %v7505 = vpop.f32.mrb[0].mxu0
        %v7506 = vpop.f32.mrb[0].mxu0
        %7507 = vdwg.mxu0
        %7508 = vmatprep.subr.bf16.mxu0 %v5507
        %7509 = vmatpush1.bf16.msra.mxu0 %v5506
        %7510 = vmatprep.subr.bf16.mxu0 %v5511
        %7511 = vmatpush1.bf16.msra.mxu0 %v5510
        %7512 = vmatprep.subr.bf16.mxu0 %v5515
        %7513 = vmatpush1.bf16.msra.mxu0 %v5514
        %7514 = vmatprep.subr.bf16.mxu0 %v5519
        %7515 = vmatpush1.bf16.msra.mxu0 %v5518
        %7516 = vmatprep.subr.bf16.mxu0 %v5523
        %7517 = vmatpush1.bf16.msra.mxu0 %v5522
        %7518 = vmatprep.subr.bf16.mxu0 %v5527
        %7519 = vmatpush1.bf16.msra.mxu0 %v5526
        %7520 = vmatprep.subr.bf16.mxu0 %v5531
        %7521 = vmatpush1.bf16.msra.mxu0 %v5530
        %7522 = vmatprep.subr.bf16.mxu0 %v5535
        %7523 = vmatpush1.bf16.msra.mxu0 %v5534
        %7524 = vmatprep.subr.bf16.mxu0 %v5539
        %7525 = vmatpush1.bf16.msra.mxu0 %v5538
        %7526 = vmatprep.subr.bf16.mxu0 %v5543
        %7527 = vmatpush1.bf16.msra.mxu0 %v5542
        %7528 = vmatprep.subr.bf16.mxu0 %v5547
        %7529 = vmatpush1.bf16.msra.mxu0 %v5546
        %7530 = vmatprep.subr.bf16.mxu0 %v5551
        %7531 = vmatpush1.bf16.msra.mxu0 %v5550
        %7532 = vmatprep.subr.bf16.mxu0 %v5555
        %7533 = vmatpush1.bf16.msra.mxu0 %v5554
        %7534 = vmatprep.subr.bf16.mxu0 %v5559
        %7535 = vmatpush1.bf16.msra.mxu0 %v5558
        %7536 = vmatprep.subr.bf16.mxu0 %v5563
        %7537 = vmatpush1.bf16.msra.mxu0 %v5562
        %7538 = vmatprep.subr.bf16.mxu0 %v5567
        %7539 = vmatpush1.bf16.msra.mxu0 %v5566
        %7540 = vmatprep.mubr.bf16.mxu0 %v2247
        %7541 = vmatmul.mubr.bf16.gmra.mrb[0].mxu0 %v2246
        %v7542 = vpop.f32.mrb[0].mxu0
        %v7543 = vadd.f32 %v7502, %v7542
        %v7544 = vpop.f32.mrb[0].mxu0
        %v7545 = vadd.f32 %v7504, %v7544
        %v7546 = vpop.f32.mrb[0].mxu0
        %v7547 = vpop.f32.mrb[0].mxu0
        %7548 = vdwg.mxu0
        %7549 = vmatprep.subr.bf16.mxu0 %v5571
        %7550 = vmatpush1.bf16.msra.mxu0 %v5570
        %7551 = vmatprep.subr.bf16.mxu0 %v5575
        %7552 = vmatpush1.bf16.msra.mxu0 %v5574
        %7553 = vmatprep.subr.bf16.mxu0 %v5579
        %7554 = vmatpush1.bf16.msra.mxu0 %v5578
        %7555 = vmatprep.subr.bf16.mxu0 %v5583
        %7556 = vmatpush1.bf16.msra.mxu0 %v5582
        %7557 = vmatprep.subr.bf16.mxu0 %v5587
        %7558 = vmatpush1.bf16.msra.mxu0 %v5586
        %7559 = vmatprep.subr.bf16.mxu0 %v5591
        %7560 = vmatpush1.bf16.msra.mxu0 %v5590
        %7561 = vmatprep.subr.bf16.mxu0 %v5595
        %7562 = vmatpush1.bf16.msra.mxu0 %v5594
        %7563 = vmatprep.subr.bf16.mxu0 %v5599
        %7564 = vmatpush1.bf16.msra.mxu0 %v5598
        %7565 = vmatprep.subr.bf16.mxu0 %v5603
        %7566 = vmatpush1.bf16.msra.mxu0 %v5602
        %7567 = vmatprep.subr.bf16.mxu0 %v5607
        %7568 = vmatpush1.bf16.msra.mxu0 %v5606
        %7569 = vmatprep.subr.bf16.mxu0 %v5611
        %7570 = vmatpush1.bf16.msra.mxu0 %v5610
        %7571 = vmatprep.subr.bf16.mxu0 %v5615
        %7572 = vmatpush1.bf16.msra.mxu0 %v5614
        %7573 = vmatprep.subr.bf16.mxu0 %v5619
        %7574 = vmatpush1.bf16.msra.mxu0 %v5618
        %7575 = vmatprep.subr.bf16.mxu0 %v5623
        %7576 = vmatpush1.bf16.msra.mxu0 %v5622
        %7577 = vmatprep.subr.bf16.mxu0 %v5627
        %7578 = vmatpush1.bf16.msra.mxu0 %v5626
        %7579 = vmatprep.subr.bf16.mxu0 %v5631
        %7580 = vmatpush1.bf16.msra.mxu0 %v5630
        %7581 = vmatprep.mubr.bf16.mxu0 %v2249
        %7582 = vmatmul.mubr.bf16.gmra.mrb[0].mxu0 %v2248
        %v7583 = vpop.f32.mrb[0].mxu0
        %v7584 = vadd.f32 %v7543, %v7583
        %v7585 = vpop.f32.mrb[0].mxu0
        %v7586 = vadd.f32 %v7545, %v7585
        %v7587 = vpop.f32.mrb[0].mxu0
        %v7588 = vpop.f32.mrb[0].mxu0
        %7589 = vdwg.mxu0
        %7590 = vmatprep.subr.bf16.mxu0 %v5635
        %7591 = vmatpush1.bf16.msra.mxu0 %v5634
        %7592 = vmatprep.subr.bf16.mxu0 %v5639
        %7593 = vmatpush1.bf16.msra.mxu0 %v5638
        %7594 = vmatprep.subr.bf16.mxu0 %v5643
        %7595 = vmatpush1.bf16.msra.mxu0 %v5642
        %7596 = vmatprep.subr.bf16.mxu0 %v5647
        %7597 = vmatpush1.bf16.msra.mxu0 %v5646
        %7598 = vmatprep.subr.bf16.mxu0 %v5651
        %7599 = vmatpush1.bf16.msra.mxu0 %v5650
        %7600 = vmatprep.subr.bf16.mxu0 %v5655
        %7601 = vmatpush1.bf16.msra.mxu0 %v5654
        %7602 = vmatprep.subr.bf16.mxu0 %v5659
        %7603 = vmatpush1.bf16.msra.mxu0 %v5658
        %7604 = vmatprep.subr.bf16.mxu0 %v5663
        %7605 = vmatpush1.bf16.msra.mxu0 %v5662
        %7606 = vmatprep.subr.bf16.mxu0 %v5667
        %7607 = vmatpush1.bf16.msra.mxu0 %v5666
        %7608 = vmatprep.subr.bf16.mxu0 %v5671
        %7609 = vmatpush1.bf16.msra.mxu0 %v5670
        %7610 = vmatprep.subr.bf16.mxu0 %v5675
        %7611 = vmatpush1.bf16.msra.mxu0 %v5674
        %7612 = vmatprep.subr.bf16.mxu0 %v5679
        %7613 = vmatpush1.bf16.msra.mxu0 %v5678
        %7614 = vmatprep.subr.bf16.mxu0 %v5683
        %7615 = vmatpush1.bf16.msra.mxu0 %v5682
        %7616 = vmatprep.subr.bf16.mxu0 %v5687
        %7617 = vmatpush1.bf16.msra.mxu0 %v5686
        %7618 = vmatprep.subr.bf16.mxu0 %v5691
        %7619 = vmatpush1.bf16.msra.mxu0 %v5690
        %7620 = vmatprep.subr.bf16.mxu0 %v5695
        %7621 = vmatpush1.bf16.msra.mxu0 %v5694
        %7622 = vmatprep.mubr.bf16.mxu0 %v2251
        %7623 = vmatmul.mubr.bf16.gmra.mrb[0].mxu0 %v2250
        %v7624 = vpop.f32.mrb[0].mxu0
        %v7625 = vadd.f32 %v7584, %v7624
        %v7626 = vpop.f32.mrb[0].mxu0
        %v7627 = vadd.f32 %v7586, %v7626
        %v7628 = vpop.f32.mrb[0].mxu0
        %v7629 = vpop.f32.mrb[0].mxu0
        %7630 = vdwg.mxu0
        %7631 = vmatprep.subr.bf16.mxu0 %v5699
        %7632 = vmatpush1.bf16.msra.mxu0 %v5698
        %7633 = vmatprep.subr.bf16.mxu0 %v5703
        %7634 = vmatpush1.bf16.msra.mxu0 %v5702
        %7635 = vmatprep.subr.bf16.mxu0 %v5707
        %7636 = vmatpush1.bf16.msra.mxu0 %v5706
        %7637 = vmatprep.subr.bf16.mxu0 %v5711
        %7638 = vmatpush1.bf16.msra.mxu0 %v5710
        %7639 = vmatprep.subr.bf16.mxu0 %v5715
        %7640 = vmatpush1.bf16.msra.mxu0 %v5714
        %7641 = vmatprep.subr.bf16.mxu0 %v5719
        %7642 = vmatpush1.bf16.msra.mxu0 %v5718
        %7643 = vmatprep.subr.bf16.mxu0 %v5723
        %7644 = vmatpush1.bf16.msra.mxu0 %v5722
        %7645 = vmatprep.subr.bf16.mxu0 %v5727
        %7646 = vmatpush1.bf16.msra.mxu0 %v5726
        %7647 = vmatprep.subr.bf16.mxu0 %v5731
        %7648 = vmatpush1.bf16.msra.mxu0 %v5730
        %7649 = vmatprep.subr.bf16.mxu0 %v5735
        %7650 = vmatpush1.bf16.msra.mxu0 %v5734
        %7651 = vmatprep.subr.bf16.mxu0 %v5739
        %7652 = vmatpush1.bf16.msra.mxu0 %v5738
        %7653 = vmatprep.subr.bf16.mxu0 %v5743
        %7654 = vmatpush1.bf16.msra.mxu0 %v5742
        %7655 = vmatprep.subr.bf16.mxu0 %v5747
        %7656 = vmatpush1.bf16.msra.mxu0 %v5746
        %7657 = vmatprep.subr.bf16.mxu0 %v5751
        %7658 = vmatpush1.bf16.msra.mxu0 %v5750
        %7659 = vmatprep.subr.bf16.mxu0 %v5755
        %7660 = vmatpush1.bf16.msra.mxu0 %v5754
        %7661 = vmatprep.subr.bf16.mxu0 %v5759
        %7662 = vmatpush1.bf16.msra.mxu0 %v5758
        %7663 = vmatprep.mubr.bf16.mxu0 %v2253
        %7664 = vmatmul.mubr.bf16.gmra.mrb[0].mxu0 %v2252
        %v7665 = vpop.f32.mrb[0].mxu0
        %v7666 = vadd.f32 %v7625, %v7665
        %v7667 = vpop.f32.mrb[0].mxu0
        %v7668 = vadd.f32 %v7627, %v7667
        %v7669 = vpop.f32.mrb[0].mxu0
        %v7670 = vpop.f32.mrb[0].mxu0
        %7671 = vdwg.mxu0
        %7672 = vmatprep.subr.bf16.mxu0 %v5763
        %7673 = vmatpush1.bf16.msra.mxu0 %v5762
        %7674 = vmatprep.subr.bf16.mxu0 %v5767
        %7675 = vmatpush1.bf16.msra.mxu0 %v5766
        %7676 = vmatprep.subr.bf16.mxu0 %v5771
        %7677 = vmatpush1.bf16.msra.mxu0 %v5770
        %7678 = vmatprep.subr.bf16.mxu0 %v5775
        %7679 = vmatpush1.bf16.msra.mxu0 %v5774
        %7680 = vmatprep.subr.bf16.mxu0 %v5779
        %7681 = vmatpush1.bf16.msra.mxu0 %v5778
        %7682 = vmatprep.subr.bf16.mxu0 %v5783
        %7683 = vmatpush1.bf16.msra.mxu0 %v5782
        %7684 = vmatprep.subr.bf16.mxu0 %v5787
        %7685 = vmatpush1.bf16.msra.mxu0 %v5786
        %7686 = vmatprep.subr.bf16.mxu0 %v5791
        %7687 = vmatpush1.bf16.msra.mxu0 %v5790
        %7688 = vmatprep.subr.bf16.mxu0 %v5795
        %7689 = vmatpush1.bf16.msra.mxu0 %v5794
        %7690 = vmatprep.subr.bf16.mxu0 %v5799
        %7691 = vmatpush1.bf16.msra.mxu0 %v5798
        %7692 = vmatprep.subr.bf16.mxu0 %v5803
        %7693 = vmatpush1.bf16.msra.mxu0 %v5802
        %7694 = vmatprep.subr.bf16.mxu0 %v5807
        %7695 = vmatpush1.bf16.msra.mxu0 %v5806
        %7696 = vmatprep.subr.bf16.mxu0 %v5811
        %7697 = vmatpush1.bf16.msra.mxu0 %v5810
        %7698 = vmatprep.subr.bf16.mxu0 %v5815
        %7699 = vmatpush1.bf16.msra.mxu0 %v5814
        %7700 = vmatprep.subr.bf16.mxu0 %v5819
        %7701 = vmatpush1.bf16.msra.mxu0 %v5818
        %7702 = vmatprep.subr.bf16.mxu0 %v5823
        %7703 = vmatpush1.bf16.msra.mxu0 %v5822
        %7704 = vmatprep.mubr.bf16.mxu0 %v2255
        %7705 = vmatmul.mubr.bf16.gmra.mrb[0].mxu0 %v2254
        %v7706 = vpop.f32.mrb[0].mxu0
        %v7707 = vadd.f32 %v7666, %v7706
        %v7708 = vpop.f32.mrb[0].mxu0
        %v7709 = vadd.f32 %v7668, %v7708
        %v7710 = vpop.f32.mrb[0].mxu0
        %v7711 = vpop.f32.mrb[0].mxu0
        %7712 = vdwg.mxu0
        %7713 = vmatprep.subr.bf16.mxu0 %v5827
        %7714 = vmatpush1.bf16.msra.mxu0 %v5826
        %7715 = vmatprep.subr.bf16.mxu0 %v5831
        %7716 = vmatpush1.bf16.msra.mxu0 %v5830
        %7717 = vmatprep.subr.bf16.mxu0 %v5835
        %7718 = vmatpush1.bf16.msra.mxu0 %v5834
        %7719 = vmatprep.subr.bf16.mxu0 %v5839
        %7720 = vmatpush1.bf16.msra.mxu0 %v5838
        %7721 = vmatprep.subr.bf16.mxu0 %v5843
        %7722 = vmatpush1.bf16.msra.mxu0 %v5842
        %7723 = vmatprep.subr.bf16.mxu0 %v5847
        %7724 = vmatpush1.bf16.msra.mxu0 %v5846
        %7725 = vmatprep.subr.bf16.mxu0 %v5851
        %7726 = vmatpush1.bf16.msra.mxu0 %v5850
        %7727 = vmatprep.subr.bf16.mxu0 %v5855
        %7728 = vmatpush1.bf16.msra.mxu0 %v5854
        %7729 = vmatprep.subr.bf16.mxu0 %v5859
        %7730 = vmatpush1.bf16.msra.mxu0 %v5858
        %7731 = vmatprep.subr.bf16.mxu0 %v5863
        %7732 = vmatpush1.bf16.msra.mxu0 %v5862
        %7733 = vmatprep.subr.bf16.mxu0 %v5867
        %7734 = vmatpush1.bf16.msra.mxu0 %v5866
        %7735 = vmatprep.subr.bf16.mxu0 %v5871
        %7736 = vmatpush1.bf16.msra.mxu0 %v5870
        %7737 = vmatprep.subr.bf16.mxu0 %v5875
        %7738 = vmatpush1.bf16.msra.mxu0 %v5874
        %7739 = vmatprep.subr.bf16.mxu0 %v5879
        %7740 = vmatpush1.bf16.msra.mxu0 %v5878
        %7741 = vmatprep.subr.bf16.mxu0 %v5883
        %7742 = vmatpush1.bf16.msra.mxu0 %v5882
        %7743 = vmatprep.subr.bf16.mxu0 %v5887
        %7744 = vmatpush1.bf16.msra.mxu0 %v5886
        %7745 = vmatprep.mubr.bf16.mxu0 %v2257
        %7746 = vmatmul.mubr.bf16.gmra.mrb[0].mxu0 %v2256
        %v7747 = vpop.f32.mrb[0].mxu0
        %v7748 = vadd.f32 %v7707, %v7747
        %v7749 = vpop.f32.mrb[0].mxu0
        %v7750 = vadd.f32 %v7709, %v7749
        %v7751 = vpop.f32.mrb[0].mxu0
        %v7752 = vpop.f32.mrb[0].mxu0
        %7753 = vdwg.mxu0
        %7754 = vmatprep.subr.bf16.mxu0 %v5891
        %7755 = vmatpush1.bf16.msra.mxu0 %v5890
        %7756 = vmatprep.subr.bf16.mxu0 %v5895
        %7757 = vmatpush1.bf16.msra.mxu0 %v5894
        %7758 = vmatprep.subr.bf16.mxu0 %v5899
        %7759 = vmatpush1.bf16.msra.mxu0 %v5898
        %7760 = vmatprep.subr.bf16.mxu0 %v5903
        %7761 = vmatpush1.bf16.msra.mxu0 %v5902
        %7762 = vmatprep.subr.bf16.mxu0 %v5907
        %7763 = vmatpush1.bf16.msra.mxu0 %v5906
        %7764 = vmatprep.subr.bf16.mxu0 %v5911
        %7765 = vmatpush1.bf16.msra.mxu0 %v5910
        %7766 = vmatprep.subr.bf16.mxu0 %v5915
        %7767 = vmatpush1.bf16.msra.mxu0 %v5914
        %7768 = vmatprep.subr.bf16.mxu0 %v5919
        %7769 = vmatpush1.bf16.msra.mxu0 %v5918
        %7770 = vmatprep.subr.bf16.mxu0 %v5923
        %7771 = vmatpush1.bf16.msra.mxu0 %v5922
        %7772 = vmatprep.subr.bf16.mxu0 %v5927
        %7773 = vmatpush1.bf16.msra.mxu0 %v5926
        %7774 = vmatprep.subr.bf16.mxu0 %v5931
        %7775 = vmatpush1.bf16.msra.mxu0 %v5930
        %7776 = vmatprep.subr.bf16.mxu0 %v5935
        %7777 = vmatpush1.bf16.msra.mxu0 %v5934
        %7778 = vmatprep.subr.bf16.mxu0 %v5939
        %7779 = vmatpush1.bf16.msra.mxu0 %v5938
        %7780 = vmatprep.subr.bf16.mxu0 %v5943
        %7781 = vmatpush1.bf16.msra.mxu0 %v5942
        %7782 = vmatprep.subr.bf16.mxu0 %v5947
        %7783 = vmatpush1.bf16.msra.mxu0 %v5946
        %7784 = vmatprep.subr.bf16.mxu0 %v5951
        %7785 = vmatpush1.bf16.msra.mxu0 %v5950
        %7786 = vmatprep.mubr.bf16.mxu0 %v2259
        %7787 = vmatmul.mubr.bf16.gmra.mrb[0].mxu0 %v2258
        %v7788 = vpop.f32.mrb[0].mxu0
        %v7789 = vadd.f32 %v7748, %v7788
        %v7790 = vpop.f32.mrb[0].mxu0
        %v7791 = vadd.f32 %v7750, %v7790
        %v7792 = vpop.f32.mrb[0].mxu0
        %v7793 = vpop.f32.mrb[0].mxu0
        %7794 = vdwg.mxu0
        %7795 = vmatprep.subr.bf16.mxu0 %v5955
        %7796 = vmatpush1.bf16.msra.mxu0 %v5954
        %7797 = vmatprep.subr.bf16.mxu0 %v5959
        %7798 = vmatpush1.bf16.msra.mxu0 %v5958
        %7799 = vmatprep.subr.bf16.mxu0 %v5963
        %7800 = vmatpush1.bf16.msra.mxu0 %v5962
        %7801 = vmatprep.subr.bf16.mxu0 %v5967
        %7802 = vmatpush1.bf16.msra.mxu0 %v5966
        %7803 = vmatprep.subr.bf16.mxu0 %v5971
        %7804 = vmatpush1.bf16.msra.mxu0 %v5970
        %7805 = vmatprep.subr.bf16.mxu0 %v5975
        %7806 = vmatpush1.bf16.msra.mxu0 %v5974
        %7807 = vmatprep.subr.bf16.mxu0 %v5979
        %7808 = vmatpush1.bf16.msra.mxu0 %v5978
        %7809 = vmatprep.subr.bf16.mxu0 %v5983
        %7810 = vmatpush1.bf16.msra.mxu0 %v5982
        %7811 = vmatprep.subr.bf16.mxu0 %v5987
        %7812 = vmatpush1.bf16.msra.mxu0 %v5986
        %7813 = vmatprep.subr.bf16.mxu0 %v5991
        %7814 = vmatpush1.bf16.msra.mxu0 %v5990
        %7815 = vmatprep.subr.bf16.mxu0 %v5995
        %7816 = vmatpush1.bf16.msra.mxu0 %v5994
        %7817 = vmatprep.subr.bf16.mxu0 %v5999
        %7818 = vmatpush1.bf16.msra.mxu0 %v5998
        %7819 = vmatprep.subr.bf16.mxu0 %v6003
        %7820 = vmatpush1.bf16.msra.mxu0 %v6002
        %7821 = vmatprep.subr.bf16.mxu0 %v6007
        %7822 = vmatpush1.bf16.msra.mxu0 %v6006
        %7823 = vmatprep.subr.bf16.mxu0 %v6011
        %7824 = vmatpush1.bf16.msra.mxu0 %v6010
        %7825 = vmatprep.subr.bf16.mxu0 %v6015
        %7826 = vmatpush1.bf16.msra.mxu0 %v6014
        %7827 = vmatprep.mubr.bf16.mxu0 %v2261
        %7828 = vmatmul.mubr.bf16.gmra.mrb[0].mxu0 %v2260
        %v7829 = vpop.f32.mrb[0].mxu0
        %v7830 = vadd.f32 %v7789, %v7829
        %v7831 = vpop.f32.mrb[0].mxu0
        %v7832 = vadd.f32 %v7791, %v7831
        %v7833 = vpop.f32.mrb[0].mxu0
        %v7834 = vpop.f32.mrb[0].mxu0
        %7835 = vdwg.mxu0
        %7836 = vmatprep.subr.bf16.mxu0 %v6019
        %7837 = vmatpush1.bf16.msra.mxu0 %v6018
        %7838 = vmatprep.subr.bf16.mxu0 %v6023
        %7839 = vmatpush1.bf16.msra.mxu0 %v6022
        %7840 = vmatprep.subr.bf16.mxu0 %v6027
        %7841 = vmatpush1.bf16.msra.mxu0 %v6026
        %7842 = vmatprep.subr.bf16.mxu0 %v6031
        %7843 = vmatpush1.bf16.msra.mxu0 %v6030
        %7844 = vmatprep.subr.bf16.mxu0 %v6035
        %7845 = vmatpush1.bf16.msra.mxu0 %v6034
        %7846 = vmatprep.subr.bf16.mxu0 %v6039
        %7847 = vmatpush1.bf16.msra.mxu0 %v6038
        %7848 = vmatprep.subr.bf16.mxu0 %v6043
        %7849 = vmatpush1.bf16.msra.mxu0 %v6042
        %7850 = vmatprep.subr.bf16.mxu0 %v6047
        %7851 = vmatpush1.bf16.msra.mxu0 %v6046
        %7852 = vmatprep.subr.bf16.mxu0 %v6051
        %7853 = vmatpush1.bf16.msra.mxu0 %v6050
        %7854 = vmatprep.subr.bf16.mxu0 %v6055
        %7855 = vmatpush1.bf16.msra.mxu0 %v6054
        %7856 = vmatprep.subr.bf16.mxu0 %v6059
        %7857 = vmatpush1.bf16.msra.mxu0 %v6058
        %7858 = vmatprep.subr.bf16.mxu0 %v6063
        %7859 = vmatpush1.bf16.msra.mxu0 %v6062
        %7860 = vmatprep.subr.bf16.mxu0 %v6067
        %7861 = vmatpush1.bf16.msra.mxu0 %v6066
        %7862 = vmatprep.subr.bf16.mxu0 %v6071
        %7863 = vmatpush1.bf16.msra.mxu0 %v6070
        %7864 = vmatprep.subr.bf16.mxu0 %v6075
        %7865 = vmatpush1.bf16.msra.mxu0 %v6074
        %7866 = vmatprep.subr.bf16.mxu0 %v6079
        %7867 = vmatpush1.bf16.msra.mxu0 %v6078
        %7868 = vmatprep.mubr.bf16.mxu0 %v2263
        %7869 = vmatmul.mubr.bf16.gmra.mrb[0].mxu0 %v2262
        %v7870 = vpop.f32.mrb[0].mxu0
        %v7871 = vadd.f32 %v7830, %v7870
        %v7872 = vpop.f32.mrb[0].mxu0
        %v7873 = vadd.f32 %v7832, %v7872
        %v7874 = vpop.f32.mrb[0].mxu0
        %v7875 = vpop.f32.mrb[0].mxu0
        %7876 = vdwg.mxu0
        %7877 = vmatprep.subr.bf16.mxu0 %v6083
        %7878 = vmatpush1.bf16.msra.mxu0 %v6082
        %7879 = vmatprep.subr.bf16.mxu0 %v6087
        %7880 = vmatpush1.bf16.msra.mxu0 %v6086
        %7881 = vmatprep.subr.bf16.mxu0 %v6091
        %7882 = vmatpush1.bf16.msra.mxu0 %v6090
        %7883 = vmatprep.subr.bf16.mxu0 %v6095
        %7884 = vmatpush1.bf16.msra.mxu0 %v6094
        %7885 = vmatprep.subr.bf16.mxu0 %v6099
        %7886 = vmatpush1.bf16.msra.mxu0 %v6098
        %7887 = vmatprep.subr.bf16.mxu0 %v6103
        %7888 = vmatpush1.bf16.msra.mxu0 %v6102
        %7889 = vmatprep.subr.bf16.mxu0 %v6107
        %7890 = vmatpush1.bf16.msra.mxu0 %v6106
        %7891 = vmatprep.subr.bf16.mxu0 %v6111
        %7892 = vmatpush1.bf16.msra.mxu0 %v6110
        %7893 = vmatprep.subr.bf16.mxu0 %v6115
        %7894 = vmatpush1.bf16.msra.mxu0 %v6114
        %7895 = vmatprep.subr.bf16.mxu0 %v6119
        %7896 = vmatpush1.bf16.msra.mxu0 %v6118
        %7897 = vmatprep.subr.bf16.mxu0 %v6123
        %7898 = vmatpush1.bf16.msra.mxu0 %v6122
        %7899 = vmatprep.subr.bf16.mxu0 %v6127
        %7900 = vmatpush1.bf16.msra.mxu0 %v6126
        %7901 = vmatprep.subr.bf16.mxu0 %v6131
        %7902 = vmatpush1.bf16.msra.mxu0 %v6130
        %7903 = vmatprep.subr.bf16.mxu0 %v6135
        %7904 = vmatpush1.bf16.msra.mxu0 %v6134
        %7905 = vmatprep.subr.bf16.mxu0 %v6139
        %7906 = vmatpush1.bf16.msra.mxu0 %v6138
        %7907 = vmatprep.subr.bf16.mxu0 %v6143
        %7908 = vmatpush1.bf16.msra.mxu0 %v6142
        %7909 = vmatprep.mubr.bf16.mxu0 %v2265
        %7910 = vmatmul.mubr.bf16.gmra.mrb[0].mxu0 %v2264
        %v7911 = vpop.f32.mrb[0].mxu0
        %v7912 = vadd.f32 %v7871, %v7911
        %v7913 = vpop.f32.mrb[0].mxu0
        %v7914 = vadd.f32 %v7873, %v7913
        %v7915 = vpop.f32.mrb[0].mxu0
        %v7916 = vpop.f32.mrb[0].mxu0
        %7917 = vdwg.mxu0
        %7918 = vmatprep.subr.bf16.mxu0 %v6147
        %7919 = vmatpush1.bf16.msra.mxu0 %v6146
        %7920 = vmatprep.subr.bf16.mxu0 %v6151
        %7921 = vmatpush1.bf16.msra.mxu0 %v6150
        %7922 = vmatprep.subr.bf16.mxu0 %v6155
        %7923 = vmatpush1.bf16.msra.mxu0 %v6154
        %7924 = vmatprep.subr.bf16.mxu0 %v6159
        %7925 = vmatpush1.bf16.msra.mxu0 %v6158
        %7926 = vmatprep.subr.bf16.mxu0 %v6163
        %7927 = vmatpush1.bf16.msra.mxu0 %v6162
        %7928 = vmatprep.subr.bf16.mxu0 %v6167
        %7929 = vmatpush1.bf16.msra.mxu0 %v6166
        %7930 = vmatprep.subr.bf16.mxu0 %v6171
        %7931 = vmatpush1.bf16.msra.mxu0 %v6170
        %7932 = vmatprep.subr.bf16.mxu0 %v6175
        %7933 = vmatpush1.bf16.msra.mxu0 %v6174
        %7934 = vmatprep.subr.bf16.mxu0 %v6179
        %7935 = vmatpush1.bf16.msra.mxu0 %v6178
        %7936 = vmatprep.subr.bf16.mxu0 %v6183
        %7937 = vmatpush1.bf16.msra.mxu0 %v6182
        %7938 = vmatprep.subr.bf16.mxu0 %v6187
        %7939 = vmatpush1.bf16.msra.mxu0 %v6186
        %7940 = vmatprep.subr.bf16.mxu0 %v6191
        %7941 = vmatpush1.bf16.msra.mxu0 %v6190
        %7942 = vmatprep.subr.bf16.mxu0 %v6195
        %7943 = vmatpush1.bf16.msra.mxu0 %v6194
        %7944 = vmatprep.subr.bf16.mxu0 %v6199
        %7945 = vmatpush1.bf16.msra.mxu0 %v6198
        %7946 = vmatprep.subr.bf16.mxu0 %v6203
        %7947 = vmatpush1.bf16.msra.mxu0 %v6202
        %7948 = vmatprep.subr.bf16.mxu0 %v6207
        %7949 = vmatpush1.bf16.msra.mxu0 %v6206
        %7950 = vmatprep.mubr.bf16.mxu0 %v2267
        %7951 = vmatmul.mubr.bf16.gmra.mrb[0].mxu0 %v2266
        %v7952 = vpop.f32.mrb[0].mxu0
        %v7953 = vadd.f32 %v7912, %v7952
        %v7954 = vpop.f32.mrb[0].mxu0
        %v7955 = vadd.f32 %v7914, %v7954
        %v7956 = vpop.f32.mrb[0].mxu0
        %v7957 = vpop.f32.mrb[0].mxu0
        %7958 = vdwg.mxu0
        %7959 = vmatprep.subr.bf16.mxu0 %v6211
        %7960 = vmatpush1.bf16.msra.mxu0 %v6210
        %7961 = vmatprep.subr.bf16.mxu0 %v6215
        %7962 = vmatpush1.bf16.msra.mxu0 %v6214
        %7963 = vmatprep.subr.bf16.mxu0 %v6219
        %7964 = vmatpush1.bf16.msra.mxu0 %v6218
        %7965 = vmatprep.subr.bf16.mxu0 %v6223
        %7966 = vmatpush1.bf16.msra.mxu0 %v6222
        %7967 = vmatprep.subr.bf16.mxu0 %v6227
        %7968 = vmatpush1.bf16.msra.mxu0 %v6226
        %7969 = vmatprep.subr.bf16.mxu0 %v6231
        %7970 = vmatpush1.bf16.msra.mxu0 %v6230
        %7971 = vmatprep.subr.bf16.mxu0 %v6235
        %7972 = vmatpush1.bf16.msra.mxu0 %v6234
        %7973 = vmatprep.subr.bf16.mxu0 %v6239
        %7974 = vmatpush1.bf16.msra.mxu0 %v6238
        %7975 = vmatprep.subr.bf16.mxu0 %v6243
        %7976 = vmatpush1.bf16.msra.mxu0 %v6242
        %7977 = vmatprep.subr.bf16.mxu0 %v6247
        %7978 = vmatpush1.bf16.msra.mxu0 %v6246
        %7979 = vmatprep.subr.bf16.mxu0 %v6251
        %7980 = vmatpush1.bf16.msra.mxu0 %v6250
        %7981 = vmatprep.subr.bf16.mxu0 %v6255
        %7982 = vmatpush1.bf16.msra.mxu0 %v6254
        %7983 = vmatprep.subr.bf16.mxu0 %v6259
        %7984 = vmatpush1.bf16.msra.mxu0 %v6258
        %7985 = vmatprep.subr.bf16.mxu0 %v6263
        %7986 = vmatpush1.bf16.msra.mxu0 %v6262
        %7987 = vmatprep.subr.bf16.mxu0 %v6267
        %7988 = vmatpush1.bf16.msra.mxu0 %v6266
        %7989 = vmatprep.subr.bf16.mxu0 %v6271
        %7990 = vmatpush1.bf16.msra.mxu0 %v6270
        %7991 = vmatprep.mubr.bf16.mxu0 %v2269
        %7992 = vmatmul.mubr.bf16.gmra.mrb[0].mxu0 %v2268
        %v7993 = vpop.f32.mrb[0].mxu0
        %v7994 = vadd.f32 %v7953, %v7993
        %v7995 = vpop.f32.mrb[0].mxu0
        %v7996 = vadd.f32 %v7955, %v7995
        %v7997 = vpop.f32.mrb[0].mxu0
        %v7998 = vpop.f32.mrb[0].mxu0
        %7999 = vdwg.mxu0
        %8000 = vmatprep.subr.bf16.mxu0 %v6275
        %8001 = vmatpush1.bf16.msra.mxu0 %v6274
        %8002 = vmatprep.subr.bf16.mxu0 %v6279
        %8003 = vmatpush1.bf16.msra.mxu0 %v6278
        %8004 = vmatprep.subr.bf16.mxu0 %v6283
        %8005 = vmatpush1.bf16.msra.mxu0 %v6282
        %8006 = vmatprep.subr.bf16.mxu0 %v6287
        %8007 = vmatpush1.bf16.msra.mxu0 %v6286
        %8008 = vmatprep.subr.bf16.mxu0 %v6291
        %8009 = vmatpush1.bf16.msra.mxu0 %v6290
        %8010 = vmatprep.subr.bf16.mxu0 %v6295
        %8011 = vmatpush1.bf16.msra.mxu0 %v6294
        %8012 = vmatprep.subr.bf16.mxu0 %v6299
        %8013 = vmatpush1.bf16.msra.mxu0 %v6298
        %8014 = vmatprep.subr.bf16.mxu0 %v6303
        %8015 = vmatpush1.bf16.msra.mxu0 %v6302
        %8016 = vmatprep.subr.bf16.mxu0 %v6307
        %8017 = vmatpush1.bf16.msra.mxu0 %v6306
        %8018 = vmatprep.subr.bf16.mxu0 %v6311
        %8019 = vmatpush1.bf16.msra.mxu0 %v6310
        %8020 = vmatprep.subr.bf16.mxu0 %v6315
        %8021 = vmatpush1.bf16.msra.mxu0 %v6314
        %8022 = vmatprep.subr.bf16.mxu0 %v6319
        %8023 = vmatpush1.bf16.msra.mxu0 %v6318
        %8024 = vmatprep.subr.bf16.mxu0 %v6323
        %8025 = vmatpush1.bf16.msra.mxu0 %v6322
        %8026 = vmatprep.subr.bf16.mxu0 %v6327
        %8027 = vmatpush1.bf16.msra.mxu0 %v6326
        %8028 = vmatprep.subr.bf16.mxu0 %v6331
        %8029 = vmatpush1.bf16.msra.mxu0 %v6330
        %8030 = vmatprep.subr.bf16.mxu0 %v6335
        %8031 = vmatpush1.bf16.msra.mxu0 %v6334
        %8032 = vmatprep.mubr.bf16.mxu0 %v2271
        %8033 = vmatmul.mubr.bf16.gmra.mrb[0].mxu0 %v2270
        %v8034 = vpop.f32.mrb[0].mxu0
        %v8035 = vadd.f32 %v7994, %v8034
        %v8036 = vpop.f32.mrb[0].mxu0
        %v8037 = vadd.f32 %v7996, %v8036
        %v8038 = vpop.f32.mrb[0].mxu0
        %v8039 = vpop.f32.mrb[0].mxu0
        %8040 = vdwg.mxu0
        %8041 = vmatprep.subr.bf16.mxu0 %v6339
        %8042 = vmatpush1.bf16.msra.mxu0 %v6338
        %8043 = vmatprep.subr.bf16.mxu0 %v6343
        %8044 = vmatpush1.bf16.msra.mxu0 %v6342
        %8045 = vmatprep.subr.bf16.mxu0 %v6347
        %8046 = vmatpush1.bf16.msra.mxu0 %v6346
        %8047 = vmatprep.subr.bf16.mxu0 %v6351
        %8048 = vmatpush1.bf16.msra.mxu0 %v6350
        %8049 = vmatprep.subr.bf16.mxu0 %v6355
        %8050 = vmatpush1.bf16.msra.mxu0 %v6354
        %8051 = vmatprep.subr.bf16.mxu0 %v6359
        %8052 = vmatpush1.bf16.msra.mxu0 %v6358
        %8053 = vmatprep.subr.bf16.mxu0 %v6363
        %8054 = vmatpush1.bf16.msra.mxu0 %v6362
        %8055 = vmatprep.subr.bf16.mxu0 %v6367
        %8056 = vmatpush1.bf16.msra.mxu0 %v6366
        %8057 = vmatprep.subr.bf16.mxu0 %v6371
        %8058 = vmatpush1.bf16.msra.mxu0 %v6370
        %8059 = vmatprep.subr.bf16.mxu0 %v6375
        %8060 = vmatpush1.bf16.msra.mxu0 %v6374
        %8061 = vmatprep.subr.bf16.mxu0 %v6379
        %8062 = vmatpush1.bf16.msra.mxu0 %v6378
        %8063 = vmatprep.subr.bf16.mxu0 %v6383
        %8064 = vmatpush1.bf16.msra.mxu0 %v6382
        %8065 = vmatprep.subr.bf16.mxu0 %v6387
        %8066 = vmatpush1.bf16.msra.mxu0 %v6386
        %8067 = vmatprep.subr.bf16.mxu0 %v6391
        %8068 = vmatpush1.bf16.msra.mxu0 %v6390
        %8069 = vmatprep.subr.bf16.mxu0 %v6395
        %8070 = vmatpush1.bf16.msra.mxu0 %v6394
        %8071 = vmatprep.subr.bf16.mxu0 %v6399
        %8072 = vmatpush1.bf16.msra.mxu0 %v6398
        %8073 = vmatprep.mubr.bf16.mxu0 %v2273
        %8074 = vmatmul.mubr.bf16.gmra.mrb[0].mxu0 %v2272
        %v8075 = vpop.f32.mrb[0].mxu0
        %v8076 = vadd.f32 %v8035, %v8075
        %v8077 = vpop.f32.mrb[0].mxu0
        %v8078 = vadd.f32 %v8037, %v8077
        %v8079 = vpop.f32.mrb[0].mxu0
        %v8080 = vpop.f32.mrb[0].mxu0
        %8081 = vdwg.mxu0
        %8082 = vmatprep.subr.bf16.mxu0 %v5381
        %8083 = vmatpush1.bf16.msra.mxu0 %v5380
        %8084 = vmatprep.subr.bf16.mxu0 %v5385
        %8085 = vmatpush1.bf16.msra.mxu0 %v5384
        %8086 = vmatprep.subr.bf16.mxu0 %v5389
        %8087 = vmatpush1.bf16.msra.mxu0 %v5388
        %8088 = vmatprep.subr.bf16.mxu0 %v5393
        %8089 = vmatpush1.bf16.msra.mxu0 %v5392
        %8090 = vmatprep.subr.bf16.mxu0 %v5397
        %8091 = vmatpush1.bf16.msra.mxu0 %v5396
        %8092 = vmatprep.subr.bf16.mxu0 %v5401
        %8093 = vmatpush1.bf16.msra.mxu0 %v5400
        %8094 = vmatprep.subr.bf16.mxu0 %v5405
        %8095 = vmatpush1.bf16.msra.mxu0 %v5404
        %8096 = vmatprep.subr.bf16.mxu0 %v5409
        %8097 = vmatpush1.bf16.msra.mxu0 %v5408
        %8098 = vmatprep.subr.bf16.mxu0 %v5413
        %8099 = vmatpush1.bf16.msra.mxu0 %v5412
        %8100 = vmatprep.subr.bf16.mxu0 %v5417
        %8101 = vmatpush1.bf16.msra.mxu0 %v5416
        %8102 = vmatprep.subr.bf16.mxu0 %v5421
        %8103 = vmatpush1.bf16.msra.mxu0 %v5420
        %8104 = vmatprep.subr.bf16.mxu0 %v5425
        %8105 = vmatpush1.bf16.msra.mxu0 %v5424
        %8106 = vmatprep.subr.bf16.mxu0 %v5429
        %8107 = vmatpush1.bf16.msra.mxu0 %v5428
        %8108 = vmatprep.subr.bf16.mxu0 %v5433
        %8109 = vmatpush1.bf16.msra.mxu0 %v5432
        %8110 = vmatprep.subr.bf16.mxu0 %v5437
        %8111 = vmatpush1.bf16.msra.mxu0 %v5436
        %8112 = vmatprep.subr.bf16.mxu0 %v5441
        %8113 = vmatpush1.bf16.msra.mxu0 %v5440
        %8114 = vmatprep.mubr.bf16.mxu0 %v2243
        %8115 = vmatmul.mubr.bf16.gmra.mrb[0].mxu0 %v2242
        %v8116 = vpop.f32.mrb[0].mxu0
        %v8117 = vadd.f32 0.0, %v8116
        %v8118 = vpop.f32.mrb[0].mxu0
        %v8119 = vadd.f32 0.0, %v8118
        %v8120 = vpop.f32.mrb[0].mxu0
        %v8121 = vpop.f32.mrb[0].mxu0
        %8122 = vdwg.mxu0
        %8123 = vmatprep.subr.bf16.mxu0 %v5445
        %8124 = vmatpush1.bf16.msra.mxu0 %v5444
        %8125 = vmatprep.subr.bf16.mxu0 %v5449
        %8126 = vmatpush1.bf16.msra.mxu0 %v5448
        %8127 = vmatprep.subr.bf16.mxu0 %v5453
        %8128 = vmatpush1.bf16.msra.mxu0 %v5452
        %8129 = vmatprep.subr.bf16.mxu0 %v5457
        %8130 = vmatpush1.bf16.msra.mxu0 %v5456
        %8131 = vmatprep.subr.bf16.mxu0 %v5461
        %8132 = vmatpush1.bf16.msra.mxu0 %v5460
        %8133 = vmatprep.subr.bf16.mxu0 %v5465
        %8134 = vmatpush1.bf16.msra.mxu0 %v5464
        %8135 = vmatprep.subr.bf16.mxu0 %v5469
        %8136 = vmatpush1.bf16.msra.mxu0 %v5468
        %8137 = vmatprep.subr.bf16.mxu0 %v5473
        %8138 = vmatpush1.bf16.msra.mxu0 %v5472
        %8139 = vmatprep.subr.bf16.mxu0 %v5477
        %8140 = vmatpush1.bf16.msra.mxu0 %v5476
        %8141 = vmatprep.subr.bf16.mxu0 %v5481
        %8142 = vmatpush1.bf16.msra.mxu0 %v5480
        %8143 = vmatprep.subr.bf16.mxu0 %v5485
        %8144 = vmatpush1.bf16.msra.mxu0 %v5484
        %8145 = vmatprep.subr.bf16.mxu0 %v5489
        %8146 = vmatpush1.bf16.msra.mxu0 %v5488
        %8147 = vmatprep.subr.bf16.mxu0 %v5493
        %8148 = vmatpush1.bf16.msra.mxu0 %v5492
        %8149 = vmatprep.subr.bf16.mxu0 %v5497
        %8150 = vmatpush1.bf16.msra.mxu0 %v5496
        %8151 = vmatprep.subr.bf16.mxu0 %v5501
        %8152 = vmatpush1.bf16.msra.mxu0 %v5500
        %8153 = vmatprep.subr.bf16.mxu0 %v5505
        %8154 = vmatpush1.bf16.msra.mxu0 %v5504
        %8155 = vmatprep.mubr.bf16.mxu0 %v2245
        %8156 = vmatmul.mubr.bf16.gmra.mrb[0].mxu0 %v2244
        %v8157 = vpop.f32.mrb[0].mxu0
        %v8158 = vadd.f32 %v8117, %v8157
        %v8159 = vpop.f32.mrb[0].mxu0
        %v8160 = vadd.f32 %v8119, %v8159
        %v8161 = vpop.f32.mrb[0].mxu0
        %v8162 = vpop.f32.mrb[0].mxu0
        %8163 = vdwg.mxu0
        %8164 = vmatprep.subr.bf16.mxu0 %v5509
        %8165 = vmatpush1.bf16.msra.mxu0 %v5508
        %8166 = vmatprep.subr.bf16.mxu0 %v5513
        %8167 = vmatpush1.bf16.msra.mxu0 %v5512
        %8168 = vmatprep.subr.bf16.mxu0 %v5517
        %8169 = vmatpush1.bf16.msra.mxu0 %v5516
        %8170 = vmatprep.subr.bf16.mxu0 %v5521
        %8171 = vmatpush1.bf16.msra.mxu0 %v5520
        %8172 = vmatprep.subr.bf16.mxu0 %v5525
        %8173 = vmatpush1.bf16.msra.mxu0 %v5524
        %8174 = vmatprep.subr.bf16.mxu0 %v5529
        %8175 = vmatpush1.bf16.msra.mxu0 %v5528
        %8176 = vmatprep.subr.bf16.mxu0 %v5533
        %8177 = vmatpush1.bf16.msra.mxu0 %v5532
        %8178 = vmatprep.subr.bf16.mxu0 %v5537
        %8179 = vmatpush1.bf16.msra.mxu0 %v5536
        %8180 = vmatprep.subr.bf16.mxu0 %v5541
        %8181 = vmatpush1.bf16.msra.mxu0 %v5540
        %8182 = vmatprep.subr.bf16.mxu0 %v5545
        %8183 = vmatpush1.bf16.msra.mxu0 %v5544
        %8184 = vmatprep.subr.bf16.mxu0 %v5549
        %8185 = vmatpush1.bf16.msra.mxu0 %v5548
        %8186 = vmatprep.subr.bf16.mxu0 %v5553
        %8187 = vmatpush1.bf16.msra.mxu0 %v5552
        %8188 = vmatprep.subr.bf16.mxu0 %v5557
        %8189 = vmatpush1.bf16.msra.mxu0 %v5556
        %8190 = vmatprep.subr.bf16.mxu0 %v5561
        %8191 = vmatpush1.bf16.msra.mxu0 %v5560
        %8192 = vmatprep.subr.bf16.mxu0 %v5565
        %8193 = vmatpush1.bf16.msra.mxu0 %v5564
        %8194 = vmatprep.subr.bf16.mxu0 %v5569
        %8195 = vmatpush1.bf16.msra.mxu0 %v5568
        %8196 = vmatprep.mubr.bf16.mxu0 %v2247
        %8197 = vmatmul.mubr.bf16.gmra.mrb[0].mxu0 %v2246
        %v8198 = vpop.f32.mrb[0].mxu0
        %v8199 = vadd.f32 %v8158, %v8198
        %v8200 = vpop.f32.mrb[0].mxu0
        %v8201 = vadd.f32 %v8160, %v8200
        %v8202 = vpop.f32.mrb[0].mxu0
        %v8203 = vpop.f32.mrb[0].mxu0
        %8204 = vdwg.mxu0
        %8205 = vmatprep.subr.bf16.mxu0 %v5573
        %8206 = vmatpush1.bf16.msra.mxu0 %v5572
        %8207 = vmatprep.subr.bf16.mxu0 %v5577
        %8208 = vmatpush1.bf16.msra.mxu0 %v5576
        %8209 = vmatprep.subr.bf16.mxu0 %v5581
        %8210 = vmatpush1.bf16.msra.mxu0 %v5580
        %8211 = vmatprep.subr.bf16.mxu0 %v5585
        %8212 = vmatpush1.bf16.msra.mxu0 %v5584
        %8213 = vmatprep.subr.bf16.mxu0 %v5589
        %8214 = vmatpush1.bf16.msra.mxu0 %v5588
        %8215 = vmatprep.subr.bf16.mxu0 %v5593
        %8216 = vmatpush1.bf16.msra.mxu0 %v5592
        %8217 = vmatprep.subr.bf16.mxu0 %v5597
        %8218 = vmatpush1.bf16.msra.mxu0 %v5596
        %8219 = vmatprep.subr.bf16.mxu0 %v5601
        %8220 = vmatpush1.bf16.msra.mxu0 %v5600
        %8221 = vmatprep.subr.bf16.mxu0 %v5605
        %8222 = vmatpush1.bf16.msra.mxu0 %v5604
        %8223 = vmatprep.subr.bf16.mxu0 %v5609
        %8224 = vmatpush1.bf16.msra.mxu0 %v5608
        %8225 = vmatprep.subr.bf16.mxu0 %v5613
        %8226 = vmatpush1.bf16.msra.mxu0 %v5612
        %8227 = vmatprep.subr.bf16.mxu0 %v5617
        %8228 = vmatpush1.bf16.msra.mxu0 %v5616
        %8229 = vmatprep.subr.bf16.mxu0 %v5621
        %8230 = vmatpush1.bf16.msra.mxu0 %v5620
        %8231 = vmatprep.subr.bf16.mxu0 %v5625
        %8232 = vmatpush1.bf16.msra.mxu0 %v5624
        %8233 = vmatprep.subr.bf16.mxu0 %v5629
        %8234 = vmatpush1.bf16.msra.mxu0 %v5628
        %8235 = vmatprep.subr.bf16.mxu0 %v5633
        %8236 = vmatpush1.bf16.msra.mxu0 %v5632
        %8237 = vmatprep.mubr.bf16.mxu0 %v2249
        %8238 = vmatmul.mubr.bf16.gmra.mrb[0].mxu0 %v2248
        %v8239 = vpop.f32.mrb[0].mxu0
        %v8240 = vadd.f32 %v8199, %v8239
        %v8241 = vpop.f32.mrb[0].mxu0
        %v8242 = vadd.f32 %v8201, %v8241
        %v8243 = vpop.f32.mrb[0].mxu0
        %v8244 = vpop.f32.mrb[0].mxu0
        %8245 = vdwg.mxu0
        %8246 = vmatprep.subr.bf16.mxu0 %v5637
        %8247 = vmatpush1.bf16.msra.mxu0 %v5636
        %8248 = vmatprep.subr.bf16.mxu0 %v5641
        %8249 = vmatpush1.bf16.msra.mxu0 %v5640
        %8250 = vmatprep.subr.bf16.mxu0 %v5645
        %8251 = vmatpush1.bf16.msra.mxu0 %v5644
        %8252 = vmatprep.subr.bf16.mxu0 %v5649
        %8253 = vmatpush1.bf16.msra.mxu0 %v5648
        %8254 = vmatprep.subr.bf16.mxu0 %v5653
        %8255 = vmatpush1.bf16.msra.mxu0 %v5652
        %8256 = vmatprep.subr.bf16.mxu0 %v5657
        %8257 = vmatpush1.bf16.msra.mxu0 %v5656
        %8258 = vmatprep.subr.bf16.mxu0 %v5661
        %8259 = vmatpush1.bf16.msra.mxu0 %v5660
        %8260 = vmatprep.subr.bf16.mxu0 %v5665
        %8261 = vmatpush1.bf16.msra.mxu0 %v5664
        %8262 = vmatprep.subr.bf16.mxu0 %v5669
        %8263 = vmatpush1.bf16.msra.mxu0 %v5668
        %8264 = vmatprep.subr.bf16.mxu0 %v5673
        %8265 = vmatpush1.bf16.msra.mxu0 %v5672
        %8266 = vmatprep.subr.bf16.mxu0 %v5677
        %8267 = vmatpush1.bf16.msra.mxu0 %v5676
        %8268 = vmatprep.subr.bf16.mxu0 %v5681
        %8269 = vmatpush1.bf16.msra.mxu0 %v5680
        %8270 = vmatprep.subr.bf16.mxu0 %v5685
        %8271 = vmatpush1.bf16.msra.mxu0 %v5684
        %8272 = vmatprep.subr.bf16.mxu0 %v5689
        %8273 = vmatpush1.bf16.msra.mxu0 %v5688
        %8274 = vmatprep.subr.bf16.mxu0 %v5693
        %8275 = vmatpush1.bf16.msra.mxu0 %v5692
        %8276 = vmatprep.subr.bf16.mxu0 %v5697
        %8277 = vmatpush1.bf16.msra.mxu0 %v5696
        %8278 = vmatprep.mubr.bf16.mxu0 %v2251
        %8279 = vmatmul.mubr.bf16.gmra.mrb[0].mxu0 %v2250
        %v8280 = vpop.f32.mrb[0].mxu0
        %v8281 = vadd.f32 %v8240, %v8280
        %v8282 = vpop.f32.mrb[0].mxu0
        %v8283 = vadd.f32 %v8242, %v8282
        %v8284 = vpop.f32.mrb[0].mxu0
        %v8285 = vpop.f32.mrb[0].mxu0
        %8286 = vdwg.mxu0
        %8287 = vmatprep.subr.bf16.mxu0 %v5701
        %8288 = vmatpush1.bf16.msra.mxu0 %v5700
        %8289 = vmatprep.subr.bf16.mxu0 %v5705
        %8290 = vmatpush1.bf16.msra.mxu0 %v5704
        %8291 = vmatprep.subr.bf16.mxu0 %v5709
        %8292 = vmatpush1.bf16.msra.mxu0 %v5708
        %8293 = vmatprep.subr.bf16.mxu0 %v5713
        %8294 = vmatpush1.bf16.msra.mxu0 %v5712
        %8295 = vmatprep.subr.bf16.mxu0 %v5717
        %8296 = vmatpush1.bf16.msra.mxu0 %v5716
        %8297 = vmatprep.subr.bf16.mxu0 %v5721
        %8298 = vmatpush1.bf16.msra.mxu0 %v5720
        %8299 = vmatprep.subr.bf16.mxu0 %v5725
        %8300 = vmatpush1.bf16.msra.mxu0 %v5724
        %8301 = vmatprep.subr.bf16.mxu0 %v5729
        %8302 = vmatpush1.bf16.msra.mxu0 %v5728
        %8303 = vmatprep.subr.bf16.mxu0 %v5733
        %8304 = vmatpush1.bf16.msra.mxu0 %v5732
        %8305 = vmatprep.subr.bf16.mxu0 %v5737
        %8306 = vmatpush1.bf16.msra.mxu0 %v5736
        %8307 = vmatprep.subr.bf16.mxu0 %v5741
        %8308 = vmatpush1.bf16.msra.mxu0 %v5740
        %8309 = vmatprep.subr.bf16.mxu0 %v5745
        %8310 = vmatpush1.bf16.msra.mxu0 %v5744
        %8311 = vmatprep.subr.bf16.mxu0 %v5749
        %8312 = vmatpush1.bf16.msra.mxu0 %v5748
        %8313 = vmatprep.subr.bf16.mxu0 %v5753
        %8314 = vmatpush1.bf16.msra.mxu0 %v5752
        %8315 = vmatprep.subr.bf16.mxu0 %v5757
        %8316 = vmatpush1.bf16.msra.mxu0 %v5756
        %8317 = vmatprep.subr.bf16.mxu0 %v5761
        %8318 = vmatpush1.bf16.msra.mxu0 %v5760
        %8319 = vmatprep.mubr.bf16.mxu0 %v2253
        %8320 = vmatmul.mubr.bf16.gmra.mrb[0].mxu0 %v2252
        %v8321 = vpop.f32.mrb[0].mxu0
        %v8322 = vadd.f32 %v8281, %v8321
        %v8323 = vpop.f32.mrb[0].mxu0
        %v8324 = vadd.f32 %v8283, %v8323
        %v8325 = vpop.f32.mrb[0].mxu0
        %v8326 = vpop.f32.mrb[0].mxu0
        %8327 = vdwg.mxu0
        %8328 = vmatprep.subr.bf16.mxu0 %v5765
        %8329 = vmatpush1.bf16.msra.mxu0 %v5764
        %8330 = vmatprep.subr.bf16.mxu0 %v5769
        %8331 = vmatpush1.bf16.msra.mxu0 %v5768
        %8332 = vmatprep.subr.bf16.mxu0 %v5773
        %8333 = vmatpush1.bf16.msra.mxu0 %v5772
        %8334 = vmatprep.subr.bf16.mxu0 %v5777
        %8335 = vmatpush1.bf16.msra.mxu0 %v5776
        %8336 = vmatprep.subr.bf16.mxu0 %v5781
        %8337 = vmatpush1.bf16.msra.mxu0 %v5780
        %8338 = vmatprep.subr.bf16.mxu0 %v5785
        %8339 = vmatpush1.bf16.msra.mxu0 %v5784
        %8340 = vmatprep.subr.bf16.mxu0 %v5789
        %8341 = vmatpush1.bf16.msra.mxu0 %v5788
        %8342 = vmatprep.subr.bf16.mxu0 %v5793
        %8343 = vmatpush1.bf16.msra.mxu0 %v5792
        %8344 = vmatprep.subr.bf16.mxu0 %v5797
        %8345 = vmatpush1.bf16.msra.mxu0 %v5796
        %8346 = vmatprep.subr.bf16.mxu0 %v5801
        %8347 = vmatpush1.bf16.msra.mxu0 %v5800
        %8348 = vmatprep.subr.bf16.mxu0 %v5805
        %8349 = vmatpush1.bf16.msra.mxu0 %v5804
        %8350 = vmatprep.subr.bf16.mxu0 %v5809
        %8351 = vmatpush1.bf16.msra.mxu0 %v5808
        %8352 = vmatprep.subr.bf16.mxu0 %v5813
        %8353 = vmatpush1.bf16.msra.mxu0 %v5812
        %8354 = vmatprep.subr.bf16.mxu0 %v5817
        %8355 = vmatpush1.bf16.msra.mxu0 %v5816
        %8356 = vmatprep.subr.bf16.mxu0 %v5821
        %8357 = vmatpush1.bf16.msra.mxu0 %v5820
        %8358 = vmatprep.subr.bf16.mxu0 %v5825
        %8359 = vmatpush1.bf16.msra.mxu0 %v5824
        %8360 = vmatprep.mubr.bf16.mxu0 %v2255
        %8361 = vmatmul.mubr.bf16.gmra.mrb[0].mxu0 %v2254
        %v8362 = vpop.f32.mrb[0].mxu0
        %v8363 = vadd.f32 %v8322, %v8362
        %v8364 = vpop.f32.mrb[0].mxu0
        %v8365 = vadd.f32 %v8324, %v8364
        %v8366 = vpop.f32.mrb[0].mxu0
        %v8367 = vpop.f32.mrb[0].mxu0
        %8368 = vdwg.mxu0
        %8369 = vmatprep.subr.bf16.mxu0 %v5829
        %8370 = vmatpush1.bf16.msra.mxu0 %v5828
        %8371 = vmatprep.subr.bf16.mxu0 %v5833
        %8372 = vmatpush1.bf16.msra.mxu0 %v5832
        %8373 = vmatprep.subr.bf16.mxu0 %v5837
        %8374 = vmatpush1.bf16.msra.mxu0 %v5836
        %8375 = vmatprep.subr.bf16.mxu0 %v5841
        %8376 = vmatpush1.bf16.msra.mxu0 %v5840
        %8377 = vmatprep.subr.bf16.mxu0 %v5845
        %8378 = vmatpush1.bf16.msra.mxu0 %v5844
        %8379 = vmatprep.subr.bf16.mxu0 %v5849
        %8380 = vmatpush1.bf16.msra.mxu0 %v5848
        %8381 = vmatprep.subr.bf16.mxu0 %v5853
        %8382 = vmatpush1.bf16.msra.mxu0 %v5852
        %8383 = vmatprep.subr.bf16.mxu0 %v5857
        %8384 = vmatpush1.bf16.msra.mxu0 %v5856
        %8385 = vmatprep.subr.bf16.mxu0 %v5861
        %8386 = vmatpush1.bf16.msra.mxu0 %v5860
        %8387 = vmatprep.subr.bf16.mxu0 %v5865
        %8388 = vmatpush1.bf16.msra.mxu0 %v5864
        %8389 = vmatprep.subr.bf16.mxu0 %v5869
        %8390 = vmatpush1.bf16.msra.mxu0 %v5868
        %8391 = vmatprep.subr.bf16.mxu0 %v5873
        %8392 = vmatpush1.bf16.msra.mxu0 %v5872
        %8393 = vmatprep.subr.bf16.mxu0 %v5877
        %8394 = vmatpush1.bf16.msra.mxu0 %v5876
        %8395 = vmatprep.subr.bf16.mxu0 %v5881
        %8396 = vmatpush1.bf16.msra.mxu0 %v5880
        %8397 = vmatprep.subr.bf16.mxu0 %v5885
        %8398 = vmatpush1.bf16.msra.mxu0 %v5884
        %8399 = vmatprep.subr.bf16.mxu0 %v5889
        %8400 = vmatpush1.bf16.msra.mxu0 %v5888
        %8401 = vmatprep.mubr.bf16.mxu0 %v2257
        %8402 = vmatmul.mubr.bf16.gmra.mrb[0].mxu0 %v2256
        %v8403 = vpop.f32.mrb[0].mxu0
        %v8404 = vadd.f32 %v8363, %v8403
        %v8405 = vpop.f32.mrb[0].mxu0
        %v8406 = vadd.f32 %v8365, %v8405
        %v8407 = vpop.f32.mrb[0].mxu0
        %v8408 = vpop.f32.mrb[0].mxu0
        %8409 = vdwg.mxu0
        %8410 = vmatprep.subr.bf16.mxu0 %v5893
        %8411 = vmatpush1.bf16.msra.mxu0 %v5892
        %8412 = vmatprep.subr.bf16.mxu0 %v5897
        %8413 = vmatpush1.bf16.msra.mxu0 %v5896
        %8414 = vmatprep.subr.bf16.mxu0 %v5901
        %8415 = vmatpush1.bf16.msra.mxu0 %v5900
        %8416 = vmatprep.subr.bf16.mxu0 %v5905
        %8417 = vmatpush1.bf16.msra.mxu0 %v5904
        %8418 = vmatprep.subr.bf16.mxu0 %v5909
        %8419 = vmatpush1.bf16.msra.mxu0 %v5908
        %8420 = vmatprep.subr.bf16.mxu0 %v5913
        %8421 = vmatpush1.bf16.msra.mxu0 %v5912
        %8422 = vmatprep.subr.bf16.mxu0 %v5917
        %8423 = vmatpush1.bf16.msra.mxu0 %v5916
        %8424 = vmatprep.subr.bf16.mxu0 %v5921
        %8425 = vmatpush1.bf16.msra.mxu0 %v5920
        %8426 = vmatprep.subr.bf16.mxu0 %v5925
        %8427 = vmatpush1.bf16.msra.mxu0 %v5924
        %8428 = vmatprep.subr.bf16.mxu0 %v5929
        %8429 = vmatpush1.bf16.msra.mxu0 %v5928
        %8430 = vmatprep.subr.bf16.mxu0 %v5933
        %8431 = vmatpush1.bf16.msra.mxu0 %v5932
        %8432 = vmatprep.subr.bf16.mxu0 %v5937
        %8433 = vmatpush1.bf16.msra.mxu0 %v5936
        %8434 = vmatprep.subr.bf16.mxu0 %v5941
        %8435 = vmatpush1.bf16.msra.mxu0 %v5940
        %8436 = vmatprep.subr.bf16.mxu0 %v5945
        %8437 = vmatpush1.bf16.msra.mxu0 %v5944
        %8438 = vmatprep.subr.bf16.mxu0 %v5949
        %8439 = vmatpush1.bf16.msra.mxu0 %v5948
        %8440 = vmatprep.subr.bf16.mxu0 %v5953
        %8441 = vmatpush1.bf16.msra.mxu0 %v5952
        %8442 = vmatprep.mubr.bf16.mxu0 %v2259
        %8443 = vmatmul.mubr.bf16.gmra.mrb[0].mxu0 %v2258
        %v8444 = vpop.f32.mrb[0].mxu0
        %v8445 = vadd.f32 %v8404, %v8444
        %v8446 = vpop.f32.mrb[0].mxu0
        %v8447 = vadd.f32 %v8406, %v8446
        %v8448 = vpop.f32.mrb[0].mxu0
        %v8449 = vpop.f32.mrb[0].mxu0
        %8450 = vdwg.mxu0
        %8451 = vmatprep.subr.bf16.mxu0 %v5957
        %8452 = vmatpush1.bf16.msra.mxu0 %v5956
        %8453 = vmatprep.subr.bf16.mxu0 %v5961
        %8454 = vmatpush1.bf16.msra.mxu0 %v5960
        %8455 = vmatprep.subr.bf16.mxu0 %v5965
        %8456 = vmatpush1.bf16.msra.mxu0 %v5964
        %8457 = vmatprep.subr.bf16.mxu0 %v5969
        %8458 = vmatpush1.bf16.msra.mxu0 %v5968
        %8459 = vmatprep.subr.bf16.mxu0 %v5973
        %8460 = vmatpush1.bf16.msra.mxu0 %v5972
        %8461 = vmatprep.subr.bf16.mxu0 %v5977
        %8462 = vmatpush1.bf16.msra.mxu0 %v5976
        %8463 = vmatprep.subr.bf16.mxu0 %v5981
        %8464 = vmatpush1.bf16.msra.mxu0 %v5980
        %8465 = vmatprep.subr.bf16.mxu0 %v5985
        %8466 = vmatpush1.bf16.msra.mxu0 %v5984
        %8467 = vmatprep.subr.bf16.mxu0 %v5989
        %8468 = vmatpush1.bf16.msra.mxu0 %v5988
        %8469 = vmatprep.subr.bf16.mxu0 %v5993
        %8470 = vmatpush1.bf16.msra.mxu0 %v5992
        %8471 = vmatprep.subr.bf16.mxu0 %v5997
        %8472 = vmatpush1.bf16.msra.mxu0 %v5996
        %8473 = vmatprep.subr.bf16.mxu0 %v6001
        %8474 = vmatpush1.bf16.msra.mxu0 %v6000
        %8475 = vmatprep.subr.bf16.mxu0 %v6005
        %8476 = vmatpush1.bf16.msra.mxu0 %v6004
        %8477 = vmatprep.subr.bf16.mxu0 %v6009
        %8478 = vmatpush1.bf16.msra.mxu0 %v6008
        %8479 = vmatprep.subr.bf16.mxu0 %v6013
        %8480 = vmatpush1.bf16.msra.mxu0 %v6012
        %8481 = vmatprep.subr.bf16.mxu0 %v6017
        %8482 = vmatpush1.bf16.msra.mxu0 %v6016
        %8483 = vmatprep.mubr.bf16.mxu0 %v2261
        %8484 = vmatmul.mubr.bf16.gmra.mrb[0].mxu0 %v2260
        %v8485 = vpop.f32.mrb[0].mxu0
        %v8486 = vadd.f32 %v8445, %v8485
        %v8487 = vpop.f32.mrb[0].mxu0
        %v8488 = vadd.f32 %v8447, %v8487
        %v8489 = vpop.f32.mrb[0].mxu0
        %v8490 = vpop.f32.mrb[0].mxu0
        %8491 = vdwg.mxu0
        %8492 = vmatprep.subr.bf16.mxu0 %v6021
        %8493 = vmatpush1.bf16.msra.mxu0 %v6020
        %8494 = vmatprep.subr.bf16.mxu0 %v6025
        %8495 = vmatpush1.bf16.msra.mxu0 %v6024
        %8496 = vmatprep.subr.bf16.mxu0 %v6029
        %8497 = vmatpush1.bf16.msra.mxu0 %v6028
        %8498 = vmatprep.subr.bf16.mxu0 %v6033
        %8499 = vmatpush1.bf16.msra.mxu0 %v6032
        %8500 = vmatprep.subr.bf16.mxu0 %v6037
        %8501 = vmatpush1.bf16.msra.mxu0 %v6036
        %8502 = vmatprep.subr.bf16.mxu0 %v6041
        %8503 = vmatpush1.bf16.msra.mxu0 %v6040
        %8504 = vmatprep.subr.bf16.mxu0 %v6045
        %8505 = vmatpush1.bf16.msra.mxu0 %v6044
        %8506 = vmatprep.subr.bf16.mxu0 %v6049
        %8507 = vmatpush1.bf16.msra.mxu0 %v6048
        %8508 = vmatprep.subr.bf16.mxu0 %v6053
        %8509 = vmatpush1.bf16.msra.mxu0 %v6052
        %8510 = vmatprep.subr.bf16.mxu0 %v6057
        %8511 = vmatpush1.bf16.msra.mxu0 %v6056
        %8512 = vmatprep.subr.bf16.mxu0 %v6061
        %8513 = vmatpush1.bf16.msra.mxu0 %v6060
        %8514 = vmatprep.subr.bf16.mxu0 %v6065
        %8515 = vmatpush1.bf16.msra.mxu0 %v6064
        %8516 = vmatprep.subr.bf16.mxu0 %v6069
        %8517 = vmatpush1.bf16.msra.mxu0 %v6068
        %8518 = vmatprep.subr.bf16.mxu0 %v6073
        %8519 = vmatpush1.bf16.msra.mxu0 %v6072
        %8520 = vmatprep.subr.bf16.mxu0 %v6077
        %8521 = vmatpush1.bf16.msra.mxu0 %v6076
        %8522 = vmatprep.subr.bf16.mxu0 %v6081
        %8523 = vmatpush1.bf16.msra.mxu0 %v6080
        %8524 = vmatprep.mubr.bf16.mxu0 %v2263
        %8525 = vmatmul.mubr.bf16.gmra.mrb[0].mxu0 %v2262
        %v8526 = vpop.f32.mrb[0].mxu0
        %v8527 = vadd.f32 %v8486, %v8526
        %v8528 = vpop.f32.mrb[0].mxu0
        %v8529 = vadd.f32 %v8488, %v8528
        %v8530 = vpop.f32.mrb[0].mxu0
        %v8531 = vpop.f32.mrb[0].mxu0
        %8532 = vdwg.mxu0
        %8533 = vmatprep.subr.bf16.mxu0 %v6085
        %8534 = vmatpush1.bf16.msra.mxu0 %v6084
        %8535 = vmatprep.subr.bf16.mxu0 %v6089
        %8536 = vmatpush1.bf16.msra.mxu0 %v6088
        %8537 = vmatprep.subr.bf16.mxu0 %v6093
        %8538 = vmatpush1.bf16.msra.mxu0 %v6092
        %8539 = vmatprep.subr.bf16.mxu0 %v6097
        %8540 = vmatpush1.bf16.msra.mxu0 %v6096
        %8541 = vmatprep.subr.bf16.mxu0 %v6101
        %8542 = vmatpush1.bf16.msra.mxu0 %v6100
        %8543 = vmatprep.subr.bf16.mxu0 %v6105
        %8544 = vmatpush1.bf16.msra.mxu0 %v6104
        %8545 = vmatprep.subr.bf16.mxu0 %v6109
        %8546 = vmatpush1.bf16.msra.mxu0 %v6108
        %8547 = vmatprep.subr.bf16.mxu0 %v6113
        %8548 = vmatpush1.bf16.msra.mxu0 %v6112
        %8549 = vmatprep.subr.bf16.mxu0 %v6117
        %8550 = vmatpush1.bf16.msra.mxu0 %v6116
        %8551 = vmatprep.subr.bf16.mxu0 %v6121
        %8552 = vmatpush1.bf16.msra.mxu0 %v6120
        %8553 = vmatprep.subr.bf16.mxu0 %v6125
        %8554 = vmatpush1.bf16.msra.mxu0 %v6124
        %8555 = vmatprep.subr.bf16.mxu0 %v6129
        %8556 = vmatpush1.bf16.msra.mxu0 %v6128
        %8557 = vmatprep.subr.bf16.mxu0 %v6133
        %8558 = vmatpush1.bf16.msra.mxu0 %v6132
        %8559 = vmatprep.subr.bf16.mxu0 %v6137
        %8560 = vmatpush1.bf16.msra.mxu0 %v6136
        %8561 = vmatprep.subr.bf16.mxu0 %v6141
        %8562 = vmatpush1.bf16.msra.mxu0 %v6140
        %8563 = vmatprep.subr.bf16.mxu0 %v6145
        %8564 = vmatpush1.bf16.msra.mxu0 %v6144
        %8565 = vmatprep.mubr.bf16.mxu0 %v2265
        %8566 = vmatmul.mubr.bf16.gmra.mrb[0].mxu0 %v2264
        %v8567 = vpop.f32.mrb[0].mxu0
        %v8568 = vadd.f32 %v8527, %v8567
        %v8569 = vpop.f32.mrb[0].mxu0
        %v8570 = vadd.f32 %v8529, %v8569
        %v8571 = vpop.f32.mrb[0].mxu0
        %v8572 = vpop.f32.mrb[0].mxu0
        %8573 = vdwg.mxu0
        %8574 = vmatprep.subr.bf16.mxu0 %v6149
        %8575 = vmatpush1.bf16.msra.mxu0 %v6148
        %8576 = vmatprep.subr.bf16.mxu0 %v6153
        %8577 = vmatpush1.bf16.msra.mxu0 %v6152
        %8578 = vmatprep.subr.bf16.mxu0 %v6157
        %8579 = vmatpush1.bf16.msra.mxu0 %v6156
        %8580 = vmatprep.subr.bf16.mxu0 %v6161
        %8581 = vmatpush1.bf16.msra.mxu0 %v6160
        %8582 = vmatprep.subr.bf16.mxu0 %v6165
        %8583 = vmatpush1.bf16.msra.mxu0 %v6164
        %8584 = vmatprep.subr.bf16.mxu0 %v6169
        %8585 = vmatpush1.bf16.msra.mxu0 %v6168
        %8586 = vmatprep.subr.bf16.mxu0 %v6173
        %8587 = vmatpush1.bf16.msra.mxu0 %v6172
        %8588 = vmatprep.subr.bf16.mxu0 %v6177
        %8589 = vmatpush1.bf16.msra.mxu0 %v6176
        %8590 = vmatprep.subr.bf16.mxu0 %v6181
        %8591 = vmatpush1.bf16.msra.mxu0 %v6180
        %8592 = vmatprep.subr.bf16.mxu0 %v6185
        %8593 = vmatpush1.bf16.msra.mxu0 %v6184
        %8594 = vmatprep.subr.bf16.mxu0 %v6189
        %8595 = vmatpush1.bf16.msra.mxu0 %v6188
        %8596 = vmatprep.subr.bf16.mxu0 %v6193
        %8597 = vmatpush1.bf16.msra.mxu0 %v6192
        %8598 = vmatprep.subr.bf16.mxu0 %v6197
        %8599 = vmatpush1.bf16.msra.mxu0 %v6196
        %8600 = vmatprep.subr.bf16.mxu0 %v6201
        %8601 = vmatpush1.bf16.msra.mxu0 %v6200
        %8602 = vmatprep.subr.bf16.mxu0 %v6205
        %8603 = vmatpush1.bf16.msra.mxu0 %v6204
        %8604 = vmatprep.subr.bf16.mxu0 %v6209
        %8605 = vmatpush1.bf16.msra.mxu0 %v6208
        %8606 = vmatprep.mubr.bf16.mxu0 %v2267
        %8607 = vmatmul.mubr.bf16.gmra.mrb[0].mxu0 %v2266
        %v8608 = vpop.f32.mrb[0].mxu0
        %v8609 = vadd.f32 %v8568, %v8608
        %v8610 = vpop.f32.mrb[0].mxu0
        %v8611 = vadd.f32 %v8570, %v8610
        %v8612 = vpop.f32.mrb[0].mxu0
        %v8613 = vpop.f32.mrb[0].mxu0
        %8614 = vdwg.mxu0
        %8615 = vmatprep.subr.bf16.mxu0 %v6213
        %8616 = vmatpush1.bf16.msra.mxu0 %v6212
        %8617 = vmatprep.subr.bf16.mxu0 %v6217
        %8618 = vmatpush1.bf16.msra.mxu0 %v6216
        %8619 = vmatprep.subr.bf16.mxu0 %v6221
        %8620 = vmatpush1.bf16.msra.mxu0 %v6220
        %8621 = vmatprep.subr.bf16.mxu0 %v6225
        %8622 = vmatpush1.bf16.msra.mxu0 %v6224
        %8623 = vmatprep.subr.bf16.mxu0 %v6229
        %8624 = vmatpush1.bf16.msra.mxu0 %v6228
        %8625 = vmatprep.subr.bf16.mxu0 %v6233
        %8626 = vmatpush1.bf16.msra.mxu0 %v6232
        %8627 = vmatprep.subr.bf16.mxu0 %v6237
        %8628 = vmatpush1.bf16.msra.mxu0 %v6236
        %8629 = vmatprep.subr.bf16.mxu0 %v6241
        %8630 = vmatpush1.bf16.msra.mxu0 %v6240
        %8631 = vmatprep.subr.bf16.mxu0 %v6245
        %8632 = vmatpush1.bf16.msra.mxu0 %v6244
        %8633 = vmatprep.subr.bf16.mxu0 %v6249
        %8634 = vmatpush1.bf16.msra.mxu0 %v6248
        %8635 = vmatprep.subr.bf16.mxu0 %v6253
        %8636 = vmatpush1.bf16.msra.mxu0 %v6252
        %8637 = vmatprep.subr.bf16.mxu0 %v6257
        %8638 = vmatpush1.bf16.msra.mxu0 %v6256
        %8639 = vmatprep.subr.bf16.mxu0 %v6261
        %8640 = vmatpush1.bf16.msra.mxu0 %v6260
        %8641 = vmatprep.subr.bf16.mxu0 %v6265
        %8642 = vmatpush1.bf16.msra.mxu0 %v6264
        %8643 = vmatprep.subr.bf16.mxu0 %v6269
        %8644 = vmatpush1.bf16.msra.mxu0 %v6268
        %8645 = vmatprep.subr.bf16.mxu0 %v6273
        %8646 = vmatpush1.bf16.msra.mxu0 %v6272
        %8647 = vmatprep.mubr.bf16.mxu0 %v2269
        %8648 = vmatmul.mubr.bf16.gmra.mrb[0].mxu0 %v2268
        %v8649 = vpop.f32.mrb[0].mxu0
        %v8650 = vadd.f32 %v8609, %v8649
        %v8651 = vpop.f32.mrb[0].mxu0
        %v8652 = vadd.f32 %v8611, %v8651
        %v8653 = vpop.f32.mrb[0].mxu0
        %v8654 = vpop.f32.mrb[0].mxu0
        %8655 = vdwg.mxu0
        %8656 = vmatprep.subr.bf16.mxu0 %v6277
        %8657 = vmatpush1.bf16.msra.mxu0 %v6276
        %8658 = vmatprep.subr.bf16.mxu0 %v6281
        %8659 = vmatpush1.bf16.msra.mxu0 %v6280
        %8660 = vmatprep.subr.bf16.mxu0 %v6285
        %8661 = vmatpush1.bf16.msra.mxu0 %v6284
        %8662 = vmatprep.subr.bf16.mxu0 %v6289
        %8663 = vmatpush1.bf16.msra.mxu0 %v6288
        %8664 = vmatprep.subr.bf16.mxu0 %v6293
        %8665 = vmatpush1.bf16.msra.mxu0 %v6292
        %8666 = vmatprep.subr.bf16.mxu0 %v6297
        %8667 = vmatpush1.bf16.msra.mxu0 %v6296
        %8668 = vmatprep.subr.bf16.mxu0 %v6301
        %8669 = vmatpush1.bf16.msra.mxu0 %v6300
        %8670 = vmatprep.subr.bf16.mxu0 %v6305
        %8671 = vmatpush1.bf16.msra.mxu0 %v6304
        %8672 = vmatprep.subr.bf16.mxu0 %v6309
        %8673 = vmatpush1.bf16.msra.mxu0 %v6308
        %8674 = vmatprep.subr.bf16.mxu0 %v6313
        %8675 = vmatpush1.bf16.msra.mxu0 %v6312
        %8676 = vmatprep.subr.bf16.mxu0 %v6317
        %8677 = vmatpush1.bf16.msra.mxu0 %v6316
        %8678 = vmatprep.subr.bf16.mxu0 %v6321
        %8679 = vmatpush1.bf16.msra.mxu0 %v6320
        %8680 = vmatprep.subr.bf16.mxu0 %v6325
        %8681 = vmatpush1.bf16.msra.mxu0 %v6324
        %8682 = vmatprep.subr.bf16.mxu0 %v6329
        %8683 = vmatpush1.bf16.msra.mxu0 %v6328
        %8684 = vmatprep.subr.bf16.mxu0 %v6333
        %8685 = vmatpush1.bf16.msra.mxu0 %v6332
        %8686 = vmatprep.subr.bf16.mxu0 %v6337
        %8687 = vmatpush1.bf16.msra.mxu0 %v6336
        %8688 = vmatprep.mubr.bf16.mxu0 %v2271
        %8689 = vmatmul.mubr.bf16.gmra.mrb[0].mxu0 %v2270
        %v8690 = vpop.f32.mrb[0].mxu0
        %v8691 = vadd.f32 %v8650, %v8690
        %v8692 = vpop.f32.mrb[0].mxu0
        %v8693 = vadd.f32 %v8652, %v8692
        %v8694 = vpop.f32.mrb[0].mxu0
        %v8695 = vpop.f32.mrb[0].mxu0
        %8696 = vdwg.mxu0
        %8697 = vmatprep.subr.bf16.mxu0 %v6341
        %8698 = vmatpush1.bf16.msra.mxu0 %v6340
        %8699 = vmatprep.subr.bf16.mxu0 %v6345
        %8700 = vmatpush1.bf16.msra.mxu0 %v6344
        %8701 = vmatprep.subr.bf16.mxu0 %v6349
        %8702 = vmatpush1.bf16.msra.mxu0 %v6348
        %8703 = vmatprep.subr.bf16.mxu0 %v6353
        %8704 = vmatpush1.bf16.msra.mxu0 %v6352
        %8705 = vmatprep.subr.bf16.mxu0 %v6357
        %8706 = vmatpush1.bf16.msra.mxu0 %v6356
        %8707 = vmatprep.subr.bf16.mxu0 %v6361
        %8708 = vmatpush1.bf16.msra.mxu0 %v6360
        %8709 = vmatprep.subr.bf16.mxu0 %v6365
        %8710 = vmatpush1.bf16.msra.mxu0 %v6364
        %8711 = vmatprep.subr.bf16.mxu0 %v6369
        %8712 = vmatpush1.bf16.msra.mxu0 %v6368
        %8713 = vmatprep.subr.bf16.mxu0 %v6373
        %8714 = vmatpush1.bf16.msra.mxu0 %v6372
        %8715 = vmatprep.subr.bf16.mxu0 %v6377
        %8716 = vmatpush1.bf16.msra.mxu0 %v6376
        %8717 = vmatprep.subr.bf16.mxu0 %v6381
        %8718 = vmatpush1.bf16.msra.mxu0 %v6380
        %8719 = vmatprep.subr.bf16.mxu0 %v6385
        %8720 = vmatpush1.bf16.msra.mxu0 %v6384
        %8721 = vmatprep.subr.bf16.mxu0 %v6389
        %8722 = vmatpush1.bf16.msra.mxu0 %v6388
        %8723 = vmatprep.subr.bf16.mxu0 %v6393
        %8724 = vmatpush1.bf16.msra.mxu0 %v6392
        %8725 = vmatprep.subr.bf16.mxu0 %v6397
        %8726 = vmatpush1.bf16.msra.mxu0 %v6396
        %8727 = vmatprep.subr.bf16.mxu0 %v6401
        %8728 = vmatpush1.bf16.msra.mxu0 %v6400
        %8729 = vmatprep.mubr.bf16.mxu0 %v2273
        %8730 = vmatmul.mubr.bf16.gmra.mrb[0].mxu0 %v2272
        %v8731 = vpop.f32.mrb[0].mxu0
        %v8732 = vadd.f32 %v8691, %v8731
        %v8733 = vpop.f32.mrb[0].mxu0
        %v8734 = vadd.f32 %v8693, %v8733
        %v8735 = vpop.f32.mrb[0].mxu0
        %v8736 = vpop.f32.mrb[0].mxu0
        %8737 = vdwg.mxu0
        %v8742 = vcombine.low %v8076, %v8078
        %v8743 = vcombine.low %v8732, %v8734
        %v8745 = vunpack.c.l.s4 1983009808
        %v8746 = vunpack.c.0.s8 %v8745
        %v8747 = vlaneseq
        %v8748 = vshrl.u32 %v8747, 7
        %v8749 = vsub.s32 %v8746, %v8748
        %v8750 = vrot.slane %v8742, %v8749
        %v8752 = vunpack.c.l.s4 1983009808
        %v8753 = vunpack.c.0.s8 %v8752
        %v8754 = vlaneseq
        %v8755 = vshrl.u32 %v8754, 7
        %v8756 = vsub.s32 %v8753, %v8755
        %v8757 = vrot.slane %v8743, %v8756
        %v8758 = vcombine.low %v8750, %v8757
        %v8760 = vadd.f32 %v992, %v8758
        %8761 = vst [vmem:[#allocation2] sm:$0xff] %v8760
        %p8762 = scmp.eq.s32.totalorder %s24, 3
        // Predicated region
        $region61: #{tpu_custom_call.1} parent=39 // pred_check
          %p8763 = pneg %p8762
        $region62: #{tpu_custom_call.1} parent=39 // pred_check_branch
          %8765 = sbr.rel (%p8763) target = $region64
        $region63: #{tpu_custom_call.1} parent=39 // pred_region
          %v8766 = vld [vmem:[#allocation2] sm:$0xff]
          %v8767 = vld [vmem:[#allocation8] sm:$0xf]
          %v8769 = vlaneseq
          %v8770 = vshrl.u32 %v8769, 7
          %v8771 = vsub.s32 0, %v8770
          %v8772 = vrot.slane %v8767, %v8771
          %v8773 = vlaneseq
          %v8774 = vshrl.u32 %v8773, 7
          %v8775 = vsub.s32 1, %v8774
          %v8776 = vrot.slane %v8767, %v8775
          %v8777 = vlaneseq
          %v8778 = vshrl.u32 %v8777, 7
          %v8779 = vsub.s32 2, %v8778
          %v8780 = vrot.slane %v8767, %v8779
          %v8781 = vlaneseq
          %v8782 = vshrl.u32 %v8781, 7
          %v8783 = vsub.s32 3, %v8782
          %v8784 = vrot.slane %v8767, %v8783
          %v8785 = vcombine.low %v8772, %v8776
          %v8786 = vcombine.low %v8780, %v8784
          %v8788 = vunpack.c.l.s4 1983009808
          %v8789 = vunpack.c.0.s8 %v8788
          %v8790 = vlaneseq
          %v8791 = vshrl.u32 %v8790, 7
          %v8792 = vsub.s32 %v8789, %v8791
          %v8793 = vrot.slane %v8785, %v8792
          %v8795 = vunpack.c.l.s4 1983009808
          %v8796 = vunpack.c.0.s8 %v8795
          %v8797 = vlaneseq
          %v8798 = vshrl.u32 %v8797, 7
          %v8799 = vsub.s32 %v8796, %v8798
          %v8800 = vrot.slane %v8786, %v8799
          %v8801 = vcombine.low %v8793, %v8800
          %v8803 = vadd.f32 %v8766, %v8801
          %v8804 = vmax.f32 %v8803, 0.0
          %v8805 = vld [vmem:[%s3] sm:$0xff]
          %v8806 = vld [vmem:[%s3 + $0x8] sm:$0xff]
          %v8807 = vld [vmem:[%s3 + $0x10] sm:$0xff]
          %v8808 = vld [vmem:[%s3 + $0x18] sm:$0xff]
          %v8809 = vld [vmem:[%s3 + $0x20] sm:$0xff]
          %v8810 = vld [vmem:[%s3 + $0x28] sm:$0xff]
          %v8811 = vld [vmem:[%s3 + $0x30] sm:$0xff]
          %v8812 = vld [vmem:[%s3 + $0x38] sm:$0xff]
          %v8813 = vld [vmem:[%s3 + $0x40] sm:$0xff]
          %v8814 = vld [vmem:[%s3 + $0x48] sm:$0xff]
          %v8815 = vld [vmem:[%s3 + $0x50] sm:$0xff]
          %v8816 = vld [vmem:[%s3 + $0x58] sm:$0xff]
          %v8817 = vld [vmem:[%s3 + $0x60] sm:$0xff]
          %v8818 = vld [vmem:[%s3 + $0x68] sm:$0xff]
          %v8819 = vld [vmem:[%s3 + $0x70] sm:$0xff]
          %v8820 = vld [vmem:[%s3 + $0x78] sm:$0xff]
          %v8821 = vld [vmem:[%s3 + $0x80] sm:$0xff]
          %v8822 = vld [vmem:[%s3 + $0x88] sm:$0xff]
          %v8823 = vld [vmem:[%s3 + $0x90] sm:$0xff]
          %v8824 = vld [vmem:[%s3 + $0x98] sm:$0xff]
          %v8825 = vld [vmem:[%s3 + $0xa0] sm:$0xff]
          %v8826 = vld [vmem:[%s3 + $0xa8] sm:$0xff]
          %v8827 = vld [vmem:[%s3 + $0xb0] sm:$0xff]
          %v8828 = vld [vmem:[%s3 + $0xb8] sm:$0xff]
          %v8829 = vld [vmem:[%s3 + $0xc0] sm:$0xff]
          %v8830 = vld [vmem:[%s3 + $0xc8] sm:$0xff]
          %v8831 = vld [vmem:[%s3 + $0xd0] sm:$0xff]
          %v8832 = vld [vmem:[%s3 + $0xd8] sm:$0xff]
          %v8833 = vld [vmem:[%s3 + $0xe0] sm:$0xff]
          %v8834 = vld [vmem:[%s3 + $0xe8] sm:$0xff]
          %v8835 = vld [vmem:[%s3 + $0xf0] sm:$0xff]
          %v8836 = vld [vmem:[%s3 + $0xf8] sm:$0xff]
          %v8837 = vld [vmem:[%s3 + $0x100] sm:$0xff]
          %v8838 = vld [vmem:[%s3 + $0x108] sm:$0xff]
          %v8839 = vld [vmem:[%s3 + $0x110] sm:$0xff]
          %v8840 = vld [vmem:[%s3 + $0x118] sm:$0xff]
          %v8841 = vld [vmem:[%s3 + $0x120] sm:$0xff]
          %v8842 = vld [vmem:[%s3 + $0x128] sm:$0xff]
          %v8843 = vld [vmem:[%s3 + $0x130] sm:$0xff]
          %v8844 = vld [vmem:[%s3 + $0x138] sm:$0xff]
          %v8845 = vld [vmem:[%s3 + $0x140] sm:$0xff]
          %v8846 = vld [vmem:[%s3 + $0x148] sm:$0xff]
          %v8847 = vld [vmem:[%s3 + $0x150] sm:$0xff]
          %v8848 = vld [vmem:[%s3 + $0x158] sm:$0xff]
          %v8849 = vld [vmem:[%s3 + $0x160] sm:$0xff]
          %v8850 = vld [vmem:[%s3 + $0x168] sm:$0xff]
          %v8851 = vld [vmem:[%s3 + $0x170] sm:$0xff]
          %v8852 = vld [vmem:[%s3 + $0x178] sm:$0xff]
          %v8853 = vld [vmem:[%s3 + $0x180] sm:$0xff]
          %v8854 = vld [vmem:[%s3 + $0x188] sm:$0xff]
          %v8855 = vld [vmem:[%s3 + $0x190] sm:$0xff]
          %v8856 = vld [vmem:[%s3 + $0x198] sm:$0xff]
          %v8857 = vld [vmem:[%s3 + $0x1a0] sm:$0xff]
          %v8858 = vld [vmem:[%s3 + $0x1a8] sm:$0xff]
          %v8859 = vld [vmem:[%s3 + $0x1b0] sm:$0xff]
          %v8860 = vld [vmem:[%s3 + $0x1b8] sm:$0xff]
          %v8861 = vld [vmem:[%s3 + $0x1c0] sm:$0xff]
          %v8862 = vld [vmem:[%s3 + $0x1c8] sm:$0xff]
          %v8863 = vld [vmem:[%s3 + $0x1d0] sm:$0xff]
          %v8864 = vld [vmem:[%s3 + $0x1d8] sm:$0xff]
          %v8865 = vld [vmem:[%s3 + $0x1e0] sm:$0xff]
          %v8866 = vld [vmem:[%s3 + $0x1e8] sm:$0xff]
          %v8867 = vld [vmem:[%s3 + $0x1f0] sm:$0xff]
          %v8868 = vld [vmem:[%s3 + $0x1f8] sm:$0xff]
          %v8869 = vld [vmem:[#allocation9] sm:$0x1]
          %v8871 = vlaneseq
          %v8872 = vshrl.u32 %v8871, 7
          %v8873 = vsub.s32 0, %v8872
          %v8874 = vrot.slane %v8869, %v8873
          %v8877 = vcombine.high %v8804, %v8804
          %v8879 = vunpack.c.l.s4 1983009808
          %v8880 = vunpack.c.0.s8 %v8879
          %v8881 = vlaneseq
          %v8882 = vshrl.u32 %v8881, 7
          %v8883 = vsub.s32 %v8880, %v8882
          %v8884 = vrot.slane %v8804, %v8883
          %v8886 = vunpack.c.l.s4 1983009808
          %v8887 = vunpack.c.0.s8 %v8886
          %v8888 = vlaneseq
          %v8889 = vshrl.u32 %v8888, 7
          %v8890 = vsub.s32 %v8887, %v8889
          %v8891 = vrot.slane %v8877, %v8890
          %v8892 = vcombine.high %v8884, %v8884
          %v8893 = vcombine.high %v8891, %v8891
          %8898 = vmatprep.subr.mxu0 0.0
          %8899 = vmatpush1.msra.mxu0 %v8805
          %8900 = vmatprep.subr.mxu0 0.0
          %8901 = vmatpush1.msra.mxu0 %v8806
          %8902 = vmatprep.subr.mxu0 0.0
          %8903 = vmatpush1.msra.mxu0 %v8807
          %8904 = vmatprep.subr.mxu0 0.0
          %8905 = vmatpush1.msra.mxu0 %v8808
          %8906 = vmatprep.subr.mxu0 0.0
          %8907 = vmatpush1.msra.mxu0 %v8809
          %8908 = vmatprep.subr.mxu0 0.0
          %8909 = vmatpush1.msra.mxu0 %v8810
          %8910 = vmatprep.subr.mxu0 0.0
          %8911 = vmatpush1.msra.mxu0 %v8811
          %8912 = vmatprep.subr.mxu0 0.0
          %8913 = vmatpush1.msra.mxu0 %v8812
          %8914 = vmatprep.subr.mxu0 0.0
          %8915 = vmatpush1.msra.mxu0 %v8813
          %8916 = vmatprep.subr.mxu0 0.0
          %8917 = vmatpush1.msra.mxu0 %v8814
          %8918 = vmatprep.subr.mxu0 0.0
          %8919 = vmatpush1.msra.mxu0 %v8815
          %8920 = vmatprep.subr.mxu0 0.0
          %8921 = vmatpush1.msra.mxu0 %v8816
          %8922 = vmatprep.subr.mxu0 0.0
          %8923 = vmatpush1.msra.mxu0 %v8817
          %8924 = vmatprep.subr.mxu0 0.0
          %8925 = vmatpush1.msra.mxu0 %v8818
          %8926 = vmatprep.subr.mxu0 0.0
          %8927 = vmatpush1.msra.mxu0 %v8819
          %8928 = vmatprep.subr.mxu0 0.0
          %8929 = vmatpush1.msra.mxu0 %v8820
          %8930 = vmatprep.subr.mxu0 0.0
          %8931 = vmatpush1.msra.mxu0 %v8821
          %8932 = vmatprep.subr.mxu0 0.0
          %8933 = vmatpush1.msra.mxu0 %v8822
          %8934 = vmatprep.subr.mxu0 0.0
          %8935 = vmatpush1.msra.mxu0 %v8823
          %8936 = vmatprep.subr.mxu0 0.0
          %8937 = vmatpush1.msra.mxu0 %v8824
          %8938 = vmatprep.subr.mxu0 0.0
          %8939 = vmatpush1.msra.mxu0 %v8825
          %8940 = vmatprep.subr.mxu0 0.0
          %8941 = vmatpush1.msra.mxu0 %v8826
          %8942 = vmatprep.subr.mxu0 0.0
          %8943 = vmatpush1.msra.mxu0 %v8827
          %8944 = vmatprep.subr.mxu0 0.0
          %8945 = vmatpush1.msra.mxu0 %v8828
          %8946 = vmatprep.subr.mxu0 0.0
          %8947 = vmatpush1.msra.mxu0 %v8829
          %8948 = vmatprep.subr.mxu0 0.0
          %8949 = vmatpush1.msra.mxu0 %v8830
          %8950 = vmatprep.subr.mxu0 0.0
          %8951 = vmatpush1.msra.mxu0 %v8831
          %8952 = vmatprep.subr.mxu0 0.0
          %8953 = vmatpush1.msra.mxu0 %v8832
          %8954 = vmatprep.subr.mxu0 0.0
          %8955 = vmatpush1.msra.mxu0 %v8833
          %8956 = vmatprep.subr.mxu0 0.0
          %8957 = vmatpush1.msra.mxu0 %v8834
          %8958 = vmatprep.subr.mxu0 0.0
          %8959 = vmatpush1.msra.mxu0 %v8835
          %8960 = vmatprep.subr.mxu0 0.0
          %8961 = vmatpush1.msra.mxu0 %v8836
          %8962 = vmatprep.mubr.f32.mxu0 %v8892
          %8963 = vmatmul.mubr.f32.gmra.mrb[0].mxu0 %v8884
          %v8964 = vpop.f32.mrb[0].mxu0
          %v8965 = vadd.f32 %v8874, %v8964
          %v8966 = vpop.f32.mrb[0].mxu0
          %8967 = vdwg.mxu0
          %8968 = vmatprep.subr.mxu0 0.0
          %8969 = vmatpush1.msra.mxu0 %v8837
          %8970 = vmatprep.subr.mxu0 0.0
          %8971 = vmatpush1.msra.mxu0 %v8838
          %8972 = vmatprep.subr.mxu0 0.0
          %8973 = vmatpush1.msra.mxu0 %v8839
          %8974 = vmatprep.subr.mxu0 0.0
          %8975 = vmatpush1.msra.mxu0 %v8840
          %8976 = vmatprep.subr.mxu0 0.0
          %8977 = vmatpush1.msra.mxu0 %v8841
          %8978 = vmatprep.subr.mxu0 0.0
          %8979 = vmatpush1.msra.mxu0 %v8842
          %8980 = vmatprep.subr.mxu0 0.0
          %8981 = vmatpush1.msra.mxu0 %v8843
          %8982 = vmatprep.subr.mxu0 0.0
          %8983 = vmatpush1.msra.mxu0 %v8844
          %8984 = vmatprep.subr.mxu0 0.0
          %8985 = vmatpush1.msra.mxu0 %v8845
          %8986 = vmatprep.subr.mxu0 0.0
          %8987 = vmatpush1.msra.mxu0 %v8846
          %8988 = vmatprep.subr.mxu0 0.0
          %8989 = vmatpush1.msra.mxu0 %v8847
          %8990 = vmatprep.subr.mxu0 0.0
          %8991 = vmatpush1.msra.mxu0 %v8848
          %8992 = vmatprep.subr.mxu0 0.0
          %8993 = vmatpush1.msra.mxu0 %v8849
          %8994 = vmatprep.subr.mxu0 0.0
          %8995 = vmatpush1.msra.mxu0 %v8850
          %8996 = vmatprep.subr.mxu0 0.0
          %8997 = vmatpush1.msra.mxu0 %v8851
          %8998 = vmatprep.subr.mxu0 0.0
          %8999 = vmatpush1.msra.mxu0 %v8852
          %9000 = vmatprep.subr.mxu0 0.0
          %9001 = vmatpush1.msra.mxu0 %v8853
          %9002 = vmatprep.subr.mxu0 0.0
          %9003 = vmatpush1.msra.mxu0 %v8854
          %9004 = vmatprep.subr.mxu0 0.0
          %9005 = vmatpush1.msra.mxu0 %v8855
          %9006 = vmatprep.subr.mxu0 0.0
          %9007 = vmatpush1.msra.mxu0 %v8856
          %9008 = vmatprep.subr.mxu0 0.0
          %9009 = vmatpush1.msra.mxu0 %v8857
          %9010 = vmatprep.subr.mxu0 0.0
          %9011 = vmatpush1.msra.mxu0 %v8858
          %9012 = vmatprep.subr.mxu0 0.0
          %9013 = vmatpush1.msra.mxu0 %v8859
          %9014 = vmatprep.subr.mxu0 0.0
          %9015 = vmatpush1.msra.mxu0 %v8860
          %9016 = vmatprep.subr.mxu0 0.0
          %9017 = vmatpush1.msra.mxu0 %v8861
          %9018 = vmatprep.subr.mxu0 0.0
          %9019 = vmatpush1.msra.mxu0 %v8862
          %9020 = vmatprep.subr.mxu0 0.0
          %9021 = vmatpush1.msra.mxu0 %v8863
          %9022 = vmatprep.subr.mxu0 0.0
          %9023 = vmatpush1.msra.mxu0 %v8864
          %9024 = vmatprep.subr.mxu0 0.0
          %9025 = vmatpush1.msra.mxu0 %v8865
          %9026 = vmatprep.subr.mxu0 0.0
          %9027 = vmatpush1.msra.mxu0 %v8866
          %9028 = vmatprep.subr.mxu0 0.0
          %9029 = vmatpush1.msra.mxu0 %v8867
          %9030 = vmatprep.subr.mxu0 0.0
          %9031 = vmatpush1.msra.mxu0 %v8868
          %9032 = vmatprep.mubr.f32.mxu0 %v8893
          %9033 = vmatmul.mubr.f32.gmra.mrb[0].mxu0 %v8891
          %v9034 = vpop.f32.mrb[0].mxu0
          %v9035 = vadd.f32 %v8965, %v9034
          %v9036 = vpop.f32.mrb[0].mxu0
          %9037 = vdwg.mxu0
          %vm9038 = vcmask 123904
          %9039 = vst.msk [vmem:[#allocation11] sm:$0x3] %vm9038, %v9035
        $region64: #{tpu_custom_call.1} parent=39 // pred_fallthru
          _
        // Predicated region
        $region65: #{tpu_custom_call.1} parent=39 // pred_check
          %p9040 = pneg %p176
        $region66: #{tpu_custom_call.1} parent=39 // pred_check_branch
          %9042 = sbr.rel (%p9040) target = $region68
        $region67: #{tpu_custom_call.1} parent=39 // pred_region
          %s9044 = ssub.s32 32, 32
          %9045 = vsyncadd [#allocation5], %s9044
          %s9047 = sshll.u32 [#allocation11], 4
          %s9048 = int_to_ptr.vmem [resolvable:$true] %s9047
          %9050 = dma.vmem_to_hbm [thread:$0]  %s9048, 32, %s5, [#allocation5]
        $region68: #{tpu_custom_call.1} parent=39 // pred_fallthru
          _
        // Predicated region
        $region69: #{tpu_custom_call.1} parent=39 // pred_check
          %p9051 = pneg %p176
        $region70: #{tpu_custom_call.1} parent=39 // pred_check_branch
          %9053 = sbr.rel (%p9051) target = $region72
        $region71: #{tpu_custom_call.1} parent=39 // pred_region
          %9054 = dma.done [#allocation5], 32
        $region72: #{tpu_custom_call.1} parent=39 // pred_fallthru
          _
      $region40: #{tpu_custom_call.1} parent=5 // pred_fallthru
        _
      %p9055 = scmp.le.s32.totalorder 2, %s19
      // Predicated region
      $region73: #{tpu_custom_call.1} parent=5 // pred_check
        %p9056 = pneg %p9055
      $region74: #{tpu_custom_call.1} parent=5 // pred_check_branch
        %9058 = sbr.rel (%p9056) target = $region76
      $region75: #{tpu_custom_call.1} parent=5 // pred_region
        %s9059 = ssub.s32 %s19, 2
      $region76: #{tpu_custom_call.1} parent=5 // pred_fallthru
        _
    $region6: #{tpu_custom_call.1} parent=1 // loop_footer
      %s23 = sadd.s32 1, %s19
    $region7: #{tpu_custom_call.1} parent=1 // loop_footer_branch
      %18 = sbr.rel target = $region3
    $region8: #{tpu_custom_call.1} parent=1 // loop_exit
      _
    %9060 = vsyncpa [#allocation4], 1
    %s9061 = scalar_lea.sflag [#allocation4], 1
    %9062 = vsyncpa %s9061, 1
    %9063 = vsyncpa [#allocation7], 1
    %s9064 = scalar_lea.sflag [#allocation7], 1
    %9065 = vsyncpa %s9064, 1
    %9066 = vsyncpa [#allocation10], 1
    %9067 = vsyncpa [#allocation5], 1
    %s9068 = scalar_lea.sflag [#allocation5], 1
    %9069 = vsyncpa %s9068, 1

</llo_original>
